<compile_context>
chip_gen: v5e
topology: v5e:2x2
jax: 0.10.0
libtpu: 0.0.40
codegen_flags: <defaults>
</compile_context>

<pallas_src>
import functools
import numpy as np

import jax
import jax.numpy as jnp
from jax import lax
from jax.experimental import pallas as pl
from jax.experimental.pallas import tpu as pltpu


# ------------------------------ tiling helper --------------------------------

def _pick_tile(m, bytes_per_row, vmem_budget=8 << 20, max_rows=1024):
    """Row tile: multiple-of-16 divisor of m, capped by a double-buffered VMEM
    budget and by max_rows, and leaving >= 2 grid steps when possible so both
    v7x TensorCores get work."""
    if m % 16 != 0:
        return m                      # single full block; these slabs are tiny
    cap = min(m // 2 if m >= 32 else m, max_rows,
              vmem_budget // max(1, 2 * bytes_per_row))
    cap = max(16, cap - cap % 16)
    for t in range(cap, 15, -16):
        if m % t == 0:
            return t
    return m


# --------------------------- in-kernel math helpers ----------------------------

def _ln_relu_f32(x, g, b, eps):
    """relu(LayerNorm_C(x)) in f32 (VPU/EUP/XLU work, cheap next to the matmuls)."""
    mean = jnp.mean(x, axis=-1, keepdims=True)
    xc = x - mean
    var = jnp.mean(xc * xc, axis=-1, keepdims=True)
    return jnp.maximum(xc * lax.rsqrt(var + eps) * g + b, 0.0)


def _front_tail(out_f32, g, b, w1, b1, skip_ref, h1_ref, eps):
    """skip = relu(LN(out)); h1 = relu(skip @ w1 + b1).  h1 is emitted in bf16
    (it feeds the next im2col), skip in f32 (residual add precision)."""
    skip = _ln_relu_f32(out_f32, g, b, eps)
    skip_ref[...] = skip
    h1 = jnp.dot(skip.astype(jnp.bfloat16), w1,
                 preferred_element_type=jnp.float32) + b1
    # fold rb2's preceding ReLU here so it is NOT applied to the expanded patches
    h1_ref[...] = jnp.maximum(h1, 0.0).astype(jnp.bfloat16)


def _back_core(p, skip, w2, b2, w3, b3, wa, ba, wb, bb):
    """7x7 rb2 (sparse-tap patches) -> ReLU -> 1x1 rb3 -> +skip residual -> ReLU
    -> 1x1 ca -> ReLU -> 1x1 cb.  All intermediates stay in registers."""
    h2 = jnp.dot(p, w2, preferred_element_type=jnp.float32) + b2
    h2 = jnp.maximum(h2, 0.0).astype(jnp.bfloat16)
    h3 = jnp.dot(h2, w3, preferred_element_type=jnp.float32) + b3
    y = jnp.maximum(h3 + skip, 0.0).astype(jnp.bfloat16)       # ReLU before ca
    z = jnp.dot(y, wa, preferred_element_type=jnp.float32) + ba
    z = jnp.maximum(z, 0.0).astype(jnp.bfloat16)                # ReLU before cb
    return jnp.dot(z, wb, preferred_element_type=jnp.float32) + bb


# ------------------------------ Pallas kernels --------------------------------

def _stem_front_kernel(p_ref, w0_ref, b0_ref, g_ref, bg_ref, w1_ref, b1_ref,
                       skip_ref, h1_ref, *, eps):
    """Stem 7x7 type-A conv fused with layer-0's LN + ReLU + 1x1 rb1 + ReLU."""
    out = jnp.dot(p_ref[...], w0_ref[...],
                  preferred_element_type=jnp.float32) + b0_ref[...]
    _front_tail(out, g_ref[...], bg_ref[...], w1_ref[...], b1_ref[...],
                skip_ref, h1_ref, eps)


def _back_front_kernel(p_ref, s_ref, w2_ref, b2_ref, w3_ref, b3_ref,
                       wa_ref, ba_ref, wb_ref, bb_ref,
                       gn_ref, bn_ref, w1n_ref, b1n_ref,
                       skip_ref, h1_ref, *, eps):
    """Layer back-half fused with the NEXT layer's front-half."""
    out = _back_core(p_ref[...], s_ref[...], w2_ref[...], b2_ref[...],
                     w3_ref[...], b3_ref[...], wa_ref[...], ba_ref[...],
                     wb_ref[...], bb_ref[...])
    _front_tail(out, gn_ref[...], bn_ref[...], w1n_ref[...], b1n_ref[...],
                skip_ref, h1_ref, eps)


def _back_last_kernel(p_ref, s_ref, w2_ref, b2_ref, w3_ref, b3_ref,
                      wa_ref, ba_ref, wb_ref, bb_ref, o_ref):
    """Final layer back-half; emits the (M, OC) f32 output slab."""
    o_ref[...] = _back_core(p_ref[...], s_ref[...], w2_ref[...], b2_ref[...],
                            w3_ref[...], b3_ref[...], wa_ref[...], ba_ref[...],
                            wb_ref[...], bb_ref[...])


# ------------------------------ Pallas wrappers --------------------------------

def _row_grid_call(kernel, M, tm, row_args, full_args, outs):
    """Shared 1-D row-tiled pallas_call builder.
    row_args: (M, C_i) slabs tiled along rows; full_args: weights/biases passed
    whole to every grid step; outs: list of (width, dtype) row-tiled outputs."""
    in_specs = [pl.BlockSpec((tm, a.shape[1]), lambda i: (i, 0)) for a in row_args]
    in_specs += [pl.BlockSpec(a.shape, lambda i: (0, 0)) for a in full_args]
    out_shapes = tuple(jax.ShapeDtypeStruct((M, w), dt) for w, dt in outs)
    out_specs = tuple(pl.BlockSpec((tm, w), lambda i: (i, 0)) for w, _ in outs)
    single = len(outs) == 1
    return pl.pallas_call(
        kernel,
        out_shape=out_shapes[0] if single else out_shapes,
        grid_spec=pltpu.PrefetchScalarGridSpec(
            num_scalar_prefetch=0,
            grid=(pl.cdiv(M, tm),),
            in_specs=in_specs,
            out_specs=out_specs[0] if single else out_specs,
        ),
        compiler_params=pltpu.CompilerParams(
            dimension_semantics=("parallel",)),
    )(*row_args, *full_args)


def stem_front(p0, c0, lp1, eps=1e-5):
    M, K0 = p0.shape
    F = c0["w"].shape[1]
    F2 = lp1["rb1"]["w"].shape[1]
    tm = _pick_tile(M, K0 * 2 + F * 4 + F2 * 2)
    return _row_grid_call(
        functools.partial(_stem_front_kernel, eps=eps), M, tm,
        row_args=[p0],
        full_args=[c0["w"], c0["b"], lp1["ln_g"], lp1["ln_b"],
                   lp1["rb1"]["w"], lp1["rb1"]["b"]],
        outs=[(F, jnp.float32), (F2, jnp.bfloat16)])


def layer_back_front(patches, skip, lp, lp_next, eps=1e-5):
    M, K2 = patches.shape
    F = skip.shape[1]
    Fn = lp["cb"]["w"].shape[1]
    F2n = lp_next["rb1"]["w"].shape[1]
    tm = _pick_tile(M, K2 * 2 + F * 4 + Fn * 4 + F2n * 2)
    return _row_grid_call(
        functools.partial(_back_front_kernel, eps=eps), M, tm,
        row_args=[patches, skip],
        full_args=[lp["rb2"]["w"], lp["rb2"]["b"],
                   lp["rb3"]["w"], lp["rb3"]["b"],
                   lp["ca"]["w"], lp["ca"]["b"],
                   lp["cb"]["w"], lp["cb"]["b"],
                   lp_next["ln_g"], lp_next["ln_b"],
                   lp_next["rb1"]["w"], lp_next["rb1"]["b"]],
        outs=[(Fn, jnp.float32), (F2n, jnp.bfloat16)])


def layer_back_last(patches, skip, lp):
    M, K2 = patches.shape
    F = skip.shape[1]
    OC = lp["cb"]["w"].shape[1]
    tm = _pick_tile(M, K2 * 2 + F * 4 + OC * 4)
    return _row_grid_call(
        _back_last_kernel, M, tm,
        row_args=[patches, skip],
        full_args=[lp["rb2"]["w"], lp["rb2"]["b"],
                   lp["rb3"]["w"], lp["rb3"]["b"],
                   lp["ca"]["w"], lp["ca"]["b"],
                   lp["cb"]["w"], lp["cb"]["b"]],
        outs=[(OC, jnp.float32)])


# -------------------- masked conv = sparse-tap im2col + matmul -----------------

def _nonzero_taps(mask_type, k):
    """PixelCNN mask: rows above center, left half of center row (+ center if B)."""
    taps = []
    for dh in range(k):
        for dw in range(k):
            if dh < k // 2 or (dh == k // 2 and
                               (dw < k // 2 or (mask_type and dw == k // 2))):
                taps.append((dh, dw))
    return taps


def _im2col_taps(x_nhwc, taps, k):
    """Gather only the nonzero-mask taps (~half of k*k) into a (M, T*C) slab."""
    B, H, W, C = x_nhwc.shape
    if k == 1:
        return x_nhwc.reshape(B * H * W, C)
    pad = k // 2
    xp = jnp.pad(x_nhwc, ((0, 0), (pad, pad), (pad, pad), (0, 0)))
    cols = [xp[:, dh:dh + H, dw:dw + W, :] for dh, dw in taps]
    return jnp.concatenate(cols, axis=-1).reshape(B * H * W, len(taps) * C)


# ------------------------------ parameters --------------------------------------

def _make_mask(mask_type, cout, cin, k):
    m = np.zeros((cout, cin, k, k), dtype=np.float32)
    m[:, :, :k // 2] = 1.0
    m[:, :, k // 2, :k // 2] = 1.0
    if mask_type:                       # type B keeps the center tap
        m[:, :, k // 2, k // 2] = 1.0
    return jnp.asarray(m)


def _init_conv(key, mask_type, cin, cout, k):
    kw, kb = jax.random.split(key)
    bound = 1.0 / np.sqrt(cin * k * k)
    w = jax.random.uniform(kw, (cout, cin, k, k), jnp.float32, -bound, bound)
    b = jax.random.uniform(kb, (cout,), jnp.float32, -bound, bound)
    return (w, _make_mask(mask_type, cout, cin, k), b)


def init_params(key, in_shape, filters=24, kernel_size=7, n_layers=2,
                n_components=2):
    n_channels = in_shape[0]
    out_ch = 3 * n_components * n_channels
    keys = jax.random.split(key, 1 + 5 * n_layers)
    params = {
        "n_channels": n_channels,
        "n_components": n_components,
        "conv0": _init_conv(keys[0], False, n_channels, filters, kernel_size),
        "layers": [],
    }
    for i in range(n_layers):
        k0, k1, k2, k3, k4 = keys[1 + 5 * i: 6 + 5 * i]
        params["layers"].append({
            "ln_g": jnp.ones((filters,), jnp.float32),
            "ln_b": jnp.zeros((filters,), jnp.float32),
            "rb1": _init_conv(k0, True, filters, filters // 2, 1),
            "rb2": _init_conv(k1, True, filters // 2, filters // 2, 7),
            "rb3": _init_conv(k2, True, filters // 2, filters, 1),
            "ca": _init_conv(k3, True, filters, filters, 1),
            "cb": _init_conv(k4, True, filters, out_ch, 1),
        })
    return params


def _fold_conv(conv_params, mask_type):
    """Fold the PixelCNN mask in ONCE: keep only nonzero taps, reorder to a
    (T*Cin, Cout) bf16 matrix matching the im2col tap order."""
    w, _mask, b = conv_params
    cout, cin, k, _ = w.shape
    taps = _nonzero_taps(mask_type, k)
    w_sel = jnp.stack([w[:, :, dh, dw] for dh, dw in taps], axis=0)   # (T,Cout,Cin)
    w_mat = jnp.transpose(w_sel, (0, 2, 1)).reshape(len(taps) * cin, cout)
    return {"w": w_mat.astype(jnp.bfloat16),
            "b": b.reshape(1, cout).astype(jnp.float32),
            "taps": taps, "k": k}


def fold_params(params):
    """One-time weight prep (outside the per-call path)."""
    fp = {"n_channels": params["n_channels"],
          "n_components": params["n_components"],
          "conv0": _fold_conv(params["conv0"], False),
          "layers": []}
    for lp in params["layers"]:
        F = lp["ln_g"].shape[0]
        fp["layers"].append({
            "ln_g": lp["ln_g"].reshape(1, F).astype(jnp.float32),
            "ln_b": lp["ln_b"].reshape(1, F).astype(jnp.float32),
            "rb1": _fold_conv(lp["rb1"], True),
            "rb2": _fold_conv(lp["rb2"], True),
            "rb3": _fold_conv(lp["rb3"], True),
            "ca": _fold_conv(lp["ca"], True),
            "cb": _fold_conv(lp["cb"], True),
        })
    return fp


# --------------------------------- forward ---------------------------------------

def autoregressive_flow_forward(fparams, x_nchw):
    x = jnp.transpose(x_nchw.astype(jnp.float32), (0, 2, 3, 1))   # NCHW -> NHWC
    B, H, W, _ = x.shape
    layers = fparams["layers"]
    assert len(layers) >= 1, "AutoregressiveFlow requires n_layers >= 1"

    # TODO(synk): reference LayerNorm.forward is missing its return statement
    # (returns None); the intended channel LayerNorm is implemented here.
    # TODO(synk): ResidualBlock.forward's for/else re-applies the final conv
    # (shape-inconsistent); each layer is applied exactly once here.

    # stem: 7x7 type-A masked conv over its 24 nonzero taps, fused with the
    # first layer's LN + ReLU + 1x1 rb1 + ReLU.
    c0 = fparams["conv0"]
    p0 = _im2col_taps(x.astype(jnp.bfloat16), c0["taps"], c0["k"])
    skip, h1 = stem_front(p0, c0, layers[0])          # (M,F) f32, (M,F//2) bf16

    out = None
    for i, lp in enumerate(layers):
        F2 = lp["rb1"]["w"].shape[1]
        # sparse-tap im2col on bf16 activations (ReLU already folded upstream)
        patches = _im2col_taps(h1.reshape(B, H, W, F2),
                               lp["rb2"]["taps"], lp["rb2"]["k"])
        if i + 1 < len(layers):
            # back-half of layer i fused with front-half of layer i+1
            skip, h1 = layer_back_front(patches, skip, lp, layers[i + 1])
        else:
            out = layer_back_last(patches, skip, lp)

    OC = out.shape[-1]
    out = jnp.transpose(out.reshape(B, H, W, OC), (0, 3, 1, 2))   # NHWC -> NCHW
    return out.reshape(B, 3 * fparams["n_components"],
                       fparams["n_channels"], H, W)


# ----------------------------- pure-JAX reference --------------------------------

def _ref_conv(x, conv_params, relu_x=False):
    w, mask, b = conv_params
    if relu_x:
        x = jnp.maximum(x, 0.0)
    w_hwio = jnp.transpose(w * mask, (2, 3, 1, 0))
    k = w.shape[-1]
    pad = k // 2
    y = lax.conv_general_dilated(
        x, w_hwio, (1, 1), [(pad, pad), (pad, pad)],
        dimension_numbers=("NHWC", "HWIO", "NHWC"))
    return y + b


def _ref_ln(x, g, b, eps=1e-5):
    mean = jnp.mean(x, axis=-1, keepdims=True)
    var = jnp.mean((x - mean) ** 2, axis=-1, keepdims=True)
    return (x - mean) * lax.rsqrt(var + eps) * g + b


def reference_forward(params, x_nchw):
    x = jnp.transpose(x_nchw.astype(jnp.float32), (0, 2, 3, 1))
    out = _ref_conv(x, params["conv0"])
    for lp in params["layers"]:
        out = _ref_ln(out, lp["ln_g"], lp["ln_b"])
        skip = jnp.maximum(out, 0.0)
        h = _ref_conv(skip, lp["rb1"], relu_x=True)
        h = _ref_conv(h, lp["rb2"], relu_x=True)
        out = _ref_conv(h, lp["rb3"], relu_x=True) + skip
        out = _ref_conv(out, lp["ca"], relu_x=True)
        out = _ref_conv(out, lp["cb"], relu_x=True)
    B, H, W, _ = out.shape
    out = jnp.transpose(out, (0, 3, 1, 2))
    return out.reshape(B, 3 * params["n_components"],
                       params["n_channels"], H, W)


# ------------------------------------ main ----------------------------------------

if __name__ == "__main__":
    B = 2
    in_shape = (4, 16, 16)            # (C, H, W)
    n_components = 2
    # TODO(synk): with the reference defaults (filters=64, n_layers=5) the stack is
    # shape-inconsistent after layer 0; filters = 3*n_components*C keeps the
    # n_layers loop composable exactly as written.
    filters = 3 * n_components * in_shape[0]   # 24

    key = jax.random.PRNGKey(0)
    kx, kp = jax.random.split(key)
    x = jax.random.normal(kx, (B,) + in_shape, dtype=jnp.float32)
    params = init_params(kp, in_shape, filters=filters, kernel_size=7,
                         n_layers=2, n_components=n_components)
    fparams = fold_params(params)      # mask fold / weight reshape done ONCE

    fwd = jax.jit(lambda xx: autoregressive_flow_forward(fparams, xx))
    out = jax.block_until_ready(fwd(x))
    assert out.shape == (B, 3 * n_components) + in_shape, out.shape

    ref = jax.block_until_ready(reference_forward(params, x))
    np.testing.assert_allclose(np.asarray(out), np.asarray(ref),
                               rtol=3e-2, atol=3e-2)
    print("KERNEL_OK")
</pallas_src>

<mosaic_0001>
module attributes {stable_mosaic.version = 11 : i64} {
  func.func @_stem_front_kernel(%arg0: i32, %arg1: memref<256x96xbf16, #tpu.memory_space<vmem>>, %arg2: memref<96x24xbf16, #tpu.memory_space<vmem>>, %arg3: memref<1x24xf32, #tpu.memory_space<vmem>>, %arg4: memref<1x24xf32, #tpu.memory_space<vmem>>, %arg5: memref<1x24xf32, #tpu.memory_space<vmem>>, %arg6: memref<24x12xbf16, #tpu.memory_space<vmem>>, %arg7: memref<1x12xf32, #tpu.memory_space<vmem>>, %arg8: memref<256x24xf32, #tpu.memory_space<vmem>>, %arg9: memref<256x12xbf16, #tpu.memory_space<vmem>>) attributes {dimension_semantics = [#tpu.dimension_semantics<parallel>], iteration_bounds = array<i64: 2>, scalar_prefetch = 0 : i64, scratch_operands = 0 : i64, tpu.core_type = #tpu.core_type<tc>, window_params = [{transform_indices = @transform_0, window_bounds = array<i64: 256, 96>}, {pipeline_mode = #tpu.pipeline_mode<synchronous>, transform_indices = @transform_1, window_bounds = array<i64: 96, 24>}, {pipeline_mode = #tpu.pipeline_mode<synchronous>, transform_indices = @transform_2, window_bounds = array<i64: 1, 24>}, {pipeline_mode = #tpu.pipeline_mode<synchronous>, transform_indices = @transform_3, window_bounds = array<i64: 1, 24>}, {pipeline_mode = #tpu.pipeline_mode<synchronous>, transform_indices = @transform_4, window_bounds = array<i64: 1, 24>}, {pipeline_mode = #tpu.pipeline_mode<synchronous>, transform_indices = @transform_5, window_bounds = array<i64: 24, 12>}, {pipeline_mode = #tpu.pipeline_mode<synchronous>, transform_indices = @transform_6, window_bounds = array<i64: 1, 12>}, {transform_indices = @transform_7, window_bounds = array<i64: 256, 24>}, {transform_indices = @transform_8, window_bounds = array<i64: 256, 12>}]} {
    %c0 = arith.constant 0 : index
    %c0_0 = arith.constant 0 : index
    %0 = vector.load %arg1[%c0, %c0_0] : memref<256x96xbf16, #tpu.memory_space<vmem>>, vector<256x96xbf16>
    %c0_1 = arith.constant 0 : index
    %c0_2 = arith.constant 0 : index
    %1 = vector.load %arg2[%c0_1, %c0_2] : memref<96x24xbf16, #tpu.memory_space<vmem>>, vector<96x24xbf16>
    %cst = arith.constant dense<0.000000e+00> : vector<256x24xf32>
    %2 = tpu.matmul %0, %1, %cst {dimension_numbers = #tpu.dot_dimension_numbers<[1], [0], [0], [1], [0, 0, 1, 1], [], []>} : vector<256x96xbf16>, vector<96x24xbf16>, vector<256x24xf32> -> vector<256x24xf32>
    %c0_3 = arith.constant 0 : index
    %c0_4 = arith.constant 0 : index
    %3 = vector.load %arg3[%c0_3, %c0_4] : memref<1x24xf32, #tpu.memory_space<vmem>>, vector<1x24xf32>
    %4 = vector.broadcast %3 : vector<1x24xf32> to vector<256x24xf32>
    %5 = arith.addf %2, %4 : vector<256x24xf32>
    %c0_5 = arith.constant 0 : index
    %c0_6 = arith.constant 0 : index
    %6 = vector.load %arg4[%c0_5, %c0_6] : memref<1x24xf32, #tpu.memory_space<vmem>>, vector<1x24xf32>
    %c0_7 = arith.constant 0 : index
    %c0_8 = arith.constant 0 : index
    %7 = vector.load %arg5[%c0_7, %c0_8] : memref<1x24xf32, #tpu.memory_space<vmem>>, vector<1x24xf32>
    %c0_9 = arith.constant 0 : index
    %c0_10 = arith.constant 0 : index
    %8 = vector.load %arg6[%c0_9, %c0_10] : memref<24x12xbf16, #tpu.memory_space<vmem>>, vector<24x12xbf16>
    %c0_11 = arith.constant 0 : index
    %c0_12 = arith.constant 0 : index
    %9 = vector.load %arg7[%c0_11, %c0_12] : memref<1x12xf32, #tpu.memory_space<vmem>>, vector<1x12xf32>
    %cst_13 = arith.constant dense<0.000000e+00> : vector<256xf32>
    %10 = vector.multi_reduction <add>, %5, %cst_13 [1] : vector<256x24xf32> to vector<256xf32>
    %11 = vector.shape_cast %10 : vector<256xf32> to vector<256x1xf32>
    %cst_14 = arith.constant 2.400000e+01 : f32
    %12 = vector.broadcast %cst_14 : f32 to vector<256x1xf32>
    %13 = arith.divf %11, %12 : vector<256x1xf32>
    %14 = vector.broadcast %13 : vector<256x1xf32> to vector<256x24xf32>
    %15 = arith.subf %5, %14 : vector<256x24xf32>
    %16 = arith.mulf %15, %15 : vector<256x24xf32>
    %cst_15 = arith.constant dense<0.000000e+00> : vector<256xf32>
    %17 = vector.multi_reduction <add>, %16, %cst_15 [1] : vector<256x24xf32> to vector<256xf32>
    %18 = vector.shape_cast %17 : vector<256xf32> to vector<256x1xf32>
    %cst_16 = arith.constant 2.400000e+01 : f32
    %19 = vector.broadcast %cst_16 : f32 to vector<256x1xf32>
    %20 = arith.divf %18, %19 : vector<256x1xf32>
    %cst_17 = arith.constant 9.99999974E-6 : f32
    %21 = vector.broadcast %cst_17 : f32 to vector<256x1xf32>
    %22 = arith.addf %20, %21 : vector<256x1xf32>
    %23 = math.rsqrt %22 : vector<256x1xf32>
    %24 = vector.broadcast %23 : vector<256x1xf32> to vector<256x24xf32>
    %25 = arith.mulf %15, %24 : vector<256x24xf32>
    %26 = vector.broadcast %6 : vector<1x24xf32> to vector<256x24xf32>
    %27 = arith.mulf %25, %26 : vector<256x24xf32>
    %28 = vector.broadcast %7 : vector<1x24xf32> to vector<256x24xf32>
    %29 = arith.addf %27, %28 : vector<256x24xf32>
    %cst_18 = arith.constant 0.000000e+00 : f32
    %30 = vector.broadcast %cst_18 : f32 to vector<256x24xf32>
    %31 = arith.maximumf %29, %30 : vector<256x24xf32>
    %c0_19 = arith.constant 0 : index
    %c0_20 = arith.constant 0 : index
    %32 = vector.load %arg8[%c0_19, %c0_20] : memref<256x24xf32, #tpu.memory_space<vmem>>, vector<256x24xf32>
    tpu.vector_store %arg8[%c0_19, %c0_20], %31 {strides = array<i32>} : memref<256x24xf32, #tpu.memory_space<vmem>>, vector<256x24xf32>,
    %33 = arith.truncf %31 : vector<256x24xf32> to vector<256x24xbf16>
    %cst_21 = arith.constant dense<0.000000e+00> : vector<256x12xf32>
    %34 = tpu.matmul %33, %8, %cst_21 {dimension_numbers = #tpu.dot_dimension_numbers<[1], [0], [0], [1], [0, 0, 1, 1], [], []>} : vector<256x24xbf16>, vector<24x12xbf16>, vector<256x12xf32> -> vector<256x12xf32>
    %35 = vector.broadcast %9 : vector<1x12xf32> to vector<256x12xf32>
    %36 = arith.addf %34, %35 : vector<256x12xf32>
    %cst_22 = arith.constant 0.000000e+00 : f32
    %37 = vector.broadcast %cst_22 : f32 to vector<256x12xf32>
    %38 = arith.maximumf %36, %37 : vector<256x12xf32>
    %39 = arith.truncf %38 : vector<256x12xf32> to vector<256x12xbf16>
    %c0_23 = arith.constant 0 : index
    %c0_24 = arith.constant 0 : index
    %40 = vector.load %arg9[%c0_23, %c0_24] : memref<256x12xbf16, #tpu.memory_space<vmem>>, vector<256x12xbf16>
    tpu.vector_store %arg9[%c0_23, %c0_24], %39 {strides = array<i32>} : memref<256x12xbf16, #tpu.memory_space<vmem>>, vector<256x12xbf16>,
    return
  }
  func.func @transform_0(%arg0: i32) -> (i32, i32) {
    %c0_i32 = arith.constant 0 : i32
    %c0_i32_0 = arith.constant 0 : i32
    return %arg0, %c0_i32 : i32, i32
  }
  func.func @transform_1(%arg0: i32) -> (i32, i32) {
    %c0_i32 = arith.constant 0 : i32
    %c0_i32_0 = arith.constant 0 : i32
    %c0_i32_1 = arith.constant 0 : i32
    return %c0_i32, %c0_i32_0 : i32, i32
  }
  func.func @transform_2(%arg0: i32) -> (i32, i32) {
    %c0_i32 = arith.constant 0 : i32
    %c0_i32_0 = arith.constant 0 : i32
    %c0_i32_1 = arith.constant 0 : i32
    return %c0_i32, %c0_i32_0 : i32, i32
  }
  func.func @transform_3(%arg0: i32) -> (i32, i32) {
    %c0_i32 = arith.constant 0 : i32
    %c0_i32_0 = arith.constant 0 : i32
    %c0_i32_1 = arith.constant 0 : i32
    return %c0_i32, %c0_i32_0 : i32, i32
  }
  func.func @transform_4(%arg0: i32) -> (i32, i32) {
    %c0_i32 = arith.constant 0 : i32
    %c0_i32_0 = arith.constant 0 : i32
    %c0_i32_1 = arith.constant 0 : i32
    return %c0_i32, %c0_i32_0 : i32, i32
  }
  func.func @transform_5(%arg0: i32) -> (i32, i32) {
    %c0_i32 = arith.constant 0 : i32
    %c0_i32_0 = arith.constant 0 : i32
    %c0_i32_1 = arith.constant 0 : i32
    return %c0_i32, %c0_i32_0 : i32, i32
  }
  func.func @transform_6(%arg0: i32) -> (i32, i32) {
    %c0_i32 = arith.constant 0 : i32
    %c0_i32_0 = arith.constant 0 : i32
    %c0_i32_1 = arith.constant 0 : i32
    return %c0_i32, %c0_i32_0 : i32, i32
  }
  func.func @transform_7(%arg0: i32) -> (i32, i32) {
    %c0_i32 = arith.constant 0 : i32
    %c0_i32_0 = arith.constant 0 : i32
    return %arg0, %c0_i32 : i32, i32
  }
  func.func @transform_8(%arg0: i32) -> (i32, i32) {
    %c0_i32 = arith.constant 0 : i32
    %c0_i32_0 = arith.constant 0 : i32
    return %arg0, %c0_i32 : i32, i32
  }
}

module attributes {stable_mosaic.version = 11 : i64} {
  func.func @_back_front_kernel(%arg0: i32, %arg1: memref<256x300xbf16, #tpu.memory_space<vmem>>, %arg2: memref<256x24xf32, #tpu.memory_space<vmem>>, %arg3: memref<300x12xbf16, #tpu.memory_space<vmem>>, %arg4: memref<1x12xf32, #tpu.memory_space<vmem>>, %arg5: memref<12x24xbf16, #tpu.memory_space<vmem>>, %arg6: memref<1x24xf32, #tpu.memory_space<vmem>>, %arg7: memref<24x24xbf16, #tpu.memory_space<vmem>>, %arg8: memref<1x24xf32, #tpu.memory_space<vmem>>, %arg9: memref<24x24xbf16, #tpu.memory_space<vmem>>, %arg10: memref<1x24xf32, #tpu.memory_space<vmem>>, %arg11: memref<1x24xf32, #tpu.memory_space<vmem>>, %arg12: memref<1x24xf32, #tpu.memory_space<vmem>>, %arg13: memref<24x12xbf16, #tpu.memory_space<vmem>>, %arg14: memref<1x12xf32, #tpu.memory_space<vmem>>, %arg15: memref<256x24xf32, #tpu.memory_space<vmem>>, %arg16: memref<256x12xbf16, #tpu.memory_space<vmem>>) attributes {dimension_semantics = [#tpu.dimension_semantics<parallel>], iteration_bounds = array<i64: 2>, scalar_prefetch = 0 : i64, scratch_operands = 0 : i64, tpu.core_type = #tpu.core_type<tc>, window_params = [{transform_indices = @transform_0, window_bounds = array<i64: 256, 300>}, {transform_indices = @transform_1, window_bounds = array<i64: 256, 24>}, {pipeline_mode = #tpu.pipeline_mode<synchronous>, transform_indices = @transform_2, window_bounds = array<i64: 300, 12>}, {pipeline_mode = #tpu.pipeline_mode<synchronous>, transform_indices = @transform_3, window_bounds = array<i64: 1, 12>}, {pipeline_mode = #tpu.pipeline_mode<synchronous>, transform_indices = @transform_4, window_bounds = array<i64: 12, 24>}, {pipeline_mode = #tpu.pipeline_mode<synchronous>, transform_indices = @transform_5, window_bounds = array<i64: 1, 24>}, {pipeline_mode = #tpu.pipeline_mode<synchronous>, transform_indices = @transform_6, window_bounds = array<i64: 24, 24>}, {pipeline_mode = #tpu.pipeline_mode<synchronous>, transform_indices = @transform_7, window_bounds = array<i64: 1, 24>}, {pipeline_mode = #tpu.pipeline_mode<synchronous>, transform_indices = @transform_8, window_bounds = array<i64: 24, 24>}, {pipeline_mode = #tpu.pipeline_mode<synchronous>, transform_indices = @transform_9, window_bounds = array<i64: 1, 24>}, {pipeline_mode = #tpu.pipeline_mode<synchronous>, transform_indices = @transform_10, window_bounds = array<i64: 1, 24>}, {pipeline_mode = #tpu.pipeline_mode<synchronous>, transform_indices = @transform_11, window_bounds = array<i64: 1, 24>}, {pipeline_mode = #tpu.pipeline_mode<synchronous>, transform_indices = @transform_12, window_bounds = array<i64: 24, 12>}, {pipeline_mode = #tpu.pipeline_mode<synchronous>, transform_indices = @transform_13, window_bounds = array<i64: 1, 12>}, {transform_indices = @transform_14, window_bounds = array<i64: 256, 24>}, {transform_indices = @transform_15, window_bounds = array<i64: 256, 12>}]} {
    %c0 = arith.constant 0 : index
    %c0_0 = arith.constant 0 : index
    %0 = vector.load %arg1[%c0, %c0_0] : memref<256x300xbf16, #tpu.memory_space<vmem>>, vector<256x300xbf16>
    %c0_1 = arith.constant 0 : index
    %c0_2 = arith.constant 0 : index
    %1 = vector.load %arg2[%c0_1, %c0_2] : memref<256x24xf32, #tpu.memory_space<vmem>>, vector<256x24xf32>
    %c0_3 = arith.constant 0 : index
    %c0_4 = arith.constant 0 : index
    %2 = vector.load %arg3[%c0_3, %c0_4] : memref<300x12xbf16, #tpu.memory_space<vmem>>, vector<300x12xbf16>
    %c0_5 = arith.constant 0 : index
    %c0_6 = arith.constant 0 : index
    %3 = vector.load %arg4[%c0_5, %c0_6] : memref<1x12xf32, #tpu.memory_space<vmem>>, vector<1x12xf32>
    %c0_7 = arith.constant 0 : index
    %c0_8 = arith.constant 0 : index
    %4 = vector.load %arg5[%c0_7, %c0_8] : memref<12x24xbf16, #tpu.memory_space<vmem>>, vector<12x24xbf16>
    %c0_9 = arith.constant 0 : index
    %c0_10 = arith.constant 0 : index
    %5 = vector.load %arg6[%c0_9, %c0_10] : memref<1x24xf32, #tpu.memory_space<vmem>>, vector<1x24xf32>
    %c0_11 = arith.constant 0 : index
    %c0_12 = arith.constant 0 : index
    %6 = vector.load %arg7[%c0_11, %c0_12] : memref<24x24xbf16, #tpu.memory_space<vmem>>, vector<24x24xbf16>
    %c0_13 = arith.constant 0 : index
    %c0_14 = arith.constant 0 : index
    %7 = vector.load %arg8[%c0_13, %c0_14] : memref<1x24xf32, #tpu.memory_space<vmem>>, vector<1x24xf32>
    %c0_15 = arith.constant 0 : index
    %c0_16 = arith.constant 0 : index
    %8 = vector.load %arg9[%c0_15, %c0_16] : memref<24x24xbf16, #tpu.memory_space<vmem>>, vector<24x24xbf16>
    %c0_17 = arith.constant 0 : index
    %c0_18 = arith.constant 0 : index
    %9 = vector.load %arg10[%c0_17, %c0_18] : memref<1x24xf32, #tpu.memory_space<vmem>>, vector<1x24xf32>
    %cst = arith.constant dense<0.000000e+00> : vector<256x12xf32>
    %10 = tpu.matmul %0, %2, %cst {dimension_numbers = #tpu.dot_dimension_numbers<[1], [0], [0], [1], [0, 0, 1, 1], [], []>} : vector<256x300xbf16>, vector<300x12xbf16>, vector<256x12xf32> -> vector<256x12xf32>
    %11 = vector.broadcast %3 : vector<1x12xf32> to vector<256x12xf32>
    %12 = arith.addf %10, %11 : vector<256x12xf32>
    %cst_19 = arith.constant 0.000000e+00 : f32
    %13 = vector.broadcast %cst_19 : f32 to vector<256x12xf32>
    %14 = arith.maximumf %12, %13 : vector<256x12xf32>
    %15 = arith.truncf %14 : vector<256x12xf32> to vector<256x12xbf16>
    %cst_20 = arith.constant dense<0.000000e+00> : vector<256x24xf32>
    %16 = tpu.matmul %15, %4, %cst_20 {dimension_numbers = #tpu.dot_dimension_numbers<[1], [0], [0], [1], [0, 0, 1, 1], [], []>} : vector<256x12xbf16>, vector<12x24xbf16>, vector<256x24xf32> -> vector<256x24xf32>
    %17 = vector.broadcast %5 : vector<1x24xf32> to vector<256x24xf32>
    %18 = arith.addf %16, %17 : vector<256x24xf32>
    %19 = arith.addf %18, %1 : vector<256x24xf32>
    %cst_21 = arith.constant 0.000000e+00 : f32
    %20 = vector.broadcast %cst_21 : f32 to vector<256x24xf32>
    %21 = arith.maximumf %19, %20 : vector<256x24xf32>
    %22 = arith.truncf %21 : vector<256x24xf32> to vector<256x24xbf16>
    %cst_22 = arith.constant dense<0.000000e+00> : vector<256x24xf32>
    %23 = tpu.matmul %22, %6, %cst_22 {dimension_numbers = #tpu.dot_dimension_numbers<[1], [0], [0], [1], [0, 0, 1, 1], [], []>} : vector<256x24xbf16>, vector<24x24xbf16>, vector<256x24xf32> -> vector<256x24xf32>
    %24 = vector.broadcast %7 : vector<1x24xf32> to vector<256x24xf32>
    %25 = arith.addf %23, %24 : vector<256x24xf32>
    %cst_23 = arith.constant 0.000000e+00 : f32
    %26 = vector.broadcast %cst_23 : f32 to vector<256x24xf32>
    %27 = arith.maximumf %25, %26 : vector<256x24xf32>
    %28 = arith.truncf %27 : vector<256x24xf32> to vector<256x24xbf16>
    %cst_24 = arith.constant dense<0.000000e+00> : vector<256x24xf32>
    %29 = tpu.matmul %28, %8, %cst_24 {dimension_numbers = #tpu.dot_dimension_numbers<[1], [0], [0], [1], [0, 0, 1, 1], [], []>} : vector<256x24xbf16>, vector<24x24xbf16>, vector<256x24xf32> -> vector<256x24xf32>
    %30 = vector.broadcast %9 : vector<1x24xf32> to vector<256x24xf32>
    %31 = arith.addf %29, %30 : vector<256x24xf32>
    %c0_25 = arith.constant 0 : index
    %c0_26 = arith.constant 0 : index
    %32 = vector.load %arg11[%c0_25, %c0_26] : memref<1x24xf32, #tpu.memory_space<vmem>>, vector<1x24xf32>
    %c0_27 = arith.constant 0 : index
    %c0_28 = arith.constant 0 : index
    %33 = vector.load %arg12[%c0_27, %c0_28] : memref<1x24xf32, #tpu.memory_space<vmem>>, vector<1x24xf32>
    %c0_29 = arith.constant 0 : index
    %c0_30 = arith.constant 0 : index
    %34 = vector.load %arg13[%c0_29, %c0_30] : memref<24x12xbf16, #tpu.memory_space<vmem>>, vector<24x12xbf16>
    %c0_31 = arith.constant 0 : index
    %c0_32 = arith.constant 0 : index
    %35 = vector.load %arg14[%c0_31, %c0_32] : memref<1x12xf32, #tpu.memory_space<vmem>>, vector<1x12xf32>
    %cst_33 = arith.constant dense<0.000000e+00> : vector<256xf32>
    %36 = vector.multi_reduction <add>, %31, %cst_33 [1] : vector<256x24xf32> to vector<256xf32>
    %37 = vector.shape_cast %36 : vector<256xf32> to vector<256x1xf32>
    %cst_34 = arith.constant 2.400000e+01 : f32
    %38 = vector.broadcast %cst_34 : f32 to vector<256x1xf32>
    %39 = arith.divf %37, %38 : vector<256x1xf32>
    %40 = vector.broadcast %39 : vector<256x1xf32> to vector<256x24xf32>
    %41 = arith.subf %31, %40 : vector<256x24xf32>
    %42 = arith.mulf %41, %41 : vector<256x24xf32>
    %cst_35 = arith.constant dense<0.000000e+00> : vector<256xf32>
    %43 = vector.multi_reduction <add>, %42, %cst_35 [1] : vector<256x24xf32> to vector<256xf32>
    %44 = vector.shape_cast %43 : vector<256xf32> to vector<256x1xf32>
    %cst_36 = arith.constant 2.400000e+01 : f32
    %45 = vector.broadcast %cst_36 : f32 to vector<256x1xf32>
    %46 = arith.divf %44, %45 : vector<256x1xf32>
    %cst_37 = arith.constant 9.99999974E-6 : f32
    %47 = vector.broadcast %cst_37 : f32 to vector<256x1xf32>
    %48 = arith.addf %46, %47 : vector<256x1xf32>
    %49 = math.rsqrt %48 : vector<256x1xf32>
    %50 = vector.broadcast %49 : vector<256x1xf32> to vector<256x24xf32>
    %51 = arith.mulf %41, %50 : vector<256x24xf32>
    %52 = vector.broadcast %32 : vector<1x24xf32> to vector<256x24xf32>
    %53 = arith.mulf %51, %52 : vector<256x24xf32>
    %54 = vector.broadcast %33 : vector<1x24xf32> to vector<256x24xf32>
    %55 = arith.addf %53, %54 : vector<256x24xf32>
    %cst_38 = arith.constant 0.000000e+00 : f32
    %56 = vector.broadcast %cst_38 : f32 to vector<256x24xf32>
    %57 = arith.maximumf %55, %56 : vector<256x24xf32>
    %c0_39 = arith.constant 0 : index
    %c0_40 = arith.constant 0 : index
    %58 = vector.load %arg15[%c0_39, %c0_40] : memref<256x24xf32, #tpu.memory_space<vmem>>, vector<256x24xf32>
    tpu.vector_store %arg15[%c0_39, %c0_40], %57 {strides = array<i32>} : memref<256x24xf32, #tpu.memory_space<vmem>>, vector<256x24xf32>,
    %59 = arith.truncf %57 : vector<256x24xf32> to vector<256x24xbf16>
    %cst_41 = arith.constant dense<0.000000e+00> : vector<256x12xf32>
    %60 = tpu.matmul %59, %34, %cst_41 {dimension_numbers = #tpu.dot_dimension_numbers<[1], [0], [0], [1], [0, 0, 1, 1], [], []>} : vector<256x24xbf16>, vector<24x12xbf16>, vector<256x12xf32> -> vector<256x12xf32>
    %61 = vector.broadcast %35 : vector<1x12xf32> to vector<256x12xf32>
    %62 = arith.addf %60, %61 : vector<256x12xf32>
    %cst_42 = arith.constant 0.000000e+00 : f32
    %63 = vector.broadcast %cst_42 : f32 to vector<256x12xf32>
    %64 = arith.maximumf %62, %63 : vector<256x12xf32>
    %65 = arith.truncf %64 : vector<256x12xf32> to vector<256x12xbf16>
    %c0_43 = arith.constant 0 : index
    %c0_44 = arith.constant 0 : index
    %66 = vector.load %arg16[%c0_43, %c0_44] : memref<256x12xbf16, #tpu.memory_space<vmem>>, vector<256x12xbf16>
    tpu.vector_store %arg16[%c0_43, %c0_44], %65 {strides = array<i32>} : memref<256x12xbf16, #tpu.memory_space<vmem>>, vector<256x12xbf16>,
    return
  }
  func.func @transform_0(%arg0: i32) -> (i32, i32) {
    %c0_i32 = arith.constant 0 : i32
    %c0_i32_0 = arith.constant 0 : i32
    return %arg0, %c0_i32 : i32, i32
  }
  func.func @transform_1(%arg0: i32) -> (i32, i32) {
    %c0_i32 = arith.constant 0 : i32
    %c0_i32_0 = arith.constant 0 : i32
    return %arg0, %c0_i32 : i32, i32
  }
  func.func @transform_2(%arg0: i32) -> (i32, i32) {
    %c0_i32 = arith.constant 0 : i32
    %c0_i32_0 = arith.constant 0 : i32
    %c0_i32_1 = arith.constant 0 : i32
    return %c0_i32, %c0_i32_0 : i32, i32
  }
  func.func @transform_3(%arg0: i32) -> (i32, i32) {
    %c0_i32 = arith.constant 0 : i32
    %c0_i32_0 = arith.constant 0 : i32
    %c0_i32_1 = arith.constant 0 : i32
    return %c0_i32, %c0_i32_0 : i32, i32
  }
  func.func @transform_4(%arg0: i32) -> (i32, i32) {
    %c0_i32 = arith.constant 0 : i32
    %c0_i32_0 = arith.constant 0 : i32
    %c0_i32_1 = arith.constant 0 : i32
    return %c0_i32, %c0_i32_0 : i32, i32
  }
  func.func @transform_5(%arg0: i32) -> (i32, i32) {
    %c0_i32 = arith.constant 0 : i32
    %c0_i32_0 = arith.constant 0 : i32
    %c0_i32_1 = arith.constant 0 : i32
    return %c0_i32, %c0_i32_0 : i32, i32
  }
  func.func @transform_6(%arg0: i32) -> (i32, i32) {
    %c0_i32 = arith.constant 0 : i32
    %c0_i32_0 = arith.constant 0 : i32
    %c0_i32_1 = arith.constant 0 : i32
    return %c0_i32, %c0_i32_0 : i32, i32
  }
  func.func @transform_7(%arg0: i32) -> (i32, i32) {
    %c0_i32 = arith.constant 0 : i32
    %c0_i32_0 = arith.constant 0 : i32
    %c0_i32_1 = arith.constant 0 : i32
    return %c0_i32, %c0_i32_0 : i32, i32
  }
  func.func @transform_8(%arg0: i32) -> (i32, i32) {
    %c0_i32 = arith.constant 0 : i32
    %c0_i32_0 = arith.constant 0 : i32
    %c0_i32_1 = arith.constant 0 : i32
    return %c0_i32, %c0_i32_0 : i32, i32
  }
  func.func @transform_9(%arg0: i32) -> (i32, i32) {
    %c0_i32 = arith.constant 0 : i32
    %c0_i32_0 = arith.constant 0 : i32
    %c0_i32_1 = arith.constant 0 : i32
    return %c0_i32, %c0_i32_0 : i32, i32
  }
  func.func @transform_10(%arg0: i32) -> (i32, i32) {
    %c0_i32 = arith.constant 0 : i32
    %c0_i32_0 = arith.constant 0 : i32
    %c0_i32_1 = arith.constant 0 : i32
    return %c0_i32, %c0_i32_0 : i32, i32
  }
  func.func @transform_11(%arg0: i32) -> (i32, i32) {
    %c0_i32 = arith.constant 0 : i32
    %c0_i32_0 = arith.constant 0 : i32
    %c0_i32_1 = arith.constant 0 : i32
    return %c0_i32, %c0_i32_0 : i32, i32
  }
  func.func @transform_12(%arg0: i32) -> (i32, i32) {
    %c0_i32 = arith.constant 0 : i32
    %c0_i32_0 = arith.constant 0 : i32
    %c0_i32_1 = arith.constant 0 : i32
    return %c0_i32, %c0_i32_0 : i32, i32
  }
  func.func @transform_13(%arg0: i32) -> (i32, i32) {
    %c0_i32 = arith.constant 0 : i32
    %c0_i32_0 = arith.constant 0 : i32
    %c0_i32_1 = arith.constant 0 : i32
    return %c0_i32, %c0_i32_0 : i32, i32
  }
  func.func @transform_14(%arg0: i32) -> (i32, i32) {
    %c0_i32 = arith.constant 0 : i32
    %c0_i32_0 = arith.constant 0 : i32
    return %arg0, %c0_i32 : i32, i32
  }
  func.func @transform_15(%arg0: i32) -> (i32, i32) {
    %c0_i32 = arith.constant 0 : i32
    %c0_i32_0 = arith.constant 0 : i32
    return %arg0, %c0_i32 : i32, i32
  }
}

module attributes {stable_mosaic.version = 11 : i64} {
  func.func @_back_last_kernel(%arg0: i32, %arg1: memref<256x300xbf16, #tpu.memory_space<vmem>>, %arg2: memref<256x24xf32, #tpu.memory_space<vmem>>, %arg3: memref<300x12xbf16, #tpu.memory_space<vmem>>, %arg4: memref<1x12xf32, #tpu.memory_space<vmem>>, %arg5: memref<12x24xbf16, #tpu.memory_space<vmem>>, %arg6: memref<1x24xf32, #tpu.memory_space<vmem>>, %arg7: memref<24x24xbf16, #tpu.memory_space<vmem>>, %arg8: memref<1x24xf32, #tpu.memory_space<vmem>>, %arg9: memref<24x24xbf16, #tpu.memory_space<vmem>>, %arg10: memref<1x24xf32, #tpu.memory_space<vmem>>, %arg11: memref<256x24xf32, #tpu.memory_space<vmem>>) attributes {dimension_semantics = [#tpu.dimension_semantics<parallel>], iteration_bounds = array<i64: 2>, scalar_prefetch = 0 : i64, scratch_operands = 0 : i64, tpu.core_type = #tpu.core_type<tc>, window_params = [{transform_indices = @transform_0, window_bounds = array<i64: 256, 300>}, {transform_indices = @transform_1, window_bounds = array<i64: 256, 24>}, {pipeline_mode = #tpu.pipeline_mode<synchronous>, transform_indices = @transform_2, window_bounds = array<i64: 300, 12>}, {pipeline_mode = #tpu.pipeline_mode<synchronous>, transform_indices = @transform_3, window_bounds = array<i64: 1, 12>}, {pipeline_mode = #tpu.pipeline_mode<synchronous>, transform_indices = @transform_4, window_bounds = array<i64: 12, 24>}, {pipeline_mode = #tpu.pipeline_mode<synchronous>, transform_indices = @transform_5, window_bounds = array<i64: 1, 24>}, {pipeline_mode = #tpu.pipeline_mode<synchronous>, transform_indices = @transform_6, window_bounds = array<i64: 24, 24>}, {pipeline_mode = #tpu.pipeline_mode<synchronous>, transform_indices = @transform_7, window_bounds = array<i64: 1, 24>}, {pipeline_mode = #tpu.pipeline_mode<synchronous>, transform_indices = @transform_8, window_bounds = array<i64: 24, 24>}, {pipeline_mode = #tpu.pipeline_mode<synchronous>, transform_indices = @transform_9, window_bounds = array<i64: 1, 24>}, {transform_indices = @transform_10, window_bounds = array<i64: 256, 24>}]} {
    %c0 = arith.constant 0 : index
    %c0_0 = arith.constant 0 : index
    %0 = vector.load %arg1[%c0, %c0_0] : memref<256x300xbf16, #tpu.memory_space<vmem>>, vector<256x300xbf16>
    %c0_1 = arith.constant 0 : index
    %c0_2 = arith.constant 0 : index
    %1 = vector.load %arg2[%c0_1, %c0_2] : memref<256x24xf32, #tpu.memory_space<vmem>>, vector<256x24xf32>
    %c0_3 = arith.constant 0 : index
    %c0_4 = arith.constant 0 : index
    %2 = vector.load %arg3[%c0_3, %c0_4] : memref<300x12xbf16, #tpu.memory_space<vmem>>, vector<300x12xbf16>
    %c0_5 = arith.constant 0 : index
    %c0_6 = arith.constant 0 : index
    %3 = vector.load %arg4[%c0_5, %c0_6] : memref<1x12xf32, #tpu.memory_space<vmem>>, vector<1x12xf32>
    %c0_7 = arith.constant 0 : index
    %c0_8 = arith.constant 0 : index
    %4 = vector.load %arg5[%c0_7, %c0_8] : memref<12x24xbf16, #tpu.memory_space<vmem>>, vector<12x24xbf16>
    %c0_9 = arith.constant 0 : index
    %c0_10 = arith.constant 0 : index
    %5 = vector.load %arg6[%c0_9, %c0_10] : memref<1x24xf32, #tpu.memory_space<vmem>>, vector<1x24xf32>
    %c0_11 = arith.constant 0 : index
    %c0_12 = arith.constant 0 : index
    %6 = vector.load %arg7[%c0_11, %c0_12] : memref<24x24xbf16, #tpu.memory_space<vmem>>, vector<24x24xbf16>
    %c0_13 = arith.constant 0 : index
    %c0_14 = arith.constant 0 : index
    %7 = vector.load %arg8[%c0_13, %c0_14] : memref<1x24xf32, #tpu.memory_space<vmem>>, vector<1x24xf32>
    %c0_15 = arith.constant 0 : index
    %c0_16 = arith.constant 0 : index
    %8 = vector.load %arg9[%c0_15, %c0_16] : memref<24x24xbf16, #tpu.memory_space<vmem>>, vector<24x24xbf16>
    %c0_17 = arith.constant 0 : index
    %c0_18 = arith.constant 0 : index
    %9 = vector.load %arg10[%c0_17, %c0_18] : memref<1x24xf32, #tpu.memory_space<vmem>>, vector<1x24xf32>
    %cst = arith.constant dense<0.000000e+00> : vector<256x12xf32>
    %10 = tpu.matmul %0, %2, %cst {dimension_numbers = #tpu.dot_dimension_numbers<[1], [0], [0], [1], [0, 0, 1, 1], [], []>} : vector<256x300xbf16>, vector<300x12xbf16>, vector<256x12xf32> -> vector<256x12xf32>
    %11 = vector.broadcast %3 : vector<1x12xf32> to vector<256x12xf32>
    %12 = arith.addf %10, %11 : vector<256x12xf32>
    %cst_19 = arith.constant 0.000000e+00 : f32
    %13 = vector.broadcast %cst_19 : f32 to vector<256x12xf32>
    %14 = arith.maximumf %12, %13 : vector<256x12xf32>
    %15 = arith.truncf %14 : vector<256x12xf32> to vector<256x12xbf16>
    %cst_20 = arith.constant dense<0.000000e+00> : vector<256x24xf32>
    %16 = tpu.matmul %15, %4, %cst_20 {dimension_numbers = #tpu.dot_dimension_numbers<[1], [0], [0], [1], [0, 0, 1, 1], [], []>} : vector<256x12xbf16>, vector<12x24xbf16>, vector<256x24xf32> -> vector<256x24xf32>
    %17 = vector.broadcast %5 : vector<1x24xf32> to vector<256x24xf32>
    %18 = arith.addf %16, %17 : vector<256x24xf32>
    %19 = arith.addf %18, %1 : vector<256x24xf32>
    %cst_21 = arith.constant 0.000000e+00 : f32
    %20 = vector.broadcast %cst_21 : f32 to vector<256x24xf32>
    %21 = arith.maximumf %19, %20 : vector<256x24xf32>
    %22 = arith.truncf %21 : vector<256x24xf32> to vector<256x24xbf16>
    %cst_22 = arith.constant dense<0.000000e+00> : vector<256x24xf32>
    %23 = tpu.matmul %22, %6, %cst_22 {dimension_numbers = #tpu.dot_dimension_numbers<[1], [0], [0], [1], [0, 0, 1, 1], [], []>} : vector<256x24xbf16>, vector<24x24xbf16>, vector<256x24xf32> -> vector<256x24xf32>
    %24 = vector.broadcast %7 : vector<1x24xf32> to vector<256x24xf32>
    %25 = arith.addf %23, %24 : vector<256x24xf32>
    %cst_23 = arith.constant 0.000000e+00 : f32
    %26 = vector.broadcast %cst_23 : f32 to vector<256x24xf32>
    %27 = arith.maximumf %25, %26 : vector<256x24xf32>
    %28 = arith.truncf %27 : vector<256x24xf32> to vector<256x24xbf16>
    %cst_24 = arith.constant dense<0.000000e+00> : vector<256x24xf32>
    %29 = tpu.matmul %28, %8, %cst_24 {dimension_numbers = #tpu.dot_dimension_numbers<[1], [0], [0], [1], [0, 0, 1, 1], [], []>} : vector<256x24xbf16>, vector<24x24xbf16>, vector<256x24xf32> -> vector<256x24xf32>
    %30 = vector.broadcast %9 : vector<1x24xf32> to vector<256x24xf32>
    %31 = arith.addf %29, %30 : vector<256x24xf32>
    %c0_25 = arith.constant 0 : index
    %c0_26 = arith.constant 0 : index
    %32 = vector.load %arg11[%c0_25, %c0_26] : memref<256x24xf32, #tpu.memory_space<vmem>>, vector<256x24xf32>
    tpu.vector_store %arg11[%c0_25, %c0_26], %31 {strides = array<i32>} : memref<256x24xf32, #tpu.memory_space<vmem>>, vector<256x24xf32>,
    return
  }
  func.func @transform_0(%arg0: i32) -> (i32, i32) {
    %c0_i32 = arith.constant 0 : i32
    %c0_i32_0 = arith.constant 0 : i32
    return %arg0, %c0_i32 : i32, i32
  }
  func.func @transform_1(%arg0: i32) -> (i32, i32) {
    %c0_i32 = arith.constant 0 : i32
    %c0_i32_0 = arith.constant 0 : i32
    return %arg0, %c0_i32 : i32, i32
  }
  func.func @transform_2(%arg0: i32) -> (i32, i32) {
    %c0_i32 = arith.constant 0 : i32
    %c0_i32_0 = arith.constant 0 : i32
    %c0_i32_1 = arith.constant 0 : i32
    return %c0_i32, %c0_i32_0 : i32, i32
  }
  func.func @transform_3(%arg0: i32) -> (i32, i32) {
    %c0_i32 = arith.constant 0 : i32
    %c0_i32_0 = arith.constant 0 : i32
    %c0_i32_1 = arith.constant 0 : i32
    return %c0_i32, %c0_i32_0 : i32, i32
  }
  func.func @transform_4(%arg0: i32) -> (i32, i32) {
    %c0_i32 = arith.constant 0 : i32
    %c0_i32_0 = arith.constant 0 : i32
    %c0_i32_1 = arith.constant 0 : i32
    return %c0_i32, %c0_i32_0 : i32, i32
  }
  func.func @transform_5(%arg0: i32) -> (i32, i32) {
    %c0_i32 = arith.constant 0 : i32
    %c0_i32_0 = arith.constant 0 : i32
    %c0_i32_1 = arith.constant 0 : i32
    return %c0_i32, %c0_i32_0 : i32, i32
  }
  func.func @transform_6(%arg0: i32) -> (i32, i32) {
    %c0_i32 = arith.constant 0 : i32
    %c0_i32_0 = arith.constant 0 : i32
    %c0_i32_1 = arith.constant 0 : i32
    return %c0_i32, %c0_i32_0 : i32, i32
  }
  func.func @transform_7(%arg0: i32) -> (i32, i32) {
    %c0_i32 = arith.constant 0 : i32
    %c0_i32_0 = arith.constant 0 : i32
    %c0_i32_1 = arith.constant 0 : i32
    return %c0_i32, %c0_i32_0 : i32, i32
  }
  func.func @transform_8(%arg0: i32) -> (i32, i32) {
    %c0_i32 = arith.constant 0 : i32
    %c0_i32_0 = arith.constant 0 : i32
    %c0_i32_1 = arith.constant 0 : i32
    return %c0_i32, %c0_i32_0 : i32, i32
  }
  func.func @transform_9(%arg0: i32) -> (i32, i32) {
    %c0_i32 = arith.constant 0 : i32
    %c0_i32_0 = arith.constant 0 : i32
    %c0_i32_1 = arith.constant 0 : i32
    return %c0_i32, %c0_i32_0 : i32, i32
  }
  func.func @transform_10(%arg0: i32) -> (i32, i32) {
    %c0_i32 = arith.constant 0 : i32
    %c0_i32_0 = arith.constant 0 : i32
    return %arg0, %c0_i32 : i32, i32
  }
}

</mosaic_0001>

<llo_original>
// kernel: _lambda_.3
$region0: #{_lambda_.3}
  #allocation0 [shape = 'u32[]', space=smem, size = 0x4, offset = 0x4, fixed_abs, tag = 'smem constant byte address 0x4 - core index']
  #allocation1 [shape = 'u32[72,128]{1,0:T(1,128)}', space=vmem, size = 0x9000, scoped, tag = 'internal scratch']
  %s0 = inlined_call_operand.vmem [shape: bf16[512,96], index: 0, kind: input, shape index: {}]
  %s1 = inlined_call_operand.vmem [shape: bf16[96,24], index: 1, kind: input, shape index: {}]
  %s2 = inlined_call_operand.vmem [shape: f32[1,24], index: 2, kind: input, shape index: {}]
  %s3 = inlined_call_operand.vmem [shape: f32[1,24], index: 3, kind: input, shape index: {}]
  %s4 = inlined_call_operand.vmem [shape: f32[1,24], index: 4, kind: input, shape index: {}]
  %s5 = inlined_call_operand.vmem [shape: bf16[24,12], index: 5, kind: input, shape index: {}]
  %s6 = inlined_call_operand.vmem [shape: f32[1,12], index: 6, kind: input, shape index: {}]
  %s7 = inlined_call_operand.vmem [shape: f32[512,24], index: 7, kind: output, shape index: {0}]
  %s8 = inlined_call_operand.vmem [shape: bf16[512,12], index: 8, kind: output, shape index: {1}]
  %9 = xla_tuple %s7, %s8
  %s10 = sld [smem:[#allocation0]]
  $region69: #{_lambda_.3} parent=0
    _
  %s12 = ssub.s32 1, %s10
  %s13 = scalar_select 0, %s12, %s10
  loop: start=0, step=1, limit=4
  $region2: #{_lambda_.3} parent=0 // loop_pre_header
    _
  $region3: #{_lambda_.3} parent=0 // loop_header
    %s15 = sphi 0, %s19
    %p16 = scmp.ge.s32.totalorder %s15, 4
    %s25 = sphi 0, %s27
    %s28 = sphi 0, %s25
    %s29 = sphi 0, %s28
    %s45 = sphi 0, %s29
    %s49 = sphi 0, %s49
    %s51 = sphi 0, %s49
    %s52 = sphi 0, %s51
    %s66 = sphi 0, %s52
    %s70 = sphi 0, %s70
    %s72 = sphi 0, %s70
    %s73 = sphi 0, %s72
    %s87 = sphi 0, %s73
    %s91 = sphi 0, %s91
    %s93 = sphi 0, %s91
    %s94 = sphi 0, %s93
    %s108 = sphi 0, %s94
    %s112 = sphi 0, %s112
    %s114 = sphi 0, %s112
    %s115 = sphi 0, %s114
    %s129 = sphi 0, %s115
    %s133 = sphi 0, %s133
    %s135 = sphi 0, %s133
    %s136 = sphi 0, %s135
    %s150 = sphi 0, %s136
    %s154 = sphi 0, %s154
    %s156 = sphi 0, %s154
    %s157 = sphi 0, %s156
    %s171 = sphi 0, %s157
    %s177 = sphi 0, %s179
    %s180 = sphi 0, %s177
    %s181 = sphi 0, %s180
    %s197 = sphi 0, %s181
    %s203 = sphi 0, %s205
    %s206 = sphi 0, %s203
    %s207 = sphi 0, %s206
    %s223 = sphi 0, %s207
  $region4: #{_lambda_.3} parent=0 // loop_header_branch
    %18 = sbr.rel (%p16) target = $region8
  $region5: #{_lambda_.3} parent=0 // loop_body
    %s20 = ssub.s32 %s15, 1
    %s21 = ssub.s32 %s15, 2
    %s22 = sadd.s32 %s15, 1
    %s23 = ssub.s32 %s15, %s22
    %p24 = scmp.eq.s32.totalorder %s23, 0
    %s26 = sadd.s32 %s25, 1
    %s27 = scalar_select %p24, %s25, %s26
    %p30 = pneg %p24
    %p31 = scmp.eq.s32.totalorder %s15, 1
    %p32 = por %p30, %p31
    %p33 = scmp.ne.s32.totalorder %s25, %s28
    %p34 = scmp.eq.s32.totalorder %s15, 0
    %p35 = por %p33, %p34
    %p36 = scmp.ne.s32.totalorder %s25, %s28
    %p37 = scmp.eq.s32.totalorder %s20, 1
    %p38 = por %p36, %p37
    %p39 = scmp.ne.s32.totalorder %s28, %s29
    %p40 = scmp.eq.s32.totalorder %s20, 0
    %p41 = por %p39, %p40
    %p42 = scmp.ne.s32.totalorder %s28, %s29
    %p43 = scmp.eq.s32.totalorder %s21, 1
    %p44 = por %p42, %p43
    %p46 = scmp.ne.s32.totalorder %s29, %s45
    %p47 = scmp.eq.s32.totalorder %s21, 0
    %p48 = por %p46, %p47
    %s50 = sadd.s32 %s49, 1
    %p53 = scmp.eq.s32.totalorder %s15, 1
    %p54 = scmp.ne.s32.totalorder %s49, %s51
    %p55 = scmp.eq.s32.totalorder %s15, 0
    %p56 = por %p54, %p55
    %p57 = scmp.ne.s32.totalorder %s49, %s51
    %p58 = scmp.eq.s32.totalorder %s20, 1
    %p59 = por %p57, %p58
    %p60 = scmp.ne.s32.totalorder %s51, %s52
    %p61 = scmp.eq.s32.totalorder %s20, 0
    %p62 = por %p60, %p61
    %p63 = scmp.ne.s32.totalorder %s51, %s52
    %p64 = scmp.eq.s32.totalorder %s21, 1
    %p65 = por %p63, %p64
    %p67 = scmp.ne.s32.totalorder %s52, %s66
    %p68 = scmp.eq.s32.totalorder %s21, 0
    %p69 = por %p67, %p68
    %s71 = sadd.s32 %s70, 1
    %p74 = scmp.eq.s32.totalorder %s15, 1
    %p75 = scmp.ne.s32.totalorder %s70, %s72
    %p76 = scmp.eq.s32.totalorder %s15, 0
    %p77 = por %p75, %p76
    %p78 = scmp.ne.s32.totalorder %s70, %s72
    %p79 = scmp.eq.s32.totalorder %s20, 1
    %p80 = por %p78, %p79
    %p81 = scmp.ne.s32.totalorder %s72, %s73
    %p82 = scmp.eq.s32.totalorder %s20, 0
    %p83 = por %p81, %p82
    %p84 = scmp.ne.s32.totalorder %s72, %s73
    %p85 = scmp.eq.s32.totalorder %s21, 1
    %p86 = por %p84, %p85
    %p88 = scmp.ne.s32.totalorder %s73, %s87
    %p89 = scmp.eq.s32.totalorder %s21, 0
    %p90 = por %p88, %p89
    %s92 = sadd.s32 %s91, 1
    %p95 = scmp.eq.s32.totalorder %s15, 1
    %p96 = scmp.ne.s32.totalorder %s91, %s93
    %p97 = scmp.eq.s32.totalorder %s15, 0
    %p98 = por %p96, %p97
    %p99 = scmp.ne.s32.totalorder %s91, %s93
    %p100 = scmp.eq.s32.totalorder %s20, 1
    %p101 = por %p99, %p100
    %p102 = scmp.ne.s32.totalorder %s93, %s94
    %p103 = scmp.eq.s32.totalorder %s20, 0
    %p104 = por %p102, %p103
    %p105 = scmp.ne.s32.totalorder %s93, %s94
    %p106 = scmp.eq.s32.totalorder %s21, 1
    %p107 = por %p105, %p106
    %p109 = scmp.ne.s32.totalorder %s94, %s108
    %p110 = scmp.eq.s32.totalorder %s21, 0
    %p111 = por %p109, %p110
    %s113 = sadd.s32 %s112, 1
    %p116 = scmp.eq.s32.totalorder %s15, 1
    %p117 = scmp.ne.s32.totalorder %s112, %s114
    %p118 = scmp.eq.s32.totalorder %s15, 0
    %p119 = por %p117, %p118
    %p120 = scmp.ne.s32.totalorder %s112, %s114
    %p121 = scmp.eq.s32.totalorder %s20, 1
    %p122 = por %p120, %p121
    %p123 = scmp.ne.s32.totalorder %s114, %s115
    %p124 = scmp.eq.s32.totalorder %s20, 0
    %p125 = por %p123, %p124
    %p126 = scmp.ne.s32.totalorder %s114, %s115
    %p127 = scmp.eq.s32.totalorder %s21, 1
    %p128 = por %p126, %p127
    %p130 = scmp.ne.s32.totalorder %s115, %s129
    %p131 = scmp.eq.s32.totalorder %s21, 0
    %p132 = por %p130, %p131
    %s134 = sadd.s32 %s133, 1
    %p137 = scmp.eq.s32.totalorder %s15, 1
    %p138 = scmp.ne.s32.totalorder %s133, %s135
    %p139 = scmp.eq.s32.totalorder %s15, 0
    %p140 = por %p138, %p139
    %p141 = scmp.ne.s32.totalorder %s133, %s135
    %p142 = scmp.eq.s32.totalorder %s20, 1
    %p143 = por %p141, %p142
    %p144 = scmp.ne.s32.totalorder %s135, %s136
    %p145 = scmp.eq.s32.totalorder %s20, 0
    %p146 = por %p144, %p145
    %p147 = scmp.ne.s32.totalorder %s135, %s136
    %p148 = scmp.eq.s32.totalorder %s21, 1
    %p149 = por %p147, %p148
    %p151 = scmp.ne.s32.totalorder %s136, %s150
    %p152 = scmp.eq.s32.totalorder %s21, 0
    %p153 = por %p151, %p152
    %s155 = sadd.s32 %s154, 1
    %p158 = scmp.eq.s32.totalorder %s15, 1
    %p159 = scmp.ne.s32.totalorder %s154, %s156
    %p160 = scmp.eq.s32.totalorder %s15, 0
    %p161 = por %p159, %p160
    %p162 = scmp.ne.s32.totalorder %s154, %s156
    %p163 = scmp.eq.s32.totalorder %s20, 1
    %p164 = por %p162, %p163
    %p165 = scmp.ne.s32.totalorder %s156, %s157
    %p166 = scmp.eq.s32.totalorder %s20, 0
    %p167 = por %p165, %p166
    %p168 = scmp.ne.s32.totalorder %s156, %s157
    %p169 = scmp.eq.s32.totalorder %s21, 1
    %p170 = por %p168, %p169
    %p172 = scmp.ne.s32.totalorder %s157, %s171
    %p173 = scmp.eq.s32.totalorder %s21, 0
    %p174 = por %p172, %p173
    %s175 = ssub.s32 %s15, %s22
    %p176 = scmp.eq.s32.totalorder %s175, 0
    %s178 = sadd.s32 %s177, 1
    %s179 = scalar_select %p176, %s177, %s178
    %p182 = pneg %p176
    %p183 = scmp.eq.s32.totalorder %s15, 1
    %p184 = por %p182, %p183
    %p185 = scmp.ne.s32.totalorder %s177, %s180
    %p186 = scmp.eq.s32.totalorder %s15, 0
    %p187 = por %p185, %p186
    %p188 = scmp.ne.s32.totalorder %s177, %s180
    %p189 = scmp.eq.s32.totalorder %s20, 1
    %p190 = por %p188, %p189
    %p191 = scmp.ne.s32.totalorder %s180, %s181
    %p192 = scmp.eq.s32.totalorder %s20, 0
    %p193 = por %p191, %p192
    %p194 = scmp.ne.s32.totalorder %s180, %s181
    %p195 = scmp.eq.s32.totalorder %s21, 1
    %p196 = por %p194, %p195
    %p198 = scmp.ne.s32.totalorder %s181, %s197
    %p199 = scmp.eq.s32.totalorder %s21, 0
    %p200 = por %p198, %p199
    %s201 = ssub.s32 %s15, %s22
    %p202 = scmp.eq.s32.totalorder %s201, 0
    %s204 = sadd.s32 %s203, 1
    %s205 = scalar_select %p202, %s203, %s204
    %p208 = pneg %p202
    %p209 = scmp.eq.s32.totalorder %s15, 1
    %p210 = por %p208, %p209
    %p211 = scmp.ne.s32.totalorder %s203, %s206
    %p212 = scmp.eq.s32.totalorder %s15, 0
    %p213 = por %p211, %p212
    %p214 = scmp.ne.s32.totalorder %s203, %s206
    %p215 = scmp.eq.s32.totalorder %s20, 1
    %p216 = por %p214, %p215
    %p217 = scmp.ne.s32.totalorder %s206, %s207
    %p218 = scmp.eq.s32.totalorder %s20, 0
    %p219 = por %p217, %p218
    %p220 = scmp.ne.s32.totalorder %s206, %s207
    %p221 = scmp.eq.s32.totalorder %s21, 1
    %p222 = por %p220, %p221
    %p224 = scmp.ne.s32.totalorder %s207, %s223
    %p225 = scmp.eq.s32.totalorder %s21, 0
    %p226 = por %p224, %p225
    %p227 = scmp.le.s32.totalorder 1, %s15
    %p228 = scmp.lt.s32.totalorder %s15, 3
    %p229 = pnand %p227, %p228
    %p230 = pneg %p229
    // Predicated region
    $region9: #{_lambda_.3} parent=5 // pred_check
      _
    $region10: #{_lambda_.3} parent=5 // pred_check_branch
      %232 = sbr.rel (%p229) target = $region12
    $region11: #{_lambda_.3} parent=5 // pred_region
      %s233 = ssub.s32 %s15, 1
      // Predicated region
      $region13: #{_lambda_.3} parent=11 // pred_check
        %p234 = pneg %p62
      $region14: #{_lambda_.3} parent=11 // pred_check_branch
        %236 = sbr.rel (%p234) target = $region16
      $region15: #{_lambda_.3} parent=11 // pred_region
        _
      $region16: #{_lambda_.3} parent=11 // pred_fallthru
        _
      // Predicated region
      $region17: #{_lambda_.3} parent=11 // pred_check
        %p237 = pneg %p83
      $region18: #{_lambda_.3} parent=11 // pred_check_branch
        %239 = sbr.rel (%p237) target = $region20
      $region19: #{_lambda_.3} parent=11 // pred_region
        _
      $region20: #{_lambda_.3} parent=11 // pred_fallthru
        _
      // Predicated region
      $region21: #{_lambda_.3} parent=11 // pred_check
        %p240 = pneg %p104
      $region22: #{_lambda_.3} parent=11 // pred_check_branch
        %242 = sbr.rel (%p240) target = $region24
      $region23: #{_lambda_.3} parent=11 // pred_region
        _
      $region24: #{_lambda_.3} parent=11 // pred_fallthru
        _
      // Predicated region
      $region25: #{_lambda_.3} parent=11 // pred_check
        %p243 = pneg %p125
      $region26: #{_lambda_.3} parent=11 // pred_check_branch
        %245 = sbr.rel (%p243) target = $region28
      $region27: #{_lambda_.3} parent=11 // pred_region
        _
      $region28: #{_lambda_.3} parent=11 // pred_fallthru
        _
      // Predicated region
      $region29: #{_lambda_.3} parent=11 // pred_check
        %p246 = pneg %p146
      $region30: #{_lambda_.3} parent=11 // pred_check_branch
        %248 = sbr.rel (%p246) target = $region32
      $region31: #{_lambda_.3} parent=11 // pred_region
        _
      $region32: #{_lambda_.3} parent=11 // pred_fallthru
        _
      // Predicated region
      $region33: #{_lambda_.3} parent=11 // pred_check
        %p249 = pneg %p167
      $region34: #{_lambda_.3} parent=11 // pred_check_branch
        %251 = sbr.rel (%p249) target = $region36
      $region35: #{_lambda_.3} parent=11 // pred_region
        _
      $region36: #{_lambda_.3} parent=11 // pred_fallthru
        _
    $region12: #{_lambda_.3} parent=5 // pred_fallthru
      _
    %p252 = scmp.lt.s32.totalorder %s15, 2
    // Predicated region
    $region37: #{_lambda_.3} parent=5 // pred_check
      %p253 = pneg %p252
    $region38: #{_lambda_.3} parent=5 // pred_check_branch
      %255 = sbr.rel (%p253) target = $region40
    $region39: #{_lambda_.3} parent=5 // pred_region
      // Predicated region
      $region41: #{_lambda_.3} parent=39 // pred_check
        %p256 = pneg %p35
      $region42: #{_lambda_.3} parent=39 // pred_check_branch
        %258 = sbr.rel (%p256) target = $region44
      $region43: #{_lambda_.3} parent=39 // pred_region
        %s259 = smul.u32 32, %s15
        %p260 = scmp.lt.s32.totalorder %s259, 63
        %s261 = scalar_select %p260, %s259, 63
        %s262 = smul.addr %s261, 4
        %s263 = scalar_lea.vmem %s0, %s262
        %s264 = smul.u32 32, %s15
      $region44: #{_lambda_.3} parent=39 // pred_fallthru
        _
    $region40: #{_lambda_.3} parent=5 // pred_fallthru
      _
    %p265 = scmp.le.s32.totalorder 1, %s15
    %p266 = scmp.lt.s32.totalorder %s15, 3
    %p267 = pnand %p265, %p266
    %p268 = pneg %p267
    // Predicated region
    $region45: #{_lambda_.3} parent=5 // pred_check
      _
    $region46: #{_lambda_.3} parent=5 // pred_check_branch
      %270 = sbr.rel (%p267) target = $region48
    $region47: #{_lambda_.3} parent=5 // pred_region
      %s271 = ssub.s32 %s15, 1
      %s272 = smul.u32 32, %s20
      %p273 = scmp.lt.s32.totalorder %s272, 63
      %s274 = scalar_select %p273, %s272, 63
      %s275 = smul.addr %s274, 4
      %s276 = scalar_lea.vmem %s0, %s275
      %p277 = pneg %p41
      %p278 = pneg %p38
      %p279 = pneg %p62
      %p280 = pneg %p59
      %p281 = pneg %p83
      %p282 = pneg %p80
      %p283 = pneg %p104
      %p284 = pneg %p101
      %p285 = pneg %p125
      %p286 = pneg %p122
      %p287 = pneg %p146
      %p288 = pneg %p143
      %p289 = pneg %p167
      %p290 = pneg %p164
      %p291 = pneg %p193
      %p292 = pneg %p190
      %s293 = smul.u32 32, %s20
      %p294 = scmp.lt.s32.totalorder %s293, 63
      %s295 = scalar_select %p294, %s293, 63
      %s296 = smul.addr %s295, 8
      %s297 = scalar_lea.vmem %s7, %s296
      %p298 = pneg %p219
      %p299 = pneg %p216
      %s300 = smul.u32 32, %s20
      %p301 = scmp.lt.s32.totalorder %s300, 63
      %s302 = scalar_select %p301, %s300, 63
      %s303 = smul.addr %s302, 4
      %s304 = scalar_lea.vmem %s8, %s303
      %s305 = smul.u32 32, %s20
      %p306 = scmp.lt.s32.totalorder %s305, 63
      %s307 = scalar_select %p306, %s305, 63
      %s308 = smul.addr %s307, 4
      %s309 = scalar_lea.vmem %s0, %s308
      %s310 = smul.u32 32, %s20
      %s311 = smul.u32 32, %s20
      %p312 = scmp.lt.s32.totalorder %s311, 63
      %s313 = scalar_select %p312, %s311, 63
      %s314 = smul.addr %s313, 8
      %s315 = scalar_lea.vmem %s7, %s314
      %s316 = smul.u32 32, %s20
      %s317 = smul.u32 32, %s20
      %p318 = scmp.lt.s32.totalorder %s317, 63
      %s319 = scalar_select %p318, %s317, 63
      %s320 = smul.addr %s319, 4
      %s321 = scalar_lea.vmem %s8, %s320
      %s322 = smul.u32 32, %s20
      %v324 = vld [vmem:[%s309] sm:$0xf]
      %v325 = vld [vmem:[%s309 + $0x4] sm:$0xf]
      %v326 = vld [vmem:[%s309 + $0x8] sm:$0xf]
      %v327 = vld [vmem:[%s309 + $0xc] sm:$0xf]
      %v328 = vld [vmem:[%s309 + $0x10] sm:$0xf]
      %v329 = vld [vmem:[%s309 + $0x14] sm:$0xf]
      %v330 = vld [vmem:[%s309 + $0x18] sm:$0xf]
      %v331 = vld [vmem:[%s309 + $0x1c] sm:$0xf]
      %v332 = vld [vmem:[%s309 + $0x20] sm:$0xf]
      %v333 = vld [vmem:[%s309 + $0x24] sm:$0xf]
      %v334 = vld [vmem:[%s309 + $0x28] sm:$0xf]
      %v335 = vld [vmem:[%s309 + $0x2c] sm:$0xf]
      %v336 = vld [vmem:[%s309 + $0x30] sm:$0xf]
      %v337 = vld [vmem:[%s309 + $0x34] sm:$0xf]
      %v338 = vld [vmem:[%s309 + $0x38] sm:$0xf]
      %v339 = vld [vmem:[%s309 + $0x3c] sm:$0xf]
      %v340 = vld [vmem:[%s309 + $0x40] sm:$0xf]
      %v341 = vld [vmem:[%s309 + $0x44] sm:$0xf]
      %v342 = vld [vmem:[%s309 + $0x48] sm:$0xf]
      %v343 = vld [vmem:[%s309 + $0x4c] sm:$0xf]
      %v344 = vld [vmem:[%s309 + $0x50] sm:$0xf]
      %v345 = vld [vmem:[%s309 + $0x54] sm:$0xf]
      %v346 = vld [vmem:[%s309 + $0x58] sm:$0xf]
      %v347 = vld [vmem:[%s309 + $0x5c] sm:$0xf]
      %v348 = vld [vmem:[%s309 + $0x60] sm:$0xf]
      %v349 = vld [vmem:[%s309 + $0x64] sm:$0xf]
      %v350 = vld [vmem:[%s309 + $0x68] sm:$0xf]
      %v351 = vld [vmem:[%s309 + $0x6c] sm:$0xf]
      %v352 = vld [vmem:[%s309 + $0x70] sm:$0xf]
      %v353 = vld [vmem:[%s309 + $0x74] sm:$0xf]
      %v354 = vld [vmem:[%s309 + $0x78] sm:$0xf]
      %v355 = vld [vmem:[%s309 + $0x7c] sm:$0xf]
      %v356 = vld [vmem:[%s1] sm:$0xf]
      %v357 = vld [vmem:[%s1 + $0x4] sm:$0xf]
      %v358 = vld [vmem:[%s1 + $0x8] sm:$0xf]
      %v359 = vld [vmem:[%s1 + $0xc] sm:$0xf]
      %v360 = vld [vmem:[%s1 + $0x10] sm:$0xf]
      %v361 = vld [vmem:[%s1 + $0x14] sm:$0xf]
      %v362 = vld [vmem:[%s1 + $0x18] sm:$0xf]
      %v363 = vld [vmem:[%s1 + $0x1c] sm:$0xf]
      %v364 = vld [vmem:[%s1 + $0x20] sm:$0xf]
      %v365 = vld [vmem:[%s1 + $0x24] sm:$0xf]
      %v366 = vld [vmem:[%s1 + $0x28] sm:$0xf]
      %v367 = vld [vmem:[%s1 + $0x2c] sm:$0xf]
      %v368 = vld [vmem:[%s2] sm:$0x1]
      %v370 = vperm.slane %v368, 0
      %v404 = vunpack.c.l.b16 %v324
      %v405 = vunpack.c.l.b16 %v325
      %v406 = vunpack.c.l.b16 %v326
      %v407 = vunpack.c.l.b16 %v327
      %v408 = vunpack.c.l.b16 %v328
      %v409 = vunpack.c.l.b16 %v329
      %v410 = vunpack.c.l.b16 %v330
      %v411 = vunpack.c.l.b16 %v331
      %v412 = vunpack.c.l.b16 %v332
      %v413 = vunpack.c.l.b16 %v333
      %v414 = vunpack.c.l.b16 %v334
      %v415 = vunpack.c.l.b16 %v335
      %v416 = vunpack.c.l.b16 %v336
      %v417 = vunpack.c.l.b16 %v337
      %v418 = vunpack.c.l.b16 %v338
      %v419 = vunpack.c.l.b16 %v339
      %v420 = vunpack.c.l.b16 %v340
      %v421 = vunpack.c.l.b16 %v341
      %v422 = vunpack.c.l.b16 %v342
      %v423 = vunpack.c.l.b16 %v343
      %v424 = vunpack.c.l.b16 %v344
      %v425 = vunpack.c.l.b16 %v345
      %v426 = vunpack.c.l.b16 %v346
      %v427 = vunpack.c.l.b16 %v347
      %v428 = vunpack.c.l.b16 %v348
      %v429 = vunpack.c.l.b16 %v349
      %v430 = vunpack.c.l.b16 %v350
      %v431 = vunpack.c.l.b16 %v351
      %v432 = vunpack.c.l.b16 %v352
      %v433 = vunpack.c.l.b16 %v353
      %v434 = vunpack.c.l.b16 %v354
      %v435 = vunpack.c.l.b16 %v355
      %v436 = vpack.c.b16 %v405, %v404
      %v437 = vpack.c.b16 %v407, %v406
      %v438 = vpack.c.b16 %v409, %v408
      %v439 = vpack.c.b16 %v411, %v410
      %v440 = vpack.c.b16 %v413, %v412
      %v441 = vpack.c.b16 %v415, %v414
      %v442 = vpack.c.b16 %v417, %v416
      %v443 = vpack.c.b16 %v419, %v418
      %v444 = vpack.c.b16 %v421, %v420
      %v445 = vpack.c.b16 %v423, %v422
      %v446 = vpack.c.b16 %v425, %v424
      %v447 = vpack.c.b16 %v427, %v426
      %v448 = vpack.c.b16 %v429, %v428
      %v449 = vpack.c.b16 %v431, %v430
      %v450 = vpack.c.b16 %v433, %v432
      %v451 = vpack.c.b16 %v435, %v434
      %v464 = vunpack.c.l.b16 %v356
      %v465 = vunpack.c.l.b16 %v357
      %v466 = vunpack.c.l.b16 %v358
      %v467 = vunpack.c.l.b16 %v359
      %v468 = vunpack.c.l.b16 %v360
      %v469 = vunpack.c.l.b16 %v361
      %v470 = vunpack.c.l.b16 %v362
      %v471 = vunpack.c.l.b16 %v363
      %v472 = vunpack.c.l.b16 %v364
      %v473 = vunpack.c.l.b16 %v365
      %v474 = vunpack.c.l.b16 %v366
      %v475 = vunpack.c.l.b16 %v367
      %v476 = vpack.c.b16 %v465, %v464
      %v477 = vpack.c.b16 %v467, %v466
      %v478 = vpack.c.b16 %v469, %v468
      %v479 = vpack.c.b16 %v471, %v470
      %v480 = vpack.c.b16 %v473, %v472
      %v481 = vpack.c.b16 %v475, %v474
      %vm488 = vcmask 785408
      %v490 = vsel %vm488, %v436, 0
      %v493 = vsel %vm488, %v437, 0
      %v496 = vsel %vm488, %v438, 0
      %v499 = vsel %vm488, %v439, 0
      %v502 = vsel %vm488, %v440, 0
      %v505 = vsel %vm488, %v441, 0
      %v508 = vsel %vm488, %v442, 0
      %v511 = vsel %vm488, %v443, 0
      %v514 = vsel %vm488, %v444, 0
      %v517 = vsel %vm488, %v445, 0
      %v520 = vsel %vm488, %v446, 0
      %v523 = vsel %vm488, %v447, 0
      %v526 = vsel %vm488, %v448, 0
      %v529 = vsel %vm488, %v449, 0
      %v532 = vsel %vm488, %v450, 0
      %v535 = vsel %vm488, %v451, 0
      %537 = vmatpush.bf16.msra.mxu0 0
      %538 = vmatpush.bf16.msra.mxu0 0
      %539 = vmatpush.bf16.msra.mxu0 %v481
      %540 = vmatpush.bf16.msra.mxu0 %v480
      %541 = vmatpush.bf16.msra.mxu0 %v479
      %542 = vmatpush.bf16.msra.mxu0 %v478
      %543 = vmatpush.bf16.msra.mxu0 %v477
      %544 = vmatpush.bf16.msra.mxu0 %v476
      %545 = vmatmul.bf16.gmra.mxu0 %v490
      %v546 = vpop.f32.mrf.mxu0
      %v547 = vadd.f32 %v370, %v546
      %v548 = vpop.f32.mrf.mxu0
      %v549 = vadd.f32 %v370, %v548
      %550 = vmatmul.bf16.gmra.mxu0 %v493
      %v551 = vpop.f32.mrf.mxu0
      %v552 = vadd.f32 %v370, %v551
      %v553 = vpop.f32.mrf.mxu0
      %v554 = vadd.f32 %v370, %v553
      %555 = vmatmul.bf16.gmra.mxu0 %v496
      %v556 = vpop.f32.mrf.mxu0
      %v557 = vadd.f32 %v370, %v556
      %v558 = vpop.f32.mrf.mxu0
      %v559 = vadd.f32 %v370, %v558
      %560 = vmatmul.bf16.gmra.mxu0 %v499
      %v561 = vpop.f32.mrf.mxu0
      %v562 = vadd.f32 %v370, %v561
      %v563 = vpop.f32.mrf.mxu0
      %v564 = vadd.f32 %v370, %v563
      %565 = vmatmul.bf16.gmra.mxu0 %v502
      %v566 = vpop.f32.mrf.mxu0
      %v567 = vadd.f32 %v370, %v566
      %v568 = vpop.f32.mrf.mxu0
      %v569 = vadd.f32 %v370, %v568
      %570 = vmatmul.bf16.gmra.mxu0 %v505
      %v571 = vpop.f32.mrf.mxu0
      %v572 = vadd.f32 %v370, %v571
      %v573 = vpop.f32.mrf.mxu0
      %v574 = vadd.f32 %v370, %v573
      %575 = vmatmul.bf16.gmra.mxu0 %v508
      %v576 = vpop.f32.mrf.mxu0
      %v577 = vadd.f32 %v370, %v576
      %v578 = vpop.f32.mrf.mxu0
      %v579 = vadd.f32 %v370, %v578
      %580 = vmatmul.bf16.gmra.mxu0 %v511
      %v581 = vpop.f32.mrf.mxu0
      %v582 = vadd.f32 %v370, %v581
      %v583 = vpop.f32.mrf.mxu0
      %v584 = vadd.f32 %v370, %v583
      %585 = vmatmul.bf16.gmra.mxu0 %v514
      %v586 = vpop.f32.mrf.mxu0
      %v587 = vadd.f32 %v370, %v586
      %v588 = vpop.f32.mrf.mxu0
      %v589 = vadd.f32 %v370, %v588
      %590 = vmatmul.bf16.gmra.mxu0 %v517
      %v591 = vpop.f32.mrf.mxu0
      %v592 = vadd.f32 %v370, %v591
      %v593 = vpop.f32.mrf.mxu0
      %v594 = vadd.f32 %v370, %v593
      %595 = vmatmul.bf16.gmra.mxu0 %v520
      %v596 = vpop.f32.mrf.mxu0
      %v597 = vadd.f32 %v370, %v596
      %v598 = vpop.f32.mrf.mxu0
      %v599 = vadd.f32 %v370, %v598
      %600 = vmatmul.bf16.gmra.mxu0 %v523
      %v601 = vpop.f32.mrf.mxu0
      %v602 = vadd.f32 %v370, %v601
      %v603 = vpop.f32.mrf.mxu0
      %v604 = vadd.f32 %v370, %v603
      %605 = vmatmul.bf16.gmra.mxu0 %v526
      %v606 = vpop.f32.mrf.mxu0
      %v607 = vadd.f32 %v370, %v606
      %v608 = vpop.f32.mrf.mxu0
      %v609 = vadd.f32 %v370, %v608
      %610 = vmatmul.bf16.gmra.mxu0 %v529
      %v611 = vpop.f32.mrf.mxu0
      %v612 = vadd.f32 %v370, %v611
      %v613 = vpop.f32.mrf.mxu0
      %v614 = vadd.f32 %v370, %v613
      %615 = vmatmul.bf16.gmra.mxu0 %v532
      %v616 = vpop.f32.mrf.mxu0
      %v617 = vadd.f32 %v370, %v616
      %v618 = vpop.f32.mrf.mxu0
      %v619 = vadd.f32 %v370, %v618
      %620 = vmatmul.bf16.gmra.mxu0 %v535
      %v621 = vpop.f32.mrf.mxu0
      %v622 = vadd.f32 %v370, %v621
      %v623 = vpop.f32.mrf.mxu0
      %v624 = vadd.f32 %v370, %v623
      %625 = vdwg.mxu0
      %v626 = vld [vmem:[%s3] sm:$0x1]
      %v627 = vld [vmem:[%s4] sm:$0x1]
      %v628 = vld [vmem:[%s5] sm:$0xf]
      %v629 = vld [vmem:[%s5 + $0x4] sm:$0xf]
      %v630 = vld [vmem:[%s5 + $0x8] sm:$0xf]
      %v631 = vld [vmem:[%s6] sm:$0x1]
      %vm632 = vcmask 195584
      %v633 = vsel %vm632, %v547, 0.0
      %634 = vadd.xlane.f32.xlu0 %v633
      %v635 = vpop.xlane.xlu0 %634
      %v636 = vsel %vm632, %v549, 0.0
      %637 = vadd.xlane.f32.xlu0 %v636
      %v638 = vpop.xlane.xlu0 %637
      %v639 = vsel %vm632, %v552, 0.0
      %640 = vadd.xlane.f32.xlu0 %v639
      %v641 = vpop.xlane.xlu0 %640
      %v642 = vsel %vm632, %v554, 0.0
      %643 = vadd.xlane.f32.xlu0 %v642
      %v644 = vpop.xlane.xlu0 %643
      %v645 = vsel %vm632, %v557, 0.0
      %646 = vadd.xlane.f32.xlu0 %v645
      %v647 = vpop.xlane.xlu0 %646
      %v648 = vsel %vm632, %v559, 0.0
      %649 = vadd.xlane.f32.xlu0 %v648
      %v650 = vpop.xlane.xlu0 %649
      %v651 = vsel %vm632, %v562, 0.0
      %652 = vadd.xlane.f32.xlu0 %v651
      %v653 = vpop.xlane.xlu0 %652
      %v654 = vsel %vm632, %v564, 0.0
      %655 = vadd.xlane.f32.xlu0 %v654
      %v656 = vpop.xlane.xlu0 %655
      %v657 = vsel %vm632, %v567, 0.0
      %658 = vadd.xlane.f32.xlu0 %v657
      %v659 = vpop.xlane.xlu0 %658
      %v660 = vsel %vm632, %v569, 0.0
      %661 = vadd.xlane.f32.xlu0 %v660
      %v662 = vpop.xlane.xlu0 %661
      %v663 = vsel %vm632, %v572, 0.0
      %664 = vadd.xlane.f32.xlu0 %v663
      %v665 = vpop.xlane.xlu0 %664
      %v666 = vsel %vm632, %v574, 0.0
      %667 = vadd.xlane.f32.xlu0 %v666
      %v668 = vpop.xlane.xlu0 %667
      %v669 = vsel %vm632, %v577, 0.0
      %670 = vadd.xlane.f32.xlu0 %v669
      %v671 = vpop.xlane.xlu0 %670
      %v672 = vsel %vm632, %v579, 0.0
      %673 = vadd.xlane.f32.xlu0 %v672
      %v674 = vpop.xlane.xlu0 %673
      %v675 = vsel %vm632, %v582, 0.0
      %676 = vadd.xlane.f32.xlu0 %v675
      %v677 = vpop.xlane.xlu0 %676
      %v678 = vsel %vm632, %v584, 0.0
      %679 = vadd.xlane.f32.xlu0 %v678
      %v680 = vpop.xlane.xlu0 %679
      %v681 = vsel %vm632, %v587, 0.0
      %682 = vadd.xlane.f32.xlu0 %v681
      %v683 = vpop.xlane.xlu0 %682
      %v684 = vsel %vm632, %v589, 0.0
      %685 = vadd.xlane.f32.xlu0 %v684
      %v686 = vpop.xlane.xlu0 %685
      %v687 = vsel %vm632, %v592, 0.0
      %688 = vadd.xlane.f32.xlu0 %v687
      %v689 = vpop.xlane.xlu0 %688
      %v690 = vsel %vm632, %v594, 0.0
      %691 = vadd.xlane.f32.xlu0 %v690
      %v692 = vpop.xlane.xlu0 %691
      %v693 = vsel %vm632, %v597, 0.0
      %694 = vadd.xlane.f32.xlu0 %v693
      %v695 = vpop.xlane.xlu0 %694
      %v696 = vsel %vm632, %v599, 0.0
      %697 = vadd.xlane.f32.xlu0 %v696
      %v698 = vpop.xlane.xlu0 %697
      %v699 = vsel %vm632, %v602, 0.0
      %700 = vadd.xlane.f32.xlu0 %v699
      %v701 = vpop.xlane.xlu0 %700
      %v702 = vsel %vm632, %v604, 0.0
      %703 = vadd.xlane.f32.xlu0 %v702
      %v704 = vpop.xlane.xlu0 %703
      %v705 = vsel %vm632, %v607, 0.0
      %706 = vadd.xlane.f32.xlu0 %v705
      %v707 = vpop.xlane.xlu0 %706
      %v708 = vsel %vm632, %v609, 0.0
      %709 = vadd.xlane.f32.xlu0 %v708
      %v710 = vpop.xlane.xlu0 %709
      %v711 = vsel %vm632, %v612, 0.0
      %712 = vadd.xlane.f32.xlu0 %v711
      %v713 = vpop.xlane.xlu0 %712
      %v714 = vsel %vm632, %v614, 0.0
      %715 = vadd.xlane.f32.xlu0 %v714
      %v716 = vpop.xlane.xlu0 %715
      %v717 = vsel %vm632, %v617, 0.0
      %718 = vadd.xlane.f32.xlu0 %v717
      %v719 = vpop.xlane.xlu0 %718
      %v720 = vsel %vm632, %v619, 0.0
      %721 = vadd.xlane.f32.xlu0 %v720
      %v722 = vpop.xlane.xlu0 %721
      %v723 = vsel %vm632, %v622, 0.0
      %724 = vadd.xlane.f32.xlu0 %v723
      %v725 = vpop.xlane.xlu0 %724
      %v726 = vsel %vm632, %v624, 0.0
      %727 = vadd.xlane.f32.xlu0 %v726
      %v728 = vpop.xlane.xlu0 %727
      %v729 = vrcp.pop 24.0
      %v730 = vmul.f32 24.0, %v729
      %v731 = vsub.f32 1.0, %v730
      %v732 = vmul.f32 %v729, %v731
      %v733 = vadd.f32 %v729, %v732
      %vm734 = vweird.f32 %v729
      %v735 = vsel %vm734, %v729, %v733
      %v736 = vmul.f32 %v635, %v735
      %v737 = vmul.f32 %v638, %v735
      %v738 = vmul.f32 %v641, %v735
      %v739 = vmul.f32 %v644, %v735
      %v740 = vmul.f32 %v647, %v735
      %v741 = vmul.f32 %v650, %v735
      %v742 = vmul.f32 %v653, %v735
      %v743 = vmul.f32 %v656, %v735
      %v744 = vmul.f32 %v659, %v735
      %v745 = vmul.f32 %v662, %v735
      %v746 = vmul.f32 %v665, %v735
      %v747 = vmul.f32 %v668, %v735
      %v748 = vmul.f32 %v671, %v735
      %v749 = vmul.f32 %v674, %v735
      %v750 = vmul.f32 %v677, %v735
      %v751 = vmul.f32 %v680, %v735
      %v752 = vmul.f32 %v683, %v735
      %v753 = vmul.f32 %v686, %v735
      %v754 = vmul.f32 %v689, %v735
      %v755 = vmul.f32 %v692, %v735
      %v756 = vmul.f32 %v695, %v735
      %v757 = vmul.f32 %v698, %v735
      %v758 = vmul.f32 %v701, %v735
      %v759 = vmul.f32 %v704, %v735
      %v760 = vmul.f32 %v707, %v735
      %v761 = vmul.f32 %v710, %v735
      %v762 = vmul.f32 %v713, %v735
      %v763 = vmul.f32 %v716, %v735
      %v764 = vmul.f32 %v719, %v735
      %v765 = vmul.f32 %v722, %v735
      %v766 = vmul.f32 %v725, %v735
      %v767 = vmul.f32 %v728, %v735
      %v768 = vsub.f32 %v547, %v736
      %v769 = vsub.f32 %v549, %v737
      %v770 = vsub.f32 %v552, %v738
      %v771 = vsub.f32 %v554, %v739
      %v772 = vsub.f32 %v557, %v740
      %v773 = vsub.f32 %v559, %v741
      %v774 = vsub.f32 %v562, %v742
      %v775 = vsub.f32 %v564, %v743
      %v776 = vsub.f32 %v567, %v744
      %v777 = vsub.f32 %v569, %v745
      %v778 = vsub.f32 %v572, %v746
      %v779 = vsub.f32 %v574, %v747
      %v780 = vsub.f32 %v577, %v748
      %v781 = vsub.f32 %v579, %v749
      %v782 = vsub.f32 %v582, %v750
      %v783 = vsub.f32 %v584, %v751
      %v784 = vsub.f32 %v587, %v752
      %v785 = vsub.f32 %v589, %v753
      %v786 = vsub.f32 %v592, %v754
      %v787 = vsub.f32 %v594, %v755
      %v788 = vsub.f32 %v597, %v756
      %v789 = vsub.f32 %v599, %v757
      %v790 = vsub.f32 %v602, %v758
      %v791 = vsub.f32 %v604, %v759
      %v792 = vsub.f32 %v607, %v760
      %v793 = vsub.f32 %v609, %v761
      %v794 = vsub.f32 %v612, %v762
      %v795 = vsub.f32 %v614, %v763
      %v796 = vsub.f32 %v617, %v764
      %v797 = vsub.f32 %v619, %v765
      %v798 = vsub.f32 %v622, %v766
      %v799 = vsub.f32 %v624, %v767
      %v800 = vmul.f32 %v768, %v768
      %v801 = vmul.f32 %v769, %v769
      %v802 = vmul.f32 %v770, %v770
      %v803 = vmul.f32 %v771, %v771
      %v804 = vmul.f32 %v772, %v772
      %v805 = vmul.f32 %v773, %v773
      %v806 = vmul.f32 %v774, %v774
      %v807 = vmul.f32 %v775, %v775
      %v808 = vmul.f32 %v776, %v776
      %v809 = vmul.f32 %v777, %v777
      %v810 = vmul.f32 %v778, %v778
      %v811 = vmul.f32 %v779, %v779
      %v812 = vmul.f32 %v780, %v780
      %v813 = vmul.f32 %v781, %v781
      %v814 = vmul.f32 %v782, %v782
      %v815 = vmul.f32 %v783, %v783
      %v816 = vmul.f32 %v784, %v784
      %v817 = vmul.f32 %v785, %v785
      %v818 = vmul.f32 %v786, %v786
      %v819 = vmul.f32 %v787, %v787
      %v820 = vmul.f32 %v788, %v788
      %v821 = vmul.f32 %v789, %v789
      %v822 = vmul.f32 %v790, %v790
      %v823 = vmul.f32 %v791, %v791
      %v824 = vmul.f32 %v792, %v792
      %v825 = vmul.f32 %v793, %v793
      %v826 = vmul.f32 %v794, %v794
      %v827 = vmul.f32 %v795, %v795
      %v828 = vmul.f32 %v796, %v796
      %v829 = vmul.f32 %v797, %v797
      %v830 = vmul.f32 %v798, %v798
      %v831 = vmul.f32 %v799, %v799
      %v832 = vsel %vm632, %v800, 0.0
      %833 = vadd.xlane.f32.xlu0 %v832
      %v834 = vpop.xlane.xlu0 %833
      %v835 = vsel %vm632, %v801, 0.0
      %836 = vadd.xlane.f32.xlu0 %v835
      %v837 = vpop.xlane.xlu0 %836
      %v838 = vsel %vm632, %v802, 0.0
      %839 = vadd.xlane.f32.xlu0 %v838
      %v840 = vpop.xlane.xlu0 %839
      %v841 = vsel %vm632, %v803, 0.0
      %842 = vadd.xlane.f32.xlu0 %v841
      %v843 = vpop.xlane.xlu0 %842
      %v844 = vsel %vm632, %v804, 0.0
      %845 = vadd.xlane.f32.xlu0 %v844
      %v846 = vpop.xlane.xlu0 %845
      %v847 = vsel %vm632, %v805, 0.0
      %848 = vadd.xlane.f32.xlu0 %v847
      %v849 = vpop.xlane.xlu0 %848
      %v850 = vsel %vm632, %v806, 0.0
      %851 = vadd.xlane.f32.xlu0 %v850
      %v852 = vpop.xlane.xlu0 %851
      %v853 = vsel %vm632, %v807, 0.0
      %854 = vadd.xlane.f32.xlu0 %v853
      %v855 = vpop.xlane.xlu0 %854
      %v856 = vsel %vm632, %v808, 0.0
      %857 = vadd.xlane.f32.xlu0 %v856
      %v858 = vpop.xlane.xlu0 %857
      %v859 = vsel %vm632, %v809, 0.0
      %860 = vadd.xlane.f32.xlu0 %v859
      %v861 = vpop.xlane.xlu0 %860
      %v862 = vsel %vm632, %v810, 0.0
      %863 = vadd.xlane.f32.xlu0 %v862
      %v864 = vpop.xlane.xlu0 %863
      %v865 = vsel %vm632, %v811, 0.0
      %866 = vadd.xlane.f32.xlu0 %v865
      %v867 = vpop.xlane.xlu0 %866
      %v868 = vsel %vm632, %v812, 0.0
      %869 = vadd.xlane.f32.xlu0 %v868
      %v870 = vpop.xlane.xlu0 %869
      %v871 = vsel %vm632, %v813, 0.0
      %872 = vadd.xlane.f32.xlu0 %v871
      %v873 = vpop.xlane.xlu0 %872
      %v874 = vsel %vm632, %v814, 0.0
      %875 = vadd.xlane.f32.xlu0 %v874
      %v876 = vpop.xlane.xlu0 %875
      %v877 = vsel %vm632, %v815, 0.0
      %878 = vadd.xlane.f32.xlu0 %v877
      %v879 = vpop.xlane.xlu0 %878
      %v880 = vsel %vm632, %v816, 0.0
      %881 = vadd.xlane.f32.xlu0 %v880
      %v882 = vpop.xlane.xlu0 %881
      %v883 = vsel %vm632, %v817, 0.0
      %884 = vadd.xlane.f32.xlu0 %v883
      %v885 = vpop.xlane.xlu0 %884
      %v886 = vsel %vm632, %v818, 0.0
      %887 = vadd.xlane.f32.xlu0 %v886
      %v888 = vpop.xlane.xlu0 %887
      %v889 = vsel %vm632, %v819, 0.0
      %890 = vadd.xlane.f32.xlu0 %v889
      %v891 = vpop.xlane.xlu0 %890
      %v892 = vsel %vm632, %v820, 0.0
      %893 = vadd.xlane.f32.xlu0 %v892
      %v894 = vpop.xlane.xlu0 %893
      %v895 = vsel %vm632, %v821, 0.0
      %896 = vadd.xlane.f32.xlu0 %v895
      %v897 = vpop.xlane.xlu0 %896
      %v898 = vsel %vm632, %v822, 0.0
      %899 = vadd.xlane.f32.xlu0 %v898
      %v900 = vpop.xlane.xlu0 %899
      %v901 = vsel %vm632, %v823, 0.0
      %902 = vadd.xlane.f32.xlu0 %v901
      %v903 = vpop.xlane.xlu0 %902
      %v904 = vsel %vm632, %v824, 0.0
      %905 = vadd.xlane.f32.xlu0 %v904
      %v906 = vpop.xlane.xlu0 %905
      %v907 = vsel %vm632, %v825, 0.0
      %908 = vadd.xlane.f32.xlu0 %v907
      %v909 = vpop.xlane.xlu0 %908
      %v910 = vsel %vm632, %v826, 0.0
      %911 = vadd.xlane.f32.xlu0 %v910
      %v912 = vpop.xlane.xlu0 %911
      %v913 = vsel %vm632, %v827, 0.0
      %914 = vadd.xlane.f32.xlu0 %v913
      %v915 = vpop.xlane.xlu0 %914
      %v916 = vsel %vm632, %v828, 0.0
      %917 = vadd.xlane.f32.xlu0 %v916
      %v918 = vpop.xlane.xlu0 %917
      %v919 = vsel %vm632, %v829, 0.0
      %920 = vadd.xlane.f32.xlu0 %v919
      %v921 = vpop.xlane.xlu0 %920
      %v922 = vsel %vm632, %v830, 0.0
      %923 = vadd.xlane.f32.xlu0 %v922
      %v924 = vpop.xlane.xlu0 %923
      %v925 = vsel %vm632, %v831, 0.0
      %926 = vadd.xlane.f32.xlu0 %v925
      %v927 = vpop.xlane.xlu0 %926
      %v928 = vmul.f32 %v834, %v735
      %v929 = vmul.f32 %v837, %v735
      %v930 = vmul.f32 %v840, %v735
      %v931 = vmul.f32 %v843, %v735
      %v932 = vmul.f32 %v846, %v735
      %v933 = vmul.f32 %v849, %v735
      %v934 = vmul.f32 %v852, %v735
      %v935 = vmul.f32 %v855, %v735
      %v936 = vmul.f32 %v858, %v735
      %v937 = vmul.f32 %v861, %v735
      %v938 = vmul.f32 %v864, %v735
      %v939 = vmul.f32 %v867, %v735
      %v940 = vmul.f32 %v870, %v735
      %v941 = vmul.f32 %v873, %v735
      %v942 = vmul.f32 %v876, %v735
      %v943 = vmul.f32 %v879, %v735
      %v944 = vmul.f32 %v882, %v735
      %v945 = vmul.f32 %v885, %v735
      %v946 = vmul.f32 %v888, %v735
      %v947 = vmul.f32 %v891, %v735
      %v948 = vmul.f32 %v894, %v735
      %v949 = vmul.f32 %v897, %v735
      %v950 = vmul.f32 %v900, %v735
      %v951 = vmul.f32 %v903, %v735
      %v952 = vmul.f32 %v906, %v735
      %v953 = vmul.f32 %v909, %v735
      %v954 = vmul.f32 %v912, %v735
      %v955 = vmul.f32 %v915, %v735
      %v956 = vmul.f32 %v918, %v735
      %v957 = vmul.f32 %v921, %v735
      %v958 = vmul.f32 %v924, %v735
      %v959 = vmul.f32 %v927, %v735
      %v960 = vadd.f32 %v928, 1e-05
      %v961 = vadd.f32 %v929, 1e-05
      %v962 = vadd.f32 %v930, 1e-05
      %v963 = vadd.f32 %v931, 1e-05
      %v964 = vadd.f32 %v932, 1e-05
      %v965 = vadd.f32 %v933, 1e-05
      %v966 = vadd.f32 %v934, 1e-05
      %v967 = vadd.f32 %v935, 1e-05
      %v968 = vadd.f32 %v936, 1e-05
      %v969 = vadd.f32 %v937, 1e-05
      %v970 = vadd.f32 %v938, 1e-05
      %v971 = vadd.f32 %v939, 1e-05
      %v972 = vadd.f32 %v940, 1e-05
      %v973 = vadd.f32 %v941, 1e-05
      %v974 = vadd.f32 %v942, 1e-05
      %v975 = vadd.f32 %v943, 1e-05
      %v976 = vadd.f32 %v944, 1e-05
      %v977 = vadd.f32 %v945, 1e-05
      %v978 = vadd.f32 %v946, 1e-05
      %v979 = vadd.f32 %v947, 1e-05
      %v980 = vadd.f32 %v948, 1e-05
      %v981 = vadd.f32 %v949, 1e-05
      %v982 = vadd.f32 %v950, 1e-05
      %v983 = vadd.f32 %v951, 1e-05
      %v984 = vadd.f32 %v952, 1e-05
      %v985 = vadd.f32 %v953, 1e-05
      %v986 = vadd.f32 %v954, 1e-05
      %v987 = vadd.f32 %v955, 1e-05
      %v988 = vadd.f32 %v956, 1e-05
      %v989 = vadd.f32 %v957, 1e-05
      %v990 = vadd.f32 %v958, 1e-05
      %v991 = vadd.f32 %v959, 1e-05
      %v992 = vrsqrt.pop %v960
      %v993 = vmul.f32 %v992, %v960
      %v994 = vmul.f32 %v993, %v992
      %v995 = vmul.f32 0.5, %v994
      %v996 = vsub.f32 1.5, %v995
      %v997 = vmul.f32 %v992, %v996
      %vm998 = vweird.f32 %v960
      %vm999 = vweird.f32 %v992
      %vm1000 = vmor %vm998, %vm999
      %v1001 = vsel %vm1000, %v992, %v997
      %v1002 = vrsqrt.pop %v961
      %v1003 = vmul.f32 %v1002, %v961
      %v1004 = vmul.f32 %v1003, %v1002
      %v1005 = vmul.f32 0.5, %v1004
      %v1006 = vsub.f32 1.5, %v1005
      %v1007 = vmul.f32 %v1002, %v1006
      %vm1008 = vweird.f32 %v961
      %vm1009 = vweird.f32 %v1002
      %vm1010 = vmor %vm1008, %vm1009
      %v1011 = vsel %vm1010, %v1002, %v1007
      %v1012 = vrsqrt.pop %v962
      %v1013 = vmul.f32 %v1012, %v962
      %v1014 = vmul.f32 %v1013, %v1012
      %v1015 = vmul.f32 0.5, %v1014
      %v1016 = vsub.f32 1.5, %v1015
      %v1017 = vmul.f32 %v1012, %v1016
      %vm1018 = vweird.f32 %v962
      %vm1019 = vweird.f32 %v1012
      %vm1020 = vmor %vm1018, %vm1019
      %v1021 = vsel %vm1020, %v1012, %v1017
      %v1022 = vrsqrt.pop %v963
      %v1023 = vmul.f32 %v1022, %v963
      %v1024 = vmul.f32 %v1023, %v1022
      %v1025 = vmul.f32 0.5, %v1024
      %v1026 = vsub.f32 1.5, %v1025
      %v1027 = vmul.f32 %v1022, %v1026
      %vm1028 = vweird.f32 %v963
      %vm1029 = vweird.f32 %v1022
      %vm1030 = vmor %vm1028, %vm1029
      %v1031 = vsel %vm1030, %v1022, %v1027
      %v1032 = vrsqrt.pop %v964
      %v1033 = vmul.f32 %v1032, %v964
      %v1034 = vmul.f32 %v1033, %v1032
      %v1035 = vmul.f32 0.5, %v1034
      %v1036 = vsub.f32 1.5, %v1035
      %v1037 = vmul.f32 %v1032, %v1036
      %vm1038 = vweird.f32 %v964
      %vm1039 = vweird.f32 %v1032
      %vm1040 = vmor %vm1038, %vm1039
      %v1041 = vsel %vm1040, %v1032, %v1037
      %v1042 = vrsqrt.pop %v965
      %v1043 = vmul.f32 %v1042, %v965
      %v1044 = vmul.f32 %v1043, %v1042
      %v1045 = vmul.f32 0.5, %v1044
      %v1046 = vsub.f32 1.5, %v1045
      %v1047 = vmul.f32 %v1042, %v1046
      %vm1048 = vweird.f32 %v965
      %vm1049 = vweird.f32 %v1042
      %vm1050 = vmor %vm1048, %vm1049
      %v1051 = vsel %vm1050, %v1042, %v1047
      %v1052 = vrsqrt.pop %v966
      %v1053 = vmul.f32 %v1052, %v966
      %v1054 = vmul.f32 %v1053, %v1052
      %v1055 = vmul.f32 0.5, %v1054
      %v1056 = vsub.f32 1.5, %v1055
      %v1057 = vmul.f32 %v1052, %v1056
      %vm1058 = vweird.f32 %v966
      %vm1059 = vweird.f32 %v1052
      %vm1060 = vmor %vm1058, %vm1059
      %v1061 = vsel %vm1060, %v1052, %v1057
      %v1062 = vrsqrt.pop %v967
      %v1063 = vmul.f32 %v1062, %v967
      %v1064 = vmul.f32 %v1063, %v1062
      %v1065 = vmul.f32 0.5, %v1064
      %v1066 = vsub.f32 1.5, %v1065
      %v1067 = vmul.f32 %v1062, %v1066
      %vm1068 = vweird.f32 %v967
      %vm1069 = vweird.f32 %v1062
      %vm1070 = vmor %vm1068, %vm1069
      %v1071 = vsel %vm1070, %v1062, %v1067
      %v1072 = vrsqrt.pop %v968
      %v1073 = vmul.f32 %v1072, %v968
      %v1074 = vmul.f32 %v1073, %v1072
      %v1075 = vmul.f32 0.5, %v1074
      %v1076 = vsub.f32 1.5, %v1075
      %v1077 = vmul.f32 %v1072, %v1076
      %vm1078 = vweird.f32 %v968
      %vm1079 = vweird.f32 %v1072
      %vm1080 = vmor %vm1078, %vm1079
      %v1081 = vsel %vm1080, %v1072, %v1077
      %v1082 = vrsqrt.pop %v969
      %v1083 = vmul.f32 %v1082, %v969
      %v1084 = vmul.f32 %v1083, %v1082
      %v1085 = vmul.f32 0.5, %v1084
      %v1086 = vsub.f32 1.5, %v1085
      %v1087 = vmul.f32 %v1082, %v1086
      %vm1088 = vweird.f32 %v969
      %vm1089 = vweird.f32 %v1082
      %vm1090 = vmor %vm1088, %vm1089
      %v1091 = vsel %vm1090, %v1082, %v1087
      %v1092 = vrsqrt.pop %v970
      %v1093 = vmul.f32 %v1092, %v970
      %v1094 = vmul.f32 %v1093, %v1092
      %v1095 = vmul.f32 0.5, %v1094
      %v1096 = vsub.f32 1.5, %v1095
      %v1097 = vmul.f32 %v1092, %v1096
      %vm1098 = vweird.f32 %v970
      %vm1099 = vweird.f32 %v1092
      %vm1100 = vmor %vm1098, %vm1099
      %v1101 = vsel %vm1100, %v1092, %v1097
      %v1102 = vrsqrt.pop %v971
      %v1103 = vmul.f32 %v1102, %v971
      %v1104 = vmul.f32 %v1103, %v1102
      %v1105 = vmul.f32 0.5, %v1104
      %v1106 = vsub.f32 1.5, %v1105
      %v1107 = vmul.f32 %v1102, %v1106
      %vm1108 = vweird.f32 %v971
      %vm1109 = vweird.f32 %v1102
      %vm1110 = vmor %vm1108, %vm1109
      %v1111 = vsel %vm1110, %v1102, %v1107
      %v1112 = vrsqrt.pop %v972
      %v1113 = vmul.f32 %v1112, %v972
      %v1114 = vmul.f32 %v1113, %v1112
      %v1115 = vmul.f32 0.5, %v1114
      %v1116 = vsub.f32 1.5, %v1115
      %v1117 = vmul.f32 %v1112, %v1116
      %vm1118 = vweird.f32 %v972
      %vm1119 = vweird.f32 %v1112
      %vm1120 = vmor %vm1118, %vm1119
      %v1121 = vsel %vm1120, %v1112, %v1117
      %v1122 = vrsqrt.pop %v973
      %v1123 = vmul.f32 %v1122, %v973
      %v1124 = vmul.f32 %v1123, %v1122
      %v1125 = vmul.f32 0.5, %v1124
      %v1126 = vsub.f32 1.5, %v1125
      %v1127 = vmul.f32 %v1122, %v1126
      %vm1128 = vweird.f32 %v973
      %vm1129 = vweird.f32 %v1122
      %vm1130 = vmor %vm1128, %vm1129
      %v1131 = vsel %vm1130, %v1122, %v1127
      %v1132 = vrsqrt.pop %v974
      %v1133 = vmul.f32 %v1132, %v974
      %v1134 = vmul.f32 %v1133, %v1132
      %v1135 = vmul.f32 0.5, %v1134
      %v1136 = vsub.f32 1.5, %v1135
      %v1137 = vmul.f32 %v1132, %v1136
      %vm1138 = vweird.f32 %v974
      %vm1139 = vweird.f32 %v1132
      %vm1140 = vmor %vm1138, %vm1139
      %v1141 = vsel %vm1140, %v1132, %v1137
      %v1142 = vrsqrt.pop %v975
      %v1143 = vmul.f32 %v1142, %v975
      %v1144 = vmul.f32 %v1143, %v1142
      %v1145 = vmul.f32 0.5, %v1144
      %v1146 = vsub.f32 1.5, %v1145
      %v1147 = vmul.f32 %v1142, %v1146
      %vm1148 = vweird.f32 %v975
      %vm1149 = vweird.f32 %v1142
      %vm1150 = vmor %vm1148, %vm1149
      %v1151 = vsel %vm1150, %v1142, %v1147
      %v1152 = vrsqrt.pop %v976
      %v1153 = vmul.f32 %v1152, %v976
      %v1154 = vmul.f32 %v1153, %v1152
      %v1155 = vmul.f32 0.5, %v1154
      %v1156 = vsub.f32 1.5, %v1155
      %v1157 = vmul.f32 %v1152, %v1156
      %vm1158 = vweird.f32 %v976
      %vm1159 = vweird.f32 %v1152
      %vm1160 = vmor %vm1158, %vm1159
      %v1161 = vsel %vm1160, %v1152, %v1157
      %v1162 = vrsqrt.pop %v977
      %v1163 = vmul.f32 %v1162, %v977
      %v1164 = vmul.f32 %v1163, %v1162
      %v1165 = vmul.f32 0.5, %v1164
      %v1166 = vsub.f32 1.5, %v1165
      %v1167 = vmul.f32 %v1162, %v1166
      %vm1168 = vweird.f32 %v977
      %vm1169 = vweird.f32 %v1162
      %vm1170 = vmor %vm1168, %vm1169
      %v1171 = vsel %vm1170, %v1162, %v1167
      %v1172 = vrsqrt.pop %v978
      %v1173 = vmul.f32 %v1172, %v978
      %v1174 = vmul.f32 %v1173, %v1172
      %v1175 = vmul.f32 0.5, %v1174
      %v1176 = vsub.f32 1.5, %v1175
      %v1177 = vmul.f32 %v1172, %v1176
      %vm1178 = vweird.f32 %v978
      %vm1179 = vweird.f32 %v1172
      %vm1180 = vmor %vm1178, %vm1179
      %v1181 = vsel %vm1180, %v1172, %v1177
      %v1182 = vrsqrt.pop %v979
      %v1183 = vmul.f32 %v1182, %v979
      %v1184 = vmul.f32 %v1183, %v1182
      %v1185 = vmul.f32 0.5, %v1184
      %v1186 = vsub.f32 1.5, %v1185
      %v1187 = vmul.f32 %v1182, %v1186
      %vm1188 = vweird.f32 %v979
      %vm1189 = vweird.f32 %v1182
      %vm1190 = vmor %vm1188, %vm1189
      %v1191 = vsel %vm1190, %v1182, %v1187
      %v1192 = vrsqrt.pop %v980
      %v1193 = vmul.f32 %v1192, %v980
      %v1194 = vmul.f32 %v1193, %v1192
      %v1195 = vmul.f32 0.5, %v1194
      %v1196 = vsub.f32 1.5, %v1195
      %v1197 = vmul.f32 %v1192, %v1196
      %vm1198 = vweird.f32 %v980
      %vm1199 = vweird.f32 %v1192
      %vm1200 = vmor %vm1198, %vm1199
      %v1201 = vsel %vm1200, %v1192, %v1197
      %v1202 = vrsqrt.pop %v981
      %v1203 = vmul.f32 %v1202, %v981
      %v1204 = vmul.f32 %v1203, %v1202
      %v1205 = vmul.f32 0.5, %v1204
      %v1206 = vsub.f32 1.5, %v1205
      %v1207 = vmul.f32 %v1202, %v1206
      %vm1208 = vweird.f32 %v981
      %vm1209 = vweird.f32 %v1202
      %vm1210 = vmor %vm1208, %vm1209
      %v1211 = vsel %vm1210, %v1202, %v1207
      %v1212 = vrsqrt.pop %v982
      %v1213 = vmul.f32 %v1212, %v982
      %v1214 = vmul.f32 %v1213, %v1212
      %v1215 = vmul.f32 0.5, %v1214
      %v1216 = vsub.f32 1.5, %v1215
      %v1217 = vmul.f32 %v1212, %v1216
      %vm1218 = vweird.f32 %v982
      %vm1219 = vweird.f32 %v1212
      %vm1220 = vmor %vm1218, %vm1219
      %v1221 = vsel %vm1220, %v1212, %v1217
      %v1222 = vrsqrt.pop %v983
      %v1223 = vmul.f32 %v1222, %v983
      %v1224 = vmul.f32 %v1223, %v1222
      %v1225 = vmul.f32 0.5, %v1224
      %v1226 = vsub.f32 1.5, %v1225
      %v1227 = vmul.f32 %v1222, %v1226
      %vm1228 = vweird.f32 %v983
      %vm1229 = vweird.f32 %v1222
      %vm1230 = vmor %vm1228, %vm1229
      %v1231 = vsel %vm1230, %v1222, %v1227
      %v1232 = vrsqrt.pop %v984
      %v1233 = vmul.f32 %v1232, %v984
      %v1234 = vmul.f32 %v1233, %v1232
      %v1235 = vmul.f32 0.5, %v1234
      %v1236 = vsub.f32 1.5, %v1235
      %v1237 = vmul.f32 %v1232, %v1236
      %vm1238 = vweird.f32 %v984
      %vm1239 = vweird.f32 %v1232
      %vm1240 = vmor %vm1238, %vm1239
      %v1241 = vsel %vm1240, %v1232, %v1237
      %v1242 = vrsqrt.pop %v985
      %v1243 = vmul.f32 %v1242, %v985
      %v1244 = vmul.f32 %v1243, %v1242
      %v1245 = vmul.f32 0.5, %v1244
      %v1246 = vsub.f32 1.5, %v1245
      %v1247 = vmul.f32 %v1242, %v1246
      %vm1248 = vweird.f32 %v985
      %vm1249 = vweird.f32 %v1242
      %vm1250 = vmor %vm1248, %vm1249
      %v1251 = vsel %vm1250, %v1242, %v1247
      %v1252 = vrsqrt.pop %v986
      %v1253 = vmul.f32 %v1252, %v986
      %v1254 = vmul.f32 %v1253, %v1252
      %v1255 = vmul.f32 0.5, %v1254
      %v1256 = vsub.f32 1.5, %v1255
      %v1257 = vmul.f32 %v1252, %v1256
      %vm1258 = vweird.f32 %v986
      %vm1259 = vweird.f32 %v1252
      %vm1260 = vmor %vm1258, %vm1259
      %v1261 = vsel %vm1260, %v1252, %v1257
      %v1262 = vrsqrt.pop %v987
      %v1263 = vmul.f32 %v1262, %v987
      %v1264 = vmul.f32 %v1263, %v1262
      %v1265 = vmul.f32 0.5, %v1264
      %v1266 = vsub.f32 1.5, %v1265
      %v1267 = vmul.f32 %v1262, %v1266
      %vm1268 = vweird.f32 %v987
      %vm1269 = vweird.f32 %v1262
      %vm1270 = vmor %vm1268, %vm1269
      %v1271 = vsel %vm1270, %v1262, %v1267
      %v1272 = vrsqrt.pop %v988
      %v1273 = vmul.f32 %v1272, %v988
      %v1274 = vmul.f32 %v1273, %v1272
      %v1275 = vmul.f32 0.5, %v1274
      %v1276 = vsub.f32 1.5, %v1275
      %v1277 = vmul.f32 %v1272, %v1276
      %vm1278 = vweird.f32 %v988
      %vm1279 = vweird.f32 %v1272
      %vm1280 = vmor %vm1278, %vm1279
      %v1281 = vsel %vm1280, %v1272, %v1277
      %v1282 = vrsqrt.pop %v989
      %v1283 = vmul.f32 %v1282, %v989
      %v1284 = vmul.f32 %v1283, %v1282
      %v1285 = vmul.f32 0.5, %v1284
      %v1286 = vsub.f32 1.5, %v1285
      %v1287 = vmul.f32 %v1282, %v1286
      %vm1288 = vweird.f32 %v989
      %vm1289 = vweird.f32 %v1282
      %vm1290 = vmor %vm1288, %vm1289
      %v1291 = vsel %vm1290, %v1282, %v1287
      %v1292 = vrsqrt.pop %v990
      %v1293 = vmul.f32 %v1292, %v990
      %v1294 = vmul.f32 %v1293, %v1292
      %v1295 = vmul.f32 0.5, %v1294
      %v1296 = vsub.f32 1.5, %v1295
      %v1297 = vmul.f32 %v1292, %v1296
      %vm1298 = vweird.f32 %v990
      %vm1299 = vweird.f32 %v1292
      %vm1300 = vmor %vm1298, %vm1299
      %v1301 = vsel %vm1300, %v1292, %v1297
      %v1302 = vrsqrt.pop %v991
      %v1303 = vmul.f32 %v1302, %v991
      %v1304 = vmul.f32 %v1303, %v1302
      %v1305 = vmul.f32 0.5, %v1304
      %v1306 = vsub.f32 1.5, %v1305
      %v1307 = vmul.f32 %v1302, %v1306
      %vm1308 = vweird.f32 %v991
      %vm1309 = vweird.f32 %v1302
      %vm1310 = vmor %vm1308, %vm1309
      %v1311 = vsel %vm1310, %v1302, %v1307
      %v1312 = vmul.f32 %v768, %v1001
      %v1313 = vmul.f32 %v769, %v1011
      %v1314 = vmul.f32 %v770, %v1021
      %v1315 = vmul.f32 %v771, %v1031
      %v1316 = vmul.f32 %v772, %v1041
      %v1317 = vmul.f32 %v773, %v1051
      %v1318 = vmul.f32 %v774, %v1061
      %v1319 = vmul.f32 %v775, %v1071
      %v1320 = vmul.f32 %v776, %v1081
      %v1321 = vmul.f32 %v777, %v1091
      %v1322 = vmul.f32 %v778, %v1101
      %v1323 = vmul.f32 %v779, %v1111
      %v1324 = vmul.f32 %v780, %v1121
      %v1325 = vmul.f32 %v781, %v1131
      %v1326 = vmul.f32 %v782, %v1141
      %v1327 = vmul.f32 %v783, %v1151
      %v1328 = vmul.f32 %v784, %v1161
      %v1329 = vmul.f32 %v785, %v1171
      %v1330 = vmul.f32 %v786, %v1181
      %v1331 = vmul.f32 %v787, %v1191
      %v1332 = vmul.f32 %v788, %v1201
      %v1333 = vmul.f32 %v789, %v1211
      %v1334 = vmul.f32 %v790, %v1221
      %v1335 = vmul.f32 %v791, %v1231
      %v1336 = vmul.f32 %v792, %v1241
      %v1337 = vmul.f32 %v793, %v1251
      %v1338 = vmul.f32 %v794, %v1261
      %v1339 = vmul.f32 %v795, %v1271
      %v1340 = vmul.f32 %v796, %v1281
      %v1341 = vmul.f32 %v797, %v1291
      %v1342 = vmul.f32 %v798, %v1301
      %v1343 = vmul.f32 %v799, %v1311
      %v1345 = vperm.slane %v626, 0
      %v1347 = vmul.f32 %v1312, %v1345
      %v1348 = vmul.f32 %v1313, %v1345
      %v1349 = vmul.f32 %v1314, %v1345
      %v1350 = vmul.f32 %v1315, %v1345
      %v1351 = vmul.f32 %v1316, %v1345
      %v1352 = vmul.f32 %v1317, %v1345
      %v1353 = vmul.f32 %v1318, %v1345
      %v1354 = vmul.f32 %v1319, %v1345
      %v1355 = vmul.f32 %v1320, %v1345
      %v1356 = vmul.f32 %v1321, %v1345
      %v1357 = vmul.f32 %v1322, %v1345
      %v1358 = vmul.f32 %v1323, %v1345
      %v1359 = vmul.f32 %v1324, %v1345
      %v1360 = vmul.f32 %v1325, %v1345
      %v1361 = vmul.f32 %v1326, %v1345
      %v1362 = vmul.f32 %v1327, %v1345
      %v1363 = vmul.f32 %v1328, %v1345
      %v1364 = vmul.f32 %v1329, %v1345
      %v1365 = vmul.f32 %v1330, %v1345
      %v1366 = vmul.f32 %v1331, %v1345
      %v1367 = vmul.f32 %v1332, %v1345
      %v1368 = vmul.f32 %v1333, %v1345
      %v1369 = vmul.f32 %v1334, %v1345
      %v1370 = vmul.f32 %v1335, %v1345
      %v1371 = vmul.f32 %v1336, %v1345
      %v1372 = vmul.f32 %v1337, %v1345
      %v1373 = vmul.f32 %v1338, %v1345
      %v1374 = vmul.f32 %v1339, %v1345
      %v1375 = vmul.f32 %v1340, %v1345
      %v1376 = vmul.f32 %v1341, %v1345
      %v1377 = vmul.f32 %v1342, %v1345
      %v1378 = vmul.f32 %v1343, %v1345
      %v1380 = vperm.slane %v627, 0
      %v1382 = vadd.f32 %v1347, %v1380
      %v1383 = vadd.f32 %v1348, %v1380
      %v1384 = vadd.f32 %v1349, %v1380
      %v1385 = vadd.f32 %v1350, %v1380
      %v1386 = vadd.f32 %v1351, %v1380
      %v1387 = vadd.f32 %v1352, %v1380
      %v1388 = vadd.f32 %v1353, %v1380
      %v1389 = vadd.f32 %v1354, %v1380
      %v1390 = vadd.f32 %v1355, %v1380
      %v1391 = vadd.f32 %v1356, %v1380
      %v1392 = vadd.f32 %v1357, %v1380
      %v1393 = vadd.f32 %v1358, %v1380
      %v1394 = vadd.f32 %v1359, %v1380
      %v1395 = vadd.f32 %v1360, %v1380
      %v1396 = vadd.f32 %v1361, %v1380
      %v1397 = vadd.f32 %v1362, %v1380
      %v1398 = vadd.f32 %v1363, %v1380
      %v1399 = vadd.f32 %v1364, %v1380
      %v1400 = vadd.f32 %v1365, %v1380
      %v1401 = vadd.f32 %v1366, %v1380
      %v1402 = vadd.f32 %v1367, %v1380
      %v1403 = vadd.f32 %v1368, %v1380
      %v1404 = vadd.f32 %v1369, %v1380
      %v1405 = vadd.f32 %v1370, %v1380
      %v1406 = vadd.f32 %v1371, %v1380
      %v1407 = vadd.f32 %v1372, %v1380
      %v1408 = vadd.f32 %v1373, %v1380
      %v1409 = vadd.f32 %v1374, %v1380
      %v1410 = vadd.f32 %v1375, %v1380
      %v1411 = vadd.f32 %v1376, %v1380
      %v1412 = vadd.f32 %v1377, %v1380
      %v1413 = vadd.f32 %v1378, %v1380
      %v1414 = vmax.f32 %v1382, 0.0
      %v1415 = vmax.f32 %v1383, 0.0
      %v1416 = vmax.f32 %v1384, 0.0
      %v1417 = vmax.f32 %v1385, 0.0
      %v1418 = vmax.f32 %v1386, 0.0
      %v1419 = vmax.f32 %v1387, 0.0
      %v1420 = vmax.f32 %v1388, 0.0
      %v1421 = vmax.f32 %v1389, 0.0
      %v1422 = vmax.f32 %v1390, 0.0
      %v1423 = vmax.f32 %v1391, 0.0
      %v1424 = vmax.f32 %v1392, 0.0
      %v1425 = vmax.f32 %v1393, 0.0
      %v1426 = vmax.f32 %v1394, 0.0
      %v1427 = vmax.f32 %v1395, 0.0
      %v1428 = vmax.f32 %v1396, 0.0
      %v1429 = vmax.f32 %v1397, 0.0
      %v1430 = vmax.f32 %v1398, 0.0
      %v1431 = vmax.f32 %v1399, 0.0
      %v1432 = vmax.f32 %v1400, 0.0
      %v1433 = vmax.f32 %v1401, 0.0
      %v1434 = vmax.f32 %v1402, 0.0
      %v1435 = vmax.f32 %v1403, 0.0
      %v1436 = vmax.f32 %v1404, 0.0
      %v1437 = vmax.f32 %v1405, 0.0
      %v1438 = vmax.f32 %v1406, 0.0
      %v1439 = vmax.f32 %v1407, 0.0
      %v1440 = vmax.f32 %v1408, 0.0
      %v1441 = vmax.f32 %v1409, 0.0
      %v1442 = vmax.f32 %v1410, 0.0
      %v1443 = vmax.f32 %v1411, 0.0
      %v1444 = vmax.f32 %v1412, 0.0
      %v1445 = vmax.f32 %v1413, 0.0
      %1446 = vst.msk [vmem:[%s315] sm:$0xff] %vm632, %v1414
      %1447 = vst.msk [vmem:[%s315 + $0x8] sm:$0xff] %vm632, %v1415
      %1448 = vst.msk [vmem:[%s315 + $0x10] sm:$0xff] %vm632, %v1416
      %1449 = vst.msk [vmem:[%s315 + $0x18] sm:$0xff] %vm632, %v1417
      %1450 = vst.msk [vmem:[%s315 + $0x20] sm:$0xff] %vm632, %v1418
      %1451 = vst.msk [vmem:[%s315 + $0x28] sm:$0xff] %vm632, %v1419
      %1452 = vst.msk [vmem:[%s315 + $0x30] sm:$0xff] %vm632, %v1420
      %1453 = vst.msk [vmem:[%s315 + $0x38] sm:$0xff] %vm632, %v1421
      %1454 = vst.msk [vmem:[%s315 + $0x40] sm:$0xff] %vm632, %v1422
      %1455 = vst.msk [vmem:[%s315 + $0x48] sm:$0xff] %vm632, %v1423
      %1456 = vst.msk [vmem:[%s315 + $0x50] sm:$0xff] %vm632, %v1424
      %1457 = vst.msk [vmem:[%s315 + $0x58] sm:$0xff] %vm632, %v1425
      %1458 = vst.msk [vmem:[%s315 + $0x60] sm:$0xff] %vm632, %v1426
      %1459 = vst.msk [vmem:[%s315 + $0x68] sm:$0xff] %vm632, %v1427
      %1460 = vst.msk [vmem:[%s315 + $0x70] sm:$0xff] %vm632, %v1428
      %1461 = vst.msk [vmem:[%s315 + $0x78] sm:$0xff] %vm632, %v1429
      %1462 = vst.msk [vmem:[%s315 + $0x80] sm:$0xff] %vm632, %v1430
      %1463 = vst.msk [vmem:[%s315 + $0x88] sm:$0xff] %vm632, %v1431
      %1464 = vst.msk [vmem:[%s315 + $0x90] sm:$0xff] %vm632, %v1432
      %1465 = vst.msk [vmem:[%s315 + $0x98] sm:$0xff] %vm632, %v1433
      %1466 = vst.msk [vmem:[%s315 + $0xa0] sm:$0xff] %vm632, %v1434
      %1467 = vst.msk [vmem:[%s315 + $0xa8] sm:$0xff] %vm632, %v1435
      %1468 = vst.msk [vmem:[%s315 + $0xb0] sm:$0xff] %vm632, %v1436
      %1469 = vst.msk [vmem:[%s315 + $0xb8] sm:$0xff] %vm632, %v1437
      %1470 = vst.msk [vmem:[%s315 + $0xc0] sm:$0xff] %vm632, %v1438
      %1471 = vst.msk [vmem:[%s315 + $0xc8] sm:$0xff] %vm632, %v1439
      %1472 = vst.msk [vmem:[%s315 + $0xd0] sm:$0xff] %vm632, %v1440
      %1473 = vst.msk [vmem:[%s315 + $0xd8] sm:$0xff] %vm632, %v1441
      %1474 = vst.msk [vmem:[%s315 + $0xe0] sm:$0xff] %vm632, %v1442
      %1475 = vst.msk [vmem:[%s315 + $0xe8] sm:$0xff] %vm632, %v1443
      %1476 = vst.msk [vmem:[%s315 + $0xf0] sm:$0xff] %vm632, %v1444
      %1477 = vst.msk [vmem:[%s315 + $0xf8] sm:$0xff] %vm632, %v1445
      %v1478 = vpack.c.bf16 %v1415, %v1414
      %v1479 = vpack.c.bf16 %v1417, %v1416
      %v1480 = vpack.c.bf16 %v1419, %v1418
      %v1481 = vpack.c.bf16 %v1421, %v1420
      %v1482 = vpack.c.bf16 %v1423, %v1422
      %v1483 = vpack.c.bf16 %v1425, %v1424
      %v1484 = vpack.c.bf16 %v1427, %v1426
      %v1485 = vpack.c.bf16 %v1429, %v1428
      %v1486 = vpack.c.bf16 %v1431, %v1430
      %v1487 = vpack.c.bf16 %v1433, %v1432
      %v1488 = vpack.c.bf16 %v1435, %v1434
      %v1489 = vpack.c.bf16 %v1437, %v1436
      %v1490 = vpack.c.bf16 %v1439, %v1438
      %v1491 = vpack.c.bf16 %v1441, %v1440
      %v1492 = vpack.c.bf16 %v1443, %v1442
      %v1493 = vpack.c.bf16 %v1445, %v1444
      %v1495 = vperm.slane %v631, 0
      %v1500 = vunpack.c.l.b16 %v628
      %v1501 = vunpack.c.l.b16 %v629
      %v1502 = vunpack.c.l.b16 %v630
      %v1503 = vpack.c.b16 %v1501, %v1500
      %v1504 = vpack.c.b16 %v1502, %v1502
      %v1507 = vsel %vm632, %v1478, 0
      %v1510 = vsel %vm632, %v1479, 0
      %v1513 = vsel %vm632, %v1480, 0
      %v1516 = vsel %vm632, %v1481, 0
      %v1519 = vsel %vm632, %v1482, 0
      %v1522 = vsel %vm632, %v1483, 0
      %v1525 = vsel %vm632, %v1484, 0
      %v1528 = vsel %vm632, %v1485, 0
      %v1531 = vsel %vm632, %v1486, 0
      %v1534 = vsel %vm632, %v1487, 0
      %v1537 = vsel %vm632, %v1488, 0
      %v1540 = vsel %vm632, %v1489, 0
      %v1543 = vsel %vm632, %v1490, 0
      %v1546 = vsel %vm632, %v1491, 0
      %v1549 = vsel %vm632, %v1492, 0
      %v1552 = vsel %vm632, %v1493, 0
      %vm1554 = vcmask 1043456
      %v1556 = vsel %vm1554, %v1504, 0
      %1558 = vmatpush.bf16.msra.mxu0 0
      %1559 = vmatpush.bf16.msra.mxu0 0
      %1560 = vmatpush.bf16.msra.mxu0 0
      %1561 = vmatpush.bf16.msra.mxu0 0
      %1562 = vmatpush.bf16.msra.mxu0 0
      %1563 = vmatpush.bf16.msra.mxu0 0
      %1564 = vmatpush.bf16.msra.mxu0 %v1556
      %1565 = vmatpush.bf16.msra.mxu0 %v1503
      %1566 = vmatmul.bf16.gmra.mxu0 %v1507
      %v1567 = vpop.f32.mrf.mxu0
      %v1568 = vadd.f32 %v1495, %v1567
      %v1569 = vpop.f32.mrf.mxu0
      %v1570 = vadd.f32 %v1495, %v1569
      %1571 = vmatmul.bf16.gmra.mxu0 %v1510
      %v1572 = vpop.f32.mrf.mxu0
      %v1573 = vadd.f32 %v1495, %v1572
      %v1574 = vpop.f32.mrf.mxu0
      %v1575 = vadd.f32 %v1495, %v1574
      %1576 = vmatmul.bf16.gmra.mxu0 %v1513
      %v1577 = vpop.f32.mrf.mxu0
      %v1578 = vadd.f32 %v1495, %v1577
      %v1579 = vpop.f32.mrf.mxu0
      %v1580 = vadd.f32 %v1495, %v1579
      %1581 = vmatmul.bf16.gmra.mxu0 %v1516
      %v1582 = vpop.f32.mrf.mxu0
      %v1583 = vadd.f32 %v1495, %v1582
      %v1584 = vpop.f32.mrf.mxu0
      %v1585 = vadd.f32 %v1495, %v1584
      %1586 = vmatmul.bf16.gmra.mxu0 %v1519
      %v1587 = vpop.f32.mrf.mxu0
      %v1588 = vadd.f32 %v1495, %v1587
      %v1589 = vpop.f32.mrf.mxu0
      %v1590 = vadd.f32 %v1495, %v1589
      %1591 = vmatmul.bf16.gmra.mxu0 %v1522
      %v1592 = vpop.f32.mrf.mxu0
      %v1593 = vadd.f32 %v1495, %v1592
      %v1594 = vpop.f32.mrf.mxu0
      %v1595 = vadd.f32 %v1495, %v1594
      %1596 = vmatmul.bf16.gmra.mxu0 %v1525
      %v1597 = vpop.f32.mrf.mxu0
      %v1598 = vadd.f32 %v1495, %v1597
      %v1599 = vpop.f32.mrf.mxu0
      %v1600 = vadd.f32 %v1495, %v1599
      %1601 = vmatmul.bf16.gmra.mxu0 %v1528
      %v1602 = vpop.f32.mrf.mxu0
      %v1603 = vadd.f32 %v1495, %v1602
      %v1604 = vpop.f32.mrf.mxu0
      %v1605 = vadd.f32 %v1495, %v1604
      %1606 = vmatmul.bf16.gmra.mxu0 %v1531
      %v1607 = vpop.f32.mrf.mxu0
      %v1608 = vadd.f32 %v1495, %v1607
      %v1609 = vpop.f32.mrf.mxu0
      %v1610 = vadd.f32 %v1495, %v1609
      %1611 = vmatmul.bf16.gmra.mxu0 %v1534
      %v1612 = vpop.f32.mrf.mxu0
      %v1613 = vadd.f32 %v1495, %v1612
      %v1614 = vpop.f32.mrf.mxu0
      %v1615 = vadd.f32 %v1495, %v1614
      %1616 = vmatmul.bf16.gmra.mxu0 %v1537
      %v1617 = vpop.f32.mrf.mxu0
      %v1618 = vadd.f32 %v1495, %v1617
      %v1619 = vpop.f32.mrf.mxu0
      %v1620 = vadd.f32 %v1495, %v1619
      %1621 = vmatmul.bf16.gmra.mxu0 %v1540
      %v1622 = vpop.f32.mrf.mxu0
      %v1623 = vadd.f32 %v1495, %v1622
      %v1624 = vpop.f32.mrf.mxu0
      %v1625 = vadd.f32 %v1495, %v1624
      %1626 = vmatmul.bf16.gmra.mxu0 %v1543
      %v1627 = vpop.f32.mrf.mxu0
      %v1628 = vadd.f32 %v1495, %v1627
      %v1629 = vpop.f32.mrf.mxu0
      %v1630 = vadd.f32 %v1495, %v1629
      %1631 = vmatmul.bf16.gmra.mxu0 %v1546
      %v1632 = vpop.f32.mrf.mxu0
      %v1633 = vadd.f32 %v1495, %v1632
      %v1634 = vpop.f32.mrf.mxu0
      %v1635 = vadd.f32 %v1495, %v1634
      %1636 = vmatmul.bf16.gmra.mxu0 %v1549
      %v1637 = vpop.f32.mrf.mxu0
      %v1638 = vadd.f32 %v1495, %v1637
      %v1639 = vpop.f32.mrf.mxu0
      %v1640 = vadd.f32 %v1495, %v1639
      %1641 = vmatmul.bf16.gmra.mxu0 %v1552
      %v1642 = vpop.f32.mrf.mxu0
      %v1643 = vadd.f32 %v1495, %v1642
      %v1644 = vpop.f32.mrf.mxu0
      %v1645 = vadd.f32 %v1495, %v1644
      %1646 = vdwg.mxu0
      %v1647 = vmax.f32 %v1568, 0.0
      %v1648 = vmax.f32 %v1570, 0.0
      %v1649 = vmax.f32 %v1573, 0.0
      %v1650 = vmax.f32 %v1575, 0.0
      %v1651 = vmax.f32 %v1578, 0.0
      %v1652 = vmax.f32 %v1580, 0.0
      %v1653 = vmax.f32 %v1583, 0.0
      %v1654 = vmax.f32 %v1585, 0.0
      %v1655 = vmax.f32 %v1588, 0.0
      %v1656 = vmax.f32 %v1590, 0.0
      %v1657 = vmax.f32 %v1593, 0.0
      %v1658 = vmax.f32 %v1595, 0.0
      %v1659 = vmax.f32 %v1598, 0.0
      %v1660 = vmax.f32 %v1600, 0.0
      %v1661 = vmax.f32 %v1603, 0.0
      %v1662 = vmax.f32 %v1605, 0.0
      %v1663 = vmax.f32 %v1608, 0.0
      %v1664 = vmax.f32 %v1610, 0.0
      %v1665 = vmax.f32 %v1613, 0.0
      %v1666 = vmax.f32 %v1615, 0.0
      %v1667 = vmax.f32 %v1618, 0.0
      %v1668 = vmax.f32 %v1620, 0.0
      %v1669 = vmax.f32 %v1623, 0.0
      %v1670 = vmax.f32 %v1625, 0.0
      %v1671 = vmax.f32 %v1628, 0.0
      %v1672 = vmax.f32 %v1630, 0.0
      %v1673 = vmax.f32 %v1633, 0.0
      %v1674 = vmax.f32 %v1635, 0.0
      %v1675 = vmax.f32 %v1638, 0.0
      %v1676 = vmax.f32 %v1640, 0.0
      %v1677 = vmax.f32 %v1643, 0.0
      %v1678 = vmax.f32 %v1645, 0.0
      %v1679 = vpack.c.bf16 %v1647, %v1647
      %v1680 = vpack.c.bf16 %v1648, %v1648
      %v1681 = vpack.c.bf16 %v1649, %v1649
      %v1682 = vpack.c.bf16 %v1650, %v1650
      %v1683 = vpack.c.bf16 %v1651, %v1651
      %v1684 = vpack.c.bf16 %v1652, %v1652
      %v1685 = vpack.c.bf16 %v1653, %v1653
      %v1686 = vpack.c.bf16 %v1654, %v1654
      %v1687 = vpack.c.bf16 %v1655, %v1655
      %v1688 = vpack.c.bf16 %v1656, %v1656
      %v1689 = vpack.c.bf16 %v1657, %v1657
      %v1690 = vpack.c.bf16 %v1658, %v1658
      %v1691 = vpack.c.bf16 %v1659, %v1659
      %v1692 = vpack.c.bf16 %v1660, %v1660
      %v1693 = vpack.c.bf16 %v1661, %v1661
      %v1694 = vpack.c.bf16 %v1662, %v1662
      %v1695 = vpack.c.bf16 %v1663, %v1663
      %v1696 = vpack.c.bf16 %v1664, %v1664
      %v1697 = vpack.c.bf16 %v1665, %v1665
      %v1698 = vpack.c.bf16 %v1666, %v1666
      %v1699 = vpack.c.bf16 %v1667, %v1667
      %v1700 = vpack.c.bf16 %v1668, %v1668
      %v1701 = vpack.c.bf16 %v1669, %v1669
      %v1702 = vpack.c.bf16 %v1670, %v1670
      %v1703 = vpack.c.bf16 %v1671, %v1671
      %v1704 = vpack.c.bf16 %v1672, %v1672
      %v1705 = vpack.c.bf16 %v1673, %v1673
      %v1706 = vpack.c.bf16 %v1674, %v1674
      %v1707 = vpack.c.bf16 %v1675, %v1675
      %v1708 = vpack.c.bf16 %v1676, %v1676
      %v1709 = vpack.c.bf16 %v1677, %v1677
      %v1710 = vpack.c.bf16 %v1678, %v1678
      %vm1711 = vcmask 93184
      %1712 = vst.msk [vmem:[%s321] sm:$0xf] %vm1711, %v1679
      %1713 = vst.msk [vmem:[%s321 + $0x4] sm:$0xf] %vm1711, %v1680
      %1714 = vst.msk [vmem:[%s321 + $0x8] sm:$0xf] %vm1711, %v1681
      %1715 = vst.msk [vmem:[%s321 + $0xc] sm:$0xf] %vm1711, %v1682
      %1716 = vst.msk [vmem:[%s321 + $0x10] sm:$0xf] %vm1711, %v1683
      %1717 = vst.msk [vmem:[%s321 + $0x14] sm:$0xf] %vm1711, %v1684
      %1718 = vst.msk [vmem:[%s321 + $0x18] sm:$0xf] %vm1711, %v1685
      %1719 = vst.msk [vmem:[%s321 + $0x1c] sm:$0xf] %vm1711, %v1686
      %1720 = vst.msk [vmem:[%s321 + $0x20] sm:$0xf] %vm1711, %v1687
      %1721 = vst.msk [vmem:[%s321 + $0x24] sm:$0xf] %vm1711, %v1688
      %1722 = vst.msk [vmem:[%s321 + $0x28] sm:$0xf] %vm1711, %v1689
      %1723 = vst.msk [vmem:[%s321 + $0x2c] sm:$0xf] %vm1711, %v1690
      %1724 = vst.msk [vmem:[%s321 + $0x30] sm:$0xf] %vm1711, %v1691
      %1725 = vst.msk [vmem:[%s321 + $0x34] sm:$0xf] %vm1711, %v1692
      %1726 = vst.msk [vmem:[%s321 + $0x38] sm:$0xf] %vm1711, %v1693
      %1727 = vst.msk [vmem:[%s321 + $0x3c] sm:$0xf] %vm1711, %v1694
      %1728 = vst.msk [vmem:[%s321 + $0x40] sm:$0xf] %vm1711, %v1695
      %1729 = vst.msk [vmem:[%s321 + $0x44] sm:$0xf] %vm1711, %v1696
      %1730 = vst.msk [vmem:[%s321 + $0x48] sm:$0xf] %vm1711, %v1697
      %1731 = vst.msk [vmem:[%s321 + $0x4c] sm:$0xf] %vm1711, %v1698
      %1732 = vst.msk [vmem:[%s321 + $0x50] sm:$0xf] %vm1711, %v1699
      %1733 = vst.msk [vmem:[%s321 + $0x54] sm:$0xf] %vm1711, %v1700
      %1734 = vst.msk [vmem:[%s321 + $0x58] sm:$0xf] %vm1711, %v1701
      %1735 = vst.msk [vmem:[%s321 + $0x5c] sm:$0xf] %vm1711, %v1702
      %1736 = vst.msk [vmem:[%s321 + $0x60] sm:$0xf] %vm1711, %v1703
      %1737 = vst.msk [vmem:[%s321 + $0x64] sm:$0xf] %vm1711, %v1704
      %1738 = vst.msk [vmem:[%s321 + $0x68] sm:$0xf] %vm1711, %v1705
      %1739 = vst.msk [vmem:[%s321 + $0x6c] sm:$0xf] %vm1711, %v1706
      %1740 = vst.msk [vmem:[%s321 + $0x70] sm:$0xf] %vm1711, %v1707
      %1741 = vst.msk [vmem:[%s321 + $0x74] sm:$0xf] %vm1711, %v1708
      %1742 = vst.msk [vmem:[%s321 + $0x78] sm:$0xf] %vm1711, %v1709
      %1743 = vst.msk [vmem:[%s321 + $0x7c] sm:$0xf] %vm1711, %v1710
      %s1744 = smul.u32 32, %s20
      %p1745 = scmp.lt.s32.totalorder %s1744, 63
      %s1746 = scalar_select %p1745, %s1744, 63
      %s1747 = smul.addr %s1746, 8
      %s1748 = scalar_lea.vmem %s7, %s1747
      %s1749 = smul.u32 32, %s20
      %p1750 = scmp.lt.s32.totalorder %s1749, 63
      %s1751 = scalar_select %p1750, %s1749, 63
      %s1752 = smul.addr %s1751, 4
      %s1753 = scalar_lea.vmem %s8, %s1752
      // Predicated region
      $region49: #{_lambda_.3} parent=47 // pred_check
        %p1754 = pneg %p190
      $region50: #{_lambda_.3} parent=47 // pred_check_branch
        %1756 = sbr.rel (%p1754) target = $region52
      $region51: #{_lambda_.3} parent=47 // pred_region
        %s1757 = smul.u32 32, %s20
      $region52: #{_lambda_.3} parent=47 // pred_fallthru
        _
      // Predicated region
      $region53: #{_lambda_.3} parent=47 // pred_check
        %p1758 = pneg %p216
      $region54: #{_lambda_.3} parent=47 // pred_check_branch
        %1760 = sbr.rel (%p1758) target = $region56
      $region55: #{_lambda_.3} parent=47 // pred_region
        %s1761 = smul.u32 32, %s20
      $region56: #{_lambda_.3} parent=47 // pred_fallthru
        _
    $region48: #{_lambda_.3} parent=5 // pred_fallthru
      _
    %p1762 = scmp.le.s32.totalorder 2, %s15
    // Predicated region
    $region57: #{_lambda_.3} parent=5 // pred_check
      %p1763 = pneg %p1762
    $region58: #{_lambda_.3} parent=5 // pred_check_branch
      %1765 = sbr.rel (%p1763) target = $region60
    $region59: #{_lambda_.3} parent=5 // pred_region
      %s1766 = ssub.s32 %s15, 2
      // Predicated region
      $region61: #{_lambda_.3} parent=59 // pred_check
        %p1767 = pneg %p196
      $region62: #{_lambda_.3} parent=59 // pred_check_branch
        %1769 = sbr.rel (%p1767) target = $region64
      $region63: #{_lambda_.3} parent=59 // pred_region
        %s1770 = smul.u32 32, %s21
        %p1771 = scmp.lt.s32.totalorder %s1770, 63
        %s1772 = scalar_select %p1771, %s1770, 63
        %s1773 = smul.addr %s1772, 8
        %s1774 = scalar_lea.vmem %s7, %s1773
      $region64: #{_lambda_.3} parent=59 // pred_fallthru
        _
      // Predicated region
      $region65: #{_lambda_.3} parent=59 // pred_check
        %p1775 = pneg %p222
      $region66: #{_lambda_.3} parent=59 // pred_check_branch
        %1777 = sbr.rel (%p1775) target = $region68
      $region67: #{_lambda_.3} parent=59 // pred_region
        %s1778 = smul.u32 32, %s21
        %p1779 = scmp.lt.s32.totalorder %s1778, 63
        %s1780 = scalar_select %p1779, %s1778, 63
        %s1781 = smul.addr %s1780, 4
        %s1782 = scalar_lea.vmem %s8, %s1781
      $region68: #{_lambda_.3} parent=59 // pred_fallthru
        _
    $region60: #{_lambda_.3} parent=5 // pred_fallthru
      _
  $region6: #{_lambda_.3} parent=0 // loop_footer
    %s19 = sadd.s32 1, %s15
  $region7: #{_lambda_.3} parent=0 // loop_footer_branch
    %14 = sbr.rel target = $region3
  $region8: #{_lambda_.3} parent=0 // loop_exit
    _

// kernel: _lambda_.5
$region0: #{_lambda_.5}
  #allocation0 [shape = 'u32[]', space=smem, size = 0x4, offset = 0x4, fixed_abs, tag = 'smem constant byte address 0x4 - core index']
  #allocation1 [shape = 'u32[72,128]{1,0:T(1,128)}', space=vmem, size = 0x9000, scoped, tag = 'internal scratch']
  %s0 = inlined_call_operand.vmem [shape: bf16[512,300], index: 0, kind: input, shape index: {}]
  %s1 = inlined_call_operand.vmem [shape: f32[512,24], index: 1, kind: input, shape index: {}]
  %s2 = inlined_call_operand.vmem [shape: bf16[300,12], index: 2, kind: input, shape index: {}]
  %s3 = inlined_call_operand.vmem [shape: f32[1,12], index: 3, kind: input, shape index: {}]
  %s4 = inlined_call_operand.vmem [shape: bf16[12,24], index: 4, kind: input, shape index: {}]
  %s5 = inlined_call_operand.vmem [shape: f32[1,24], index: 5, kind: input, shape index: {}]
  %s6 = inlined_call_operand.vmem [shape: bf16[24,24], index: 6, kind: input, shape index: {}]
  %s7 = inlined_call_operand.vmem [shape: f32[1,24], index: 7, kind: input, shape index: {}]
  %s8 = inlined_call_operand.vmem [shape: bf16[24,24], index: 8, kind: input, shape index: {}]
  %s9 = inlined_call_operand.vmem [shape: f32[1,24], index: 9, kind: input, shape index: {}]
  %s10 = inlined_call_operand.vmem [shape: f32[512,24], index: 10, kind: output, shape index: {}]
  %s11 = sld [smem:[#allocation0]]
  $region73: #{_lambda_.5} parent=0
    _
  %s13 = ssub.s32 1, %s11
  %s14 = scalar_select 0, %s13, %s11
  loop: start=0, step=1, limit=4
  $region2: #{_lambda_.5} parent=0 // loop_pre_header
    _
  $region3: #{_lambda_.5} parent=0 // loop_header
    %s16 = sphi 0, %s20
    %p17 = scmp.ge.s32.totalorder %s16, 4
    %s26 = sphi 0, %s28
    %s29 = sphi 0, %s26
    %s30 = sphi 0, %s29
    %s46 = sphi 0, %s30
    %s52 = sphi 0, %s54
    %s55 = sphi 0, %s52
    %s56 = sphi 0, %s55
    %s72 = sphi 0, %s56
    %s76 = sphi 0, %s76
    %s78 = sphi 0, %s76
    %s79 = sphi 0, %s78
    %s93 = sphi 0, %s79
    %s97 = sphi 0, %s97
    %s99 = sphi 0, %s97
    %s100 = sphi 0, %s99
    %s114 = sphi 0, %s100
    %s118 = sphi 0, %s118
    %s120 = sphi 0, %s118
    %s121 = sphi 0, %s120
    %s135 = sphi 0, %s121
    %s139 = sphi 0, %s139
    %s141 = sphi 0, %s139
    %s142 = sphi 0, %s141
    %s156 = sphi 0, %s142
    %s160 = sphi 0, %s160
    %s162 = sphi 0, %s160
    %s163 = sphi 0, %s162
    %s177 = sphi 0, %s163
    %s181 = sphi 0, %s181
    %s183 = sphi 0, %s181
    %s184 = sphi 0, %s183
    %s198 = sphi 0, %s184
    %s202 = sphi 0, %s202
    %s204 = sphi 0, %s202
    %s205 = sphi 0, %s204
    %s219 = sphi 0, %s205
    %s223 = sphi 0, %s223
    %s225 = sphi 0, %s223
    %s226 = sphi 0, %s225
    %s240 = sphi 0, %s226
    %s246 = sphi 0, %s248
    %s249 = sphi 0, %s246
    %s250 = sphi 0, %s249
    %s266 = sphi 0, %s250
  $region4: #{_lambda_.5} parent=0 // loop_header_branch
    %19 = sbr.rel (%p17) target = $region8
  $region5: #{_lambda_.5} parent=0 // loop_body
    %s21 = ssub.s32 %s16, 1
    %s22 = ssub.s32 %s16, 2
    %s23 = sadd.s32 %s16, 1
    %s24 = ssub.s32 %s16, %s23
    %p25 = scmp.eq.s32.totalorder %s24, 0
    %s27 = sadd.s32 %s26, 1
    %s28 = scalar_select %p25, %s26, %s27
    %p31 = pneg %p25
    %p32 = scmp.eq.s32.totalorder %s16, 1
    %p33 = por %p31, %p32
    %p34 = scmp.ne.s32.totalorder %s26, %s29
    %p35 = scmp.eq.s32.totalorder %s16, 0
    %p36 = por %p34, %p35
    %p37 = scmp.ne.s32.totalorder %s26, %s29
    %p38 = scmp.eq.s32.totalorder %s21, 1
    %p39 = por %p37, %p38
    %p40 = scmp.ne.s32.totalorder %s29, %s30
    %p41 = scmp.eq.s32.totalorder %s21, 0
    %p42 = por %p40, %p41
    %p43 = scmp.ne.s32.totalorder %s29, %s30
    %p44 = scmp.eq.s32.totalorder %s22, 1
    %p45 = por %p43, %p44
    %p47 = scmp.ne.s32.totalorder %s30, %s46
    %p48 = scmp.eq.s32.totalorder %s22, 0
    %p49 = por %p47, %p48
    %s50 = ssub.s32 %s16, %s23
    %p51 = scmp.eq.s32.totalorder %s50, 0
    %s53 = sadd.s32 %s52, 1
    %s54 = scalar_select %p51, %s52, %s53
    %p57 = pneg %p51
    %p58 = scmp.eq.s32.totalorder %s16, 1
    %p59 = por %p57, %p58
    %p60 = scmp.ne.s32.totalorder %s52, %s55
    %p61 = scmp.eq.s32.totalorder %s16, 0
    %p62 = por %p60, %p61
    %p63 = scmp.ne.s32.totalorder %s52, %s55
    %p64 = scmp.eq.s32.totalorder %s21, 1
    %p65 = por %p63, %p64
    %p66 = scmp.ne.s32.totalorder %s55, %s56
    %p67 = scmp.eq.s32.totalorder %s21, 0
    %p68 = por %p66, %p67
    %p69 = scmp.ne.s32.totalorder %s55, %s56
    %p70 = scmp.eq.s32.totalorder %s22, 1
    %p71 = por %p69, %p70
    %p73 = scmp.ne.s32.totalorder %s56, %s72
    %p74 = scmp.eq.s32.totalorder %s22, 0
    %p75 = por %p73, %p74
    %s77 = sadd.s32 %s76, 1
    %p80 = scmp.eq.s32.totalorder %s16, 1
    %p81 = scmp.ne.s32.totalorder %s76, %s78
    %p82 = scmp.eq.s32.totalorder %s16, 0
    %p83 = por %p81, %p82
    %p84 = scmp.ne.s32.totalorder %s76, %s78
    %p85 = scmp.eq.s32.totalorder %s21, 1
    %p86 = por %p84, %p85
    %p87 = scmp.ne.s32.totalorder %s78, %s79
    %p88 = scmp.eq.s32.totalorder %s21, 0
    %p89 = por %p87, %p88
    %p90 = scmp.ne.s32.totalorder %s78, %s79
    %p91 = scmp.eq.s32.totalorder %s22, 1
    %p92 = por %p90, %p91
    %p94 = scmp.ne.s32.totalorder %s79, %s93
    %p95 = scmp.eq.s32.totalorder %s22, 0
    %p96 = por %p94, %p95
    %s98 = sadd.s32 %s97, 1
    %p101 = scmp.eq.s32.totalorder %s16, 1
    %p102 = scmp.ne.s32.totalorder %s97, %s99
    %p103 = scmp.eq.s32.totalorder %s16, 0
    %p104 = por %p102, %p103
    %p105 = scmp.ne.s32.totalorder %s97, %s99
    %p106 = scmp.eq.s32.totalorder %s21, 1
    %p107 = por %p105, %p106
    %p108 = scmp.ne.s32.totalorder %s99, %s100
    %p109 = scmp.eq.s32.totalorder %s21, 0
    %p110 = por %p108, %p109
    %p111 = scmp.ne.s32.totalorder %s99, %s100
    %p112 = scmp.eq.s32.totalorder %s22, 1
    %p113 = por %p111, %p112
    %p115 = scmp.ne.s32.totalorder %s100, %s114
    %p116 = scmp.eq.s32.totalorder %s22, 0
    %p117 = por %p115, %p116
    %s119 = sadd.s32 %s118, 1
    %p122 = scmp.eq.s32.totalorder %s16, 1
    %p123 = scmp.ne.s32.totalorder %s118, %s120
    %p124 = scmp.eq.s32.totalorder %s16, 0
    %p125 = por %p123, %p124
    %p126 = scmp.ne.s32.totalorder %s118, %s120
    %p127 = scmp.eq.s32.totalorder %s21, 1
    %p128 = por %p126, %p127
    %p129 = scmp.ne.s32.totalorder %s120, %s121
    %p130 = scmp.eq.s32.totalorder %s21, 0
    %p131 = por %p129, %p130
    %p132 = scmp.ne.s32.totalorder %s120, %s121
    %p133 = scmp.eq.s32.totalorder %s22, 1
    %p134 = por %p132, %p133
    %p136 = scmp.ne.s32.totalorder %s121, %s135
    %p137 = scmp.eq.s32.totalorder %s22, 0
    %p138 = por %p136, %p137
    %s140 = sadd.s32 %s139, 1
    %p143 = scmp.eq.s32.totalorder %s16, 1
    %p144 = scmp.ne.s32.totalorder %s139, %s141
    %p145 = scmp.eq.s32.totalorder %s16, 0
    %p146 = por %p144, %p145
    %p147 = scmp.ne.s32.totalorder %s139, %s141
    %p148 = scmp.eq.s32.totalorder %s21, 1
    %p149 = por %p147, %p148
    %p150 = scmp.ne.s32.totalorder %s141, %s142
    %p151 = scmp.eq.s32.totalorder %s21, 0
    %p152 = por %p150, %p151
    %p153 = scmp.ne.s32.totalorder %s141, %s142
    %p154 = scmp.eq.s32.totalorder %s22, 1
    %p155 = por %p153, %p154
    %p157 = scmp.ne.s32.totalorder %s142, %s156
    %p158 = scmp.eq.s32.totalorder %s22, 0
    %p159 = por %p157, %p158
    %s161 = sadd.s32 %s160, 1
    %p164 = scmp.eq.s32.totalorder %s16, 1
    %p165 = scmp.ne.s32.totalorder %s160, %s162
    %p166 = scmp.eq.s32.totalorder %s16, 0
    %p167 = por %p165, %p166
    %p168 = scmp.ne.s32.totalorder %s160, %s162
    %p169 = scmp.eq.s32.totalorder %s21, 1
    %p170 = por %p168, %p169
    %p171 = scmp.ne.s32.totalorder %s162, %s163
    %p172 = scmp.eq.s32.totalorder %s21, 0
    %p173 = por %p171, %p172
    %p174 = scmp.ne.s32.totalorder %s162, %s163
    %p175 = scmp.eq.s32.totalorder %s22, 1
    %p176 = por %p174, %p175
    %p178 = scmp.ne.s32.totalorder %s163, %s177
    %p179 = scmp.eq.s32.totalorder %s22, 0
    %p180 = por %p178, %p179
    %s182 = sadd.s32 %s181, 1
    %p185 = scmp.eq.s32.totalorder %s16, 1
    %p186 = scmp.ne.s32.totalorder %s181, %s183
    %p187 = scmp.eq.s32.totalorder %s16, 0
    %p188 = por %p186, %p187
    %p189 = scmp.ne.s32.totalorder %s181, %s183
    %p190 = scmp.eq.s32.totalorder %s21, 1
    %p191 = por %p189, %p190
    %p192 = scmp.ne.s32.totalorder %s183, %s184
    %p193 = scmp.eq.s32.totalorder %s21, 0
    %p194 = por %p192, %p193
    %p195 = scmp.ne.s32.totalorder %s183, %s184
    %p196 = scmp.eq.s32.totalorder %s22, 1
    %p197 = por %p195, %p196
    %p199 = scmp.ne.s32.totalorder %s184, %s198
    %p200 = scmp.eq.s32.totalorder %s22, 0
    %p201 = por %p199, %p200
    %s203 = sadd.s32 %s202, 1
    %p206 = scmp.eq.s32.totalorder %s16, 1
    %p207 = scmp.ne.s32.totalorder %s202, %s204
    %p208 = scmp.eq.s32.totalorder %s16, 0
    %p209 = por %p207, %p208
    %p210 = scmp.ne.s32.totalorder %s202, %s204
    %p211 = scmp.eq.s32.totalorder %s21, 1
    %p212 = por %p210, %p211
    %p213 = scmp.ne.s32.totalorder %s204, %s205
    %p214 = scmp.eq.s32.totalorder %s21, 0
    %p215 = por %p213, %p214
    %p216 = scmp.ne.s32.totalorder %s204, %s205
    %p217 = scmp.eq.s32.totalorder %s22, 1
    %p218 = por %p216, %p217
    %p220 = scmp.ne.s32.totalorder %s205, %s219
    %p221 = scmp.eq.s32.totalorder %s22, 0
    %p222 = por %p220, %p221
    %s224 = sadd.s32 %s223, 1
    %p227 = scmp.eq.s32.totalorder %s16, 1
    %p228 = scmp.ne.s32.totalorder %s223, %s225
    %p229 = scmp.eq.s32.totalorder %s16, 0
    %p230 = por %p228, %p229
    %p231 = scmp.ne.s32.totalorder %s223, %s225
    %p232 = scmp.eq.s32.totalorder %s21, 1
    %p233 = por %p231, %p232
    %p234 = scmp.ne.s32.totalorder %s225, %s226
    %p235 = scmp.eq.s32.totalorder %s21, 0
    %p236 = por %p234, %p235
    %p237 = scmp.ne.s32.totalorder %s225, %s226
    %p238 = scmp.eq.s32.totalorder %s22, 1
    %p239 = por %p237, %p238
    %p241 = scmp.ne.s32.totalorder %s226, %s240
    %p242 = scmp.eq.s32.totalorder %s22, 0
    %p243 = por %p241, %p242
    %s244 = ssub.s32 %s16, %s23
    %p245 = scmp.eq.s32.totalorder %s244, 0
    %s247 = sadd.s32 %s246, 1
    %s248 = scalar_select %p245, %s246, %s247
    %p251 = pneg %p245
    %p252 = scmp.eq.s32.totalorder %s16, 1
    %p253 = por %p251, %p252
    %p254 = scmp.ne.s32.totalorder %s246, %s249
    %p255 = scmp.eq.s32.totalorder %s16, 0
    %p256 = por %p254, %p255
    %p257 = scmp.ne.s32.totalorder %s246, %s249
    %p258 = scmp.eq.s32.totalorder %s21, 1
    %p259 = por %p257, %p258
    %p260 = scmp.ne.s32.totalorder %s249, %s250
    %p261 = scmp.eq.s32.totalorder %s21, 0
    %p262 = por %p260, %p261
    %p263 = scmp.ne.s32.totalorder %s249, %s250
    %p264 = scmp.eq.s32.totalorder %s22, 1
    %p265 = por %p263, %p264
    %p267 = scmp.ne.s32.totalorder %s250, %s266
    %p268 = scmp.eq.s32.totalorder %s22, 0
    %p269 = por %p267, %p268
    %p270 = scmp.le.s32.totalorder 1, %s16
    %p271 = scmp.lt.s32.totalorder %s16, 3
    %p272 = pnand %p270, %p271
    %p273 = pneg %p272
    // Predicated region
    $region9: #{_lambda_.5} parent=5 // pred_check
      _
    $region10: #{_lambda_.5} parent=5 // pred_check_branch
      %275 = sbr.rel (%p272) target = $region12
    $region11: #{_lambda_.5} parent=5 // pred_region
      %s276 = ssub.s32 %s16, 1
      // Predicated region
      $region13: #{_lambda_.5} parent=11 // pred_check
        %p277 = pneg %p89
      $region14: #{_lambda_.5} parent=11 // pred_check_branch
        %279 = sbr.rel (%p277) target = $region16
      $region15: #{_lambda_.5} parent=11 // pred_region
        _
      $region16: #{_lambda_.5} parent=11 // pred_fallthru
        _
      // Predicated region
      $region17: #{_lambda_.5} parent=11 // pred_check
        %p280 = pneg %p110
      $region18: #{_lambda_.5} parent=11 // pred_check_branch
        %282 = sbr.rel (%p280) target = $region20
      $region19: #{_lambda_.5} parent=11 // pred_region
        _
      $region20: #{_lambda_.5} parent=11 // pred_fallthru
        _
      // Predicated region
      $region21: #{_lambda_.5} parent=11 // pred_check
        %p283 = pneg %p131
      $region22: #{_lambda_.5} parent=11 // pred_check_branch
        %285 = sbr.rel (%p283) target = $region24
      $region23: #{_lambda_.5} parent=11 // pred_region
        _
      $region24: #{_lambda_.5} parent=11 // pred_fallthru
        _
      // Predicated region
      $region25: #{_lambda_.5} parent=11 // pred_check
        %p286 = pneg %p152
      $region26: #{_lambda_.5} parent=11 // pred_check_branch
        %288 = sbr.rel (%p286) target = $region28
      $region27: #{_lambda_.5} parent=11 // pred_region
        _
      $region28: #{_lambda_.5} parent=11 // pred_fallthru
        _
      // Predicated region
      $region29: #{_lambda_.5} parent=11 // pred_check
        %p289 = pneg %p173
      $region30: #{_lambda_.5} parent=11 // pred_check_branch
        %291 = sbr.rel (%p289) target = $region32
      $region31: #{_lambda_.5} parent=11 // pred_region
        _
      $region32: #{_lambda_.5} parent=11 // pred_fallthru
        _
      // Predicated region
      $region33: #{_lambda_.5} parent=11 // pred_check
        %p292 = pneg %p194
      $region34: #{_lambda_.5} parent=11 // pred_check_branch
        %294 = sbr.rel (%p292) target = $region36
      $region35: #{_lambda_.5} parent=11 // pred_region
        _
      $region36: #{_lambda_.5} parent=11 // pred_fallthru
        _
      // Predicated region
      $region37: #{_lambda_.5} parent=11 // pred_check
        %p295 = pneg %p215
      $region38: #{_lambda_.5} parent=11 // pred_check_branch
        %297 = sbr.rel (%p295) target = $region40
      $region39: #{_lambda_.5} parent=11 // pred_region
        _
      $region40: #{_lambda_.5} parent=11 // pred_fallthru
        _
      // Predicated region
      $region41: #{_lambda_.5} parent=11 // pred_check
        %p298 = pneg %p236
      $region42: #{_lambda_.5} parent=11 // pred_check_branch
        %300 = sbr.rel (%p298) target = $region44
      $region43: #{_lambda_.5} parent=11 // pred_region
        _
      $region44: #{_lambda_.5} parent=11 // pred_fallthru
        _
    $region12: #{_lambda_.5} parent=5 // pred_fallthru
      _
    %p301 = scmp.lt.s32.totalorder %s16, 2
    // Predicated region
    $region45: #{_lambda_.5} parent=5 // pred_check
      %p302 = pneg %p301
    $region46: #{_lambda_.5} parent=5 // pred_check_branch
      %304 = sbr.rel (%p302) target = $region48
    $region47: #{_lambda_.5} parent=5 // pred_region
      // Predicated region
      $region49: #{_lambda_.5} parent=47 // pred_check
        %p305 = pneg %p36
      $region50: #{_lambda_.5} parent=47 // pred_check_branch
        %307 = sbr.rel (%p305) target = $region52
      $region51: #{_lambda_.5} parent=47 // pred_region
        %s308 = smul.u32 32, %s16
        %p309 = scmp.lt.s32.totalorder %s308, 63
        %s310 = scalar_select %p309, %s308, 63
        %s311 = smul.addr %s310, 3
        %s312 = smul.addr %s311, 4
        %s313 = scalar_lea.vmem %s0, %s312
        %s314 = smul.u32 32, %s16
      $region52: #{_lambda_.5} parent=47 // pred_fallthru
        _
      // Predicated region
      $region53: #{_lambda_.5} parent=47 // pred_check
        %p315 = pneg %p62
      $region54: #{_lambda_.5} parent=47 // pred_check_branch
        %317 = sbr.rel (%p315) target = $region56
      $region55: #{_lambda_.5} parent=47 // pred_region
        %s318 = smul.u32 32, %s16
        %p319 = scmp.lt.s32.totalorder %s318, 63
        %s320 = scalar_select %p319, %s318, 63
        %s321 = smul.addr %s320, 8
        %s322 = scalar_lea.vmem %s1, %s321
        %s323 = smul.u32 32, %s16
      $region56: #{_lambda_.5} parent=47 // pred_fallthru
        _
    $region48: #{_lambda_.5} parent=5 // pred_fallthru
      _
    %p324 = scmp.le.s32.totalorder 1, %s16
    %p325 = scmp.lt.s32.totalorder %s16, 3
    %p326 = pnand %p324, %p325
    %p327 = pneg %p326
    // Predicated region
    $region57: #{_lambda_.5} parent=5 // pred_check
      _
    $region58: #{_lambda_.5} parent=5 // pred_check_branch
      %329 = sbr.rel (%p326) target = $region60
    $region59: #{_lambda_.5} parent=5 // pred_region
      %s330 = ssub.s32 %s16, 1
      %s331 = smul.u32 32, %s21
      %p332 = scmp.lt.s32.totalorder %s331, 63
      %s333 = scalar_select %p332, %s331, 63
      %s334 = smul.addr %s333, 3
      %s335 = smul.addr %s334, 4
      %s336 = scalar_lea.vmem %s0, %s335
      %p337 = pneg %p42
      %p338 = pneg %p39
      %s339 = smul.u32 32, %s21
      %p340 = scmp.lt.s32.totalorder %s339, 63
      %s341 = scalar_select %p340, %s339, 63
      %s342 = smul.addr %s341, 8
      %s343 = scalar_lea.vmem %s1, %s342
      %p344 = pneg %p68
      %p345 = pneg %p65
      %p346 = pneg %p89
      %p347 = pneg %p86
      %p348 = pneg %p110
      %p349 = pneg %p107
      %p350 = pneg %p131
      %p351 = pneg %p128
      %p352 = pneg %p152
      %p353 = pneg %p149
      %p354 = pneg %p173
      %p355 = pneg %p170
      %p356 = pneg %p194
      %p357 = pneg %p191
      %p358 = pneg %p215
      %p359 = pneg %p212
      %p360 = pneg %p236
      %p361 = pneg %p233
      %p362 = pneg %p262
      %p363 = pneg %p259
      %s364 = smul.u32 32, %s21
      %p365 = scmp.lt.s32.totalorder %s364, 63
      %s366 = scalar_select %p365, %s364, 63
      %s367 = smul.addr %s366, 8
      %s368 = scalar_lea.vmem %s10, %s367
      %s369 = smul.u32 32, %s21
      %p370 = scmp.lt.s32.totalorder %s369, 63
      %s371 = scalar_select %p370, %s369, 63
      %s372 = smul.addr %s371, 3
      %s373 = smul.addr %s372, 4
      %s374 = scalar_lea.vmem %s0, %s373
      %s375 = smul.u32 32, %s21
      %s376 = smul.u32 32, %s21
      %p377 = scmp.lt.s32.totalorder %s376, 63
      %s378 = scalar_select %p377, %s376, 63
      %s379 = smul.addr %s378, 8
      %s380 = scalar_lea.vmem %s1, %s379
      %s381 = smul.u32 32, %s21
      %s382 = smul.u32 32, %s21
      %p383 = scmp.lt.s32.totalorder %s382, 63
      %s384 = scalar_select %p383, %s382, 63
      %s385 = smul.addr %s384, 8
      %s386 = scalar_lea.vmem %s10, %s385
      %s387 = smul.u32 32, %s21
      %v389 = vld [vmem:[%s374] sm:$0xff]
      %v390 = vld [vmem:[%s374 + $0x8] sm:$0xf]
      %v391 = vld [vmem:[%s374 + $0xc] sm:$0xff]
      %v392 = vld [vmem:[%s374 + $0x14] sm:$0xf]
      %v393 = vld [vmem:[%s374 + $0x18] sm:$0xff]
      %v394 = vld [vmem:[%s374 + $0x20] sm:$0xf]
      %v395 = vld [vmem:[%s374 + $0x24] sm:$0xff]
      %v396 = vld [vmem:[%s374 + $0x2c] sm:$0xf]
      %v397 = vld [vmem:[%s374 + $0x30] sm:$0xff]
      %v398 = vld [vmem:[%s374 + $0x38] sm:$0xf]
      %v399 = vld [vmem:[%s374 + $0x3c] sm:$0xff]
      %v400 = vld [vmem:[%s374 + $0x44] sm:$0xf]
      %v401 = vld [vmem:[%s374 + $0x48] sm:$0xff]
      %v402 = vld [vmem:[%s374 + $0x50] sm:$0xf]
      %v403 = vld [vmem:[%s374 + $0x54] sm:$0xff]
      %v404 = vld [vmem:[%s374 + $0x5c] sm:$0xf]
      %v405 = vld [vmem:[%s374 + $0x60] sm:$0xff]
      %v406 = vld [vmem:[%s374 + $0x68] sm:$0xf]
      %v407 = vld [vmem:[%s374 + $0x6c] sm:$0xff]
      %v408 = vld [vmem:[%s374 + $0x74] sm:$0xf]
      %v409 = vld [vmem:[%s374 + $0x78] sm:$0xff]
      %v410 = vld [vmem:[%s374 + $0x80] sm:$0xf]
      %v411 = vld [vmem:[%s374 + $0x84] sm:$0xff]
      %v412 = vld [vmem:[%s374 + $0x8c] sm:$0xf]
      %v413 = vld [vmem:[%s374 + $0x90] sm:$0xff]
      %v414 = vld [vmem:[%s374 + $0x98] sm:$0xf]
      %v415 = vld [vmem:[%s374 + $0x9c] sm:$0xff]
      %v416 = vld [vmem:[%s374 + $0xa4] sm:$0xf]
      %v417 = vld [vmem:[%s374 + $0xa8] sm:$0xff]
      %v418 = vld [vmem:[%s374 + $0xb0] sm:$0xf]
      %v419 = vld [vmem:[%s374 + $0xb4] sm:$0xff]
      %v420 = vld [vmem:[%s374 + $0xbc] sm:$0xf]
      %v421 = vld [vmem:[%s374 + $0xc0] sm:$0xff]
      %v422 = vld [vmem:[%s374 + $0xc8] sm:$0xf]
      %v423 = vld [vmem:[%s374 + $0xcc] sm:$0xff]
      %v424 = vld [vmem:[%s374 + $0xd4] sm:$0xf]
      %v425 = vld [vmem:[%s374 + $0xd8] sm:$0xff]
      %v426 = vld [vmem:[%s374 + $0xe0] sm:$0xf]
      %v427 = vld [vmem:[%s374 + $0xe4] sm:$0xff]
      %v428 = vld [vmem:[%s374 + $0xec] sm:$0xf]
      %v429 = vld [vmem:[%s374 + $0xf0] sm:$0xff]
      %v430 = vld [vmem:[%s374 + $0xf8] sm:$0xf]
      %v431 = vld [vmem:[%s374 + $0xfc] sm:$0xff]
      %v432 = vld [vmem:[%s374 + $0x104] sm:$0xf]
      %v433 = vld [vmem:[%s374 + $0x108] sm:$0xff]
      %v434 = vld [vmem:[%s374 + $0x110] sm:$0xf]
      %v435 = vld [vmem:[%s374 + $0x114] sm:$0xff]
      %v436 = vld [vmem:[%s374 + $0x11c] sm:$0xf]
      %v437 = vld [vmem:[%s374 + $0x120] sm:$0xff]
      %v438 = vld [vmem:[%s374 + $0x128] sm:$0xf]
      %v439 = vld [vmem:[%s374 + $0x12c] sm:$0xff]
      %v440 = vld [vmem:[%s374 + $0x134] sm:$0xf]
      %v441 = vld [vmem:[%s374 + $0x138] sm:$0xff]
      %v442 = vld [vmem:[%s374 + $0x140] sm:$0xf]
      %v443 = vld [vmem:[%s374 + $0x144] sm:$0xff]
      %v444 = vld [vmem:[%s374 + $0x14c] sm:$0xf]
      %v445 = vld [vmem:[%s374 + $0x150] sm:$0xff]
      %v446 = vld [vmem:[%s374 + $0x158] sm:$0xf]
      %v447 = vld [vmem:[%s374 + $0x15c] sm:$0xff]
      %v448 = vld [vmem:[%s374 + $0x164] sm:$0xf]
      %v449 = vld [vmem:[%s374 + $0x168] sm:$0xff]
      %v450 = vld [vmem:[%s374 + $0x170] sm:$0xf]
      %v451 = vld [vmem:[%s374 + $0x174] sm:$0xff]
      %v452 = vld [vmem:[%s374 + $0x17c] sm:$0xf]
      %v453 = vld [vmem:[%s380] sm:$0xff]
      %v454 = vld [vmem:[%s380 + $0x8] sm:$0xff]
      %v455 = vld [vmem:[%s380 + $0x10] sm:$0xff]
      %v456 = vld [vmem:[%s380 + $0x18] sm:$0xff]
      %v457 = vld [vmem:[%s380 + $0x20] sm:$0xff]
      %v458 = vld [vmem:[%s380 + $0x28] sm:$0xff]
      %v459 = vld [vmem:[%s380 + $0x30] sm:$0xff]
      %v460 = vld [vmem:[%s380 + $0x38] sm:$0xff]
      %v461 = vld [vmem:[%s380 + $0x40] sm:$0xff]
      %v462 = vld [vmem:[%s380 + $0x48] sm:$0xff]
      %v463 = vld [vmem:[%s380 + $0x50] sm:$0xff]
      %v464 = vld [vmem:[%s380 + $0x58] sm:$0xff]
      %v465 = vld [vmem:[%s380 + $0x60] sm:$0xff]
      %v466 = vld [vmem:[%s380 + $0x68] sm:$0xff]
      %v467 = vld [vmem:[%s380 + $0x70] sm:$0xff]
      %v468 = vld [vmem:[%s380 + $0x78] sm:$0xff]
      %v469 = vld [vmem:[%s380 + $0x80] sm:$0xff]
      %v470 = vld [vmem:[%s380 + $0x88] sm:$0xff]
      %v471 = vld [vmem:[%s380 + $0x90] sm:$0xff]
      %v472 = vld [vmem:[%s380 + $0x98] sm:$0xff]
      %v473 = vld [vmem:[%s380 + $0xa0] sm:$0xff]
      %v474 = vld [vmem:[%s380 + $0xa8] sm:$0xff]
      %v475 = vld [vmem:[%s380 + $0xb0] sm:$0xff]
      %v476 = vld [vmem:[%s380 + $0xb8] sm:$0xff]
      %v477 = vld [vmem:[%s380 + $0xc0] sm:$0xff]
      %v478 = vld [vmem:[%s380 + $0xc8] sm:$0xff]
      %v479 = vld [vmem:[%s380 + $0xd0] sm:$0xff]
      %v480 = vld [vmem:[%s380 + $0xd8] sm:$0xff]
      %v481 = vld [vmem:[%s380 + $0xe0] sm:$0xff]
      %v482 = vld [vmem:[%s380 + $0xe8] sm:$0xff]
      %v483 = vld [vmem:[%s380 + $0xf0] sm:$0xff]
      %v484 = vld [vmem:[%s380 + $0xf8] sm:$0xff]
      %v485 = vld [vmem:[%s2] sm:$0xf]
      %v486 = vld [vmem:[%s2 + $0x4] sm:$0xf]
      %v487 = vld [vmem:[%s2 + $0x8] sm:$0xf]
      %v488 = vld [vmem:[%s2 + $0xc] sm:$0xf]
      %v489 = vld [vmem:[%s2 + $0x10] sm:$0xf]
      %v490 = vld [vmem:[%s2 + $0x14] sm:$0xf]
      %v491 = vld [vmem:[%s2 + $0x18] sm:$0xf]
      %v492 = vld [vmem:[%s2 + $0x1c] sm:$0xf]
      %v493 = vld [vmem:[%s2 + $0x20] sm:$0xf]
      %v494 = vld [vmem:[%s2 + $0x24] sm:$0xf]
      %v495 = vld [vmem:[%s2 + $0x28] sm:$0xf]
      %v496 = vld [vmem:[%s2 + $0x2c] sm:$0xf]
      %v497 = vld [vmem:[%s2 + $0x30] sm:$0xf]
      %v498 = vld [vmem:[%s2 + $0x34] sm:$0xf]
      %v499 = vld [vmem:[%s2 + $0x38] sm:$0xf]
      %v500 = vld [vmem:[%s2 + $0x3c] sm:$0xf]
      %v501 = vld [vmem:[%s2 + $0x40] sm:$0xf]
      %v502 = vld [vmem:[%s2 + $0x44] sm:$0xf]
      %v503 = vld [vmem:[%s2 + $0x48] sm:$0xf]
      %v504 = vld [vmem:[%s2 + $0x4c] sm:$0xf]
      %v505 = vld [vmem:[%s2 + $0x50] sm:$0xf]
      %v506 = vld [vmem:[%s2 + $0x54] sm:$0xf]
      %v507 = vld [vmem:[%s2 + $0x58] sm:$0xf]
      %v508 = vld [vmem:[%s2 + $0x5c] sm:$0xf]
      %v509 = vld [vmem:[%s2 + $0x60] sm:$0xf]
      %v510 = vld [vmem:[%s2 + $0x64] sm:$0xf]
      %v511 = vld [vmem:[%s2 + $0x68] sm:$0xf]
      %v512 = vld [vmem:[%s2 + $0x6c] sm:$0xf]
      %v513 = vld [vmem:[%s2 + $0x70] sm:$0xf]
      %v514 = vld [vmem:[%s2 + $0x74] sm:$0xf]
      %v515 = vld [vmem:[%s2 + $0x78] sm:$0xf]
      %v516 = vld [vmem:[%s2 + $0x7c] sm:$0xf]
      %v517 = vld [vmem:[%s2 + $0x80] sm:$0xf]
      %v518 = vld [vmem:[%s2 + $0x84] sm:$0xf]
      %v519 = vld [vmem:[%s2 + $0x88] sm:$0xf]
      %v520 = vld [vmem:[%s2 + $0x8c] sm:$0xf]
      %v521 = vld [vmem:[%s2 + $0x90] sm:$0xf]
      %v522 = vld [vmem:[%s2 + $0x94] sm:$0x3]
      %v523 = vld [vmem:[%s3] sm:$0x1]
      %v524 = vld [vmem:[%s4] sm:$0xf]
      %v525 = vld [vmem:[%s4 + $0x4] sm:$0x3]
      %v526 = vld [vmem:[%s5] sm:$0x1]
      %v527 = vld [vmem:[%s6] sm:$0xf]
      %v528 = vld [vmem:[%s6 + $0x4] sm:$0xf]
      %v529 = vld [vmem:[%s6 + $0x8] sm:$0xf]
      %v530 = vld [vmem:[%s7] sm:$0x1]
      %v531 = vld [vmem:[%s8] sm:$0xf]
      %v532 = vld [vmem:[%s8 + $0x4] sm:$0xf]
      %v533 = vld [vmem:[%s8 + $0x8] sm:$0xf]
      %v534 = vld [vmem:[%s9] sm:$0x1]
      %v536 = vperm.slane %v523, 0
      %v602 = vunpack.c.l.b16 %v389
      %v603 = vunpack.c.h.b16 %v389
      %v604 = vunpack.c.l.b16 %v390
      %v605 = vunpack.c.l.b16 %v391
      %v606 = vunpack.c.h.b16 %v391
      %v607 = vunpack.c.l.b16 %v392
      %v608 = vunpack.c.l.b16 %v393
      %v609 = vunpack.c.h.b16 %v393
      %v610 = vunpack.c.l.b16 %v394
      %v611 = vunpack.c.l.b16 %v395
      %v612 = vunpack.c.h.b16 %v395
      %v613 = vunpack.c.l.b16 %v396
      %v614 = vunpack.c.l.b16 %v397
      %v615 = vunpack.c.h.b16 %v397
      %v616 = vunpack.c.l.b16 %v398
      %v617 = vunpack.c.l.b16 %v399
      %v618 = vunpack.c.h.b16 %v399
      %v619 = vunpack.c.l.b16 %v400
      %v620 = vunpack.c.l.b16 %v401
      %v621 = vunpack.c.h.b16 %v401
      %v622 = vunpack.c.l.b16 %v402
      %v623 = vunpack.c.l.b16 %v403
      %v624 = vunpack.c.h.b16 %v403
      %v625 = vunpack.c.l.b16 %v404
      %v626 = vunpack.c.l.b16 %v405
      %v627 = vunpack.c.h.b16 %v405
      %v628 = vunpack.c.l.b16 %v406
      %v629 = vunpack.c.l.b16 %v407
      %v630 = vunpack.c.h.b16 %v407
      %v631 = vunpack.c.l.b16 %v408
      %v632 = vunpack.c.l.b16 %v409
      %v633 = vunpack.c.h.b16 %v409
      %v634 = vunpack.c.l.b16 %v410
      %v635 = vunpack.c.l.b16 %v411
      %v636 = vunpack.c.h.b16 %v411
      %v637 = vunpack.c.l.b16 %v412
      %v638 = vunpack.c.l.b16 %v413
      %v639 = vunpack.c.h.b16 %v413
      %v640 = vunpack.c.l.b16 %v414
      %v641 = vunpack.c.l.b16 %v415
      %v642 = vunpack.c.h.b16 %v415
      %v643 = vunpack.c.l.b16 %v416
      %v644 = vunpack.c.l.b16 %v417
      %v645 = vunpack.c.h.b16 %v417
      %v646 = vunpack.c.l.b16 %v418
      %v647 = vunpack.c.l.b16 %v419
      %v648 = vunpack.c.h.b16 %v419
      %v649 = vunpack.c.l.b16 %v420
      %v650 = vunpack.c.l.b16 %v421
      %v651 = vunpack.c.h.b16 %v421
      %v652 = vunpack.c.l.b16 %v422
      %v653 = vunpack.c.l.b16 %v423
      %v654 = vunpack.c.h.b16 %v423
      %v655 = vunpack.c.l.b16 %v424
      %v656 = vunpack.c.l.b16 %v425
      %v657 = vunpack.c.h.b16 %v425
      %v658 = vunpack.c.l.b16 %v426
      %v659 = vunpack.c.l.b16 %v427
      %v660 = vunpack.c.h.b16 %v427
      %v661 = vunpack.c.l.b16 %v428
      %v662 = vunpack.c.l.b16 %v429
      %v663 = vunpack.c.h.b16 %v429
      %v664 = vunpack.c.l.b16 %v430
      %v665 = vunpack.c.l.b16 %v431
      %v666 = vunpack.c.h.b16 %v431
      %v667 = vunpack.c.l.b16 %v432
      %v668 = vunpack.c.l.b16 %v433
      %v669 = vunpack.c.h.b16 %v433
      %v670 = vunpack.c.l.b16 %v434
      %v671 = vunpack.c.l.b16 %v435
      %v672 = vunpack.c.h.b16 %v435
      %v673 = vunpack.c.l.b16 %v436
      %v674 = vunpack.c.l.b16 %v437
      %v675 = vunpack.c.h.b16 %v437
      %v676 = vunpack.c.l.b16 %v438
      %v677 = vunpack.c.l.b16 %v439
      %v678 = vunpack.c.h.b16 %v439
      %v679 = vunpack.c.l.b16 %v440
      %v680 = vunpack.c.l.b16 %v441
      %v681 = vunpack.c.h.b16 %v441
      %v682 = vunpack.c.l.b16 %v442
      %v683 = vunpack.c.l.b16 %v443
      %v684 = vunpack.c.h.b16 %v443
      %v685 = vunpack.c.l.b16 %v444
      %v686 = vunpack.c.l.b16 %v445
      %v687 = vunpack.c.h.b16 %v445
      %v688 = vunpack.c.l.b16 %v446
      %v689 = vunpack.c.l.b16 %v447
      %v690 = vunpack.c.h.b16 %v447
      %v691 = vunpack.c.l.b16 %v448
      %v692 = vunpack.c.l.b16 %v449
      %v693 = vunpack.c.h.b16 %v449
      %v694 = vunpack.c.l.b16 %v450
      %v695 = vunpack.c.l.b16 %v451
      %v696 = vunpack.c.h.b16 %v451
      %v697 = vunpack.c.l.b16 %v452
      %v698 = vpack.c.b16 %v605, %v602
      %v699 = vpack.c.b16 %v606, %v603
      %v700 = vpack.c.b16 %v607, %v604
      %v701 = vpack.c.b16 %v611, %v608
      %v702 = vpack.c.b16 %v612, %v609
      %v703 = vpack.c.b16 %v613, %v610
      %v704 = vpack.c.b16 %v617, %v614
      %v705 = vpack.c.b16 %v618, %v615
      %v706 = vpack.c.b16 %v619, %v616
      %v707 = vpack.c.b16 %v623, %v620
      %v708 = vpack.c.b16 %v624, %v621
      %v709 = vpack.c.b16 %v625, %v622
      %v710 = vpack.c.b16 %v629, %v626
      %v711 = vpack.c.b16 %v630, %v627
      %v712 = vpack.c.b16 %v631, %v628
      %v713 = vpack.c.b16 %v635, %v632
      %v714 = vpack.c.b16 %v636, %v633
      %v715 = vpack.c.b16 %v637, %v634
      %v716 = vpack.c.b16 %v641, %v638
      %v717 = vpack.c.b16 %v642, %v639
      %v718 = vpack.c.b16 %v643, %v640
      %v719 = vpack.c.b16 %v647, %v644
      %v720 = vpack.c.b16 %v648, %v645
      %v721 = vpack.c.b16 %v649, %v646
      %v722 = vpack.c.b16 %v653, %v650
      %v723 = vpack.c.b16 %v654, %v651
      %v724 = vpack.c.b16 %v655, %v652
      %v725 = vpack.c.b16 %v659, %v656
      %v726 = vpack.c.b16 %v660, %v657
      %v727 = vpack.c.b16 %v661, %v658
      %v728 = vpack.c.b16 %v665, %v662
      %v729 = vpack.c.b16 %v666, %v663
      %v730 = vpack.c.b16 %v667, %v664
      %v731 = vpack.c.b16 %v671, %v668
      %v732 = vpack.c.b16 %v672, %v669
      %v733 = vpack.c.b16 %v673, %v670
      %v734 = vpack.c.b16 %v677, %v674
      %v735 = vpack.c.b16 %v678, %v675
      %v736 = vpack.c.b16 %v679, %v676
      %v737 = vpack.c.b16 %v683, %v680
      %v738 = vpack.c.b16 %v684, %v681
      %v739 = vpack.c.b16 %v685, %v682
      %v740 = vpack.c.b16 %v689, %v686
      %v741 = vpack.c.b16 %v690, %v687
      %v742 = vpack.c.b16 %v691, %v688
      %v743 = vpack.c.b16 %v695, %v692
      %v744 = vpack.c.b16 %v696, %v693
      %v745 = vpack.c.b16 %v697, %v694
      %v816 = vunpack.c.l.b16 %v485
      %v817 = vunpack.c.l.b16 %v486
      %v818 = vunpack.c.l.b16 %v487
      %v819 = vunpack.c.l.b16 %v488
      %v820 = vunpack.c.l.b16 %v489
      %v821 = vunpack.c.l.b16 %v490
      %v822 = vunpack.c.l.b16 %v491
      %v823 = vunpack.c.l.b16 %v492
      %v824 = vunpack.c.l.b16 %v493
      %v825 = vunpack.c.l.b16 %v494
      %v826 = vunpack.c.l.b16 %v495
      %v827 = vunpack.c.l.b16 %v496
      %v828 = vunpack.c.l.b16 %v497
      %v829 = vunpack.c.l.b16 %v498
      %v830 = vunpack.c.l.b16 %v499
      %v831 = vunpack.c.l.b16 %v500
      %v832 = vunpack.c.l.b16 %v501
      %v833 = vunpack.c.l.b16 %v502
      %v834 = vunpack.c.l.b16 %v503
      %v835 = vunpack.c.l.b16 %v504
      %v836 = vunpack.c.l.b16 %v505
      %v837 = vunpack.c.l.b16 %v506
      %v838 = vunpack.c.l.b16 %v507
      %v839 = vunpack.c.l.b16 %v508
      %v840 = vunpack.c.l.b16 %v509
      %v841 = vunpack.c.l.b16 %v510
      %v842 = vunpack.c.l.b16 %v511
      %v843 = vunpack.c.l.b16 %v512
      %v844 = vunpack.c.l.b16 %v513
      %v845 = vunpack.c.l.b16 %v514
      %v846 = vunpack.c.l.b16 %v515
      %v847 = vunpack.c.l.b16 %v516
      %v848 = vunpack.c.l.b16 %v517
      %v849 = vunpack.c.l.b16 %v518
      %v850 = vunpack.c.l.b16 %v519
      %v851 = vunpack.c.l.b16 %v520
      %v852 = vunpack.c.l.b16 %v521
      %v853 = vunpack.c.l.b16 %v522
      %v854 = vpack.c.b16 %v817, %v816
      %v855 = vpack.c.b16 %v819, %v818
      %v856 = vpack.c.b16 %v821, %v820
      %v857 = vpack.c.b16 %v823, %v822
      %v858 = vpack.c.b16 %v825, %v824
      %v859 = vpack.c.b16 %v827, %v826
      %v860 = vpack.c.b16 %v829, %v828
      %v861 = vpack.c.b16 %v831, %v830
      %v862 = vpack.c.b16 %v833, %v832
      %v863 = vpack.c.b16 %v835, %v834
      %v864 = vpack.c.b16 %v837, %v836
      %v865 = vpack.c.b16 %v839, %v838
      %v866 = vpack.c.b16 %v841, %v840
      %v867 = vpack.c.b16 %v843, %v842
      %v868 = vpack.c.b16 %v845, %v844
      %v869 = vpack.c.b16 %v847, %v846
      %v870 = vpack.c.b16 %v849, %v848
      %v871 = vpack.c.b16 %v851, %v850
      %v872 = vpack.c.b16 %v853, %v852
      %vm891 = vcmask 359424
      %v893 = vsel %vm891, %v700, 0
      %v896 = vsel %vm891, %v703, 0
      %v899 = vsel %vm891, %v706, 0
      %v902 = vsel %vm891, %v709, 0
      %v905 = vsel %vm891, %v712, 0
      %v908 = vsel %vm891, %v715, 0
      %v911 = vsel %vm891, %v718, 0
      %v914 = vsel %vm891, %v721, 0
      %v917 = vsel %vm891, %v724, 0
      %v920 = vsel %vm891, %v727, 0
      %v923 = vsel %vm891, %v730, 0
      %v926 = vsel %vm891, %v733, 0
      %v929 = vsel %vm891, %v736, 0
      %v932 = vsel %vm891, %v739, 0
      %v935 = vsel %vm891, %v742, 0
      %v938 = vsel %vm891, %v745, 0
      %vm940 = vcmask 1045504
      %v942 = vsel %vm940, %v872, 0
      %944 = vmatpush.bf16.msra.mxu0 %v861
      %945 = vmatpush.bf16.msra.mxu0 %v860
      %946 = vmatpush.bf16.msra.mxu0 %v859
      %947 = vmatpush.bf16.msra.mxu0 %v858
      %948 = vmatpush.bf16.msra.mxu0 %v857
      %949 = vmatpush.bf16.msra.mxu0 %v856
      %950 = vmatpush.bf16.msra.mxu0 %v855
      %951 = vmatpush.bf16.msra.mxu0 %v854
      %952 = vmatmul.bf16.gmra.mxu0 %v698
      %v953 = vpop.f32.mrf.mxu0
      %v954 = vadd.f32 %v536, %v953
      %v955 = vpop.f32.mrf.mxu0
      %v956 = vadd.f32 %v536, %v955
      %957 = vmatmul.bf16.gmra.mxu0 %v701
      %v958 = vpop.f32.mrf.mxu0
      %v959 = vadd.f32 %v536, %v958
      %v960 = vpop.f32.mrf.mxu0
      %v961 = vadd.f32 %v536, %v960
      %962 = vmatmul.bf16.gmra.mxu0 %v704
      %v963 = vpop.f32.mrf.mxu0
      %v964 = vadd.f32 %v536, %v963
      %v965 = vpop.f32.mrf.mxu0
      %v966 = vadd.f32 %v536, %v965
      %967 = vmatmul.bf16.gmra.mxu0 %v707
      %v968 = vpop.f32.mrf.mxu0
      %v969 = vadd.f32 %v536, %v968
      %v970 = vpop.f32.mrf.mxu0
      %v971 = vadd.f32 %v536, %v970
      %972 = vmatmul.bf16.gmra.mxu0 %v710
      %v973 = vpop.f32.mrf.mxu0
      %v974 = vadd.f32 %v536, %v973
      %v975 = vpop.f32.mrf.mxu0
      %v976 = vadd.f32 %v536, %v975
      %977 = vmatmul.bf16.gmra.mxu0 %v713
      %v978 = vpop.f32.mrf.mxu0
      %v979 = vadd.f32 %v536, %v978
      %v980 = vpop.f32.mrf.mxu0
      %v981 = vadd.f32 %v536, %v980
      %982 = vmatmul.bf16.gmra.mxu0 %v716
      %v983 = vpop.f32.mrf.mxu0
      %v984 = vadd.f32 %v536, %v983
      %v985 = vpop.f32.mrf.mxu0
      %v986 = vadd.f32 %v536, %v985
      %987 = vmatmul.bf16.gmra.mxu0 %v719
      %v988 = vpop.f32.mrf.mxu0
      %v989 = vadd.f32 %v536, %v988
      %v990 = vpop.f32.mrf.mxu0
      %v991 = vadd.f32 %v536, %v990
      %992 = vmatmul.bf16.gmra.mxu0 %v722
      %v993 = vpop.f32.mrf.mxu0
      %v994 = vadd.f32 %v536, %v993
      %v995 = vpop.f32.mrf.mxu0
      %v996 = vadd.f32 %v536, %v995
      %997 = vmatmul.bf16.gmra.mxu0 %v725
      %v998 = vpop.f32.mrf.mxu0
      %v999 = vadd.f32 %v536, %v998
      %v1000 = vpop.f32.mrf.mxu0
      %v1001 = vadd.f32 %v536, %v1000
      %1002 = vmatmul.bf16.gmra.mxu0 %v728
      %v1003 = vpop.f32.mrf.mxu0
      %v1004 = vadd.f32 %v536, %v1003
      %v1005 = vpop.f32.mrf.mxu0
      %v1006 = vadd.f32 %v536, %v1005
      %1007 = vmatmul.bf16.gmra.mxu0 %v731
      %v1008 = vpop.f32.mrf.mxu0
      %v1009 = vadd.f32 %v536, %v1008
      %v1010 = vpop.f32.mrf.mxu0
      %v1011 = vadd.f32 %v536, %v1010
      %1012 = vmatmul.bf16.gmra.mxu0 %v734
      %v1013 = vpop.f32.mrf.mxu0
      %v1014 = vadd.f32 %v536, %v1013
      %v1015 = vpop.f32.mrf.mxu0
      %v1016 = vadd.f32 %v536, %v1015
      %1017 = vmatmul.bf16.gmra.mxu0 %v737
      %v1018 = vpop.f32.mrf.mxu0
      %v1019 = vadd.f32 %v536, %v1018
      %v1020 = vpop.f32.mrf.mxu0
      %v1021 = vadd.f32 %v536, %v1020
      %1022 = vmatmul.bf16.gmra.mxu0 %v740
      %v1023 = vpop.f32.mrf.mxu0
      %v1024 = vadd.f32 %v536, %v1023
      %v1025 = vpop.f32.mrf.mxu0
      %v1026 = vadd.f32 %v536, %v1025
      %1027 = vmatmul.bf16.gmra.mxu0 %v743
      %v1028 = vpop.f32.mrf.mxu0
      %v1029 = vadd.f32 %v536, %v1028
      %v1030 = vpop.f32.mrf.mxu0
      %v1031 = vadd.f32 %v536, %v1030
      %1032 = vdwg.mxu0
      %1033 = vmatpush.bf16.msra.mxu0 %v869
      %1034 = vmatpush.bf16.msra.mxu0 %v868
      %1035 = vmatpush.bf16.msra.mxu0 %v867
      %1036 = vmatpush.bf16.msra.mxu0 %v866
      %1037 = vmatpush.bf16.msra.mxu0 %v865
      %1038 = vmatpush.bf16.msra.mxu0 %v864
      %1039 = vmatpush.bf16.msra.mxu0 %v863
      %1040 = vmatpush.bf16.msra.mxu0 %v862
      %1041 = vmatmul.bf16.gmra.mxu0 %v699
      %v1042 = vpop.f32.mrf.mxu0
      %v1043 = vadd.f32 %v954, %v1042
      %v1044 = vpop.f32.mrf.mxu0
      %v1045 = vadd.f32 %v956, %v1044
      %1046 = vmatmul.bf16.gmra.mxu0 %v702
      %v1047 = vpop.f32.mrf.mxu0
      %v1048 = vadd.f32 %v959, %v1047
      %v1049 = vpop.f32.mrf.mxu0
      %v1050 = vadd.f32 %v961, %v1049
      %1051 = vmatmul.bf16.gmra.mxu0 %v705
      %v1052 = vpop.f32.mrf.mxu0
      %v1053 = vadd.f32 %v964, %v1052
      %v1054 = vpop.f32.mrf.mxu0
      %v1055 = vadd.f32 %v966, %v1054
      %1056 = vmatmul.bf16.gmra.mxu0 %v708
      %v1057 = vpop.f32.mrf.mxu0
      %v1058 = vadd.f32 %v969, %v1057
      %v1059 = vpop.f32.mrf.mxu0
      %v1060 = vadd.f32 %v971, %v1059
      %1061 = vmatmul.bf16.gmra.mxu0 %v711
      %v1062 = vpop.f32.mrf.mxu0
      %v1063 = vadd.f32 %v974, %v1062
      %v1064 = vpop.f32.mrf.mxu0
      %v1065 = vadd.f32 %v976, %v1064
      %1066 = vmatmul.bf16.gmra.mxu0 %v714
      %v1067 = vpop.f32.mrf.mxu0
      %v1068 = vadd.f32 %v979, %v1067
      %v1069 = vpop.f32.mrf.mxu0
      %v1070 = vadd.f32 %v981, %v1069
      %1071 = vmatmul.bf16.gmra.mxu0 %v717
      %v1072 = vpop.f32.mrf.mxu0
      %v1073 = vadd.f32 %v984, %v1072
      %v1074 = vpop.f32.mrf.mxu0
      %v1075 = vadd.f32 %v986, %v1074
      %1076 = vmatmul.bf16.gmra.mxu0 %v720
      %v1077 = vpop.f32.mrf.mxu0
      %v1078 = vadd.f32 %v989, %v1077
      %v1079 = vpop.f32.mrf.mxu0
      %v1080 = vadd.f32 %v991, %v1079
      %1081 = vmatmul.bf16.gmra.mxu0 %v723
      %v1082 = vpop.f32.mrf.mxu0
      %v1083 = vadd.f32 %v994, %v1082
      %v1084 = vpop.f32.mrf.mxu0
      %v1085 = vadd.f32 %v996, %v1084
      %1086 = vmatmul.bf16.gmra.mxu0 %v726
      %v1087 = vpop.f32.mrf.mxu0
      %v1088 = vadd.f32 %v999, %v1087
      %v1089 = vpop.f32.mrf.mxu0
      %v1090 = vadd.f32 %v1001, %v1089
      %1091 = vmatmul.bf16.gmra.mxu0 %v729
      %v1092 = vpop.f32.mrf.mxu0
      %v1093 = vadd.f32 %v1004, %v1092
      %v1094 = vpop.f32.mrf.mxu0
      %v1095 = vadd.f32 %v1006, %v1094
      %1096 = vmatmul.bf16.gmra.mxu0 %v732
      %v1097 = vpop.f32.mrf.mxu0
      %v1098 = vadd.f32 %v1009, %v1097
      %v1099 = vpop.f32.mrf.mxu0
      %v1100 = vadd.f32 %v1011, %v1099
      %1101 = vmatmul.bf16.gmra.mxu0 %v735
      %v1102 = vpop.f32.mrf.mxu0
      %v1103 = vadd.f32 %v1014, %v1102
      %v1104 = vpop.f32.mrf.mxu0
      %v1105 = vadd.f32 %v1016, %v1104
      %1106 = vmatmul.bf16.gmra.mxu0 %v738
      %v1107 = vpop.f32.mrf.mxu0
      %v1108 = vadd.f32 %v1019, %v1107
      %v1109 = vpop.f32.mrf.mxu0
      %v1110 = vadd.f32 %v1021, %v1109
      %1111 = vmatmul.bf16.gmra.mxu0 %v741
      %v1112 = vpop.f32.mrf.mxu0
      %v1113 = vadd.f32 %v1024, %v1112
      %v1114 = vpop.f32.mrf.mxu0
      %v1115 = vadd.f32 %v1026, %v1114
      %1116 = vmatmul.bf16.gmra.mxu0 %v744
      %v1117 = vpop.f32.mrf.mxu0
      %v1118 = vadd.f32 %v1029, %v1117
      %v1119 = vpop.f32.mrf.mxu0
      %v1120 = vadd.f32 %v1031, %v1119
      %1121 = vdwg.mxu0
      %1122 = vmatpush.bf16.msra.mxu0 0
      %1123 = vmatpush.bf16.msra.mxu0 0
      %1124 = vmatpush.bf16.msra.mxu0 0
      %1125 = vmatpush.bf16.msra.mxu0 0
      %1126 = vmatpush.bf16.msra.mxu0 0
      %1127 = vmatpush.bf16.msra.mxu0 %v942
      %1128 = vmatpush.bf16.msra.mxu0 %v871
      %1129 = vmatpush.bf16.msra.mxu0 %v870
      %1130 = vmatmul.bf16.gmra.mxu0 %v893
      %v1131 = vpop.f32.mrf.mxu0
      %v1132 = vadd.f32 %v1043, %v1131
      %v1133 = vpop.f32.mrf.mxu0
      %v1134 = vadd.f32 %v1045, %v1133
      %1135 = vmatmul.bf16.gmra.mxu0 %v896
      %v1136 = vpop.f32.mrf.mxu0
      %v1137 = vadd.f32 %v1048, %v1136
      %v1138 = vpop.f32.mrf.mxu0
      %v1139 = vadd.f32 %v1050, %v1138
      %1140 = vmatmul.bf16.gmra.mxu0 %v899
      %v1141 = vpop.f32.mrf.mxu0
      %v1142 = vadd.f32 %v1053, %v1141
      %v1143 = vpop.f32.mrf.mxu0
      %v1144 = vadd.f32 %v1055, %v1143
      %1145 = vmatmul.bf16.gmra.mxu0 %v902
      %v1146 = vpop.f32.mrf.mxu0
      %v1147 = vadd.f32 %v1058, %v1146
      %v1148 = vpop.f32.mrf.mxu0
      %v1149 = vadd.f32 %v1060, %v1148
      %1150 = vmatmul.bf16.gmra.mxu0 %v905
      %v1151 = vpop.f32.mrf.mxu0
      %v1152 = vadd.f32 %v1063, %v1151
      %v1153 = vpop.f32.mrf.mxu0
      %v1154 = vadd.f32 %v1065, %v1153
      %1155 = vmatmul.bf16.gmra.mxu0 %v908
      %v1156 = vpop.f32.mrf.mxu0
      %v1157 = vadd.f32 %v1068, %v1156
      %v1158 = vpop.f32.mrf.mxu0
      %v1159 = vadd.f32 %v1070, %v1158
      %1160 = vmatmul.bf16.gmra.mxu0 %v911
      %v1161 = vpop.f32.mrf.mxu0
      %v1162 = vadd.f32 %v1073, %v1161
      %v1163 = vpop.f32.mrf.mxu0
      %v1164 = vadd.f32 %v1075, %v1163
      %1165 = vmatmul.bf16.gmra.mxu0 %v914
      %v1166 = vpop.f32.mrf.mxu0
      %v1167 = vadd.f32 %v1078, %v1166
      %v1168 = vpop.f32.mrf.mxu0
      %v1169 = vadd.f32 %v1080, %v1168
      %1170 = vmatmul.bf16.gmra.mxu0 %v917
      %v1171 = vpop.f32.mrf.mxu0
      %v1172 = vadd.f32 %v1083, %v1171
      %v1173 = vpop.f32.mrf.mxu0
      %v1174 = vadd.f32 %v1085, %v1173
      %1175 = vmatmul.bf16.gmra.mxu0 %v920
      %v1176 = vpop.f32.mrf.mxu0
      %v1177 = vadd.f32 %v1088, %v1176
      %v1178 = vpop.f32.mrf.mxu0
      %v1179 = vadd.f32 %v1090, %v1178
      %1180 = vmatmul.bf16.gmra.mxu0 %v923
      %v1181 = vpop.f32.mrf.mxu0
      %v1182 = vadd.f32 %v1093, %v1181
      %v1183 = vpop.f32.mrf.mxu0
      %v1184 = vadd.f32 %v1095, %v1183
      %1185 = vmatmul.bf16.gmra.mxu0 %v926
      %v1186 = vpop.f32.mrf.mxu0
      %v1187 = vadd.f32 %v1098, %v1186
      %v1188 = vpop.f32.mrf.mxu0
      %v1189 = vadd.f32 %v1100, %v1188
      %1190 = vmatmul.bf16.gmra.mxu0 %v929
      %v1191 = vpop.f32.mrf.mxu0
      %v1192 = vadd.f32 %v1103, %v1191
      %v1193 = vpop.f32.mrf.mxu0
      %v1194 = vadd.f32 %v1105, %v1193
      %1195 = vmatmul.bf16.gmra.mxu0 %v932
      %v1196 = vpop.f32.mrf.mxu0
      %v1197 = vadd.f32 %v1108, %v1196
      %v1198 = vpop.f32.mrf.mxu0
      %v1199 = vadd.f32 %v1110, %v1198
      %1200 = vmatmul.bf16.gmra.mxu0 %v935
      %v1201 = vpop.f32.mrf.mxu0
      %v1202 = vadd.f32 %v1113, %v1201
      %v1203 = vpop.f32.mrf.mxu0
      %v1204 = vadd.f32 %v1115, %v1203
      %1205 = vmatmul.bf16.gmra.mxu0 %v938
      %v1206 = vpop.f32.mrf.mxu0
      %v1207 = vadd.f32 %v1118, %v1206
      %v1208 = vpop.f32.mrf.mxu0
      %v1209 = vadd.f32 %v1120, %v1208
      %1210 = vdwg.mxu0
      %v1211 = vmax.f32 %v1132, 0.0
      %v1212 = vmax.f32 %v1134, 0.0
      %v1213 = vmax.f32 %v1137, 0.0
      %v1214 = vmax.f32 %v1139, 0.0
      %v1215 = vmax.f32 %v1142, 0.0
      %v1216 = vmax.f32 %v1144, 0.0
      %v1217 = vmax.f32 %v1147, 0.0
      %v1218 = vmax.f32 %v1149, 0.0
      %v1219 = vmax.f32 %v1152, 0.0
      %v1220 = vmax.f32 %v1154, 0.0
      %v1221 = vmax.f32 %v1157, 0.0
      %v1222 = vmax.f32 %v1159, 0.0
      %v1223 = vmax.f32 %v1162, 0.0
      %v1224 = vmax.f32 %v1164, 0.0
      %v1225 = vmax.f32 %v1167, 0.0
      %v1226 = vmax.f32 %v1169, 0.0
      %v1227 = vmax.f32 %v1172, 0.0
      %v1228 = vmax.f32 %v1174, 0.0
      %v1229 = vmax.f32 %v1177, 0.0
      %v1230 = vmax.f32 %v1179, 0.0
      %v1231 = vmax.f32 %v1182, 0.0
      %v1232 = vmax.f32 %v1184, 0.0
      %v1233 = vmax.f32 %v1187, 0.0
      %v1234 = vmax.f32 %v1189, 0.0
      %v1235 = vmax.f32 %v1192, 0.0
      %v1236 = vmax.f32 %v1194, 0.0
      %v1237 = vmax.f32 %v1197, 0.0
      %v1238 = vmax.f32 %v1199, 0.0
      %v1239 = vmax.f32 %v1202, 0.0
      %v1240 = vmax.f32 %v1204, 0.0
      %v1241 = vmax.f32 %v1207, 0.0
      %v1242 = vmax.f32 %v1209, 0.0
      %v1243 = vpack.c.bf16 %v1212, %v1211
      %v1244 = vpack.c.bf16 %v1214, %v1213
      %v1245 = vpack.c.bf16 %v1216, %v1215
      %v1246 = vpack.c.bf16 %v1218, %v1217
      %v1247 = vpack.c.bf16 %v1220, %v1219
      %v1248 = vpack.c.bf16 %v1222, %v1221
      %v1249 = vpack.c.bf16 %v1224, %v1223
      %v1250 = vpack.c.bf16 %v1226, %v1225
      %v1251 = vpack.c.bf16 %v1228, %v1227
      %v1252 = vpack.c.bf16 %v1230, %v1229
      %v1253 = vpack.c.bf16 %v1232, %v1231
      %v1254 = vpack.c.bf16 %v1234, %v1233
      %v1255 = vpack.c.bf16 %v1236, %v1235
      %v1256 = vpack.c.bf16 %v1238, %v1237
      %v1257 = vpack.c.bf16 %v1240, %v1239
      %v1258 = vpack.c.bf16 %v1242, %v1241
      %v1260 = vperm.slane %v526, 0
      %v1264 = vunpack.c.l.b16 %v524
      %v1265 = vunpack.c.l.b16 %v525
      %v1266 = vpack.c.b16 %v1265, %v1264
      %vm1267 = vcmask 97280
      %v1269 = vsel %vm1267, %v1243, 0
      %v1272 = vsel %vm1267, %v1244, 0
      %v1275 = vsel %vm1267, %v1245, 0
      %v1278 = vsel %vm1267, %v1246, 0
      %v1281 = vsel %vm1267, %v1247, 0
      %v1284 = vsel %vm1267, %v1248, 0
      %v1287 = vsel %vm1267, %v1249, 0
      %v1290 = vsel %vm1267, %v1250, 0
      %v1293 = vsel %vm1267, %v1251, 0
      %v1296 = vsel %vm1267, %v1252, 0
      %v1299 = vsel %vm1267, %v1253, 0
      %v1302 = vsel %vm1267, %v1254, 0
      %v1305 = vsel %vm1267, %v1255, 0
      %v1308 = vsel %vm1267, %v1256, 0
      %v1311 = vsel %vm1267, %v1257, 0
      %v1314 = vsel %vm1267, %v1258, 0
      %v1317 = vsel %vm940, %v1266, 0
      %1319 = vmatpush.bf16.msra.mxu0 0
      %1320 = vmatpush.bf16.msra.mxu0 0
      %1321 = vmatpush.bf16.msra.mxu0 0
      %1322 = vmatpush.bf16.msra.mxu0 0
      %1323 = vmatpush.bf16.msra.mxu0 0
      %1324 = vmatpush.bf16.msra.mxu0 0
      %1325 = vmatpush.bf16.msra.mxu0 0
      %1326 = vmatpush.bf16.msra.mxu0 %v1317
      %1327 = vmatmul.bf16.gmra.mxu0 %v1269
      %v1328 = vpop.f32.mrf.mxu0
      %v1329 = vadd.f32 %v1260, %v1328
      %v1330 = vpop.f32.mrf.mxu0
      %v1331 = vadd.f32 %v1260, %v1330
      %1332 = vmatmul.bf16.gmra.mxu0 %v1272
      %v1333 = vpop.f32.mrf.mxu0
      %v1334 = vadd.f32 %v1260, %v1333
      %v1335 = vpop.f32.mrf.mxu0
      %v1336 = vadd.f32 %v1260, %v1335
      %1337 = vmatmul.bf16.gmra.mxu0 %v1275
      %v1338 = vpop.f32.mrf.mxu0
      %v1339 = vadd.f32 %v1260, %v1338
      %v1340 = vpop.f32.mrf.mxu0
      %v1341 = vadd.f32 %v1260, %v1340
      %1342 = vmatmul.bf16.gmra.mxu0 %v1278
      %v1343 = vpop.f32.mrf.mxu0
      %v1344 = vadd.f32 %v1260, %v1343
      %v1345 = vpop.f32.mrf.mxu0
      %v1346 = vadd.f32 %v1260, %v1345
      %1347 = vmatmul.bf16.gmra.mxu0 %v1281
      %v1348 = vpop.f32.mrf.mxu0
      %v1349 = vadd.f32 %v1260, %v1348
      %v1350 = vpop.f32.mrf.mxu0
      %v1351 = vadd.f32 %v1260, %v1350
      %1352 = vmatmul.bf16.gmra.mxu0 %v1284
      %v1353 = vpop.f32.mrf.mxu0
      %v1354 = vadd.f32 %v1260, %v1353
      %v1355 = vpop.f32.mrf.mxu0
      %v1356 = vadd.f32 %v1260, %v1355
      %1357 = vmatmul.bf16.gmra.mxu0 %v1287
      %v1358 = vpop.f32.mrf.mxu0
      %v1359 = vadd.f32 %v1260, %v1358
      %v1360 = vpop.f32.mrf.mxu0
      %v1361 = vadd.f32 %v1260, %v1360
      %1362 = vmatmul.bf16.gmra.mxu0 %v1290
      %v1363 = vpop.f32.mrf.mxu0
      %v1364 = vadd.f32 %v1260, %v1363
      %v1365 = vpop.f32.mrf.mxu0
      %v1366 = vadd.f32 %v1260, %v1365
      %1367 = vmatmul.bf16.gmra.mxu0 %v1293
      %v1368 = vpop.f32.mrf.mxu0
      %v1369 = vadd.f32 %v1260, %v1368
      %v1370 = vpop.f32.mrf.mxu0
      %v1371 = vadd.f32 %v1260, %v1370
      %1372 = vmatmul.bf16.gmra.mxu0 %v1296
      %v1373 = vpop.f32.mrf.mxu0
      %v1374 = vadd.f32 %v1260, %v1373
      %v1375 = vpop.f32.mrf.mxu0
      %v1376 = vadd.f32 %v1260, %v1375
      %1377 = vmatmul.bf16.gmra.mxu0 %v1299
      %v1378 = vpop.f32.mrf.mxu0
      %v1379 = vadd.f32 %v1260, %v1378
      %v1380 = vpop.f32.mrf.mxu0
      %v1381 = vadd.f32 %v1260, %v1380
      %1382 = vmatmul.bf16.gmra.mxu0 %v1302
      %v1383 = vpop.f32.mrf.mxu0
      %v1384 = vadd.f32 %v1260, %v1383
      %v1385 = vpop.f32.mrf.mxu0
      %v1386 = vadd.f32 %v1260, %v1385
      %1387 = vmatmul.bf16.gmra.mxu0 %v1305
      %v1388 = vpop.f32.mrf.mxu0
      %v1389 = vadd.f32 %v1260, %v1388
      %v1390 = vpop.f32.mrf.mxu0
      %v1391 = vadd.f32 %v1260, %v1390
      %1392 = vmatmul.bf16.gmra.mxu0 %v1308
      %v1393 = vpop.f32.mrf.mxu0
      %v1394 = vadd.f32 %v1260, %v1393
      %v1395 = vpop.f32.mrf.mxu0
      %v1396 = vadd.f32 %v1260, %v1395
      %1397 = vmatmul.bf16.gmra.mxu0 %v1311
      %v1398 = vpop.f32.mrf.mxu0
      %v1399 = vadd.f32 %v1260, %v1398
      %v1400 = vpop.f32.mrf.mxu0
      %v1401 = vadd.f32 %v1260, %v1400
      %1402 = vmatmul.bf16.gmra.mxu0 %v1314
      %v1403 = vpop.f32.mrf.mxu0
      %v1404 = vadd.f32 %v1260, %v1403
      %v1405 = vpop.f32.mrf.mxu0
      %v1406 = vadd.f32 %v1260, %v1405
      %1407 = vdwg.mxu0
      %v1408 = vadd.f32 %v1329, %v453
      %v1409 = vadd.f32 %v1331, %v454
      %v1410 = vadd.f32 %v1334, %v455
      %v1411 = vadd.f32 %v1336, %v456
      %v1412 = vadd.f32 %v1339, %v457
      %v1413 = vadd.f32 %v1341, %v458
      %v1414 = vadd.f32 %v1344, %v459
      %v1415 = vadd.f32 %v1346, %v460
      %v1416 = vadd.f32 %v1349, %v461
      %v1417 = vadd.f32 %v1351, %v462
      %v1418 = vadd.f32 %v1354, %v463
      %v1419 = vadd.f32 %v1356, %v464
      %v1420 = vadd.f32 %v1359, %v465
      %v1421 = vadd.f32 %v1361, %v466
      %v1422 = vadd.f32 %v1364, %v467
      %v1423 = vadd.f32 %v1366, %v468
      %v1424 = vadd.f32 %v1369, %v469
      %v1425 = vadd.f32 %v1371, %v470
      %v1426 = vadd.f32 %v1374, %v471
      %v1427 = vadd.f32 %v1376, %v472
      %v1428 = vadd.f32 %v1379, %v473
      %v1429 = vadd.f32 %v1381, %v474
      %v1430 = vadd.f32 %v1384, %v475
      %v1431 = vadd.f32 %v1386, %v476
      %v1432 = vadd.f32 %v1389, %v477
      %v1433 = vadd.f32 %v1391, %v478
      %v1434 = vadd.f32 %v1394, %v479
      %v1435 = vadd.f32 %v1396, %v480
      %v1436 = vadd.f32 %v1399, %v481
      %v1437 = vadd.f32 %v1401, %v482
      %v1438 = vadd.f32 %v1404, %v483
      %v1439 = vadd.f32 %v1406, %v484
      %v1440 = vmax.f32 %v1408, 0.0
      %v1441 = vmax.f32 %v1409, 0.0
      %v1442 = vmax.f32 %v1410, 0.0
      %v1443 = vmax.f32 %v1411, 0.0
      %v1444 = vmax.f32 %v1412, 0.0
      %v1445 = vmax.f32 %v1413, 0.0
      %v1446 = vmax.f32 %v1414, 0.0
      %v1447 = vmax.f32 %v1415, 0.0
      %v1448 = vmax.f32 %v1416, 0.0
      %v1449 = vmax.f32 %v1417, 0.0
      %v1450 = vmax.f32 %v1418, 0.0
      %v1451 = vmax.f32 %v1419, 0.0
      %v1452 = vmax.f32 %v1420, 0.0
      %v1453 = vmax.f32 %v1421, 0.0
      %v1454 = vmax.f32 %v1422, 0.0
      %v1455 = vmax.f32 %v1423, 0.0
      %v1456 = vmax.f32 %v1424, 0.0
      %v1457 = vmax.f32 %v1425, 0.0
      %v1458 = vmax.f32 %v1426, 0.0
      %v1459 = vmax.f32 %v1427, 0.0
      %v1460 = vmax.f32 %v1428, 0.0
      %v1461 = vmax.f32 %v1429, 0.0
      %v1462 = vmax.f32 %v1430, 0.0
      %v1463 = vmax.f32 %v1431, 0.0
      %v1464 = vmax.f32 %v1432, 0.0
      %v1465 = vmax.f32 %v1433, 0.0
      %v1466 = vmax.f32 %v1434, 0.0
      %v1467 = vmax.f32 %v1435, 0.0
      %v1468 = vmax.f32 %v1436, 0.0
      %v1469 = vmax.f32 %v1437, 0.0
      %v1470 = vmax.f32 %v1438, 0.0
      %v1471 = vmax.f32 %v1439, 0.0
      %v1472 = vpack.c.bf16 %v1441, %v1440
      %v1473 = vpack.c.bf16 %v1443, %v1442
      %v1474 = vpack.c.bf16 %v1445, %v1444
      %v1475 = vpack.c.bf16 %v1447, %v1446
      %v1476 = vpack.c.bf16 %v1449, %v1448
      %v1477 = vpack.c.bf16 %v1451, %v1450
      %v1478 = vpack.c.bf16 %v1453, %v1452
      %v1479 = vpack.c.bf16 %v1455, %v1454
      %v1480 = vpack.c.bf16 %v1457, %v1456
      %v1481 = vpack.c.bf16 %v1459, %v1458
      %v1482 = vpack.c.bf16 %v1461, %v1460
      %v1483 = vpack.c.bf16 %v1463, %v1462
      %v1484 = vpack.c.bf16 %v1465, %v1464
      %v1485 = vpack.c.bf16 %v1467, %v1466
      %v1486 = vpack.c.bf16 %v1469, %v1468
      %v1487 = vpack.c.bf16 %v1471, %v1470
      %v1489 = vperm.slane %v530, 0
      %v1494 = vunpack.c.l.b16 %v527
      %v1495 = vunpack.c.l.b16 %v528
      %v1496 = vunpack.c.l.b16 %v529
      %v1497 = vpack.c.b16 %v1495, %v1494
      %v1498 = vpack.c.b16 %v1496, %v1496
      %vm1500 = vcmask 195584
      %v1502 = vsel %vm1500, %v1472, 0
      %v1505 = vsel %vm1500, %v1473, 0
      %v1508 = vsel %vm1500, %v1474, 0
      %v1511 = vsel %vm1500, %v1475, 0
      %v1514 = vsel %vm1500, %v1476, 0
      %v1517 = vsel %vm1500, %v1477, 0
      %v1520 = vsel %vm1500, %v1478, 0
      %v1523 = vsel %vm1500, %v1479, 0
      %v1526 = vsel %vm1500, %v1480, 0
      %v1529 = vsel %vm1500, %v1481, 0
      %v1532 = vsel %vm1500, %v1482, 0
      %v1535 = vsel %vm1500, %v1483, 0
      %v1538 = vsel %vm1500, %v1484, 0
      %v1541 = vsel %vm1500, %v1485, 0
      %v1544 = vsel %vm1500, %v1486, 0
      %v1547 = vsel %vm1500, %v1487, 0
      %vm1549 = vcmask 1043456
      %v1551 = vsel %vm1549, %v1498, 0
      %1553 = vmatpush.bf16.msra.mxu0 0
      %1554 = vmatpush.bf16.msra.mxu0 0
      %1555 = vmatpush.bf16.msra.mxu0 0
      %1556 = vmatpush.bf16.msra.mxu0 0
      %1557 = vmatpush.bf16.msra.mxu0 0
      %1558 = vmatpush.bf16.msra.mxu0 0
      %1559 = vmatpush.bf16.msra.mxu0 %v1551
      %1560 = vmatpush.bf16.msra.mxu0 %v1497
      %1561 = vmatmul.bf16.gmra.mxu0 %v1502
      %v1562 = vpop.f32.mrf.mxu0
      %v1563 = vadd.f32 %v1489, %v1562
      %v1564 = vpop.f32.mrf.mxu0
      %v1565 = vadd.f32 %v1489, %v1564
      %1566 = vmatmul.bf16.gmra.mxu0 %v1505
      %v1567 = vpop.f32.mrf.mxu0
      %v1568 = vadd.f32 %v1489, %v1567
      %v1569 = vpop.f32.mrf.mxu0
      %v1570 = vadd.f32 %v1489, %v1569
      %1571 = vmatmul.bf16.gmra.mxu0 %v1508
      %v1572 = vpop.f32.mrf.mxu0
      %v1573 = vadd.f32 %v1489, %v1572
      %v1574 = vpop.f32.mrf.mxu0
      %v1575 = vadd.f32 %v1489, %v1574
      %1576 = vmatmul.bf16.gmra.mxu0 %v1511
      %v1577 = vpop.f32.mrf.mxu0
      %v1578 = vadd.f32 %v1489, %v1577
      %v1579 = vpop.f32.mrf.mxu0
      %v1580 = vadd.f32 %v1489, %v1579
      %1581 = vmatmul.bf16.gmra.mxu0 %v1514
      %v1582 = vpop.f32.mrf.mxu0
      %v1583 = vadd.f32 %v1489, %v1582
      %v1584 = vpop.f32.mrf.mxu0
      %v1585 = vadd.f32 %v1489, %v1584
      %1586 = vmatmul.bf16.gmra.mxu0 %v1517
      %v1587 = vpop.f32.mrf.mxu0
      %v1588 = vadd.f32 %v1489, %v1587
      %v1589 = vpop.f32.mrf.mxu0
      %v1590 = vadd.f32 %v1489, %v1589
      %1591 = vmatmul.bf16.gmra.mxu0 %v1520
      %v1592 = vpop.f32.mrf.mxu0
      %v1593 = vadd.f32 %v1489, %v1592
      %v1594 = vpop.f32.mrf.mxu0
      %v1595 = vadd.f32 %v1489, %v1594
      %1596 = vmatmul.bf16.gmra.mxu0 %v1523
      %v1597 = vpop.f32.mrf.mxu0
      %v1598 = vadd.f32 %v1489, %v1597
      %v1599 = vpop.f32.mrf.mxu0
      %v1600 = vadd.f32 %v1489, %v1599
      %1601 = vmatmul.bf16.gmra.mxu0 %v1526
      %v1602 = vpop.f32.mrf.mxu0
      %v1603 = vadd.f32 %v1489, %v1602
      %v1604 = vpop.f32.mrf.mxu0
      %v1605 = vadd.f32 %v1489, %v1604
      %1606 = vmatmul.bf16.gmra.mxu0 %v1529
      %v1607 = vpop.f32.mrf.mxu0
      %v1608 = vadd.f32 %v1489, %v1607
      %v1609 = vpop.f32.mrf.mxu0
      %v1610 = vadd.f32 %v1489, %v1609
      %1611 = vmatmul.bf16.gmra.mxu0 %v1532
      %v1612 = vpop.f32.mrf.mxu0
      %v1613 = vadd.f32 %v1489, %v1612
      %v1614 = vpop.f32.mrf.mxu0
      %v1615 = vadd.f32 %v1489, %v1614
      %1616 = vmatmul.bf16.gmra.mxu0 %v1535
      %v1617 = vpop.f32.mrf.mxu0
      %v1618 = vadd.f32 %v1489, %v1617
      %v1619 = vpop.f32.mrf.mxu0
      %v1620 = vadd.f32 %v1489, %v1619
      %1621 = vmatmul.bf16.gmra.mxu0 %v1538
      %v1622 = vpop.f32.mrf.mxu0
      %v1623 = vadd.f32 %v1489, %v1622
      %v1624 = vpop.f32.mrf.mxu0
      %v1625 = vadd.f32 %v1489, %v1624
      %1626 = vmatmul.bf16.gmra.mxu0 %v1541
      %v1627 = vpop.f32.mrf.mxu0
      %v1628 = vadd.f32 %v1489, %v1627
      %v1629 = vpop.f32.mrf.mxu0
      %v1630 = vadd.f32 %v1489, %v1629
      %1631 = vmatmul.bf16.gmra.mxu0 %v1544
      %v1632 = vpop.f32.mrf.mxu0
      %v1633 = vadd.f32 %v1489, %v1632
      %v1634 = vpop.f32.mrf.mxu0
      %v1635 = vadd.f32 %v1489, %v1634
      %1636 = vmatmul.bf16.gmra.mxu0 %v1547
      %v1637 = vpop.f32.mrf.mxu0
      %v1638 = vadd.f32 %v1489, %v1637
      %v1639 = vpop.f32.mrf.mxu0
      %v1640 = vadd.f32 %v1489, %v1639
      %1641 = vdwg.mxu0
      %v1642 = vmax.f32 %v1563, 0.0
      %v1643 = vmax.f32 %v1565, 0.0
      %v1644 = vmax.f32 %v1568, 0.0
      %v1645 = vmax.f32 %v1570, 0.0
      %v1646 = vmax.f32 %v1573, 0.0
      %v1647 = vmax.f32 %v1575, 0.0
      %v1648 = vmax.f32 %v1578, 0.0
      %v1649 = vmax.f32 %v1580, 0.0
      %v1650 = vmax.f32 %v1583, 0.0
      %v1651 = vmax.f32 %v1585, 0.0
      %v1652 = vmax.f32 %v1588, 0.0
      %v1653 = vmax.f32 %v1590, 0.0
      %v1654 = vmax.f32 %v1593, 0.0
      %v1655 = vmax.f32 %v1595, 0.0
      %v1656 = vmax.f32 %v1598, 0.0
      %v1657 = vmax.f32 %v1600, 0.0
      %v1658 = vmax.f32 %v1603, 0.0
      %v1659 = vmax.f32 %v1605, 0.0
      %v1660 = vmax.f32 %v1608, 0.0
      %v1661 = vmax.f32 %v1610, 0.0
      %v1662 = vmax.f32 %v1613, 0.0
      %v1663 = vmax.f32 %v1615, 0.0
      %v1664 = vmax.f32 %v1618, 0.0
      %v1665 = vmax.f32 %v1620, 0.0
      %v1666 = vmax.f32 %v1623, 0.0
      %v1667 = vmax.f32 %v1625, 0.0
      %v1668 = vmax.f32 %v1628, 0.0
      %v1669 = vmax.f32 %v1630, 0.0
      %v1670 = vmax.f32 %v1633, 0.0
      %v1671 = vmax.f32 %v1635, 0.0
      %v1672 = vmax.f32 %v1638, 0.0
      %v1673 = vmax.f32 %v1640, 0.0
      %v1674 = vpack.c.bf16 %v1643, %v1642
      %v1675 = vpack.c.bf16 %v1645, %v1644
      %v1676 = vpack.c.bf16 %v1647, %v1646
      %v1677 = vpack.c.bf16 %v1649, %v1648
      %v1678 = vpack.c.bf16 %v1651, %v1650
      %v1679 = vpack.c.bf16 %v1653, %v1652
      %v1680 = vpack.c.bf16 %v1655, %v1654
      %v1681 = vpack.c.bf16 %v1657, %v1656
      %v1682 = vpack.c.bf16 %v1659, %v1658
      %v1683 = vpack.c.bf16 %v1661, %v1660
      %v1684 = vpack.c.bf16 %v1663, %v1662
      %v1685 = vpack.c.bf16 %v1665, %v1664
      %v1686 = vpack.c.bf16 %v1667, %v1666
      %v1687 = vpack.c.bf16 %v1669, %v1668
      %v1688 = vpack.c.bf16 %v1671, %v1670
      %v1689 = vpack.c.bf16 %v1673, %v1672
      %v1691 = vperm.slane %v534, 0
      %v1696 = vunpack.c.l.b16 %v531
      %v1697 = vunpack.c.l.b16 %v532
      %v1698 = vunpack.c.l.b16 %v533
      %v1699 = vpack.c.b16 %v1697, %v1696
      %v1700 = vpack.c.b16 %v1698, %v1698
      %v1703 = vsel %vm1500, %v1674, 0
      %v1706 = vsel %vm1500, %v1675, 0
      %v1709 = vsel %vm1500, %v1676, 0
      %v1712 = vsel %vm1500, %v1677, 0
      %v1715 = vsel %vm1500, %v1678, 0
      %v1718 = vsel %vm1500, %v1679, 0
      %v1721 = vsel %vm1500, %v1680, 0
      %v1724 = vsel %vm1500, %v1681, 0
      %v1727 = vsel %vm1500, %v1682, 0
      %v1730 = vsel %vm1500, %v1683, 0
      %v1733 = vsel %vm1500, %v1684, 0
      %v1736 = vsel %vm1500, %v1685, 0
      %v1739 = vsel %vm1500, %v1686, 0
      %v1742 = vsel %vm1500, %v1687, 0
      %v1745 = vsel %vm1500, %v1688, 0
      %v1748 = vsel %vm1500, %v1689, 0
      %v1751 = vsel %vm1549, %v1700, 0
      %1753 = vmatpush.bf16.msra.mxu0 0
      %1754 = vmatpush.bf16.msra.mxu0 0
      %1755 = vmatpush.bf16.msra.mxu0 0
      %1756 = vmatpush.bf16.msra.mxu0 0
      %1757 = vmatpush.bf16.msra.mxu0 0
      %1758 = vmatpush.bf16.msra.mxu0 0
      %1759 = vmatpush.bf16.msra.mxu0 %v1751
      %1760 = vmatpush.bf16.msra.mxu0 %v1699
      %1761 = vmatmul.bf16.gmra.mxu0 %v1703
      %v1762 = vpop.f32.mrf.mxu0
      %v1763 = vadd.f32 %v1691, %v1762
      %v1764 = vpop.f32.mrf.mxu0
      %v1765 = vadd.f32 %v1691, %v1764
      %1766 = vmatmul.bf16.gmra.mxu0 %v1706
      %v1767 = vpop.f32.mrf.mxu0
      %v1768 = vadd.f32 %v1691, %v1767
      %v1769 = vpop.f32.mrf.mxu0
      %v1770 = vadd.f32 %v1691, %v1769
      %1771 = vmatmul.bf16.gmra.mxu0 %v1709
      %v1772 = vpop.f32.mrf.mxu0
      %v1773 = vadd.f32 %v1691, %v1772
      %v1774 = vpop.f32.mrf.mxu0
      %v1775 = vadd.f32 %v1691, %v1774
      %1776 = vmatmul.bf16.gmra.mxu0 %v1712
      %v1777 = vpop.f32.mrf.mxu0
      %v1778 = vadd.f32 %v1691, %v1777
      %v1779 = vpop.f32.mrf.mxu0
      %v1780 = vadd.f32 %v1691, %v1779
      %1781 = vmatmul.bf16.gmra.mxu0 %v1715
      %v1782 = vpop.f32.mrf.mxu0
      %v1783 = vadd.f32 %v1691, %v1782
      %v1784 = vpop.f32.mrf.mxu0
      %v1785 = vadd.f32 %v1691, %v1784
      %1786 = vmatmul.bf16.gmra.mxu0 %v1718
      %v1787 = vpop.f32.mrf.mxu0
      %v1788 = vadd.f32 %v1691, %v1787
      %v1789 = vpop.f32.mrf.mxu0
      %v1790 = vadd.f32 %v1691, %v1789
      %1791 = vmatmul.bf16.gmra.mxu0 %v1721
      %v1792 = vpop.f32.mrf.mxu0
      %v1793 = vadd.f32 %v1691, %v1792
      %v1794 = vpop.f32.mrf.mxu0
      %v1795 = vadd.f32 %v1691, %v1794
      %1796 = vmatmul.bf16.gmra.mxu0 %v1724
      %v1797 = vpop.f32.mrf.mxu0
      %v1798 = vadd.f32 %v1691, %v1797
      %v1799 = vpop.f32.mrf.mxu0
      %v1800 = vadd.f32 %v1691, %v1799
      %1801 = vmatmul.bf16.gmra.mxu0 %v1727
      %v1802 = vpop.f32.mrf.mxu0
      %v1803 = vadd.f32 %v1691, %v1802
      %v1804 = vpop.f32.mrf.mxu0
      %v1805 = vadd.f32 %v1691, %v1804
      %1806 = vmatmul.bf16.gmra.mxu0 %v1730
      %v1807 = vpop.f32.mrf.mxu0
      %v1808 = vadd.f32 %v1691, %v1807
      %v1809 = vpop.f32.mrf.mxu0
      %v1810 = vadd.f32 %v1691, %v1809
      %1811 = vmatmul.bf16.gmra.mxu0 %v1733
      %v1812 = vpop.f32.mrf.mxu0
      %v1813 = vadd.f32 %v1691, %v1812
      %v1814 = vpop.f32.mrf.mxu0
      %v1815 = vadd.f32 %v1691, %v1814
      %1816 = vmatmul.bf16.gmra.mxu0 %v1736
      %v1817 = vpop.f32.mrf.mxu0
      %v1818 = vadd.f32 %v1691, %v1817
      %v1819 = vpop.f32.mrf.mxu0
      %v1820 = vadd.f32 %v1691, %v1819
      %1821 = vmatmul.bf16.gmra.mxu0 %v1739
      %v1822 = vpop.f32.mrf.mxu0
      %v1823 = vadd.f32 %v1691, %v1822
      %v1824 = vpop.f32.mrf.mxu0
      %v1825 = vadd.f32 %v1691, %v1824
      %1826 = vmatmul.bf16.gmra.mxu0 %v1742
      %v1827 = vpop.f32.mrf.mxu0
      %v1828 = vadd.f32 %v1691, %v1827
      %v1829 = vpop.f32.mrf.mxu0
      %v1830 = vadd.f32 %v1691, %v1829
      %1831 = vmatmul.bf16.gmra.mxu0 %v1745
      %v1832 = vpop.f32.mrf.mxu0
      %v1833 = vadd.f32 %v1691, %v1832
      %v1834 = vpop.f32.mrf.mxu0
      %v1835 = vadd.f32 %v1691, %v1834
      %1836 = vmatmul.bf16.gmra.mxu0 %v1748
      %v1837 = vpop.f32.mrf.mxu0
      %v1838 = vadd.f32 %v1691, %v1837
      %v1839 = vpop.f32.mrf.mxu0
      %v1840 = vadd.f32 %v1691, %v1839
      %1841 = vdwg.mxu0
      %1842 = vst.msk [vmem:[%s386] sm:$0xff] %vm1500, %v1763
      %1843 = vst.msk [vmem:[%s386 + $0x8] sm:$0xff] %vm1500, %v1765
      %1844 = vst.msk [vmem:[%s386 + $0x10] sm:$0xff] %vm1500, %v1768
      %1845 = vst.msk [vmem:[%s386 + $0x18] sm:$0xff] %vm1500, %v1770
      %1846 = vst.msk [vmem:[%s386 + $0x20] sm:$0xff] %vm1500, %v1773
      %1847 = vst.msk [vmem:[%s386 + $0x28] sm:$0xff] %vm1500, %v1775
      %1848 = vst.msk [vmem:[%s386 + $0x30] sm:$0xff] %vm1500, %v1778
      %1849 = vst.msk [vmem:[%s386 + $0x38] sm:$0xff] %vm1500, %v1780
      %1850 = vst.msk [vmem:[%s386 + $0x40] sm:$0xff] %vm1500, %v1783
      %1851 = vst.msk [vmem:[%s386 + $0x48] sm:$0xff] %vm1500, %v1785
      %1852 = vst.msk [vmem:[%s386 + $0x50] sm:$0xff] %vm1500, %v1788
      %1853 = vst.msk [vmem:[%s386 + $0x58] sm:$0xff] %vm1500, %v1790
      %1854 = vst.msk [vmem:[%s386 + $0x60] sm:$0xff] %vm1500, %v1793
      %1855 = vst.msk [vmem:[%s386 + $0x68] sm:$0xff] %vm1500, %v1795
      %1856 = vst.msk [vmem:[%s386 + $0x70] sm:$0xff] %vm1500, %v1798
      %1857 = vst.msk [vmem:[%s386 + $0x78] sm:$0xff] %vm1500, %v1800
      %1858 = vst.msk [vmem:[%s386 + $0x80] sm:$0xff] %vm1500, %v1803
      %1859 = vst.msk [vmem:[%s386 + $0x88] sm:$0xff] %vm1500, %v1805
      %1860 = vst.msk [vmem:[%s386 + $0x90] sm:$0xff] %vm1500, %v1808
      %1861 = vst.msk [vmem:[%s386 + $0x98] sm:$0xff] %vm1500, %v1810
      %1862 = vst.msk [vmem:[%s386 + $0xa0] sm:$0xff] %vm1500, %v1813
      %1863 = vst.msk [vmem:[%s386 + $0xa8] sm:$0xff] %vm1500, %v1815
      %1864 = vst.msk [vmem:[%s386 + $0xb0] sm:$0xff] %vm1500, %v1818
      %1865 = vst.msk [vmem:[%s386 + $0xb8] sm:$0xff] %vm1500, %v1820
      %1866 = vst.msk [vmem:[%s386 + $0xc0] sm:$0xff] %vm1500, %v1823
      %1867 = vst.msk [vmem:[%s386 + $0xc8] sm:$0xff] %vm1500, %v1825
      %1868 = vst.msk [vmem:[%s386 + $0xd0] sm:$0xff] %vm1500, %v1828
      %1869 = vst.msk [vmem:[%s386 + $0xd8] sm:$0xff] %vm1500, %v1830
      %1870 = vst.msk [vmem:[%s386 + $0xe0] sm:$0xff] %vm1500, %v1833
      %1871 = vst.msk [vmem:[%s386 + $0xe8] sm:$0xff] %vm1500, %v1835
      %1872 = vst.msk [vmem:[%s386 + $0xf0] sm:$0xff] %vm1500, %v1838
      %1873 = vst.msk [vmem:[%s386 + $0xf8] sm:$0xff] %vm1500, %v1840
      %s1874 = smul.u32 32, %s21
      %p1875 = scmp.lt.s32.totalorder %s1874, 63
      %s1876 = scalar_select %p1875, %s1874, 63
      %s1877 = smul.addr %s1876, 8
      %s1878 = scalar_lea.vmem %s10, %s1877
      // Predicated region
      $region61: #{_lambda_.5} parent=59 // pred_check
        %p1879 = pneg %p259
      $region62: #{_lambda_.5} parent=59 // pred_check_branch
        %1881 = sbr.rel (%p1879) target = $region64
      $region63: #{_lambda_.5} parent=59 // pred_region
        %s1882 = smul.u32 32, %s21
      $region64: #{_lambda_.5} parent=59 // pred_fallthru
        _
    $region60: #{_lambda_.5} parent=5 // pred_fallthru
      _
    %p1883 = scmp.le.s32.totalorder 2, %s16
    // Predicated region
    $region65: #{_lambda_.5} parent=5 // pred_check
      %p1884 = pneg %p1883
    $region66: #{_lambda_.5} parent=5 // pred_check_branch
      %1886 = sbr.rel (%p1884) target = $region68
    $region67: #{_lambda_.5} parent=5 // pred_region
      %s1887 = ssub.s32 %s16, 2
      // Predicated region
      $region69: #{_lambda_.5} parent=67 // pred_check
        %p1888 = pneg %p265
      $region70: #{_lambda_.5} parent=67 // pred_check_branch
        %1890 = sbr.rel (%p1888) target = $region72
      $region71: #{_lambda_.5} parent=67 // pred_region
        %s1891 = smul.u32 32, %s22
        %p1892 = scmp.lt.s32.totalorder %s1891, 63
        %s1893 = scalar_select %p1892, %s1891, 63
        %s1894 = smul.addr %s1893, 8
        %s1895 = scalar_lea.vmem %s10, %s1894
      $region72: #{_lambda_.5} parent=67 // pred_fallthru
        _
    $region68: #{_lambda_.5} parent=5 // pred_fallthru
      _
  $region6: #{_lambda_.5} parent=0 // loop_footer
    %s20 = sadd.s32 1, %s16
  $region7: #{_lambda_.5} parent=0 // loop_footer_branch
    %15 = sbr.rel target = $region3
  $region8: #{_lambda_.5} parent=0 // loop_exit
    _

// kernel: _lambda_.4
$region0: #{_lambda_.4}
  #allocation0 [shape = 'u32[]', space=smem, size = 0x4, offset = 0x4, fixed_abs, tag = 'smem constant byte address 0x4 - core index']
  #allocation1 [shape = 'u32[72,128]{1,0:T(1,128)}', space=vmem, size = 0x9000, scoped, tag = 'internal scratch']
  %s0 = inlined_call_operand.vmem [shape: bf16[512,300], index: 0, kind: input, shape index: {}]
  %s1 = inlined_call_operand.vmem [shape: f32[512,24], index: 1, kind: input, shape index: {}]
  %s2 = inlined_call_operand.vmem [shape: bf16[300,12], index: 2, kind: input, shape index: {}]
  %s3 = inlined_call_operand.vmem [shape: f32[1,12], index: 3, kind: input, shape index: {}]
  %s4 = inlined_call_operand.vmem [shape: bf16[12,24], index: 4, kind: input, shape index: {}]
  %s5 = inlined_call_operand.vmem [shape: f32[1,24], index: 5, kind: input, shape index: {}]
  %s6 = inlined_call_operand.vmem [shape: bf16[24,24], index: 6, kind: input, shape index: {}]
  %s7 = inlined_call_operand.vmem [shape: f32[1,24], index: 7, kind: input, shape index: {}]
  %s8 = inlined_call_operand.vmem [shape: bf16[24,24], index: 8, kind: input, shape index: {}]
  %s9 = inlined_call_operand.vmem [shape: f32[1,24], index: 9, kind: input, shape index: {}]
  %s10 = inlined_call_operand.vmem [shape: f32[1,24], index: 10, kind: input, shape index: {}]
  %s11 = inlined_call_operand.vmem [shape: f32[1,24], index: 11, kind: input, shape index: {}]
  %s12 = inlined_call_operand.vmem [shape: bf16[24,12], index: 12, kind: input, shape index: {}]
  %s13 = inlined_call_operand.vmem [shape: f32[1,12], index: 13, kind: input, shape index: {}]
  %s14 = inlined_call_operand.vmem [shape: f32[512,24], index: 14, kind: output, shape index: {0}]
  %s15 = inlined_call_operand.vmem [shape: bf16[512,12], index: 15, kind: output, shape index: {1}]
  %16 = xla_tuple %s14, %s15
  %s17 = sld [smem:[#allocation0]]
  $region97: #{_lambda_.4} parent=0
    _
  %s19 = ssub.s32 1, %s17
  %s20 = scalar_select 0, %s19, %s17
  loop: start=0, step=1, limit=4
  $region2: #{_lambda_.4} parent=0 // loop_pre_header
    _
  $region3: #{_lambda_.4} parent=0 // loop_header
    %s22 = sphi 0, %s26
    %p23 = scmp.ge.s32.totalorder %s22, 4
    %s32 = sphi 0, %s34
    %s35 = sphi 0, %s32
    %s36 = sphi 0, %s35
    %s52 = sphi 0, %s36
    %s58 = sphi 0, %s60
    %s61 = sphi 0, %s58
    %s62 = sphi 0, %s61
    %s78 = sphi 0, %s62
    %s82 = sphi 0, %s82
    %s84 = sphi 0, %s82
    %s85 = sphi 0, %s84
    %s99 = sphi 0, %s85
    %s103 = sphi 0, %s103
    %s105 = sphi 0, %s103
    %s106 = sphi 0, %s105
    %s120 = sphi 0, %s106
    %s124 = sphi 0, %s124
    %s126 = sphi 0, %s124
    %s127 = sphi 0, %s126
    %s141 = sphi 0, %s127
    %s145 = sphi 0, %s145
    %s147 = sphi 0, %s145
    %s148 = sphi 0, %s147
    %s162 = sphi 0, %s148
    %s166 = sphi 0, %s166
    %s168 = sphi 0, %s166
    %s169 = sphi 0, %s168
    %s183 = sphi 0, %s169
    %s187 = sphi 0, %s187
    %s189 = sphi 0, %s187
    %s190 = sphi 0, %s189
    %s204 = sphi 0, %s190
    %s208 = sphi 0, %s208
    %s210 = sphi 0, %s208
    %s211 = sphi 0, %s210
    %s225 = sphi 0, %s211
    %s229 = sphi 0, %s229
    %s231 = sphi 0, %s229
    %s232 = sphi 0, %s231
    %s246 = sphi 0, %s232
    %s250 = sphi 0, %s250
    %s252 = sphi 0, %s250
    %s253 = sphi 0, %s252
    %s267 = sphi 0, %s253
    %s271 = sphi 0, %s271
    %s273 = sphi 0, %s271
    %s274 = sphi 0, %s273
    %s288 = sphi 0, %s274
    %s292 = sphi 0, %s292
    %s294 = sphi 0, %s292
    %s295 = sphi 0, %s294
    %s309 = sphi 0, %s295
    %s313 = sphi 0, %s313
    %s315 = sphi 0, %s313
    %s316 = sphi 0, %s315
    %s330 = sphi 0, %s316
    %s336 = sphi 0, %s338
    %s339 = sphi 0, %s336
    %s340 = sphi 0, %s339
    %s356 = sphi 0, %s340
    %s362 = sphi 0, %s364
    %s365 = sphi 0, %s362
    %s366 = sphi 0, %s365
    %s382 = sphi 0, %s366
  $region4: #{_lambda_.4} parent=0 // loop_header_branch
    %25 = sbr.rel (%p23) target = $region8
  $region5: #{_lambda_.4} parent=0 // loop_body
    %s27 = ssub.s32 %s22, 1
    %s28 = ssub.s32 %s22, 2
    %s29 = sadd.s32 %s22, 1
    %s30 = ssub.s32 %s22, %s29
    %p31 = scmp.eq.s32.totalorder %s30, 0
    %s33 = sadd.s32 %s32, 1
    %s34 = scalar_select %p31, %s32, %s33
    %p37 = pneg %p31
    %p38 = scmp.eq.s32.totalorder %s22, 1
    %p39 = por %p37, %p38
    %p40 = scmp.ne.s32.totalorder %s32, %s35
    %p41 = scmp.eq.s32.totalorder %s22, 0
    %p42 = por %p40, %p41
    %p43 = scmp.ne.s32.totalorder %s32, %s35
    %p44 = scmp.eq.s32.totalorder %s27, 1
    %p45 = por %p43, %p44
    %p46 = scmp.ne.s32.totalorder %s35, %s36
    %p47 = scmp.eq.s32.totalorder %s27, 0
    %p48 = por %p46, %p47
    %p49 = scmp.ne.s32.totalorder %s35, %s36
    %p50 = scmp.eq.s32.totalorder %s28, 1
    %p51 = por %p49, %p50
    %p53 = scmp.ne.s32.totalorder %s36, %s52
    %p54 = scmp.eq.s32.totalorder %s28, 0
    %p55 = por %p53, %p54
    %s56 = ssub.s32 %s22, %s29
    %p57 = scmp.eq.s32.totalorder %s56, 0
    %s59 = sadd.s32 %s58, 1
    %s60 = scalar_select %p57, %s58, %s59
    %p63 = pneg %p57
    %p64 = scmp.eq.s32.totalorder %s22, 1
    %p65 = por %p63, %p64
    %p66 = scmp.ne.s32.totalorder %s58, %s61
    %p67 = scmp.eq.s32.totalorder %s22, 0
    %p68 = por %p66, %p67
    %p69 = scmp.ne.s32.totalorder %s58, %s61
    %p70 = scmp.eq.s32.totalorder %s27, 1
    %p71 = por %p69, %p70
    %p72 = scmp.ne.s32.totalorder %s61, %s62
    %p73 = scmp.eq.s32.totalorder %s27, 0
    %p74 = por %p72, %p73
    %p75 = scmp.ne.s32.totalorder %s61, %s62
    %p76 = scmp.eq.s32.totalorder %s28, 1
    %p77 = por %p75, %p76
    %p79 = scmp.ne.s32.totalorder %s62, %s78
    %p80 = scmp.eq.s32.totalorder %s28, 0
    %p81 = por %p79, %p80
    %s83 = sadd.s32 %s82, 1
    %p86 = scmp.eq.s32.totalorder %s22, 1
    %p87 = scmp.ne.s32.totalorder %s82, %s84
    %p88 = scmp.eq.s32.totalorder %s22, 0
    %p89 = por %p87, %p88
    %p90 = scmp.ne.s32.totalorder %s82, %s84
    %p91 = scmp.eq.s32.totalorder %s27, 1
    %p92 = por %p90, %p91
    %p93 = scmp.ne.s32.totalorder %s84, %s85
    %p94 = scmp.eq.s32.totalorder %s27, 0
    %p95 = por %p93, %p94
    %p96 = scmp.ne.s32.totalorder %s84, %s85
    %p97 = scmp.eq.s32.totalorder %s28, 1
    %p98 = por %p96, %p97
    %p100 = scmp.ne.s32.totalorder %s85, %s99
    %p101 = scmp.eq.s32.totalorder %s28, 0
    %p102 = por %p100, %p101
    %s104 = sadd.s32 %s103, 1
    %p107 = scmp.eq.s32.totalorder %s22, 1
    %p108 = scmp.ne.s32.totalorder %s103, %s105
    %p109 = scmp.eq.s32.totalorder %s22, 0
    %p110 = por %p108, %p109
    %p111 = scmp.ne.s32.totalorder %s103, %s105
    %p112 = scmp.eq.s32.totalorder %s27, 1
    %p113 = por %p111, %p112
    %p114 = scmp.ne.s32.totalorder %s105, %s106
    %p115 = scmp.eq.s32.totalorder %s27, 0
    %p116 = por %p114, %p115
    %p117 = scmp.ne.s32.totalorder %s105, %s106
    %p118 = scmp.eq.s32.totalorder %s28, 1
    %p119 = por %p117, %p118
    %p121 = scmp.ne.s32.totalorder %s106, %s120
    %p122 = scmp.eq.s32.totalorder %s28, 0
    %p123 = por %p121, %p122
    %s125 = sadd.s32 %s124, 1
    %p128 = scmp.eq.s32.totalorder %s22, 1
    %p129 = scmp.ne.s32.totalorder %s124, %s126
    %p130 = scmp.eq.s32.totalorder %s22, 0
    %p131 = por %p129, %p130
    %p132 = scmp.ne.s32.totalorder %s124, %s126
    %p133 = scmp.eq.s32.totalorder %s27, 1
    %p134 = por %p132, %p133
    %p135 = scmp.ne.s32.totalorder %s126, %s127
    %p136 = scmp.eq.s32.totalorder %s27, 0
    %p137 = por %p135, %p136
    %p138 = scmp.ne.s32.totalorder %s126, %s127
    %p139 = scmp.eq.s32.totalorder %s28, 1
    %p140 = por %p138, %p139
    %p142 = scmp.ne.s32.totalorder %s127, %s141
    %p143 = scmp.eq.s32.totalorder %s28, 0
    %p144 = por %p142, %p143
    %s146 = sadd.s32 %s145, 1
    %p149 = scmp.eq.s32.totalorder %s22, 1
    %p150 = scmp.ne.s32.totalorder %s145, %s147
    %p151 = scmp.eq.s32.totalorder %s22, 0
    %p152 = por %p150, %p151
    %p153 = scmp.ne.s32.totalorder %s145, %s147
    %p154 = scmp.eq.s32.totalorder %s27, 1
    %p155 = por %p153, %p154
    %p156 = scmp.ne.s32.totalorder %s147, %s148
    %p157 = scmp.eq.s32.totalorder %s27, 0
    %p158 = por %p156, %p157
    %p159 = scmp.ne.s32.totalorder %s147, %s148
    %p160 = scmp.eq.s32.totalorder %s28, 1
    %p161 = por %p159, %p160
    %p163 = scmp.ne.s32.totalorder %s148, %s162
    %p164 = scmp.eq.s32.totalorder %s28, 0
    %p165 = por %p163, %p164
    %s167 = sadd.s32 %s166, 1
    %p170 = scmp.eq.s32.totalorder %s22, 1
    %p171 = scmp.ne.s32.totalorder %s166, %s168
    %p172 = scmp.eq.s32.totalorder %s22, 0
    %p173 = por %p171, %p172
    %p174 = scmp.ne.s32.totalorder %s166, %s168
    %p175 = scmp.eq.s32.totalorder %s27, 1
    %p176 = por %p174, %p175
    %p177 = scmp.ne.s32.totalorder %s168, %s169
    %p178 = scmp.eq.s32.totalorder %s27, 0
    %p179 = por %p177, %p178
    %p180 = scmp.ne.s32.totalorder %s168, %s169
    %p181 = scmp.eq.s32.totalorder %s28, 1
    %p182 = por %p180, %p181
    %p184 = scmp.ne.s32.totalorder %s169, %s183
    %p185 = scmp.eq.s32.totalorder %s28, 0
    %p186 = por %p184, %p185
    %s188 = sadd.s32 %s187, 1
    %p191 = scmp.eq.s32.totalorder %s22, 1
    %p192 = scmp.ne.s32.totalorder %s187, %s189
    %p193 = scmp.eq.s32.totalorder %s22, 0
    %p194 = por %p192, %p193
    %p195 = scmp.ne.s32.totalorder %s187, %s189
    %p196 = scmp.eq.s32.totalorder %s27, 1
    %p197 = por %p195, %p196
    %p198 = scmp.ne.s32.totalorder %s189, %s190
    %p199 = scmp.eq.s32.totalorder %s27, 0
    %p200 = por %p198, %p199
    %p201 = scmp.ne.s32.totalorder %s189, %s190
    %p202 = scmp.eq.s32.totalorder %s28, 1
    %p203 = por %p201, %p202
    %p205 = scmp.ne.s32.totalorder %s190, %s204
    %p206 = scmp.eq.s32.totalorder %s28, 0
    %p207 = por %p205, %p206
    %s209 = sadd.s32 %s208, 1
    %p212 = scmp.eq.s32.totalorder %s22, 1
    %p213 = scmp.ne.s32.totalorder %s208, %s210
    %p214 = scmp.eq.s32.totalorder %s22, 0
    %p215 = por %p213, %p214
    %p216 = scmp.ne.s32.totalorder %s208, %s210
    %p217 = scmp.eq.s32.totalorder %s27, 1
    %p218 = por %p216, %p217
    %p219 = scmp.ne.s32.totalorder %s210, %s211
    %p220 = scmp.eq.s32.totalorder %s27, 0
    %p221 = por %p219, %p220
    %p222 = scmp.ne.s32.totalorder %s210, %s211
    %p223 = scmp.eq.s32.totalorder %s28, 1
    %p224 = por %p222, %p223
    %p226 = scmp.ne.s32.totalorder %s211, %s225
    %p227 = scmp.eq.s32.totalorder %s28, 0
    %p228 = por %p226, %p227
    %s230 = sadd.s32 %s229, 1
    %p233 = scmp.eq.s32.totalorder %s22, 1
    %p234 = scmp.ne.s32.totalorder %s229, %s231
    %p235 = scmp.eq.s32.totalorder %s22, 0
    %p236 = por %p234, %p235
    %p237 = scmp.ne.s32.totalorder %s229, %s231
    %p238 = scmp.eq.s32.totalorder %s27, 1
    %p239 = por %p237, %p238
    %p240 = scmp.ne.s32.totalorder %s231, %s232
    %p241 = scmp.eq.s32.totalorder %s27, 0
    %p242 = por %p240, %p241
    %p243 = scmp.ne.s32.totalorder %s231, %s232
    %p244 = scmp.eq.s32.totalorder %s28, 1
    %p245 = por %p243, %p244
    %p247 = scmp.ne.s32.totalorder %s232, %s246
    %p248 = scmp.eq.s32.totalorder %s28, 0
    %p249 = por %p247, %p248
    %s251 = sadd.s32 %s250, 1
    %p254 = scmp.eq.s32.totalorder %s22, 1
    %p255 = scmp.ne.s32.totalorder %s250, %s252
    %p256 = scmp.eq.s32.totalorder %s22, 0
    %p257 = por %p255, %p256
    %p258 = scmp.ne.s32.totalorder %s250, %s252
    %p259 = scmp.eq.s32.totalorder %s27, 1
    %p260 = por %p258, %p259
    %p261 = scmp.ne.s32.totalorder %s252, %s253
    %p262 = scmp.eq.s32.totalorder %s27, 0
    %p263 = por %p261, %p262
    %p264 = scmp.ne.s32.totalorder %s252, %s253
    %p265 = scmp.eq.s32.totalorder %s28, 1
    %p266 = por %p264, %p265
    %p268 = scmp.ne.s32.totalorder %s253, %s267
    %p269 = scmp.eq.s32.totalorder %s28, 0
    %p270 = por %p268, %p269
    %s272 = sadd.s32 %s271, 1
    %p275 = scmp.eq.s32.totalorder %s22, 1
    %p276 = scmp.ne.s32.totalorder %s271, %s273
    %p277 = scmp.eq.s32.totalorder %s22, 0
    %p278 = por %p276, %p277
    %p279 = scmp.ne.s32.totalorder %s271, %s273
    %p280 = scmp.eq.s32.totalorder %s27, 1
    %p281 = por %p279, %p280
    %p282 = scmp.ne.s32.totalorder %s273, %s274
    %p283 = scmp.eq.s32.totalorder %s27, 0
    %p284 = por %p282, %p283
    %p285 = scmp.ne.s32.totalorder %s273, %s274
    %p286 = scmp.eq.s32.totalorder %s28, 1
    %p287 = por %p285, %p286
    %p289 = scmp.ne.s32.totalorder %s274, %s288
    %p290 = scmp.eq.s32.totalorder %s28, 0
    %p291 = por %p289, %p290
    %s293 = sadd.s32 %s292, 1
    %p296 = scmp.eq.s32.totalorder %s22, 1
    %p297 = scmp.ne.s32.totalorder %s292, %s294
    %p298 = scmp.eq.s32.totalorder %s22, 0
    %p299 = por %p297, %p298
    %p300 = scmp.ne.s32.totalorder %s292, %s294
    %p301 = scmp.eq.s32.totalorder %s27, 1
    %p302 = por %p300, %p301
    %p303 = scmp.ne.s32.totalorder %s294, %s295
    %p304 = scmp.eq.s32.totalorder %s27, 0
    %p305 = por %p303, %p304
    %p306 = scmp.ne.s32.totalorder %s294, %s295
    %p307 = scmp.eq.s32.totalorder %s28, 1
    %p308 = por %p306, %p307
    %p310 = scmp.ne.s32.totalorder %s295, %s309
    %p311 = scmp.eq.s32.totalorder %s28, 0
    %p312 = por %p310, %p311
    %s314 = sadd.s32 %s313, 1
    %p317 = scmp.eq.s32.totalorder %s22, 1
    %p318 = scmp.ne.s32.totalorder %s313, %s315
    %p319 = scmp.eq.s32.totalorder %s22, 0
    %p320 = por %p318, %p319
    %p321 = scmp.ne.s32.totalorder %s313, %s315
    %p322 = scmp.eq.s32.totalorder %s27, 1
    %p323 = por %p321, %p322
    %p324 = scmp.ne.s32.totalorder %s315, %s316
    %p325 = scmp.eq.s32.totalorder %s27, 0
    %p326 = por %p324, %p325
    %p327 = scmp.ne.s32.totalorder %s315, %s316
    %p328 = scmp.eq.s32.totalorder %s28, 1
    %p329 = por %p327, %p328
    %p331 = scmp.ne.s32.totalorder %s316, %s330
    %p332 = scmp.eq.s32.totalorder %s28, 0
    %p333 = por %p331, %p332
    %s334 = ssub.s32 %s22, %s29
    %p335 = scmp.eq.s32.totalorder %s334, 0
    %s337 = sadd.s32 %s336, 1
    %s338 = scalar_select %p335, %s336, %s337
    %p341 = pneg %p335
    %p342 = scmp.eq.s32.totalorder %s22, 1
    %p343 = por %p341, %p342
    %p344 = scmp.ne.s32.totalorder %s336, %s339
    %p345 = scmp.eq.s32.totalorder %s22, 0
    %p346 = por %p344, %p345
    %p347 = scmp.ne.s32.totalorder %s336, %s339
    %p348 = scmp.eq.s32.totalorder %s27, 1
    %p349 = por %p347, %p348
    %p350 = scmp.ne.s32.totalorder %s339, %s340
    %p351 = scmp.eq.s32.totalorder %s27, 0
    %p352 = por %p350, %p351
    %p353 = scmp.ne.s32.totalorder %s339, %s340
    %p354 = scmp.eq.s32.totalorder %s28, 1
    %p355 = por %p353, %p354
    %p357 = scmp.ne.s32.totalorder %s340, %s356
    %p358 = scmp.eq.s32.totalorder %s28, 0
    %p359 = por %p357, %p358
    %s360 = ssub.s32 %s22, %s29
    %p361 = scmp.eq.s32.totalorder %s360, 0
    %s363 = sadd.s32 %s362, 1
    %s364 = scalar_select %p361, %s362, %s363
    %p367 = pneg %p361
    %p368 = scmp.eq.s32.totalorder %s22, 1
    %p369 = por %p367, %p368
    %p370 = scmp.ne.s32.totalorder %s362, %s365
    %p371 = scmp.eq.s32.totalorder %s22, 0
    %p372 = por %p370, %p371
    %p373 = scmp.ne.s32.totalorder %s362, %s365
    %p374 = scmp.eq.s32.totalorder %s27, 1
    %p375 = por %p373, %p374
    %p376 = scmp.ne.s32.totalorder %s365, %s366
    %p377 = scmp.eq.s32.totalorder %s27, 0
    %p378 = por %p376, %p377
    %p379 = scmp.ne.s32.totalorder %s365, %s366
    %p380 = scmp.eq.s32.totalorder %s28, 1
    %p381 = por %p379, %p380
    %p383 = scmp.ne.s32.totalorder %s366, %s382
    %p384 = scmp.eq.s32.totalorder %s28, 0
    %p385 = por %p383, %p384
    %p386 = scmp.le.s32.totalorder 1, %s22
    %p387 = scmp.lt.s32.totalorder %s22, 3
    %p388 = pnand %p386, %p387
    %p389 = pneg %p388
    // Predicated region
    $region9: #{_lambda_.4} parent=5 // pred_check
      _
    $region10: #{_lambda_.4} parent=5 // pred_check_branch
      %391 = sbr.rel (%p388) target = $region12
    $region11: #{_lambda_.4} parent=5 // pred_region
      %s392 = ssub.s32 %s22, 1
      // Predicated region
      $region13: #{_lambda_.4} parent=11 // pred_check
        %p393 = pneg %p95
      $region14: #{_lambda_.4} parent=11 // pred_check_branch
        %395 = sbr.rel (%p393) target = $region16
      $region15: #{_lambda_.4} parent=11 // pred_region
        _
      $region16: #{_lambda_.4} parent=11 // pred_fallthru
        _
      // Predicated region
      $region17: #{_lambda_.4} parent=11 // pred_check
        %p396 = pneg %p116
      $region18: #{_lambda_.4} parent=11 // pred_check_branch
        %398 = sbr.rel (%p396) target = $region20
      $region19: #{_lambda_.4} parent=11 // pred_region
        _
      $region20: #{_lambda_.4} parent=11 // pred_fallthru
        _
      // Predicated region
      $region21: #{_lambda_.4} parent=11 // pred_check
        %p399 = pneg %p137
      $region22: #{_lambda_.4} parent=11 // pred_check_branch
        %401 = sbr.rel (%p399) target = $region24
      $region23: #{_lambda_.4} parent=11 // pred_region
        _
      $region24: #{_lambda_.4} parent=11 // pred_fallthru
        _
      // Predicated region
      $region25: #{_lambda_.4} parent=11 // pred_check
        %p402 = pneg %p158
      $region26: #{_lambda_.4} parent=11 // pred_check_branch
        %404 = sbr.rel (%p402) target = $region28
      $region27: #{_lambda_.4} parent=11 // pred_region
        _
      $region28: #{_lambda_.4} parent=11 // pred_fallthru
        _
      // Predicated region
      $region29: #{_lambda_.4} parent=11 // pred_check
        %p405 = pneg %p179
      $region30: #{_lambda_.4} parent=11 // pred_check_branch
        %407 = sbr.rel (%p405) target = $region32
      $region31: #{_lambda_.4} parent=11 // pred_region
        _
      $region32: #{_lambda_.4} parent=11 // pred_fallthru
        _
      // Predicated region
      $region33: #{_lambda_.4} parent=11 // pred_check
        %p408 = pneg %p200
      $region34: #{_lambda_.4} parent=11 // pred_check_branch
        %410 = sbr.rel (%p408) target = $region36
      $region35: #{_lambda_.4} parent=11 // pred_region
        _
      $region36: #{_lambda_.4} parent=11 // pred_fallthru
        _
      // Predicated region
      $region37: #{_lambda_.4} parent=11 // pred_check
        %p411 = pneg %p221
      $region38: #{_lambda_.4} parent=11 // pred_check_branch
        %413 = sbr.rel (%p411) target = $region40
      $region39: #{_lambda_.4} parent=11 // pred_region
        _
      $region40: #{_lambda_.4} parent=11 // pred_fallthru
        _
      // Predicated region
      $region41: #{_lambda_.4} parent=11 // pred_check
        %p414 = pneg %p242
      $region42: #{_lambda_.4} parent=11 // pred_check_branch
        %416 = sbr.rel (%p414) target = $region44
      $region43: #{_lambda_.4} parent=11 // pred_region
        _
      $region44: #{_lambda_.4} parent=11 // pred_fallthru
        _
      // Predicated region
      $region45: #{_lambda_.4} parent=11 // pred_check
        %p417 = pneg %p263
      $region46: #{_lambda_.4} parent=11 // pred_check_branch
        %419 = sbr.rel (%p417) target = $region48
      $region47: #{_lambda_.4} parent=11 // pred_region
        _
      $region48: #{_lambda_.4} parent=11 // pred_fallthru
        _
      // Predicated region
      $region49: #{_lambda_.4} parent=11 // pred_check
        %p420 = pneg %p284
      $region50: #{_lambda_.4} parent=11 // pred_check_branch
        %422 = sbr.rel (%p420) target = $region52
      $region51: #{_lambda_.4} parent=11 // pred_region
        _
      $region52: #{_lambda_.4} parent=11 // pred_fallthru
        _
      // Predicated region
      $region53: #{_lambda_.4} parent=11 // pred_check
        %p423 = pneg %p305
      $region54: #{_lambda_.4} parent=11 // pred_check_branch
        %425 = sbr.rel (%p423) target = $region56
      $region55: #{_lambda_.4} parent=11 // pred_region
        _
      $region56: #{_lambda_.4} parent=11 // pred_fallthru
        _
      // Predicated region
      $region57: #{_lambda_.4} parent=11 // pred_check
        %p426 = pneg %p326
      $region58: #{_lambda_.4} parent=11 // pred_check_branch
        %428 = sbr.rel (%p426) target = $region60
      $region59: #{_lambda_.4} parent=11 // pred_region
        _
      $region60: #{_lambda_.4} parent=11 // pred_fallthru
        _
    $region12: #{_lambda_.4} parent=5 // pred_fallthru
      _
    %p429 = scmp.lt.s32.totalorder %s22, 2
    // Predicated region
    $region61: #{_lambda_.4} parent=5 // pred_check
      %p430 = pneg %p429
    $region62: #{_lambda_.4} parent=5 // pred_check_branch
      %432 = sbr.rel (%p430) target = $region64
    $region63: #{_lambda_.4} parent=5 // pred_region
      // Predicated region
      $region65: #{_lambda_.4} parent=63 // pred_check
        %p433 = pneg %p42
      $region66: #{_lambda_.4} parent=63 // pred_check_branch
        %435 = sbr.rel (%p433) target = $region68
      $region67: #{_lambda_.4} parent=63 // pred_region
        %s436 = smul.u32 32, %s22
        %p437 = scmp.lt.s32.totalorder %s436, 63
        %s438 = scalar_select %p437, %s436, 63
        %s439 = smul.addr %s438, 3
        %s440 = smul.addr %s439, 4
        %s441 = scalar_lea.vmem %s0, %s440
        %s442 = smul.u32 32, %s22
      $region68: #{_lambda_.4} parent=63 // pred_fallthru
        _
      // Predicated region
      $region69: #{_lambda_.4} parent=63 // pred_check
        %p443 = pneg %p68
      $region70: #{_lambda_.4} parent=63 // pred_check_branch
        %445 = sbr.rel (%p443) target = $region72
      $region71: #{_lambda_.4} parent=63 // pred_region
        %s446 = smul.u32 32, %s22
        %p447 = scmp.lt.s32.totalorder %s446, 63
        %s448 = scalar_select %p447, %s446, 63
        %s449 = smul.addr %s448, 8
        %s450 = scalar_lea.vmem %s1, %s449
        %s451 = smul.u32 32, %s22
      $region72: #{_lambda_.4} parent=63 // pred_fallthru
        _
    $region64: #{_lambda_.4} parent=5 // pred_fallthru
      _
    %p452 = scmp.le.s32.totalorder 1, %s22
    %p453 = scmp.lt.s32.totalorder %s22, 3
    %p454 = pnand %p452, %p453
    %p455 = pneg %p454
    // Predicated region
    $region73: #{_lambda_.4} parent=5 // pred_check
      _
    $region74: #{_lambda_.4} parent=5 // pred_check_branch
      %457 = sbr.rel (%p454) target = $region76
    $region75: #{_lambda_.4} parent=5 // pred_region
      %s458 = ssub.s32 %s22, 1
      %s459 = smul.u32 32, %s27
      %p460 = scmp.lt.s32.totalorder %s459, 63
      %s461 = scalar_select %p460, %s459, 63
      %s462 = smul.addr %s461, 3
      %s463 = smul.addr %s462, 4
      %s464 = scalar_lea.vmem %s0, %s463
      %p465 = pneg %p48
      %p466 = pneg %p45
      %s467 = smul.u32 32, %s27
      %p468 = scmp.lt.s32.totalorder %s467, 63
      %s469 = scalar_select %p468, %s467, 63
      %s470 = smul.addr %s469, 8
      %s471 = scalar_lea.vmem %s1, %s470
      %p472 = pneg %p74
      %p473 = pneg %p71
      %p474 = pneg %p95
      %p475 = pneg %p92
      %p476 = pneg %p116
      %p477 = pneg %p113
      %p478 = pneg %p137
      %p479 = pneg %p134
      %p480 = pneg %p158
      %p481 = pneg %p155
      %p482 = pneg %p179
      %p483 = pneg %p176
      %p484 = pneg %p200
      %p485 = pneg %p197
      %p486 = pneg %p221
      %p487 = pneg %p218
      %p488 = pneg %p242
      %p489 = pneg %p239
      %p490 = pneg %p263
      %p491 = pneg %p260
      %p492 = pneg %p284
      %p493 = pneg %p281
      %p494 = pneg %p305
      %p495 = pneg %p302
      %p496 = pneg %p326
      %p497 = pneg %p323
      %p498 = pneg %p352
      %p499 = pneg %p349
      %s500 = smul.u32 32, %s27
      %p501 = scmp.lt.s32.totalorder %s500, 63
      %s502 = scalar_select %p501, %s500, 63
      %s503 = smul.addr %s502, 8
      %s504 = scalar_lea.vmem %s14, %s503
      %p505 = pneg %p378
      %p506 = pneg %p375
      %s507 = smul.u32 32, %s27
      %p508 = scmp.lt.s32.totalorder %s507, 63
      %s509 = scalar_select %p508, %s507, 63
      %s510 = smul.addr %s509, 4
      %s511 = scalar_lea.vmem %s15, %s510
      %s512 = smul.u32 32, %s27
      %p513 = scmp.lt.s32.totalorder %s512, 63
      %s514 = scalar_select %p513, %s512, 63
      %s515 = smul.addr %s514, 3
      %s516 = smul.addr %s515, 4
      %s517 = scalar_lea.vmem %s0, %s516
      %s518 = smul.u32 32, %s27
      %s519 = smul.u32 32, %s27
      %p520 = scmp.lt.s32.totalorder %s519, 63
      %s521 = scalar_select %p520, %s519, 63
      %s522 = smul.addr %s521, 8
      %s523 = scalar_lea.vmem %s1, %s522
      %s524 = smul.u32 32, %s27
      %s525 = smul.u32 32, %s27
      %p526 = scmp.lt.s32.totalorder %s525, 63
      %s527 = scalar_select %p526, %s525, 63
      %s528 = smul.addr %s527, 8
      %s529 = scalar_lea.vmem %s14, %s528
      %s530 = smul.u32 32, %s27
      %s531 = smul.u32 32, %s27
      %p532 = scmp.lt.s32.totalorder %s531, 63
      %s533 = scalar_select %p532, %s531, 63
      %s534 = smul.addr %s533, 4
      %s535 = scalar_lea.vmem %s15, %s534
      %s536 = smul.u32 32, %s27
      %v538 = vld [vmem:[%s517] sm:$0xff]
      %v539 = vld [vmem:[%s517 + $0x8] sm:$0xf]
      %v540 = vld [vmem:[%s517 + $0xc] sm:$0xff]
      %v541 = vld [vmem:[%s517 + $0x14] sm:$0xf]
      %v542 = vld [vmem:[%s517 + $0x18] sm:$0xff]
      %v543 = vld [vmem:[%s517 + $0x20] sm:$0xf]
      %v544 = vld [vmem:[%s517 + $0x24] sm:$0xff]
      %v545 = vld [vmem:[%s517 + $0x2c] sm:$0xf]
      %v546 = vld [vmem:[%s517 + $0x30] sm:$0xff]
      %v547 = vld [vmem:[%s517 + $0x38] sm:$0xf]
      %v548 = vld [vmem:[%s517 + $0x3c] sm:$0xff]
      %v549 = vld [vmem:[%s517 + $0x44] sm:$0xf]
      %v550 = vld [vmem:[%s517 + $0x48] sm:$0xff]
      %v551 = vld [vmem:[%s517 + $0x50] sm:$0xf]
      %v552 = vld [vmem:[%s517 + $0x54] sm:$0xff]
      %v553 = vld [vmem:[%s517 + $0x5c] sm:$0xf]
      %v554 = vld [vmem:[%s517 + $0x60] sm:$0xff]
      %v555 = vld [vmem:[%s517 + $0x68] sm:$0xf]
      %v556 = vld [vmem:[%s517 + $0x6c] sm:$0xff]
      %v557 = vld [vmem:[%s517 + $0x74] sm:$0xf]
      %v558 = vld [vmem:[%s517 + $0x78] sm:$0xff]
      %v559 = vld [vmem:[%s517 + $0x80] sm:$0xf]
      %v560 = vld [vmem:[%s517 + $0x84] sm:$0xff]
      %v561 = vld [vmem:[%s517 + $0x8c] sm:$0xf]
      %v562 = vld [vmem:[%s517 + $0x90] sm:$0xff]
      %v563 = vld [vmem:[%s517 + $0x98] sm:$0xf]
      %v564 = vld [vmem:[%s517 + $0x9c] sm:$0xff]
      %v565 = vld [vmem:[%s517 + $0xa4] sm:$0xf]
      %v566 = vld [vmem:[%s517 + $0xa8] sm:$0xff]
      %v567 = vld [vmem:[%s517 + $0xb0] sm:$0xf]
      %v568 = vld [vmem:[%s517 + $0xb4] sm:$0xff]
      %v569 = vld [vmem:[%s517 + $0xbc] sm:$0xf]
      %v570 = vld [vmem:[%s517 + $0xc0] sm:$0xff]
      %v571 = vld [vmem:[%s517 + $0xc8] sm:$0xf]
      %v572 = vld [vmem:[%s517 + $0xcc] sm:$0xff]
      %v573 = vld [vmem:[%s517 + $0xd4] sm:$0xf]
      %v574 = vld [vmem:[%s517 + $0xd8] sm:$0xff]
      %v575 = vld [vmem:[%s517 + $0xe0] sm:$0xf]
      %v576 = vld [vmem:[%s517 + $0xe4] sm:$0xff]
      %v577 = vld [vmem:[%s517 + $0xec] sm:$0xf]
      %v578 = vld [vmem:[%s517 + $0xf0] sm:$0xff]
      %v579 = vld [vmem:[%s517 + $0xf8] sm:$0xf]
      %v580 = vld [vmem:[%s517 + $0xfc] sm:$0xff]
      %v581 = vld [vmem:[%s517 + $0x104] sm:$0xf]
      %v582 = vld [vmem:[%s517 + $0x108] sm:$0xff]
      %v583 = vld [vmem:[%s517 + $0x110] sm:$0xf]
      %v584 = vld [vmem:[%s517 + $0x114] sm:$0xff]
      %v585 = vld [vmem:[%s517 + $0x11c] sm:$0xf]
      %v586 = vld [vmem:[%s517 + $0x120] sm:$0xff]
      %v587 = vld [vmem:[%s517 + $0x128] sm:$0xf]
      %v588 = vld [vmem:[%s517 + $0x12c] sm:$0xff]
      %v589 = vld [vmem:[%s517 + $0x134] sm:$0xf]
      %v590 = vld [vmem:[%s517 + $0x138] sm:$0xff]
      %v591 = vld [vmem:[%s517 + $0x140] sm:$0xf]
      %v592 = vld [vmem:[%s517 + $0x144] sm:$0xff]
      %v593 = vld [vmem:[%s517 + $0x14c] sm:$0xf]
      %v594 = vld [vmem:[%s517 + $0x150] sm:$0xff]
      %v595 = vld [vmem:[%s517 + $0x158] sm:$0xf]
      %v596 = vld [vmem:[%s517 + $0x15c] sm:$0xff]
      %v597 = vld [vmem:[%s517 + $0x164] sm:$0xf]
      %v598 = vld [vmem:[%s517 + $0x168] sm:$0xff]
      %v599 = vld [vmem:[%s517 + $0x170] sm:$0xf]
      %v600 = vld [vmem:[%s517 + $0x174] sm:$0xff]
      %v601 = vld [vmem:[%s517 + $0x17c] sm:$0xf]
      %v602 = vld [vmem:[%s523] sm:$0xff]
      %v603 = vld [vmem:[%s523 + $0x8] sm:$0xff]
      %v604 = vld [vmem:[%s523 + $0x10] sm:$0xff]
      %v605 = vld [vmem:[%s523 + $0x18] sm:$0xff]
      %v606 = vld [vmem:[%s523 + $0x20] sm:$0xff]
      %v607 = vld [vmem:[%s523 + $0x28] sm:$0xff]
      %v608 = vld [vmem:[%s523 + $0x30] sm:$0xff]
      %v609 = vld [vmem:[%s523 + $0x38] sm:$0xff]
      %v610 = vld [vmem:[%s523 + $0x40] sm:$0xff]
      %v611 = vld [vmem:[%s523 + $0x48] sm:$0xff]
      %v612 = vld [vmem:[%s523 + $0x50] sm:$0xff]
      %v613 = vld [vmem:[%s523 + $0x58] sm:$0xff]
      %v614 = vld [vmem:[%s523 + $0x60] sm:$0xff]
      %v615 = vld [vmem:[%s523 + $0x68] sm:$0xff]
      %v616 = vld [vmem:[%s523 + $0x70] sm:$0xff]
      %v617 = vld [vmem:[%s523 + $0x78] sm:$0xff]
      %v618 = vld [vmem:[%s523 + $0x80] sm:$0xff]
      %v619 = vld [vmem:[%s523 + $0x88] sm:$0xff]
      %v620 = vld [vmem:[%s523 + $0x90] sm:$0xff]
      %v621 = vld [vmem:[%s523 + $0x98] sm:$0xff]
      %v622 = vld [vmem:[%s523 + $0xa0] sm:$0xff]
      %v623 = vld [vmem:[%s523 + $0xa8] sm:$0xff]
      %v624 = vld [vmem:[%s523 + $0xb0] sm:$0xff]
      %v625 = vld [vmem:[%s523 + $0xb8] sm:$0xff]
      %v626 = vld [vmem:[%s523 + $0xc0] sm:$0xff]
      %v627 = vld [vmem:[%s523 + $0xc8] sm:$0xff]
      %v628 = vld [vmem:[%s523 + $0xd0] sm:$0xff]
      %v629 = vld [vmem:[%s523 + $0xd8] sm:$0xff]
      %v630 = vld [vmem:[%s523 + $0xe0] sm:$0xff]
      %v631 = vld [vmem:[%s523 + $0xe8] sm:$0xff]
      %v632 = vld [vmem:[%s523 + $0xf0] sm:$0xff]
      %v633 = vld [vmem:[%s523 + $0xf8] sm:$0xff]
      %v634 = vld [vmem:[%s2] sm:$0xf]
      %v635 = vld [vmem:[%s2 + $0x4] sm:$0xf]
      %v636 = vld [vmem:[%s2 + $0x8] sm:$0xf]
      %v637 = vld [vmem:[%s2 + $0xc] sm:$0xf]
      %v638 = vld [vmem:[%s2 + $0x10] sm:$0xf]
      %v639 = vld [vmem:[%s2 + $0x14] sm:$0xf]
      %v640 = vld [vmem:[%s2 + $0x18] sm:$0xf]
      %v641 = vld [vmem:[%s2 + $0x1c] sm:$0xf]
      %v642 = vld [vmem:[%s2 + $0x20] sm:$0xf]
      %v643 = vld [vmem:[%s2 + $0x24] sm:$0xf]
      %v644 = vld [vmem:[%s2 + $0x28] sm:$0xf]
      %v645 = vld [vmem:[%s2 + $0x2c] sm:$0xf]
      %v646 = vld [vmem:[%s2 + $0x30] sm:$0xf]
      %v647 = vld [vmem:[%s2 + $0x34] sm:$0xf]
      %v648 = vld [vmem:[%s2 + $0x38] sm:$0xf]
      %v649 = vld [vmem:[%s2 + $0x3c] sm:$0xf]
      %v650 = vld [vmem:[%s2 + $0x40] sm:$0xf]
      %v651 = vld [vmem:[%s2 + $0x44] sm:$0xf]
      %v652 = vld [vmem:[%s2 + $0x48] sm:$0xf]
      %v653 = vld [vmem:[%s2 + $0x4c] sm:$0xf]
      %v654 = vld [vmem:[%s2 + $0x50] sm:$0xf]
      %v655 = vld [vmem:[%s2 + $0x54] sm:$0xf]
      %v656 = vld [vmem:[%s2 + $0x58] sm:$0xf]
      %v657 = vld [vmem:[%s2 + $0x5c] sm:$0xf]
      %v658 = vld [vmem:[%s2 + $0x60] sm:$0xf]
      %v659 = vld [vmem:[%s2 + $0x64] sm:$0xf]
      %v660 = vld [vmem:[%s2 + $0x68] sm:$0xf]
      %v661 = vld [vmem:[%s2 + $0x6c] sm:$0xf]
      %v662 = vld [vmem:[%s2 + $0x70] sm:$0xf]
      %v663 = vld [vmem:[%s2 + $0x74] sm:$0xf]
      %v664 = vld [vmem:[%s2 + $0x78] sm:$0xf]
      %v665 = vld [vmem:[%s2 + $0x7c] sm:$0xf]
      %v666 = vld [vmem:[%s2 + $0x80] sm:$0xf]
      %v667 = vld [vmem:[%s2 + $0x84] sm:$0xf]
      %v668 = vld [vmem:[%s2 + $0x88] sm:$0xf]
      %v669 = vld [vmem:[%s2 + $0x8c] sm:$0xf]
      %v670 = vld [vmem:[%s2 + $0x90] sm:$0xf]
      %v671 = vld [vmem:[%s2 + $0x94] sm:$0x3]
      %v672 = vld [vmem:[%s3] sm:$0x1]
      %v673 = vld [vmem:[%s4] sm:$0xf]
      %v674 = vld [vmem:[%s4 + $0x4] sm:$0x3]
      %v675 = vld [vmem:[%s5] sm:$0x1]
      %v676 = vld [vmem:[%s6] sm:$0xf]
      %v677 = vld [vmem:[%s6 + $0x4] sm:$0xf]
      %v678 = vld [vmem:[%s6 + $0x8] sm:$0xf]
      %v679 = vld [vmem:[%s7] sm:$0x1]
      %v680 = vld [vmem:[%s8] sm:$0xf]
      %v681 = vld [vmem:[%s8 + $0x4] sm:$0xf]
      %v682 = vld [vmem:[%s8 + $0x8] sm:$0xf]
      %v683 = vld [vmem:[%s9] sm:$0x1]
      %v685 = vperm.slane %v672, 0
      %v751 = vunpack.c.l.b16 %v538
      %v752 = vunpack.c.h.b16 %v538
      %v753 = vunpack.c.l.b16 %v539
      %v754 = vunpack.c.l.b16 %v540
      %v755 = vunpack.c.h.b16 %v540
      %v756 = vunpack.c.l.b16 %v541
      %v757 = vunpack.c.l.b16 %v542
      %v758 = vunpack.c.h.b16 %v542
      %v759 = vunpack.c.l.b16 %v543
      %v760 = vunpack.c.l.b16 %v544
      %v761 = vunpack.c.h.b16 %v544
      %v762 = vunpack.c.l.b16 %v545
      %v763 = vunpack.c.l.b16 %v546
      %v764 = vunpack.c.h.b16 %v546
      %v765 = vunpack.c.l.b16 %v547
      %v766 = vunpack.c.l.b16 %v548
      %v767 = vunpack.c.h.b16 %v548
      %v768 = vunpack.c.l.b16 %v549
      %v769 = vunpack.c.l.b16 %v550
      %v770 = vunpack.c.h.b16 %v550
      %v771 = vunpack.c.l.b16 %v551
      %v772 = vunpack.c.l.b16 %v552
      %v773 = vunpack.c.h.b16 %v552
      %v774 = vunpack.c.l.b16 %v553
      %v775 = vunpack.c.l.b16 %v554
      %v776 = vunpack.c.h.b16 %v554
      %v777 = vunpack.c.l.b16 %v555
      %v778 = vunpack.c.l.b16 %v556
      %v779 = vunpack.c.h.b16 %v556
      %v780 = vunpack.c.l.b16 %v557
      %v781 = vunpack.c.l.b16 %v558
      %v782 = vunpack.c.h.b16 %v558
      %v783 = vunpack.c.l.b16 %v559
      %v784 = vunpack.c.l.b16 %v560
      %v785 = vunpack.c.h.b16 %v560
      %v786 = vunpack.c.l.b16 %v561
      %v787 = vunpack.c.l.b16 %v562
      %v788 = vunpack.c.h.b16 %v562
      %v789 = vunpack.c.l.b16 %v563
      %v790 = vunpack.c.l.b16 %v564
      %v791 = vunpack.c.h.b16 %v564
      %v792 = vunpack.c.l.b16 %v565
      %v793 = vunpack.c.l.b16 %v566
      %v794 = vunpack.c.h.b16 %v566
      %v795 = vunpack.c.l.b16 %v567
      %v796 = vunpack.c.l.b16 %v568
      %v797 = vunpack.c.h.b16 %v568
      %v798 = vunpack.c.l.b16 %v569
      %v799 = vunpack.c.l.b16 %v570
      %v800 = vunpack.c.h.b16 %v570
      %v801 = vunpack.c.l.b16 %v571
      %v802 = vunpack.c.l.b16 %v572
      %v803 = vunpack.c.h.b16 %v572
      %v804 = vunpack.c.l.b16 %v573
      %v805 = vunpack.c.l.b16 %v574
      %v806 = vunpack.c.h.b16 %v574
      %v807 = vunpack.c.l.b16 %v575
      %v808 = vunpack.c.l.b16 %v576
      %v809 = vunpack.c.h.b16 %v576
      %v810 = vunpack.c.l.b16 %v577
      %v811 = vunpack.c.l.b16 %v578
      %v812 = vunpack.c.h.b16 %v578
      %v813 = vunpack.c.l.b16 %v579
      %v814 = vunpack.c.l.b16 %v580
      %v815 = vunpack.c.h.b16 %v580
      %v816 = vunpack.c.l.b16 %v581
      %v817 = vunpack.c.l.b16 %v582
      %v818 = vunpack.c.h.b16 %v582
      %v819 = vunpack.c.l.b16 %v583
      %v820 = vunpack.c.l.b16 %v584
      %v821 = vunpack.c.h.b16 %v584
      %v822 = vunpack.c.l.b16 %v585
      %v823 = vunpack.c.l.b16 %v586
      %v824 = vunpack.c.h.b16 %v586
      %v825 = vunpack.c.l.b16 %v587
      %v826 = vunpack.c.l.b16 %v588
      %v827 = vunpack.c.h.b16 %v588
      %v828 = vunpack.c.l.b16 %v589
      %v829 = vunpack.c.l.b16 %v590
      %v830 = vunpack.c.h.b16 %v590
      %v831 = vunpack.c.l.b16 %v591
      %v832 = vunpack.c.l.b16 %v592
      %v833 = vunpack.c.h.b16 %v592
      %v834 = vunpack.c.l.b16 %v593
      %v835 = vunpack.c.l.b16 %v594
      %v836 = vunpack.c.h.b16 %v594
      %v837 = vunpack.c.l.b16 %v595
      %v838 = vunpack.c.l.b16 %v596
      %v839 = vunpack.c.h.b16 %v596
      %v840 = vunpack.c.l.b16 %v597
      %v841 = vunpack.c.l.b16 %v598
      %v842 = vunpack.c.h.b16 %v598
      %v843 = vunpack.c.l.b16 %v599
      %v844 = vunpack.c.l.b16 %v600
      %v845 = vunpack.c.h.b16 %v600
      %v846 = vunpack.c.l.b16 %v601
      %v847 = vpack.c.b16 %v754, %v751
      %v848 = vpack.c.b16 %v755, %v752
      %v849 = vpack.c.b16 %v756, %v753
      %v850 = vpack.c.b16 %v760, %v757
      %v851 = vpack.c.b16 %v761, %v758
      %v852 = vpack.c.b16 %v762, %v759
      %v853 = vpack.c.b16 %v766, %v763
      %v854 = vpack.c.b16 %v767, %v764
      %v855 = vpack.c.b16 %v768, %v765
      %v856 = vpack.c.b16 %v772, %v769
      %v857 = vpack.c.b16 %v773, %v770
      %v858 = vpack.c.b16 %v774, %v771
      %v859 = vpack.c.b16 %v778, %v775
      %v860 = vpack.c.b16 %v779, %v776
      %v861 = vpack.c.b16 %v780, %v777
      %v862 = vpack.c.b16 %v784, %v781
      %v863 = vpack.c.b16 %v785, %v782
      %v864 = vpack.c.b16 %v786, %v783
      %v865 = vpack.c.b16 %v790, %v787
      %v866 = vpack.c.b16 %v791, %v788
      %v867 = vpack.c.b16 %v792, %v789
      %v868 = vpack.c.b16 %v796, %v793
      %v869 = vpack.c.b16 %v797, %v794
      %v870 = vpack.c.b16 %v798, %v795
      %v871 = vpack.c.b16 %v802, %v799
      %v872 = vpack.c.b16 %v803, %v800
      %v873 = vpack.c.b16 %v804, %v801
      %v874 = vpack.c.b16 %v808, %v805
      %v875 = vpack.c.b16 %v809, %v806
      %v876 = vpack.c.b16 %v810, %v807
      %v877 = vpack.c.b16 %v814, %v811
      %v878 = vpack.c.b16 %v815, %v812
      %v879 = vpack.c.b16 %v816, %v813
      %v880 = vpack.c.b16 %v820, %v817
      %v881 = vpack.c.b16 %v821, %v818
      %v882 = vpack.c.b16 %v822, %v819
      %v883 = vpack.c.b16 %v826, %v823
      %v884 = vpack.c.b16 %v827, %v824
      %v885 = vpack.c.b16 %v828, %v825
      %v886 = vpack.c.b16 %v832, %v829
      %v887 = vpack.c.b16 %v833, %v830
      %v888 = vpack.c.b16 %v834, %v831
      %v889 = vpack.c.b16 %v838, %v835
      %v890 = vpack.c.b16 %v839, %v836
      %v891 = vpack.c.b16 %v840, %v837
      %v892 = vpack.c.b16 %v844, %v841
      %v893 = vpack.c.b16 %v845, %v842
      %v894 = vpack.c.b16 %v846, %v843
      %v965 = vunpack.c.l.b16 %v634
      %v966 = vunpack.c.l.b16 %v635
      %v967 = vunpack.c.l.b16 %v636
      %v968 = vunpack.c.l.b16 %v637
      %v969 = vunpack.c.l.b16 %v638
      %v970 = vunpack.c.l.b16 %v639
      %v971 = vunpack.c.l.b16 %v640
      %v972 = vunpack.c.l.b16 %v641
      %v973 = vunpack.c.l.b16 %v642
      %v974 = vunpack.c.l.b16 %v643
      %v975 = vunpack.c.l.b16 %v644
      %v976 = vunpack.c.l.b16 %v645
      %v977 = vunpack.c.l.b16 %v646
      %v978 = vunpack.c.l.b16 %v647
      %v979 = vunpack.c.l.b16 %v648
      %v980 = vunpack.c.l.b16 %v649
      %v981 = vunpack.c.l.b16 %v650
      %v982 = vunpack.c.l.b16 %v651
      %v983 = vunpack.c.l.b16 %v652
      %v984 = vunpack.c.l.b16 %v653
      %v985 = vunpack.c.l.b16 %v654
      %v986 = vunpack.c.l.b16 %v655
      %v987 = vunpack.c.l.b16 %v656
      %v988 = vunpack.c.l.b16 %v657
      %v989 = vunpack.c.l.b16 %v658
      %v990 = vunpack.c.l.b16 %v659
      %v991 = vunpack.c.l.b16 %v660
      %v992 = vunpack.c.l.b16 %v661
      %v993 = vunpack.c.l.b16 %v662
      %v994 = vunpack.c.l.b16 %v663
      %v995 = vunpack.c.l.b16 %v664
      %v996 = vunpack.c.l.b16 %v665
      %v997 = vunpack.c.l.b16 %v666
      %v998 = vunpack.c.l.b16 %v667
      %v999 = vunpack.c.l.b16 %v668
      %v1000 = vunpack.c.l.b16 %v669
      %v1001 = vunpack.c.l.b16 %v670
      %v1002 = vunpack.c.l.b16 %v671
      %v1003 = vpack.c.b16 %v966, %v965
      %v1004 = vpack.c.b16 %v968, %v967
      %v1005 = vpack.c.b16 %v970, %v969
      %v1006 = vpack.c.b16 %v972, %v971
      %v1007 = vpack.c.b16 %v974, %v973
      %v1008 = vpack.c.b16 %v976, %v975
      %v1009 = vpack.c.b16 %v978, %v977
      %v1010 = vpack.c.b16 %v980, %v979
      %v1011 = vpack.c.b16 %v982, %v981
      %v1012 = vpack.c.b16 %v984, %v983
      %v1013 = vpack.c.b16 %v986, %v985
      %v1014 = vpack.c.b16 %v988, %v987
      %v1015 = vpack.c.b16 %v990, %v989
      %v1016 = vpack.c.b16 %v992, %v991
      %v1017 = vpack.c.b16 %v994, %v993
      %v1018 = vpack.c.b16 %v996, %v995
      %v1019 = vpack.c.b16 %v998, %v997
      %v1020 = vpack.c.b16 %v1000, %v999
      %v1021 = vpack.c.b16 %v1002, %v1001
      %vm1040 = vcmask 359424
      %v1042 = vsel %vm1040, %v849, 0
      %v1045 = vsel %vm1040, %v852, 0
      %v1048 = vsel %vm1040, %v855, 0
      %v1051 = vsel %vm1040, %v858, 0
      %v1054 = vsel %vm1040, %v861, 0
      %v1057 = vsel %vm1040, %v864, 0
      %v1060 = vsel %vm1040, %v867, 0
      %v1063 = vsel %vm1040, %v870, 0
      %v1066 = vsel %vm1040, %v873, 0
      %v1069 = vsel %vm1040, %v876, 0
      %v1072 = vsel %vm1040, %v879, 0
      %v1075 = vsel %vm1040, %v882, 0
      %v1078 = vsel %vm1040, %v885, 0
      %v1081 = vsel %vm1040, %v888, 0
      %v1084 = vsel %vm1040, %v891, 0
      %v1087 = vsel %vm1040, %v894, 0
      %vm1089 = vcmask 1045504
      %v1091 = vsel %vm1089, %v1021, 0
      %1093 = vmatpush.bf16.msra.mxu0 %v1010
      %1094 = vmatpush.bf16.msra.mxu0 %v1009
      %1095 = vmatpush.bf16.msra.mxu0 %v1008
      %1096 = vmatpush.bf16.msra.mxu0 %v1007
      %1097 = vmatpush.bf16.msra.mxu0 %v1006
      %1098 = vmatpush.bf16.msra.mxu0 %v1005
      %1099 = vmatpush.bf16.msra.mxu0 %v1004
      %1100 = vmatpush.bf16.msra.mxu0 %v1003
      %1101 = vmatmul.bf16.gmra.mxu0 %v847
      %v1102 = vpop.f32.mrf.mxu0
      %v1103 = vadd.f32 %v685, %v1102
      %v1104 = vpop.f32.mrf.mxu0
      %v1105 = vadd.f32 %v685, %v1104
      %1106 = vmatmul.bf16.gmra.mxu0 %v850
      %v1107 = vpop.f32.mrf.mxu0
      %v1108 = vadd.f32 %v685, %v1107
      %v1109 = vpop.f32.mrf.mxu0
      %v1110 = vadd.f32 %v685, %v1109
      %1111 = vmatmul.bf16.gmra.mxu0 %v853
      %v1112 = vpop.f32.mrf.mxu0
      %v1113 = vadd.f32 %v685, %v1112
      %v1114 = vpop.f32.mrf.mxu0
      %v1115 = vadd.f32 %v685, %v1114
      %1116 = vmatmul.bf16.gmra.mxu0 %v856
      %v1117 = vpop.f32.mrf.mxu0
      %v1118 = vadd.f32 %v685, %v1117
      %v1119 = vpop.f32.mrf.mxu0
      %v1120 = vadd.f32 %v685, %v1119
      %1121 = vmatmul.bf16.gmra.mxu0 %v859
      %v1122 = vpop.f32.mrf.mxu0
      %v1123 = vadd.f32 %v685, %v1122
      %v1124 = vpop.f32.mrf.mxu0
      %v1125 = vadd.f32 %v685, %v1124
      %1126 = vmatmul.bf16.gmra.mxu0 %v862
      %v1127 = vpop.f32.mrf.mxu0
      %v1128 = vadd.f32 %v685, %v1127
      %v1129 = vpop.f32.mrf.mxu0
      %v1130 = vadd.f32 %v685, %v1129
      %1131 = vmatmul.bf16.gmra.mxu0 %v865
      %v1132 = vpop.f32.mrf.mxu0
      %v1133 = vadd.f32 %v685, %v1132
      %v1134 = vpop.f32.mrf.mxu0
      %v1135 = vadd.f32 %v685, %v1134
      %1136 = vmatmul.bf16.gmra.mxu0 %v868
      %v1137 = vpop.f32.mrf.mxu0
      %v1138 = vadd.f32 %v685, %v1137
      %v1139 = vpop.f32.mrf.mxu0
      %v1140 = vadd.f32 %v685, %v1139
      %1141 = vmatmul.bf16.gmra.mxu0 %v871
      %v1142 = vpop.f32.mrf.mxu0
      %v1143 = vadd.f32 %v685, %v1142
      %v1144 = vpop.f32.mrf.mxu0
      %v1145 = vadd.f32 %v685, %v1144
      %1146 = vmatmul.bf16.gmra.mxu0 %v874
      %v1147 = vpop.f32.mrf.mxu0
      %v1148 = vadd.f32 %v685, %v1147
      %v1149 = vpop.f32.mrf.mxu0
      %v1150 = vadd.f32 %v685, %v1149
      %1151 = vmatmul.bf16.gmra.mxu0 %v877
      %v1152 = vpop.f32.mrf.mxu0
      %v1153 = vadd.f32 %v685, %v1152
      %v1154 = vpop.f32.mrf.mxu0
      %v1155 = vadd.f32 %v685, %v1154
      %1156 = vmatmul.bf16.gmra.mxu0 %v880
      %v1157 = vpop.f32.mrf.mxu0
      %v1158 = vadd.f32 %v685, %v1157
      %v1159 = vpop.f32.mrf.mxu0
      %v1160 = vadd.f32 %v685, %v1159
      %1161 = vmatmul.bf16.gmra.mxu0 %v883
      %v1162 = vpop.f32.mrf.mxu0
      %v1163 = vadd.f32 %v685, %v1162
      %v1164 = vpop.f32.mrf.mxu0
      %v1165 = vadd.f32 %v685, %v1164
      %1166 = vmatmul.bf16.gmra.mxu0 %v886
      %v1167 = vpop.f32.mrf.mxu0
      %v1168 = vadd.f32 %v685, %v1167
      %v1169 = vpop.f32.mrf.mxu0
      %v1170 = vadd.f32 %v685, %v1169
      %1171 = vmatmul.bf16.gmra.mxu0 %v889
      %v1172 = vpop.f32.mrf.mxu0
      %v1173 = vadd.f32 %v685, %v1172
      %v1174 = vpop.f32.mrf.mxu0
      %v1175 = vadd.f32 %v685, %v1174
      %1176 = vmatmul.bf16.gmra.mxu0 %v892
      %v1177 = vpop.f32.mrf.mxu0
      %v1178 = vadd.f32 %v685, %v1177
      %v1179 = vpop.f32.mrf.mxu0
      %v1180 = vadd.f32 %v685, %v1179
      %1181 = vdwg.mxu0
      %1182 = vmatpush.bf16.msra.mxu0 %v1018
      %1183 = vmatpush.bf16.msra.mxu0 %v1017
      %1184 = vmatpush.bf16.msra.mxu0 %v1016
      %1185 = vmatpush.bf16.msra.mxu0 %v1015
      %1186 = vmatpush.bf16.msra.mxu0 %v1014
      %1187 = vmatpush.bf16.msra.mxu0 %v1013
      %1188 = vmatpush.bf16.msra.mxu0 %v1012
      %1189 = vmatpush.bf16.msra.mxu0 %v1011
      %1190 = vmatmul.bf16.gmra.mxu0 %v848
      %v1191 = vpop.f32.mrf.mxu0
      %v1192 = vadd.f32 %v1103, %v1191
      %v1193 = vpop.f32.mrf.mxu0
      %v1194 = vadd.f32 %v1105, %v1193
      %1195 = vmatmul.bf16.gmra.mxu0 %v851
      %v1196 = vpop.f32.mrf.mxu0
      %v1197 = vadd.f32 %v1108, %v1196
      %v1198 = vpop.f32.mrf.mxu0
      %v1199 = vadd.f32 %v1110, %v1198
      %1200 = vmatmul.bf16.gmra.mxu0 %v854
      %v1201 = vpop.f32.mrf.mxu0
      %v1202 = vadd.f32 %v1113, %v1201
      %v1203 = vpop.f32.mrf.mxu0
      %v1204 = vadd.f32 %v1115, %v1203
      %1205 = vmatmul.bf16.gmra.mxu0 %v857
      %v1206 = vpop.f32.mrf.mxu0
      %v1207 = vadd.f32 %v1118, %v1206
      %v1208 = vpop.f32.mrf.mxu0
      %v1209 = vadd.f32 %v1120, %v1208
      %1210 = vmatmul.bf16.gmra.mxu0 %v860
      %v1211 = vpop.f32.mrf.mxu0
      %v1212 = vadd.f32 %v1123, %v1211
      %v1213 = vpop.f32.mrf.mxu0
      %v1214 = vadd.f32 %v1125, %v1213
      %1215 = vmatmul.bf16.gmra.mxu0 %v863
      %v1216 = vpop.f32.mrf.mxu0
      %v1217 = vadd.f32 %v1128, %v1216
      %v1218 = vpop.f32.mrf.mxu0
      %v1219 = vadd.f32 %v1130, %v1218
      %1220 = vmatmul.bf16.gmra.mxu0 %v866
      %v1221 = vpop.f32.mrf.mxu0
      %v1222 = vadd.f32 %v1133, %v1221
      %v1223 = vpop.f32.mrf.mxu0
      %v1224 = vadd.f32 %v1135, %v1223
      %1225 = vmatmul.bf16.gmra.mxu0 %v869
      %v1226 = vpop.f32.mrf.mxu0
      %v1227 = vadd.f32 %v1138, %v1226
      %v1228 = vpop.f32.mrf.mxu0
      %v1229 = vadd.f32 %v1140, %v1228
      %1230 = vmatmul.bf16.gmra.mxu0 %v872
      %v1231 = vpop.f32.mrf.mxu0
      %v1232 = vadd.f32 %v1143, %v1231
      %v1233 = vpop.f32.mrf.mxu0
      %v1234 = vadd.f32 %v1145, %v1233
      %1235 = vmatmul.bf16.gmra.mxu0 %v875
      %v1236 = vpop.f32.mrf.mxu0
      %v1237 = vadd.f32 %v1148, %v1236
      %v1238 = vpop.f32.mrf.mxu0
      %v1239 = vadd.f32 %v1150, %v1238
      %1240 = vmatmul.bf16.gmra.mxu0 %v878
      %v1241 = vpop.f32.mrf.mxu0
      %v1242 = vadd.f32 %v1153, %v1241
      %v1243 = vpop.f32.mrf.mxu0
      %v1244 = vadd.f32 %v1155, %v1243
      %1245 = vmatmul.bf16.gmra.mxu0 %v881
      %v1246 = vpop.f32.mrf.mxu0
      %v1247 = vadd.f32 %v1158, %v1246
      %v1248 = vpop.f32.mrf.mxu0
      %v1249 = vadd.f32 %v1160, %v1248
      %1250 = vmatmul.bf16.gmra.mxu0 %v884
      %v1251 = vpop.f32.mrf.mxu0
      %v1252 = vadd.f32 %v1163, %v1251
      %v1253 = vpop.f32.mrf.mxu0
      %v1254 = vadd.f32 %v1165, %v1253
      %1255 = vmatmul.bf16.gmra.mxu0 %v887
      %v1256 = vpop.f32.mrf.mxu0
      %v1257 = vadd.f32 %v1168, %v1256
      %v1258 = vpop.f32.mrf.mxu0
      %v1259 = vadd.f32 %v1170, %v1258
      %1260 = vmatmul.bf16.gmra.mxu0 %v890
      %v1261 = vpop.f32.mrf.mxu0
      %v1262 = vadd.f32 %v1173, %v1261
      %v1263 = vpop.f32.mrf.mxu0
      %v1264 = vadd.f32 %v1175, %v1263
      %1265 = vmatmul.bf16.gmra.mxu0 %v893
      %v1266 = vpop.f32.mrf.mxu0
      %v1267 = vadd.f32 %v1178, %v1266
      %v1268 = vpop.f32.mrf.mxu0
      %v1269 = vadd.f32 %v1180, %v1268
      %1270 = vdwg.mxu0
      %1271 = vmatpush.bf16.msra.mxu0 0
      %1272 = vmatpush.bf16.msra.mxu0 0
      %1273 = vmatpush.bf16.msra.mxu0 0
      %1274 = vmatpush.bf16.msra.mxu0 0
      %1275 = vmatpush.bf16.msra.mxu0 0
      %1276 = vmatpush.bf16.msra.mxu0 %v1091
      %1277 = vmatpush.bf16.msra.mxu0 %v1020
      %1278 = vmatpush.bf16.msra.mxu0 %v1019
      %1279 = vmatmul.bf16.gmra.mxu0 %v1042
      %v1280 = vpop.f32.mrf.mxu0
      %v1281 = vadd.f32 %v1192, %v1280
      %v1282 = vpop.f32.mrf.mxu0
      %v1283 = vadd.f32 %v1194, %v1282
      %1284 = vmatmul.bf16.gmra.mxu0 %v1045
      %v1285 = vpop.f32.mrf.mxu0
      %v1286 = vadd.f32 %v1197, %v1285
      %v1287 = vpop.f32.mrf.mxu0
      %v1288 = vadd.f32 %v1199, %v1287
      %1289 = vmatmul.bf16.gmra.mxu0 %v1048
      %v1290 = vpop.f32.mrf.mxu0
      %v1291 = vadd.f32 %v1202, %v1290
      %v1292 = vpop.f32.mrf.mxu0
      %v1293 = vadd.f32 %v1204, %v1292
      %1294 = vmatmul.bf16.gmra.mxu0 %v1051
      %v1295 = vpop.f32.mrf.mxu0
      %v1296 = vadd.f32 %v1207, %v1295
      %v1297 = vpop.f32.mrf.mxu0
      %v1298 = vadd.f32 %v1209, %v1297
      %1299 = vmatmul.bf16.gmra.mxu0 %v1054
      %v1300 = vpop.f32.mrf.mxu0
      %v1301 = vadd.f32 %v1212, %v1300
      %v1302 = vpop.f32.mrf.mxu0
      %v1303 = vadd.f32 %v1214, %v1302
      %1304 = vmatmul.bf16.gmra.mxu0 %v1057
      %v1305 = vpop.f32.mrf.mxu0
      %v1306 = vadd.f32 %v1217, %v1305
      %v1307 = vpop.f32.mrf.mxu0
      %v1308 = vadd.f32 %v1219, %v1307
      %1309 = vmatmul.bf16.gmra.mxu0 %v1060
      %v1310 = vpop.f32.mrf.mxu0
      %v1311 = vadd.f32 %v1222, %v1310
      %v1312 = vpop.f32.mrf.mxu0
      %v1313 = vadd.f32 %v1224, %v1312
      %1314 = vmatmul.bf16.gmra.mxu0 %v1063
      %v1315 = vpop.f32.mrf.mxu0
      %v1316 = vadd.f32 %v1227, %v1315
      %v1317 = vpop.f32.mrf.mxu0
      %v1318 = vadd.f32 %v1229, %v1317
      %1319 = vmatmul.bf16.gmra.mxu0 %v1066
      %v1320 = vpop.f32.mrf.mxu0
      %v1321 = vadd.f32 %v1232, %v1320
      %v1322 = vpop.f32.mrf.mxu0
      %v1323 = vadd.f32 %v1234, %v1322
      %1324 = vmatmul.bf16.gmra.mxu0 %v1069
      %v1325 = vpop.f32.mrf.mxu0
      %v1326 = vadd.f32 %v1237, %v1325
      %v1327 = vpop.f32.mrf.mxu0
      %v1328 = vadd.f32 %v1239, %v1327
      %1329 = vmatmul.bf16.gmra.mxu0 %v1072
      %v1330 = vpop.f32.mrf.mxu0
      %v1331 = vadd.f32 %v1242, %v1330
      %v1332 = vpop.f32.mrf.mxu0
      %v1333 = vadd.f32 %v1244, %v1332
      %1334 = vmatmul.bf16.gmra.mxu0 %v1075
      %v1335 = vpop.f32.mrf.mxu0
      %v1336 = vadd.f32 %v1247, %v1335
      %v1337 = vpop.f32.mrf.mxu0
      %v1338 = vadd.f32 %v1249, %v1337
      %1339 = vmatmul.bf16.gmra.mxu0 %v1078
      %v1340 = vpop.f32.mrf.mxu0
      %v1341 = vadd.f32 %v1252, %v1340
      %v1342 = vpop.f32.mrf.mxu0
      %v1343 = vadd.f32 %v1254, %v1342
      %1344 = vmatmul.bf16.gmra.mxu0 %v1081
      %v1345 = vpop.f32.mrf.mxu0
      %v1346 = vadd.f32 %v1257, %v1345
      %v1347 = vpop.f32.mrf.mxu0
      %v1348 = vadd.f32 %v1259, %v1347
      %1349 = vmatmul.bf16.gmra.mxu0 %v1084
      %v1350 = vpop.f32.mrf.mxu0
      %v1351 = vadd.f32 %v1262, %v1350
      %v1352 = vpop.f32.mrf.mxu0
      %v1353 = vadd.f32 %v1264, %v1352
      %1354 = vmatmul.bf16.gmra.mxu0 %v1087
      %v1355 = vpop.f32.mrf.mxu0
      %v1356 = vadd.f32 %v1267, %v1355
      %v1357 = vpop.f32.mrf.mxu0
      %v1358 = vadd.f32 %v1269, %v1357
      %1359 = vdwg.mxu0
      %v1360 = vmax.f32 %v1281, 0.0
      %v1361 = vmax.f32 %v1283, 0.0
      %v1362 = vmax.f32 %v1286, 0.0
      %v1363 = vmax.f32 %v1288, 0.0
      %v1364 = vmax.f32 %v1291, 0.0
      %v1365 = vmax.f32 %v1293, 0.0
      %v1366 = vmax.f32 %v1296, 0.0
      %v1367 = vmax.f32 %v1298, 0.0
      %v1368 = vmax.f32 %v1301, 0.0
      %v1369 = vmax.f32 %v1303, 0.0
      %v1370 = vmax.f32 %v1306, 0.0
      %v1371 = vmax.f32 %v1308, 0.0
      %v1372 = vmax.f32 %v1311, 0.0
      %v1373 = vmax.f32 %v1313, 0.0
      %v1374 = vmax.f32 %v1316, 0.0
      %v1375 = vmax.f32 %v1318, 0.0
      %v1376 = vmax.f32 %v1321, 0.0
      %v1377 = vmax.f32 %v1323, 0.0
      %v1378 = vmax.f32 %v1326, 0.0
      %v1379 = vmax.f32 %v1328, 0.0
      %v1380 = vmax.f32 %v1331, 0.0
      %v1381 = vmax.f32 %v1333, 0.0
      %v1382 = vmax.f32 %v1336, 0.0
      %v1383 = vmax.f32 %v1338, 0.0
      %v1384 = vmax.f32 %v1341, 0.0
      %v1385 = vmax.f32 %v1343, 0.0
      %v1386 = vmax.f32 %v1346, 0.0
      %v1387 = vmax.f32 %v1348, 0.0
      %v1388 = vmax.f32 %v1351, 0.0
      %v1389 = vmax.f32 %v1353, 0.0
      %v1390 = vmax.f32 %v1356, 0.0
      %v1391 = vmax.f32 %v1358, 0.0
      %v1392 = vpack.c.bf16 %v1361, %v1360
      %v1393 = vpack.c.bf16 %v1363, %v1362
      %v1394 = vpack.c.bf16 %v1365, %v1364
      %v1395 = vpack.c.bf16 %v1367, %v1366
      %v1396 = vpack.c.bf16 %v1369, %v1368
      %v1397 = vpack.c.bf16 %v1371, %v1370
      %v1398 = vpack.c.bf16 %v1373, %v1372
      %v1399 = vpack.c.bf16 %v1375, %v1374
      %v1400 = vpack.c.bf16 %v1377, %v1376
      %v1401 = vpack.c.bf16 %v1379, %v1378
      %v1402 = vpack.c.bf16 %v1381, %v1380
      %v1403 = vpack.c.bf16 %v1383, %v1382
      %v1404 = vpack.c.bf16 %v1385, %v1384
      %v1405 = vpack.c.bf16 %v1387, %v1386
      %v1406 = vpack.c.bf16 %v1389, %v1388
      %v1407 = vpack.c.bf16 %v1391, %v1390
      %v1409 = vperm.slane %v675, 0
      %v1413 = vunpack.c.l.b16 %v673
      %v1414 = vunpack.c.l.b16 %v674
      %v1415 = vpack.c.b16 %v1414, %v1413
      %vm1416 = vcmask 97280
      %v1418 = vsel %vm1416, %v1392, 0
      %v1421 = vsel %vm1416, %v1393, 0
      %v1424 = vsel %vm1416, %v1394, 0
      %v1427 = vsel %vm1416, %v1395, 0
      %v1430 = vsel %vm1416, %v1396, 0
      %v1433 = vsel %vm1416, %v1397, 0
      %v1436 = vsel %vm1416, %v1398, 0
      %v1439 = vsel %vm1416, %v1399, 0
      %v1442 = vsel %vm1416, %v1400, 0
      %v1445 = vsel %vm1416, %v1401, 0
      %v1448 = vsel %vm1416, %v1402, 0
      %v1451 = vsel %vm1416, %v1403, 0
      %v1454 = vsel %vm1416, %v1404, 0
      %v1457 = vsel %vm1416, %v1405, 0
      %v1460 = vsel %vm1416, %v1406, 0
      %v1463 = vsel %vm1416, %v1407, 0
      %v1466 = vsel %vm1089, %v1415, 0
      %1468 = vmatpush.bf16.msra.mxu0 0
      %1469 = vmatpush.bf16.msra.mxu0 0
      %1470 = vmatpush.bf16.msra.mxu0 0
      %1471 = vmatpush.bf16.msra.mxu0 0
      %1472 = vmatpush.bf16.msra.mxu0 0
      %1473 = vmatpush.bf16.msra.mxu0 0
      %1474 = vmatpush.bf16.msra.mxu0 0
      %1475 = vmatpush.bf16.msra.mxu0 %v1466
      %1476 = vmatmul.bf16.gmra.mxu0 %v1418
      %v1477 = vpop.f32.mrf.mxu0
      %v1478 = vadd.f32 %v1409, %v1477
      %v1479 = vpop.f32.mrf.mxu0
      %v1480 = vadd.f32 %v1409, %v1479
      %1481 = vmatmul.bf16.gmra.mxu0 %v1421
      %v1482 = vpop.f32.mrf.mxu0
      %v1483 = vadd.f32 %v1409, %v1482
      %v1484 = vpop.f32.mrf.mxu0
      %v1485 = vadd.f32 %v1409, %v1484
      %1486 = vmatmul.bf16.gmra.mxu0 %v1424
      %v1487 = vpop.f32.mrf.mxu0
      %v1488 = vadd.f32 %v1409, %v1487
      %v1489 = vpop.f32.mrf.mxu0
      %v1490 = vadd.f32 %v1409, %v1489
      %1491 = vmatmul.bf16.gmra.mxu0 %v1427
      %v1492 = vpop.f32.mrf.mxu0
      %v1493 = vadd.f32 %v1409, %v1492
      %v1494 = vpop.f32.mrf.mxu0
      %v1495 = vadd.f32 %v1409, %v1494
      %1496 = vmatmul.bf16.gmra.mxu0 %v1430
      %v1497 = vpop.f32.mrf.mxu0
      %v1498 = vadd.f32 %v1409, %v1497
      %v1499 = vpop.f32.mrf.mxu0
      %v1500 = vadd.f32 %v1409, %v1499
      %1501 = vmatmul.bf16.gmra.mxu0 %v1433
      %v1502 = vpop.f32.mrf.mxu0
      %v1503 = vadd.f32 %v1409, %v1502
      %v1504 = vpop.f32.mrf.mxu0
      %v1505 = vadd.f32 %v1409, %v1504
      %1506 = vmatmul.bf16.gmra.mxu0 %v1436
      %v1507 = vpop.f32.mrf.mxu0
      %v1508 = vadd.f32 %v1409, %v1507
      %v1509 = vpop.f32.mrf.mxu0
      %v1510 = vadd.f32 %v1409, %v1509
      %1511 = vmatmul.bf16.gmra.mxu0 %v1439
      %v1512 = vpop.f32.mrf.mxu0
      %v1513 = vadd.f32 %v1409, %v1512
      %v1514 = vpop.f32.mrf.mxu0
      %v1515 = vadd.f32 %v1409, %v1514
      %1516 = vmatmul.bf16.gmra.mxu0 %v1442
      %v1517 = vpop.f32.mrf.mxu0
      %v1518 = vadd.f32 %v1409, %v1517
      %v1519 = vpop.f32.mrf.mxu0
      %v1520 = vadd.f32 %v1409, %v1519
      %1521 = vmatmul.bf16.gmra.mxu0 %v1445
      %v1522 = vpop.f32.mrf.mxu0
      %v1523 = vadd.f32 %v1409, %v1522
      %v1524 = vpop.f32.mrf.mxu0
      %v1525 = vadd.f32 %v1409, %v1524
      %1526 = vmatmul.bf16.gmra.mxu0 %v1448
      %v1527 = vpop.f32.mrf.mxu0
      %v1528 = vadd.f32 %v1409, %v1527
      %v1529 = vpop.f32.mrf.mxu0
      %v1530 = vadd.f32 %v1409, %v1529
      %1531 = vmatmul.bf16.gmra.mxu0 %v1451
      %v1532 = vpop.f32.mrf.mxu0
      %v1533 = vadd.f32 %v1409, %v1532
      %v1534 = vpop.f32.mrf.mxu0
      %v1535 = vadd.f32 %v1409, %v1534
      %1536 = vmatmul.bf16.gmra.mxu0 %v1454
      %v1537 = vpop.f32.mrf.mxu0
      %v1538 = vadd.f32 %v1409, %v1537
      %v1539 = vpop.f32.mrf.mxu0
      %v1540 = vadd.f32 %v1409, %v1539
      %1541 = vmatmul.bf16.gmra.mxu0 %v1457
      %v1542 = vpop.f32.mrf.mxu0
      %v1543 = vadd.f32 %v1409, %v1542
      %v1544 = vpop.f32.mrf.mxu0
      %v1545 = vadd.f32 %v1409, %v1544
      %1546 = vmatmul.bf16.gmra.mxu0 %v1460
      %v1547 = vpop.f32.mrf.mxu0
      %v1548 = vadd.f32 %v1409, %v1547
      %v1549 = vpop.f32.mrf.mxu0
      %v1550 = vadd.f32 %v1409, %v1549
      %1551 = vmatmul.bf16.gmra.mxu0 %v1463
      %v1552 = vpop.f32.mrf.mxu0
      %v1553 = vadd.f32 %v1409, %v1552
      %v1554 = vpop.f32.mrf.mxu0
      %v1555 = vadd.f32 %v1409, %v1554
      %1556 = vdwg.mxu0
      %v1557 = vadd.f32 %v1478, %v602
      %v1558 = vadd.f32 %v1480, %v603
      %v1559 = vadd.f32 %v1483, %v604
      %v1560 = vadd.f32 %v1485, %v605
      %v1561 = vadd.f32 %v1488, %v606
      %v1562 = vadd.f32 %v1490, %v607
      %v1563 = vadd.f32 %v1493, %v608
      %v1564 = vadd.f32 %v1495, %v609
      %v1565 = vadd.f32 %v1498, %v610
      %v1566 = vadd.f32 %v1500, %v611
      %v1567 = vadd.f32 %v1503, %v612
      %v1568 = vadd.f32 %v1505, %v613
      %v1569 = vadd.f32 %v1508, %v614
      %v1570 = vadd.f32 %v1510, %v615
      %v1571 = vadd.f32 %v1513, %v616
      %v1572 = vadd.f32 %v1515, %v617
      %v1573 = vadd.f32 %v1518, %v618
      %v1574 = vadd.f32 %v1520, %v619
      %v1575 = vadd.f32 %v1523, %v620
      %v1576 = vadd.f32 %v1525, %v621
      %v1577 = vadd.f32 %v1528, %v622
      %v1578 = vadd.f32 %v1530, %v623
      %v1579 = vadd.f32 %v1533, %v624
      %v1580 = vadd.f32 %v1535, %v625
      %v1581 = vadd.f32 %v1538, %v626
      %v1582 = vadd.f32 %v1540, %v627
      %v1583 = vadd.f32 %v1543, %v628
      %v1584 = vadd.f32 %v1545, %v629
      %v1585 = vadd.f32 %v1548, %v630
      %v1586 = vadd.f32 %v1550, %v631
      %v1587 = vadd.f32 %v1553, %v632
      %v1588 = vadd.f32 %v1555, %v633
      %v1589 = vmax.f32 %v1557, 0.0
      %v1590 = vmax.f32 %v1558, 0.0
      %v1591 = vmax.f32 %v1559, 0.0
      %v1592 = vmax.f32 %v1560, 0.0
      %v1593 = vmax.f32 %v1561, 0.0
      %v1594 = vmax.f32 %v1562, 0.0
      %v1595 = vmax.f32 %v1563, 0.0
      %v1596 = vmax.f32 %v1564, 0.0
      %v1597 = vmax.f32 %v1565, 0.0
      %v1598 = vmax.f32 %v1566, 0.0
      %v1599 = vmax.f32 %v1567, 0.0
      %v1600 = vmax.f32 %v1568, 0.0
      %v1601 = vmax.f32 %v1569, 0.0
      %v1602 = vmax.f32 %v1570, 0.0
      %v1603 = vmax.f32 %v1571, 0.0
      %v1604 = vmax.f32 %v1572, 0.0
      %v1605 = vmax.f32 %v1573, 0.0
      %v1606 = vmax.f32 %v1574, 0.0
      %v1607 = vmax.f32 %v1575, 0.0
      %v1608 = vmax.f32 %v1576, 0.0
      %v1609 = vmax.f32 %v1577, 0.0
      %v1610 = vmax.f32 %v1578, 0.0
      %v1611 = vmax.f32 %v1579, 0.0
      %v1612 = vmax.f32 %v1580, 0.0
      %v1613 = vmax.f32 %v1581, 0.0
      %v1614 = vmax.f32 %v1582, 0.0
      %v1615 = vmax.f32 %v1583, 0.0
      %v1616 = vmax.f32 %v1584, 0.0
      %v1617 = vmax.f32 %v1585, 0.0
      %v1618 = vmax.f32 %v1586, 0.0
      %v1619 = vmax.f32 %v1587, 0.0
      %v1620 = vmax.f32 %v1588, 0.0
      %v1621 = vpack.c.bf16 %v1590, %v1589
      %v1622 = vpack.c.bf16 %v1592, %v1591
      %v1623 = vpack.c.bf16 %v1594, %v1593
      %v1624 = vpack.c.bf16 %v1596, %v1595
      %v1625 = vpack.c.bf16 %v1598, %v1597
      %v1626 = vpack.c.bf16 %v1600, %v1599
      %v1627 = vpack.c.bf16 %v1602, %v1601
      %v1628 = vpack.c.bf16 %v1604, %v1603
      %v1629 = vpack.c.bf16 %v1606, %v1605
      %v1630 = vpack.c.bf16 %v1608, %v1607
      %v1631 = vpack.c.bf16 %v1610, %v1609
      %v1632 = vpack.c.bf16 %v1612, %v1611
      %v1633 = vpack.c.bf16 %v1614, %v1613
      %v1634 = vpack.c.bf16 %v1616, %v1615
      %v1635 = vpack.c.bf16 %v1618, %v1617
      %v1636 = vpack.c.bf16 %v1620, %v1619
      %v1638 = vperm.slane %v679, 0
      %v1643 = vunpack.c.l.b16 %v676
      %v1644 = vunpack.c.l.b16 %v677
      %v1645 = vunpack.c.l.b16 %v678
      %v1646 = vpack.c.b16 %v1644, %v1643
      %v1647 = vpack.c.b16 %v1645, %v1645
      %vm1649 = vcmask 195584
      %v1651 = vsel %vm1649, %v1621, 0
      %v1654 = vsel %vm1649, %v1622, 0
      %v1657 = vsel %vm1649, %v1623, 0
      %v1660 = vsel %vm1649, %v1624, 0
      %v1663 = vsel %vm1649, %v1625, 0
      %v1666 = vsel %vm1649, %v1626, 0
      %v1669 = vsel %vm1649, %v1627, 0
      %v1672 = vsel %vm1649, %v1628, 0
      %v1675 = vsel %vm1649, %v1629, 0
      %v1678 = vsel %vm1649, %v1630, 0
      %v1681 = vsel %vm1649, %v1631, 0
      %v1684 = vsel %vm1649, %v1632, 0
      %v1687 = vsel %vm1649, %v1633, 0
      %v1690 = vsel %vm1649, %v1634, 0
      %v1693 = vsel %vm1649, %v1635, 0
      %v1696 = vsel %vm1649, %v1636, 0
      %vm1698 = vcmask 1043456
      %v1700 = vsel %vm1698, %v1647, 0
      %1702 = vmatpush.bf16.msra.mxu0 0
      %1703 = vmatpush.bf16.msra.mxu0 0
      %1704 = vmatpush.bf16.msra.mxu0 0
      %1705 = vmatpush.bf16.msra.mxu0 0
      %1706 = vmatpush.bf16.msra.mxu0 0
      %1707 = vmatpush.bf16.msra.mxu0 0
      %1708 = vmatpush.bf16.msra.mxu0 %v1700
      %1709 = vmatpush.bf16.msra.mxu0 %v1646
      %1710 = vmatmul.bf16.gmra.mxu0 %v1651
      %v1711 = vpop.f32.mrf.mxu0
      %v1712 = vadd.f32 %v1638, %v1711
      %v1713 = vpop.f32.mrf.mxu0
      %v1714 = vadd.f32 %v1638, %v1713
      %1715 = vmatmul.bf16.gmra.mxu0 %v1654
      %v1716 = vpop.f32.mrf.mxu0
      %v1717 = vadd.f32 %v1638, %v1716
      %v1718 = vpop.f32.mrf.mxu0
      %v1719 = vadd.f32 %v1638, %v1718
      %1720 = vmatmul.bf16.gmra.mxu0 %v1657
      %v1721 = vpop.f32.mrf.mxu0
      %v1722 = vadd.f32 %v1638, %v1721
      %v1723 = vpop.f32.mrf.mxu0
      %v1724 = vadd.f32 %v1638, %v1723
      %1725 = vmatmul.bf16.gmra.mxu0 %v1660
      %v1726 = vpop.f32.mrf.mxu0
      %v1727 = vadd.f32 %v1638, %v1726
      %v1728 = vpop.f32.mrf.mxu0
      %v1729 = vadd.f32 %v1638, %v1728
      %1730 = vmatmul.bf16.gmra.mxu0 %v1663
      %v1731 = vpop.f32.mrf.mxu0
      %v1732 = vadd.f32 %v1638, %v1731
      %v1733 = vpop.f32.mrf.mxu0
      %v1734 = vadd.f32 %v1638, %v1733
      %1735 = vmatmul.bf16.gmra.mxu0 %v1666
      %v1736 = vpop.f32.mrf.mxu0
      %v1737 = vadd.f32 %v1638, %v1736
      %v1738 = vpop.f32.mrf.mxu0
      %v1739 = vadd.f32 %v1638, %v1738
      %1740 = vmatmul.bf16.gmra.mxu0 %v1669
      %v1741 = vpop.f32.mrf.mxu0
      %v1742 = vadd.f32 %v1638, %v1741
      %v1743 = vpop.f32.mrf.mxu0
      %v1744 = vadd.f32 %v1638, %v1743
      %1745 = vmatmul.bf16.gmra.mxu0 %v1672
      %v1746 = vpop.f32.mrf.mxu0
      %v1747 = vadd.f32 %v1638, %v1746
      %v1748 = vpop.f32.mrf.mxu0
      %v1749 = vadd.f32 %v1638, %v1748
      %1750 = vmatmul.bf16.gmra.mxu0 %v1675
      %v1751 = vpop.f32.mrf.mxu0
      %v1752 = vadd.f32 %v1638, %v1751
      %v1753 = vpop.f32.mrf.mxu0
      %v1754 = vadd.f32 %v1638, %v1753
      %1755 = vmatmul.bf16.gmra.mxu0 %v1678
      %v1756 = vpop.f32.mrf.mxu0
      %v1757 = vadd.f32 %v1638, %v1756
      %v1758 = vpop.f32.mrf.mxu0
      %v1759 = vadd.f32 %v1638, %v1758
      %1760 = vmatmul.bf16.gmra.mxu0 %v1681
      %v1761 = vpop.f32.mrf.mxu0
      %v1762 = vadd.f32 %v1638, %v1761
      %v1763 = vpop.f32.mrf.mxu0
      %v1764 = vadd.f32 %v1638, %v1763
      %1765 = vmatmul.bf16.gmra.mxu0 %v1684
      %v1766 = vpop.f32.mrf.mxu0
      %v1767 = vadd.f32 %v1638, %v1766
      %v1768 = vpop.f32.mrf.mxu0
      %v1769 = vadd.f32 %v1638, %v1768
      %1770 = vmatmul.bf16.gmra.mxu0 %v1687
      %v1771 = vpop.f32.mrf.mxu0
      %v1772 = vadd.f32 %v1638, %v1771
      %v1773 = vpop.f32.mrf.mxu0
      %v1774 = vadd.f32 %v1638, %v1773
      %1775 = vmatmul.bf16.gmra.mxu0 %v1690
      %v1776 = vpop.f32.mrf.mxu0
      %v1777 = vadd.f32 %v1638, %v1776
      %v1778 = vpop.f32.mrf.mxu0
      %v1779 = vadd.f32 %v1638, %v1778
      %1780 = vmatmul.bf16.gmra.mxu0 %v1693
      %v1781 = vpop.f32.mrf.mxu0
      %v1782 = vadd.f32 %v1638, %v1781
      %v1783 = vpop.f32.mrf.mxu0
      %v1784 = vadd.f32 %v1638, %v1783
      %1785 = vmatmul.bf16.gmra.mxu0 %v1696
      %v1786 = vpop.f32.mrf.mxu0
      %v1787 = vadd.f32 %v1638, %v1786
      %v1788 = vpop.f32.mrf.mxu0
      %v1789 = vadd.f32 %v1638, %v1788
      %1790 = vdwg.mxu0
      %v1791 = vmax.f32 %v1712, 0.0
      %v1792 = vmax.f32 %v1714, 0.0
      %v1793 = vmax.f32 %v1717, 0.0
      %v1794 = vmax.f32 %v1719, 0.0
      %v1795 = vmax.f32 %v1722, 0.0
      %v1796 = vmax.f32 %v1724, 0.0
      %v1797 = vmax.f32 %v1727, 0.0
      %v1798 = vmax.f32 %v1729, 0.0
      %v1799 = vmax.f32 %v1732, 0.0
      %v1800 = vmax.f32 %v1734, 0.0
      %v1801 = vmax.f32 %v1737, 0.0
      %v1802 = vmax.f32 %v1739, 0.0
      %v1803 = vmax.f32 %v1742, 0.0
      %v1804 = vmax.f32 %v1744, 0.0
      %v1805 = vmax.f32 %v1747, 0.0
      %v1806 = vmax.f32 %v1749, 0.0
      %v1807 = vmax.f32 %v1752, 0.0
      %v1808 = vmax.f32 %v1754, 0.0
      %v1809 = vmax.f32 %v1757, 0.0
      %v1810 = vmax.f32 %v1759, 0.0
      %v1811 = vmax.f32 %v1762, 0.0
      %v1812 = vmax.f32 %v1764, 0.0
      %v1813 = vmax.f32 %v1767, 0.0
      %v1814 = vmax.f32 %v1769, 0.0
      %v1815 = vmax.f32 %v1772, 0.0
      %v1816 = vmax.f32 %v1774, 0.0
      %v1817 = vmax.f32 %v1777, 0.0
      %v1818 = vmax.f32 %v1779, 0.0
      %v1819 = vmax.f32 %v1782, 0.0
      %v1820 = vmax.f32 %v1784, 0.0
      %v1821 = vmax.f32 %v1787, 0.0
      %v1822 = vmax.f32 %v1789, 0.0
      %v1823 = vpack.c.bf16 %v1792, %v1791
      %v1824 = vpack.c.bf16 %v1794, %v1793
      %v1825 = vpack.c.bf16 %v1796, %v1795
      %v1826 = vpack.c.bf16 %v1798, %v1797
      %v1827 = vpack.c.bf16 %v1800, %v1799
      %v1828 = vpack.c.bf16 %v1802, %v1801
      %v1829 = vpack.c.bf16 %v1804, %v1803
      %v1830 = vpack.c.bf16 %v1806, %v1805
      %v1831 = vpack.c.bf16 %v1808, %v1807
      %v1832 = vpack.c.bf16 %v1810, %v1809
      %v1833 = vpack.c.bf16 %v1812, %v1811
      %v1834 = vpack.c.bf16 %v1814, %v1813
      %v1835 = vpack.c.bf16 %v1816, %v1815
      %v1836 = vpack.c.bf16 %v1818, %v1817
      %v1837 = vpack.c.bf16 %v1820, %v1819
      %v1838 = vpack.c.bf16 %v1822, %v1821
      %v1840 = vperm.slane %v683, 0
      %v1845 = vunpack.c.l.b16 %v680
      %v1846 = vunpack.c.l.b16 %v681
      %v1847 = vunpack.c.l.b16 %v682
      %v1848 = vpack.c.b16 %v1846, %v1845
      %v1849 = vpack.c.b16 %v1847, %v1847
      %v1852 = vsel %vm1649, %v1823, 0
      %v1855 = vsel %vm1649, %v1824, 0
      %v1858 = vsel %vm1649, %v1825, 0
      %v1861 = vsel %vm1649, %v1826, 0
      %v1864 = vsel %vm1649, %v1827, 0
      %v1867 = vsel %vm1649, %v1828, 0
      %v1870 = vsel %vm1649, %v1829, 0
      %v1873 = vsel %vm1649, %v1830, 0
      %v1876 = vsel %vm1649, %v1831, 0
      %v1879 = vsel %vm1649, %v1832, 0
      %v1882 = vsel %vm1649, %v1833, 0
      %v1885 = vsel %vm1649, %v1834, 0
      %v1888 = vsel %vm1649, %v1835, 0
      %v1891 = vsel %vm1649, %v1836, 0
      %v1894 = vsel %vm1649, %v1837, 0
      %v1897 = vsel %vm1649, %v1838, 0
      %v1900 = vsel %vm1698, %v1849, 0
      %1902 = vmatpush.bf16.msra.mxu0 0
      %1903 = vmatpush.bf16.msra.mxu0 0
      %1904 = vmatpush.bf16.msra.mxu0 0
      %1905 = vmatpush.bf16.msra.mxu0 0
      %1906 = vmatpush.bf16.msra.mxu0 0
      %1907 = vmatpush.bf16.msra.mxu0 0
      %1908 = vmatpush.bf16.msra.mxu0 %v1900
      %1909 = vmatpush.bf16.msra.mxu0 %v1848
      %1910 = vmatmul.bf16.gmra.mxu0 %v1852
      %v1911 = vpop.f32.mrf.mxu0
      %v1912 = vadd.f32 %v1840, %v1911
      %v1913 = vpop.f32.mrf.mxu0
      %v1914 = vadd.f32 %v1840, %v1913
      %1915 = vmatmul.bf16.gmra.mxu0 %v1855
      %v1916 = vpop.f32.mrf.mxu0
      %v1917 = vadd.f32 %v1840, %v1916
      %v1918 = vpop.f32.mrf.mxu0
      %v1919 = vadd.f32 %v1840, %v1918
      %1920 = vmatmul.bf16.gmra.mxu0 %v1858
      %v1921 = vpop.f32.mrf.mxu0
      %v1922 = vadd.f32 %v1840, %v1921
      %v1923 = vpop.f32.mrf.mxu0
      %v1924 = vadd.f32 %v1840, %v1923
      %1925 = vmatmul.bf16.gmra.mxu0 %v1861
      %v1926 = vpop.f32.mrf.mxu0
      %v1927 = vadd.f32 %v1840, %v1926
      %v1928 = vpop.f32.mrf.mxu0
      %v1929 = vadd.f32 %v1840, %v1928
      %1930 = vmatmul.bf16.gmra.mxu0 %v1864
      %v1931 = vpop.f32.mrf.mxu0
      %v1932 = vadd.f32 %v1840, %v1931
      %v1933 = vpop.f32.mrf.mxu0
      %v1934 = vadd.f32 %v1840, %v1933
      %1935 = vmatmul.bf16.gmra.mxu0 %v1867
      %v1936 = vpop.f32.mrf.mxu0
      %v1937 = vadd.f32 %v1840, %v1936
      %v1938 = vpop.f32.mrf.mxu0
      %v1939 = vadd.f32 %v1840, %v1938
      %1940 = vmatmul.bf16.gmra.mxu0 %v1870
      %v1941 = vpop.f32.mrf.mxu0
      %v1942 = vadd.f32 %v1840, %v1941
      %v1943 = vpop.f32.mrf.mxu0
      %v1944 = vadd.f32 %v1840, %v1943
      %1945 = vmatmul.bf16.gmra.mxu0 %v1873
      %v1946 = vpop.f32.mrf.mxu0
      %v1947 = vadd.f32 %v1840, %v1946
      %v1948 = vpop.f32.mrf.mxu0
      %v1949 = vadd.f32 %v1840, %v1948
      %1950 = vmatmul.bf16.gmra.mxu0 %v1876
      %v1951 = vpop.f32.mrf.mxu0
      %v1952 = vadd.f32 %v1840, %v1951
      %v1953 = vpop.f32.mrf.mxu0
      %v1954 = vadd.f32 %v1840, %v1953
      %1955 = vmatmul.bf16.gmra.mxu0 %v1879
      %v1956 = vpop.f32.mrf.mxu0
      %v1957 = vadd.f32 %v1840, %v1956
      %v1958 = vpop.f32.mrf.mxu0
      %v1959 = vadd.f32 %v1840, %v1958
      %1960 = vmatmul.bf16.gmra.mxu0 %v1882
      %v1961 = vpop.f32.mrf.mxu0
      %v1962 = vadd.f32 %v1840, %v1961
      %v1963 = vpop.f32.mrf.mxu0
      %v1964 = vadd.f32 %v1840, %v1963
      %1965 = vmatmul.bf16.gmra.mxu0 %v1885
      %v1966 = vpop.f32.mrf.mxu0
      %v1967 = vadd.f32 %v1840, %v1966
      %v1968 = vpop.f32.mrf.mxu0
      %v1969 = vadd.f32 %v1840, %v1968
      %1970 = vmatmul.bf16.gmra.mxu0 %v1888
      %v1971 = vpop.f32.mrf.mxu0
      %v1972 = vadd.f32 %v1840, %v1971
      %v1973 = vpop.f32.mrf.mxu0
      %v1974 = vadd.f32 %v1840, %v1973
      %1975 = vmatmul.bf16.gmra.mxu0 %v1891
      %v1976 = vpop.f32.mrf.mxu0
      %v1977 = vadd.f32 %v1840, %v1976
      %v1978 = vpop.f32.mrf.mxu0
      %v1979 = vadd.f32 %v1840, %v1978
      %1980 = vmatmul.bf16.gmra.mxu0 %v1894
      %v1981 = vpop.f32.mrf.mxu0
      %v1982 = vadd.f32 %v1840, %v1981
      %v1983 = vpop.f32.mrf.mxu0
      %v1984 = vadd.f32 %v1840, %v1983
      %1985 = vmatmul.bf16.gmra.mxu0 %v1897
      %v1986 = vpop.f32.mrf.mxu0
      %v1987 = vadd.f32 %v1840, %v1986
      %v1988 = vpop.f32.mrf.mxu0
      %v1989 = vadd.f32 %v1840, %v1988
      %1990 = vdwg.mxu0
      %v1991 = vld [vmem:[%s10] sm:$0x1]
      %v1992 = vld [vmem:[%s11] sm:$0x1]
      %v1993 = vld [vmem:[%s12] sm:$0xf]
      %v1994 = vld [vmem:[%s12 + $0x4] sm:$0xf]
      %v1995 = vld [vmem:[%s12 + $0x8] sm:$0xf]
      %v1996 = vld [vmem:[%s13] sm:$0x1]
      %v1997 = vsel %vm1649, %v1912, 0.0
      %1998 = vadd.xlane.f32.xlu0 %v1997
      %v1999 = vpop.xlane.xlu0 %1998
      %v2000 = vsel %vm1649, %v1914, 0.0
      %2001 = vadd.xlane.f32.xlu0 %v2000
      %v2002 = vpop.xlane.xlu0 %2001
      %v2003 = vsel %vm1649, %v1917, 0.0
      %2004 = vadd.xlane.f32.xlu0 %v2003
      %v2005 = vpop.xlane.xlu0 %2004
      %v2006 = vsel %vm1649, %v1919, 0.0
      %2007 = vadd.xlane.f32.xlu0 %v2006
      %v2008 = vpop.xlane.xlu0 %2007
      %v2009 = vsel %vm1649, %v1922, 0.0
      %2010 = vadd.xlane.f32.xlu0 %v2009
      %v2011 = vpop.xlane.xlu0 %2010
      %v2012 = vsel %vm1649, %v1924, 0.0
      %2013 = vadd.xlane.f32.xlu0 %v2012
      %v2014 = vpop.xlane.xlu0 %2013
      %v2015 = vsel %vm1649, %v1927, 0.0
      %2016 = vadd.xlane.f32.xlu0 %v2015
      %v2017 = vpop.xlane.xlu0 %2016
      %v2018 = vsel %vm1649, %v1929, 0.0
      %2019 = vadd.xlane.f32.xlu0 %v2018
      %v2020 = vpop.xlane.xlu0 %2019
      %v2021 = vsel %vm1649, %v1932, 0.0
      %2022 = vadd.xlane.f32.xlu0 %v2021
      %v2023 = vpop.xlane.xlu0 %2022
      %v2024 = vsel %vm1649, %v1934, 0.0
      %2025 = vadd.xlane.f32.xlu0 %v2024
      %v2026 = vpop.xlane.xlu0 %2025
      %v2027 = vsel %vm1649, %v1937, 0.0
      %2028 = vadd.xlane.f32.xlu0 %v2027
      %v2029 = vpop.xlane.xlu0 %2028
      %v2030 = vsel %vm1649, %v1939, 0.0
      %2031 = vadd.xlane.f32.xlu0 %v2030
      %v2032 = vpop.xlane.xlu0 %2031
      %v2033 = vsel %vm1649, %v1942, 0.0
      %2034 = vadd.xlane.f32.xlu0 %v2033
      %v2035 = vpop.xlane.xlu0 %2034
      %v2036 = vsel %vm1649, %v1944, 0.0
      %2037 = vadd.xlane.f32.xlu0 %v2036
      %v2038 = vpop.xlane.xlu0 %2037
      %v2039 = vsel %vm1649, %v1947, 0.0
      %2040 = vadd.xlane.f32.xlu0 %v2039
      %v2041 = vpop.xlane.xlu0 %2040
      %v2042 = vsel %vm1649, %v1949, 0.0
      %2043 = vadd.xlane.f32.xlu0 %v2042
      %v2044 = vpop.xlane.xlu0 %2043
      %v2045 = vsel %vm1649, %v1952, 0.0
      %2046 = vadd.xlane.f32.xlu0 %v2045
      %v2047 = vpop.xlane.xlu0 %2046
      %v2048 = vsel %vm1649, %v1954, 0.0
      %2049 = vadd.xlane.f32.xlu0 %v2048
      %v2050 = vpop.xlane.xlu0 %2049
      %v2051 = vsel %vm1649, %v1957, 0.0
      %2052 = vadd.xlane.f32.xlu0 %v2051
      %v2053 = vpop.xlane.xlu0 %2052
      %v2054 = vsel %vm1649, %v1959, 0.0
      %2055 = vadd.xlane.f32.xlu0 %v2054
      %v2056 = vpop.xlane.xlu0 %2055
      %v2057 = vsel %vm1649, %v1962, 0.0
      %2058 = vadd.xlane.f32.xlu0 %v2057
      %v2059 = vpop.xlane.xlu0 %2058
      %v2060 = vsel %vm1649, %v1964, 0.0
      %2061 = vadd.xlane.f32.xlu0 %v2060
      %v2062 = vpop.xlane.xlu0 %2061
      %v2063 = vsel %vm1649, %v1967, 0.0
      %2064 = vadd.xlane.f32.xlu0 %v2063
      %v2065 = vpop.xlane.xlu0 %2064
      %v2066 = vsel %vm1649, %v1969, 0.0
      %2067 = vadd.xlane.f32.xlu0 %v2066
      %v2068 = vpop.xlane.xlu0 %2067
      %v2069 = vsel %vm1649, %v1972, 0.0
      %2070 = vadd.xlane.f32.xlu0 %v2069
      %v2071 = vpop.xlane.xlu0 %2070
      %v2072 = vsel %vm1649, %v1974, 0.0
      %2073 = vadd.xlane.f32.xlu0 %v2072
      %v2074 = vpop.xlane.xlu0 %2073
      %v2075 = vsel %vm1649, %v1977, 0.0
      %2076 = vadd.xlane.f32.xlu0 %v2075
      %v2077 = vpop.xlane.xlu0 %2076
      %v2078 = vsel %vm1649, %v1979, 0.0
      %2079 = vadd.xlane.f32.xlu0 %v2078
      %v2080 = vpop.xlane.xlu0 %2079
      %v2081 = vsel %vm1649, %v1982, 0.0
      %2082 = vadd.xlane.f32.xlu0 %v2081
      %v2083 = vpop.xlane.xlu0 %2082
      %v2084 = vsel %vm1649, %v1984, 0.0
      %2085 = vadd.xlane.f32.xlu0 %v2084
      %v2086 = vpop.xlane.xlu0 %2085
      %v2087 = vsel %vm1649, %v1987, 0.0
      %2088 = vadd.xlane.f32.xlu0 %v2087
      %v2089 = vpop.xlane.xlu0 %2088
      %v2090 = vsel %vm1649, %v1989, 0.0
      %2091 = vadd.xlane.f32.xlu0 %v2090
      %v2092 = vpop.xlane.xlu0 %2091
      %v2093 = vrcp.pop 24.0
      %v2094 = vmul.f32 24.0, %v2093
      %v2095 = vsub.f32 1.0, %v2094
      %v2096 = vmul.f32 %v2093, %v2095
      %v2097 = vadd.f32 %v2093, %v2096
      %vm2098 = vweird.f32 %v2093
      %v2099 = vsel %vm2098, %v2093, %v2097
      %v2100 = vmul.f32 %v1999, %v2099
      %v2101 = vmul.f32 %v2002, %v2099
      %v2102 = vmul.f32 %v2005, %v2099
      %v2103 = vmul.f32 %v2008, %v2099
      %v2104 = vmul.f32 %v2011, %v2099
      %v2105 = vmul.f32 %v2014, %v2099
      %v2106 = vmul.f32 %v2017, %v2099
      %v2107 = vmul.f32 %v2020, %v2099
      %v2108 = vmul.f32 %v2023, %v2099
      %v2109 = vmul.f32 %v2026, %v2099
      %v2110 = vmul.f32 %v2029, %v2099
      %v2111 = vmul.f32 %v2032, %v2099
      %v2112 = vmul.f32 %v2035, %v2099
      %v2113 = vmul.f32 %v2038, %v2099
      %v2114 = vmul.f32 %v2041, %v2099
      %v2115 = vmul.f32 %v2044, %v2099
      %v2116 = vmul.f32 %v2047, %v2099
      %v2117 = vmul.f32 %v2050, %v2099
      %v2118 = vmul.f32 %v2053, %v2099
      %v2119 = vmul.f32 %v2056, %v2099
      %v2120 = vmul.f32 %v2059, %v2099
      %v2121 = vmul.f32 %v2062, %v2099
      %v2122 = vmul.f32 %v2065, %v2099
      %v2123 = vmul.f32 %v2068, %v2099
      %v2124 = vmul.f32 %v2071, %v2099
      %v2125 = vmul.f32 %v2074, %v2099
      %v2126 = vmul.f32 %v2077, %v2099
      %v2127 = vmul.f32 %v2080, %v2099
      %v2128 = vmul.f32 %v2083, %v2099
      %v2129 = vmul.f32 %v2086, %v2099
      %v2130 = vmul.f32 %v2089, %v2099
      %v2131 = vmul.f32 %v2092, %v2099
      %v2132 = vsub.f32 %v1912, %v2100
      %v2133 = vsub.f32 %v1914, %v2101
      %v2134 = vsub.f32 %v1917, %v2102
      %v2135 = vsub.f32 %v1919, %v2103
      %v2136 = vsub.f32 %v1922, %v2104
      %v2137 = vsub.f32 %v1924, %v2105
      %v2138 = vsub.f32 %v1927, %v2106
      %v2139 = vsub.f32 %v1929, %v2107
      %v2140 = vsub.f32 %v1932, %v2108
      %v2141 = vsub.f32 %v1934, %v2109
      %v2142 = vsub.f32 %v1937, %v2110
      %v2143 = vsub.f32 %v1939, %v2111
      %v2144 = vsub.f32 %v1942, %v2112
      %v2145 = vsub.f32 %v1944, %v2113
      %v2146 = vsub.f32 %v1947, %v2114
      %v2147 = vsub.f32 %v1949, %v2115
      %v2148 = vsub.f32 %v1952, %v2116
      %v2149 = vsub.f32 %v1954, %v2117
      %v2150 = vsub.f32 %v1957, %v2118
      %v2151 = vsub.f32 %v1959, %v2119
      %v2152 = vsub.f32 %v1962, %v2120
      %v2153 = vsub.f32 %v1964, %v2121
      %v2154 = vsub.f32 %v1967, %v2122
      %v2155 = vsub.f32 %v1969, %v2123
      %v2156 = vsub.f32 %v1972, %v2124
      %v2157 = vsub.f32 %v1974, %v2125
      %v2158 = vsub.f32 %v1977, %v2126
      %v2159 = vsub.f32 %v1979, %v2127
      %v2160 = vsub.f32 %v1982, %v2128
      %v2161 = vsub.f32 %v1984, %v2129
      %v2162 = vsub.f32 %v1987, %v2130
      %v2163 = vsub.f32 %v1989, %v2131
      %v2164 = vmul.f32 %v2132, %v2132
      %v2165 = vmul.f32 %v2133, %v2133
      %v2166 = vmul.f32 %v2134, %v2134
      %v2167 = vmul.f32 %v2135, %v2135
      %v2168 = vmul.f32 %v2136, %v2136
      %v2169 = vmul.f32 %v2137, %v2137
      %v2170 = vmul.f32 %v2138, %v2138
      %v2171 = vmul.f32 %v2139, %v2139
      %v2172 = vmul.f32 %v2140, %v2140
      %v2173 = vmul.f32 %v2141, %v2141
      %v2174 = vmul.f32 %v2142, %v2142
      %v2175 = vmul.f32 %v2143, %v2143
      %v2176 = vmul.f32 %v2144, %v2144
      %v2177 = vmul.f32 %v2145, %v2145
      %v2178 = vmul.f32 %v2146, %v2146
      %v2179 = vmul.f32 %v2147, %v2147
      %v2180 = vmul.f32 %v2148, %v2148
      %v2181 = vmul.f32 %v2149, %v2149
      %v2182 = vmul.f32 %v2150, %v2150
      %v2183 = vmul.f32 %v2151, %v2151
      %v2184 = vmul.f32 %v2152, %v2152
      %v2185 = vmul.f32 %v2153, %v2153
      %v2186 = vmul.f32 %v2154, %v2154
      %v2187 = vmul.f32 %v2155, %v2155
      %v2188 = vmul.f32 %v2156, %v2156
      %v2189 = vmul.f32 %v2157, %v2157
      %v2190 = vmul.f32 %v2158, %v2158
      %v2191 = vmul.f32 %v2159, %v2159
      %v2192 = vmul.f32 %v2160, %v2160
      %v2193 = vmul.f32 %v2161, %v2161
      %v2194 = vmul.f32 %v2162, %v2162
      %v2195 = vmul.f32 %v2163, %v2163
      %v2196 = vsel %vm1649, %v2164, 0.0
      %2197 = vadd.xlane.f32.xlu0 %v2196
      %v2198 = vpop.xlane.xlu0 %2197
      %v2199 = vsel %vm1649, %v2165, 0.0
      %2200 = vadd.xlane.f32.xlu0 %v2199
      %v2201 = vpop.xlane.xlu0 %2200
      %v2202 = vsel %vm1649, %v2166, 0.0
      %2203 = vadd.xlane.f32.xlu0 %v2202
      %v2204 = vpop.xlane.xlu0 %2203
      %v2205 = vsel %vm1649, %v2167, 0.0
      %2206 = vadd.xlane.f32.xlu0 %v2205
      %v2207 = vpop.xlane.xlu0 %2206
      %v2208 = vsel %vm1649, %v2168, 0.0
      %2209 = vadd.xlane.f32.xlu0 %v2208
      %v2210 = vpop.xlane.xlu0 %2209
      %v2211 = vsel %vm1649, %v2169, 0.0
      %2212 = vadd.xlane.f32.xlu0 %v2211
      %v2213 = vpop.xlane.xlu0 %2212
      %v2214 = vsel %vm1649, %v2170, 0.0
      %2215 = vadd.xlane.f32.xlu0 %v2214
      %v2216 = vpop.xlane.xlu0 %2215
      %v2217 = vsel %vm1649, %v2171, 0.0
      %2218 = vadd.xlane.f32.xlu0 %v2217
      %v2219 = vpop.xlane.xlu0 %2218
      %v2220 = vsel %vm1649, %v2172, 0.0
      %2221 = vadd.xlane.f32.xlu0 %v2220
      %v2222 = vpop.xlane.xlu0 %2221
      %v2223 = vsel %vm1649, %v2173, 0.0
      %2224 = vadd.xlane.f32.xlu0 %v2223
      %v2225 = vpop.xlane.xlu0 %2224
      %v2226 = vsel %vm1649, %v2174, 0.0
      %2227 = vadd.xlane.f32.xlu0 %v2226
      %v2228 = vpop.xlane.xlu0 %2227
      %v2229 = vsel %vm1649, %v2175, 0.0
      %2230 = vadd.xlane.f32.xlu0 %v2229
      %v2231 = vpop.xlane.xlu0 %2230
      %v2232 = vsel %vm1649, %v2176, 0.0
      %2233 = vadd.xlane.f32.xlu0 %v2232
      %v2234 = vpop.xlane.xlu0 %2233
      %v2235 = vsel %vm1649, %v2177, 0.0
      %2236 = vadd.xlane.f32.xlu0 %v2235
      %v2237 = vpop.xlane.xlu0 %2236
      %v2238 = vsel %vm1649, %v2178, 0.0
      %2239 = vadd.xlane.f32.xlu0 %v2238
      %v2240 = vpop.xlane.xlu0 %2239
      %v2241 = vsel %vm1649, %v2179, 0.0
      %2242 = vadd.xlane.f32.xlu0 %v2241
      %v2243 = vpop.xlane.xlu0 %2242
      %v2244 = vsel %vm1649, %v2180, 0.0
      %2245 = vadd.xlane.f32.xlu0 %v2244
      %v2246 = vpop.xlane.xlu0 %2245
      %v2247 = vsel %vm1649, %v2181, 0.0
      %2248 = vadd.xlane.f32.xlu0 %v2247
      %v2249 = vpop.xlane.xlu0 %2248
      %v2250 = vsel %vm1649, %v2182, 0.0
      %2251 = vadd.xlane.f32.xlu0 %v2250
      %v2252 = vpop.xlane.xlu0 %2251
      %v2253 = vsel %vm1649, %v2183, 0.0
      %2254 = vadd.xlane.f32.xlu0 %v2253
      %v2255 = vpop.xlane.xlu0 %2254
      %v2256 = vsel %vm1649, %v2184, 0.0
      %2257 = vadd.xlane.f32.xlu0 %v2256
      %v2258 = vpop.xlane.xlu0 %2257
      %v2259 = vsel %vm1649, %v2185, 0.0
      %2260 = vadd.xlane.f32.xlu0 %v2259
      %v2261 = vpop.xlane.xlu0 %2260
      %v2262 = vsel %vm1649, %v2186, 0.0
      %2263 = vadd.xlane.f32.xlu0 %v2262
      %v2264 = vpop.xlane.xlu0 %2263
      %v2265 = vsel %vm1649, %v2187, 0.0
      %2266 = vadd.xlane.f32.xlu0 %v2265
      %v2267 = vpop.xlane.xlu0 %2266
      %v2268 = vsel %vm1649, %v2188, 0.0
      %2269 = vadd.xlane.f32.xlu0 %v2268
      %v2270 = vpop.xlane.xlu0 %2269
      %v2271 = vsel %vm1649, %v2189, 0.0
      %2272 = vadd.xlane.f32.xlu0 %v2271
      %v2273 = vpop.xlane.xlu0 %2272
      %v2274 = vsel %vm1649, %v2190, 0.0
      %2275 = vadd.xlane.f32.xlu0 %v2274
      %v2276 = vpop.xlane.xlu0 %2275
      %v2277 = vsel %vm1649, %v2191, 0.0
      %2278 = vadd.xlane.f32.xlu0 %v2277
      %v2279 = vpop.xlane.xlu0 %2278
      %v2280 = vsel %vm1649, %v2192, 0.0
      %2281 = vadd.xlane.f32.xlu0 %v2280
      %v2282 = vpop.xlane.xlu0 %2281
      %v2283 = vsel %vm1649, %v2193, 0.0
      %2284 = vadd.xlane.f32.xlu0 %v2283
      %v2285 = vpop.xlane.xlu0 %2284
      %v2286 = vsel %vm1649, %v2194, 0.0
      %2287 = vadd.xlane.f32.xlu0 %v2286
      %v2288 = vpop.xlane.xlu0 %2287
      %v2289 = vsel %vm1649, %v2195, 0.0
      %2290 = vadd.xlane.f32.xlu0 %v2289
      %v2291 = vpop.xlane.xlu0 %2290
      %v2292 = vmul.f32 %v2198, %v2099
      %v2293 = vmul.f32 %v2201, %v2099
      %v2294 = vmul.f32 %v2204, %v2099
      %v2295 = vmul.f32 %v2207, %v2099
      %v2296 = vmul.f32 %v2210, %v2099
      %v2297 = vmul.f32 %v2213, %v2099
      %v2298 = vmul.f32 %v2216, %v2099
      %v2299 = vmul.f32 %v2219, %v2099
      %v2300 = vmul.f32 %v2222, %v2099
      %v2301 = vmul.f32 %v2225, %v2099
      %v2302 = vmul.f32 %v2228, %v2099
      %v2303 = vmul.f32 %v2231, %v2099
      %v2304 = vmul.f32 %v2234, %v2099
      %v2305 = vmul.f32 %v2237, %v2099
      %v2306 = vmul.f32 %v2240, %v2099
      %v2307 = vmul.f32 %v2243, %v2099
      %v2308 = vmul.f32 %v2246, %v2099
      %v2309 = vmul.f32 %v2249, %v2099
      %v2310 = vmul.f32 %v2252, %v2099
      %v2311 = vmul.f32 %v2255, %v2099
      %v2312 = vmul.f32 %v2258, %v2099
      %v2313 = vmul.f32 %v2261, %v2099
      %v2314 = vmul.f32 %v2264, %v2099
      %v2315 = vmul.f32 %v2267, %v2099
      %v2316 = vmul.f32 %v2270, %v2099
      %v2317 = vmul.f32 %v2273, %v2099
      %v2318 = vmul.f32 %v2276, %v2099
      %v2319 = vmul.f32 %v2279, %v2099
      %v2320 = vmul.f32 %v2282, %v2099
      %v2321 = vmul.f32 %v2285, %v2099
      %v2322 = vmul.f32 %v2288, %v2099
      %v2323 = vmul.f32 %v2291, %v2099
      %v2324 = vadd.f32 %v2292, 1e-05
      %v2325 = vadd.f32 %v2293, 1e-05
      %v2326 = vadd.f32 %v2294, 1e-05
      %v2327 = vadd.f32 %v2295, 1e-05
      %v2328 = vadd.f32 %v2296, 1e-05
      %v2329 = vadd.f32 %v2297, 1e-05
      %v2330 = vadd.f32 %v2298, 1e-05
      %v2331 = vadd.f32 %v2299, 1e-05
      %v2332 = vadd.f32 %v2300, 1e-05
      %v2333 = vadd.f32 %v2301, 1e-05
      %v2334 = vadd.f32 %v2302, 1e-05
      %v2335 = vadd.f32 %v2303, 1e-05
      %v2336 = vadd.f32 %v2304, 1e-05
      %v2337 = vadd.f32 %v2305, 1e-05
      %v2338 = vadd.f32 %v2306, 1e-05
      %v2339 = vadd.f32 %v2307, 1e-05
      %v2340 = vadd.f32 %v2308, 1e-05
      %v2341 = vadd.f32 %v2309, 1e-05
      %v2342 = vadd.f32 %v2310, 1e-05
      %v2343 = vadd.f32 %v2311, 1e-05
      %v2344 = vadd.f32 %v2312, 1e-05
      %v2345 = vadd.f32 %v2313, 1e-05
      %v2346 = vadd.f32 %v2314, 1e-05
      %v2347 = vadd.f32 %v2315, 1e-05
      %v2348 = vadd.f32 %v2316, 1e-05
      %v2349 = vadd.f32 %v2317, 1e-05
      %v2350 = vadd.f32 %v2318, 1e-05
      %v2351 = vadd.f32 %v2319, 1e-05
      %v2352 = vadd.f32 %v2320, 1e-05
      %v2353 = vadd.f32 %v2321, 1e-05
      %v2354 = vadd.f32 %v2322, 1e-05
      %v2355 = vadd.f32 %v2323, 1e-05
      %v2356 = vrsqrt.pop %v2324
      %v2357 = vmul.f32 %v2356, %v2324
      %v2358 = vmul.f32 %v2357, %v2356
      %v2359 = vmul.f32 0.5, %v2358
      %v2360 = vsub.f32 1.5, %v2359
      %v2361 = vmul.f32 %v2356, %v2360
      %vm2362 = vweird.f32 %v2324
      %vm2363 = vweird.f32 %v2356
      %vm2364 = vmor %vm2362, %vm2363
      %v2365 = vsel %vm2364, %v2356, %v2361
      %v2366 = vrsqrt.pop %v2325
      %v2367 = vmul.f32 %v2366, %v2325
      %v2368 = vmul.f32 %v2367, %v2366
      %v2369 = vmul.f32 0.5, %v2368
      %v2370 = vsub.f32 1.5, %v2369
      %v2371 = vmul.f32 %v2366, %v2370
      %vm2372 = vweird.f32 %v2325
      %vm2373 = vweird.f32 %v2366
      %vm2374 = vmor %vm2372, %vm2373
      %v2375 = vsel %vm2374, %v2366, %v2371
      %v2376 = vrsqrt.pop %v2326
      %v2377 = vmul.f32 %v2376, %v2326
      %v2378 = vmul.f32 %v2377, %v2376
      %v2379 = vmul.f32 0.5, %v2378
      %v2380 = vsub.f32 1.5, %v2379
      %v2381 = vmul.f32 %v2376, %v2380
      %vm2382 = vweird.f32 %v2326
      %vm2383 = vweird.f32 %v2376
      %vm2384 = vmor %vm2382, %vm2383
      %v2385 = vsel %vm2384, %v2376, %v2381
      %v2386 = vrsqrt.pop %v2327
      %v2387 = vmul.f32 %v2386, %v2327
      %v2388 = vmul.f32 %v2387, %v2386
      %v2389 = vmul.f32 0.5, %v2388
      %v2390 = vsub.f32 1.5, %v2389
      %v2391 = vmul.f32 %v2386, %v2390
      %vm2392 = vweird.f32 %v2327
      %vm2393 = vweird.f32 %v2386
      %vm2394 = vmor %vm2392, %vm2393
      %v2395 = vsel %vm2394, %v2386, %v2391
      %v2396 = vrsqrt.pop %v2328
      %v2397 = vmul.f32 %v2396, %v2328
      %v2398 = vmul.f32 %v2397, %v2396
      %v2399 = vmul.f32 0.5, %v2398
      %v2400 = vsub.f32 1.5, %v2399
      %v2401 = vmul.f32 %v2396, %v2400
      %vm2402 = vweird.f32 %v2328
      %vm2403 = vweird.f32 %v2396
      %vm2404 = vmor %vm2402, %vm2403
      %v2405 = vsel %vm2404, %v2396, %v2401
      %v2406 = vrsqrt.pop %v2329
      %v2407 = vmul.f32 %v2406, %v2329
      %v2408 = vmul.f32 %v2407, %v2406
      %v2409 = vmul.f32 0.5, %v2408
      %v2410 = vsub.f32 1.5, %v2409
      %v2411 = vmul.f32 %v2406, %v2410
      %vm2412 = vweird.f32 %v2329
      %vm2413 = vweird.f32 %v2406
      %vm2414 = vmor %vm2412, %vm2413
      %v2415 = vsel %vm2414, %v2406, %v2411
      %v2416 = vrsqrt.pop %v2330
      %v2417 = vmul.f32 %v2416, %v2330
      %v2418 = vmul.f32 %v2417, %v2416
      %v2419 = vmul.f32 0.5, %v2418
      %v2420 = vsub.f32 1.5, %v2419
      %v2421 = vmul.f32 %v2416, %v2420
      %vm2422 = vweird.f32 %v2330
      %vm2423 = vweird.f32 %v2416
      %vm2424 = vmor %vm2422, %vm2423
      %v2425 = vsel %vm2424, %v2416, %v2421
      %v2426 = vrsqrt.pop %v2331
      %v2427 = vmul.f32 %v2426, %v2331
      %v2428 = vmul.f32 %v2427, %v2426
      %v2429 = vmul.f32 0.5, %v2428
      %v2430 = vsub.f32 1.5, %v2429
      %v2431 = vmul.f32 %v2426, %v2430
      %vm2432 = vweird.f32 %v2331
      %vm2433 = vweird.f32 %v2426
      %vm2434 = vmor %vm2432, %vm2433
      %v2435 = vsel %vm2434, %v2426, %v2431
      %v2436 = vrsqrt.pop %v2332
      %v2437 = vmul.f32 %v2436, %v2332
      %v2438 = vmul.f32 %v2437, %v2436
      %v2439 = vmul.f32 0.5, %v2438
      %v2440 = vsub.f32 1.5, %v2439
      %v2441 = vmul.f32 %v2436, %v2440
      %vm2442 = vweird.f32 %v2332
      %vm2443 = vweird.f32 %v2436
      %vm2444 = vmor %vm2442, %vm2443
      %v2445 = vsel %vm2444, %v2436, %v2441
      %v2446 = vrsqrt.pop %v2333
      %v2447 = vmul.f32 %v2446, %v2333
      %v2448 = vmul.f32 %v2447, %v2446
      %v2449 = vmul.f32 0.5, %v2448
      %v2450 = vsub.f32 1.5, %v2449
      %v2451 = vmul.f32 %v2446, %v2450
      %vm2452 = vweird.f32 %v2333
      %vm2453 = vweird.f32 %v2446
      %vm2454 = vmor %vm2452, %vm2453
      %v2455 = vsel %vm2454, %v2446, %v2451
      %v2456 = vrsqrt.pop %v2334
      %v2457 = vmul.f32 %v2456, %v2334
      %v2458 = vmul.f32 %v2457, %v2456
      %v2459 = vmul.f32 0.5, %v2458
      %v2460 = vsub.f32 1.5, %v2459
      %v2461 = vmul.f32 %v2456, %v2460
      %vm2462 = vweird.f32 %v2334
      %vm2463 = vweird.f32 %v2456
      %vm2464 = vmor %vm2462, %vm2463
      %v2465 = vsel %vm2464, %v2456, %v2461
      %v2466 = vrsqrt.pop %v2335
      %v2467 = vmul.f32 %v2466, %v2335
      %v2468 = vmul.f32 %v2467, %v2466
      %v2469 = vmul.f32 0.5, %v2468
      %v2470 = vsub.f32 1.5, %v2469
      %v2471 = vmul.f32 %v2466, %v2470
      %vm2472 = vweird.f32 %v2335
      %vm2473 = vweird.f32 %v2466
      %vm2474 = vmor %vm2472, %vm2473
      %v2475 = vsel %vm2474, %v2466, %v2471
      %v2476 = vrsqrt.pop %v2336
      %v2477 = vmul.f32 %v2476, %v2336
      %v2478 = vmul.f32 %v2477, %v2476
      %v2479 = vmul.f32 0.5, %v2478
      %v2480 = vsub.f32 1.5, %v2479
      %v2481 = vmul.f32 %v2476, %v2480
      %vm2482 = vweird.f32 %v2336
      %vm2483 = vweird.f32 %v2476
      %vm2484 = vmor %vm2482, %vm2483
      %v2485 = vsel %vm2484, %v2476, %v2481
      %v2486 = vrsqrt.pop %v2337
      %v2487 = vmul.f32 %v2486, %v2337
      %v2488 = vmul.f32 %v2487, %v2486
      %v2489 = vmul.f32 0.5, %v2488
      %v2490 = vsub.f32 1.5, %v2489
      %v2491 = vmul.f32 %v2486, %v2490
      %vm2492 = vweird.f32 %v2337
      %vm2493 = vweird.f32 %v2486
      %vm2494 = vmor %vm2492, %vm2493
      %v2495 = vsel %vm2494, %v2486, %v2491
      %v2496 = vrsqrt.pop %v2338
      %v2497 = vmul.f32 %v2496, %v2338
      %v2498 = vmul.f32 %v2497, %v2496
      %v2499 = vmul.f32 0.5, %v2498
      %v2500 = vsub.f32 1.5, %v2499
      %v2501 = vmul.f32 %v2496, %v2500
      %vm2502 = vweird.f32 %v2338
      %vm2503 = vweird.f32 %v2496
      %vm2504 = vmor %vm2502, %vm2503
      %v2505 = vsel %vm2504, %v2496, %v2501
      %v2506 = vrsqrt.pop %v2339
      %v2507 = vmul.f32 %v2506, %v2339
      %v2508 = vmul.f32 %v2507, %v2506
      %v2509 = vmul.f32 0.5, %v2508
      %v2510 = vsub.f32 1.5, %v2509
      %v2511 = vmul.f32 %v2506, %v2510
      %vm2512 = vweird.f32 %v2339
      %vm2513 = vweird.f32 %v2506
      %vm2514 = vmor %vm2512, %vm2513
      %v2515 = vsel %vm2514, %v2506, %v2511
      %v2516 = vrsqrt.pop %v2340
      %v2517 = vmul.f32 %v2516, %v2340
      %v2518 = vmul.f32 %v2517, %v2516
      %v2519 = vmul.f32 0.5, %v2518
      %v2520 = vsub.f32 1.5, %v2519
      %v2521 = vmul.f32 %v2516, %v2520
      %vm2522 = vweird.f32 %v2340
      %vm2523 = vweird.f32 %v2516
      %vm2524 = vmor %vm2522, %vm2523
      %v2525 = vsel %vm2524, %v2516, %v2521
      %v2526 = vrsqrt.pop %v2341
      %v2527 = vmul.f32 %v2526, %v2341
      %v2528 = vmul.f32 %v2527, %v2526
      %v2529 = vmul.f32 0.5, %v2528
      %v2530 = vsub.f32 1.5, %v2529
      %v2531 = vmul.f32 %v2526, %v2530
      %vm2532 = vweird.f32 %v2341
      %vm2533 = vweird.f32 %v2526
      %vm2534 = vmor %vm2532, %vm2533
      %v2535 = vsel %vm2534, %v2526, %v2531
      %v2536 = vrsqrt.pop %v2342
      %v2537 = vmul.f32 %v2536, %v2342
      %v2538 = vmul.f32 %v2537, %v2536
      %v2539 = vmul.f32 0.5, %v2538
      %v2540 = vsub.f32 1.5, %v2539
      %v2541 = vmul.f32 %v2536, %v2540
      %vm2542 = vweird.f32 %v2342
      %vm2543 = vweird.f32 %v2536
      %vm2544 = vmor %vm2542, %vm2543
      %v2545 = vsel %vm2544, %v2536, %v2541
      %v2546 = vrsqrt.pop %v2343
      %v2547 = vmul.f32 %v2546, %v2343
      %v2548 = vmul.f32 %v2547, %v2546
      %v2549 = vmul.f32 0.5, %v2548
      %v2550 = vsub.f32 1.5, %v2549
      %v2551 = vmul.f32 %v2546, %v2550
      %vm2552 = vweird.f32 %v2343
      %vm2553 = vweird.f32 %v2546
      %vm2554 = vmor %vm2552, %vm2553
      %v2555 = vsel %vm2554, %v2546, %v2551
      %v2556 = vrsqrt.pop %v2344
      %v2557 = vmul.f32 %v2556, %v2344
      %v2558 = vmul.f32 %v2557, %v2556
      %v2559 = vmul.f32 0.5, %v2558
      %v2560 = vsub.f32 1.5, %v2559
      %v2561 = vmul.f32 %v2556, %v2560
      %vm2562 = vweird.f32 %v2344
      %vm2563 = vweird.f32 %v2556
      %vm2564 = vmor %vm2562, %vm2563
      %v2565 = vsel %vm2564, %v2556, %v2561
      %v2566 = vrsqrt.pop %v2345
      %v2567 = vmul.f32 %v2566, %v2345
      %v2568 = vmul.f32 %v2567, %v2566
      %v2569 = vmul.f32 0.5, %v2568
      %v2570 = vsub.f32 1.5, %v2569
      %v2571 = vmul.f32 %v2566, %v2570
      %vm2572 = vweird.f32 %v2345
      %vm2573 = vweird.f32 %v2566
      %vm2574 = vmor %vm2572, %vm2573
      %v2575 = vsel %vm2574, %v2566, %v2571
      %v2576 = vrsqrt.pop %v2346
      %v2577 = vmul.f32 %v2576, %v2346
      %v2578 = vmul.f32 %v2577, %v2576
      %v2579 = vmul.f32 0.5, %v2578
      %v2580 = vsub.f32 1.5, %v2579
      %v2581 = vmul.f32 %v2576, %v2580
      %vm2582 = vweird.f32 %v2346
      %vm2583 = vweird.f32 %v2576
      %vm2584 = vmor %vm2582, %vm2583
      %v2585 = vsel %vm2584, %v2576, %v2581
      %v2586 = vrsqrt.pop %v2347
      %v2587 = vmul.f32 %v2586, %v2347
      %v2588 = vmul.f32 %v2587, %v2586
      %v2589 = vmul.f32 0.5, %v2588
      %v2590 = vsub.f32 1.5, %v2589
      %v2591 = vmul.f32 %v2586, %v2590
      %vm2592 = vweird.f32 %v2347
      %vm2593 = vweird.f32 %v2586
      %vm2594 = vmor %vm2592, %vm2593
      %v2595 = vsel %vm2594, %v2586, %v2591
      %v2596 = vrsqrt.pop %v2348
      %v2597 = vmul.f32 %v2596, %v2348
      %v2598 = vmul.f32 %v2597, %v2596
      %v2599 = vmul.f32 0.5, %v2598
      %v2600 = vsub.f32 1.5, %v2599
      %v2601 = vmul.f32 %v2596, %v2600
      %vm2602 = vweird.f32 %v2348
      %vm2603 = vweird.f32 %v2596
      %vm2604 = vmor %vm2602, %vm2603
      %v2605 = vsel %vm2604, %v2596, %v2601
      %v2606 = vrsqrt.pop %v2349
      %v2607 = vmul.f32 %v2606, %v2349
      %v2608 = vmul.f32 %v2607, %v2606
      %v2609 = vmul.f32 0.5, %v2608
      %v2610 = vsub.f32 1.5, %v2609
      %v2611 = vmul.f32 %v2606, %v2610
      %vm2612 = vweird.f32 %v2349
      %vm2613 = vweird.f32 %v2606
      %vm2614 = vmor %vm2612, %vm2613
      %v2615 = vsel %vm2614, %v2606, %v2611
      %v2616 = vrsqrt.pop %v2350
      %v2617 = vmul.f32 %v2616, %v2350
      %v2618 = vmul.f32 %v2617, %v2616
      %v2619 = vmul.f32 0.5, %v2618
      %v2620 = vsub.f32 1.5, %v2619
      %v2621 = vmul.f32 %v2616, %v2620
      %vm2622 = vweird.f32 %v2350
      %vm2623 = vweird.f32 %v2616
      %vm2624 = vmor %vm2622, %vm2623
      %v2625 = vsel %vm2624, %v2616, %v2621
      %v2626 = vrsqrt.pop %v2351
      %v2627 = vmul.f32 %v2626, %v2351
      %v2628 = vmul.f32 %v2627, %v2626
      %v2629 = vmul.f32 0.5, %v2628
      %v2630 = vsub.f32 1.5, %v2629
      %v2631 = vmul.f32 %v2626, %v2630
      %vm2632 = vweird.f32 %v2351
      %vm2633 = vweird.f32 %v2626
      %vm2634 = vmor %vm2632, %vm2633
      %v2635 = vsel %vm2634, %v2626, %v2631
      %v2636 = vrsqrt.pop %v2352
      %v2637 = vmul.f32 %v2636, %v2352
      %v2638 = vmul.f32 %v2637, %v2636
      %v2639 = vmul.f32 0.5, %v2638
      %v2640 = vsub.f32 1.5, %v2639
      %v2641 = vmul.f32 %v2636, %v2640
      %vm2642 = vweird.f32 %v2352
      %vm2643 = vweird.f32 %v2636
      %vm2644 = vmor %vm2642, %vm2643
      %v2645 = vsel %vm2644, %v2636, %v2641
      %v2646 = vrsqrt.pop %v2353
      %v2647 = vmul.f32 %v2646, %v2353
      %v2648 = vmul.f32 %v2647, %v2646
      %v2649 = vmul.f32 0.5, %v2648
      %v2650 = vsub.f32 1.5, %v2649
      %v2651 = vmul.f32 %v2646, %v2650
      %vm2652 = vweird.f32 %v2353
      %vm2653 = vweird.f32 %v2646
      %vm2654 = vmor %vm2652, %vm2653
      %v2655 = vsel %vm2654, %v2646, %v2651
      %v2656 = vrsqrt.pop %v2354
      %v2657 = vmul.f32 %v2656, %v2354
      %v2658 = vmul.f32 %v2657, %v2656
      %v2659 = vmul.f32 0.5, %v2658
      %v2660 = vsub.f32 1.5, %v2659
      %v2661 = vmul.f32 %v2656, %v2660
      %vm2662 = vweird.f32 %v2354
      %vm2663 = vweird.f32 %v2656
      %vm2664 = vmor %vm2662, %vm2663
      %v2665 = vsel %vm2664, %v2656, %v2661
      %v2666 = vrsqrt.pop %v2355
      %v2667 = vmul.f32 %v2666, %v2355
      %v2668 = vmul.f32 %v2667, %v2666
      %v2669 = vmul.f32 0.5, %v2668
      %v2670 = vsub.f32 1.5, %v2669
      %v2671 = vmul.f32 %v2666, %v2670
      %vm2672 = vweird.f32 %v2355
      %vm2673 = vweird.f32 %v2666
      %vm2674 = vmor %vm2672, %vm2673
      %v2675 = vsel %vm2674, %v2666, %v2671
      %v2676 = vmul.f32 %v2132, %v2365
      %v2677 = vmul.f32 %v2133, %v2375
      %v2678 = vmul.f32 %v2134, %v2385
      %v2679 = vmul.f32 %v2135, %v2395
      %v2680 = vmul.f32 %v2136, %v2405
      %v2681 = vmul.f32 %v2137, %v2415
      %v2682 = vmul.f32 %v2138, %v2425
      %v2683 = vmul.f32 %v2139, %v2435
      %v2684 = vmul.f32 %v2140, %v2445
      %v2685 = vmul.f32 %v2141, %v2455
      %v2686 = vmul.f32 %v2142, %v2465
      %v2687 = vmul.f32 %v2143, %v2475
      %v2688 = vmul.f32 %v2144, %v2485
      %v2689 = vmul.f32 %v2145, %v2495
      %v2690 = vmul.f32 %v2146, %v2505
      %v2691 = vmul.f32 %v2147, %v2515
      %v2692 = vmul.f32 %v2148, %v2525
      %v2693 = vmul.f32 %v2149, %v2535
      %v2694 = vmul.f32 %v2150, %v2545
      %v2695 = vmul.f32 %v2151, %v2555
      %v2696 = vmul.f32 %v2152, %v2565
      %v2697 = vmul.f32 %v2153, %v2575
      %v2698 = vmul.f32 %v2154, %v2585
      %v2699 = vmul.f32 %v2155, %v2595
      %v2700 = vmul.f32 %v2156, %v2605
      %v2701 = vmul.f32 %v2157, %v2615
      %v2702 = vmul.f32 %v2158, %v2625
      %v2703 = vmul.f32 %v2159, %v2635
      %v2704 = vmul.f32 %v2160, %v2645
      %v2705 = vmul.f32 %v2161, %v2655
      %v2706 = vmul.f32 %v2162, %v2665
      %v2707 = vmul.f32 %v2163, %v2675
      %v2709 = vperm.slane %v1991, 0
      %v2711 = vmul.f32 %v2676, %v2709
      %v2712 = vmul.f32 %v2677, %v2709
      %v2713 = vmul.f32 %v2678, %v2709
      %v2714 = vmul.f32 %v2679, %v2709
      %v2715 = vmul.f32 %v2680, %v2709
      %v2716 = vmul.f32 %v2681, %v2709
      %v2717 = vmul.f32 %v2682, %v2709
      %v2718 = vmul.f32 %v2683, %v2709
      %v2719 = vmul.f32 %v2684, %v2709
      %v2720 = vmul.f32 %v2685, %v2709
      %v2721 = vmul.f32 %v2686, %v2709
      %v2722 = vmul.f32 %v2687, %v2709
      %v2723 = vmul.f32 %v2688, %v2709
      %v2724 = vmul.f32 %v2689, %v2709
      %v2725 = vmul.f32 %v2690, %v2709
      %v2726 = vmul.f32 %v2691, %v2709
      %v2727 = vmul.f32 %v2692, %v2709
      %v2728 = vmul.f32 %v2693, %v2709
      %v2729 = vmul.f32 %v2694, %v2709
      %v2730 = vmul.f32 %v2695, %v2709
      %v2731 = vmul.f32 %v2696, %v2709
      %v2732 = vmul.f32 %v2697, %v2709
      %v2733 = vmul.f32 %v2698, %v2709
      %v2734 = vmul.f32 %v2699, %v2709
      %v2735 = vmul.f32 %v2700, %v2709
      %v2736 = vmul.f32 %v2701, %v2709
      %v2737 = vmul.f32 %v2702, %v2709
      %v2738 = vmul.f32 %v2703, %v2709
      %v2739 = vmul.f32 %v2704, %v2709
      %v2740 = vmul.f32 %v2705, %v2709
      %v2741 = vmul.f32 %v2706, %v2709
      %v2742 = vmul.f32 %v2707, %v2709
      %v2744 = vperm.slane %v1992, 0
      %v2746 = vadd.f32 %v2711, %v2744
      %v2747 = vadd.f32 %v2712, %v2744
      %v2748 = vadd.f32 %v2713, %v2744
      %v2749 = vadd.f32 %v2714, %v2744
      %v2750 = vadd.f32 %v2715, %v2744
      %v2751 = vadd.f32 %v2716, %v2744
      %v2752 = vadd.f32 %v2717, %v2744
      %v2753 = vadd.f32 %v2718, %v2744
      %v2754 = vadd.f32 %v2719, %v2744
      %v2755 = vadd.f32 %v2720, %v2744
      %v2756 = vadd.f32 %v2721, %v2744
      %v2757 = vadd.f32 %v2722, %v2744
      %v2758 = vadd.f32 %v2723, %v2744
      %v2759 = vadd.f32 %v2724, %v2744
      %v2760 = vadd.f32 %v2725, %v2744
      %v2761 = vadd.f32 %v2726, %v2744
      %v2762 = vadd.f32 %v2727, %v2744
      %v2763 = vadd.f32 %v2728, %v2744
      %v2764 = vadd.f32 %v2729, %v2744
      %v2765 = vadd.f32 %v2730, %v2744
      %v2766 = vadd.f32 %v2731, %v2744
      %v2767 = vadd.f32 %v2732, %v2744
      %v2768 = vadd.f32 %v2733, %v2744
      %v2769 = vadd.f32 %v2734, %v2744
      %v2770 = vadd.f32 %v2735, %v2744
      %v2771 = vadd.f32 %v2736, %v2744
      %v2772 = vadd.f32 %v2737, %v2744
      %v2773 = vadd.f32 %v2738, %v2744
      %v2774 = vadd.f32 %v2739, %v2744
      %v2775 = vadd.f32 %v2740, %v2744
      %v2776 = vadd.f32 %v2741, %v2744
      %v2777 = vadd.f32 %v2742, %v2744
      %v2778 = vmax.f32 %v2746, 0.0
      %v2779 = vmax.f32 %v2747, 0.0
      %v2780 = vmax.f32 %v2748, 0.0
      %v2781 = vmax.f32 %v2749, 0.0
      %v2782 = vmax.f32 %v2750, 0.0
      %v2783 = vmax.f32 %v2751, 0.0
      %v2784 = vmax.f32 %v2752, 0.0
      %v2785 = vmax.f32 %v2753, 0.0
      %v2786 = vmax.f32 %v2754, 0.0
      %v2787 = vmax.f32 %v2755, 0.0
      %v2788 = vmax.f32 %v2756, 0.0
      %v2789 = vmax.f32 %v2757, 0.0
      %v2790 = vmax.f32 %v2758, 0.0
      %v2791 = vmax.f32 %v2759, 0.0
      %v2792 = vmax.f32 %v2760, 0.0
      %v2793 = vmax.f32 %v2761, 0.0
      %v2794 = vmax.f32 %v2762, 0.0
      %v2795 = vmax.f32 %v2763, 0.0
      %v2796 = vmax.f32 %v2764, 0.0
      %v2797 = vmax.f32 %v2765, 0.0
      %v2798 = vmax.f32 %v2766, 0.0
      %v2799 = vmax.f32 %v2767, 0.0
      %v2800 = vmax.f32 %v2768, 0.0
      %v2801 = vmax.f32 %v2769, 0.0
      %v2802 = vmax.f32 %v2770, 0.0
      %v2803 = vmax.f32 %v2771, 0.0
      %v2804 = vmax.f32 %v2772, 0.0
      %v2805 = vmax.f32 %v2773, 0.0
      %v2806 = vmax.f32 %v2774, 0.0
      %v2807 = vmax.f32 %v2775, 0.0
      %v2808 = vmax.f32 %v2776, 0.0
      %v2809 = vmax.f32 %v2777, 0.0
      %2810 = vst.msk [vmem:[%s529] sm:$0xff] %vm1649, %v2778
      %2811 = vst.msk [vmem:[%s529 + $0x8] sm:$0xff] %vm1649, %v2779
      %2812 = vst.msk [vmem:[%s529 + $0x10] sm:$0xff] %vm1649, %v2780
      %2813 = vst.msk [vmem:[%s529 + $0x18] sm:$0xff] %vm1649, %v2781
      %2814 = vst.msk [vmem:[%s529 + $0x20] sm:$0xff] %vm1649, %v2782
      %2815 = vst.msk [vmem:[%s529 + $0x28] sm:$0xff] %vm1649, %v2783
      %2816 = vst.msk [vmem:[%s529 + $0x30] sm:$0xff] %vm1649, %v2784
      %2817 = vst.msk [vmem:[%s529 + $0x38] sm:$0xff] %vm1649, %v2785
      %2818 = vst.msk [vmem:[%s529 + $0x40] sm:$0xff] %vm1649, %v2786
      %2819 = vst.msk [vmem:[%s529 + $0x48] sm:$0xff] %vm1649, %v2787
      %2820 = vst.msk [vmem:[%s529 + $0x50] sm:$0xff] %vm1649, %v2788
      %2821 = vst.msk [vmem:[%s529 + $0x58] sm:$0xff] %vm1649, %v2789
      %2822 = vst.msk [vmem:[%s529 + $0x60] sm:$0xff] %vm1649, %v2790
      %2823 = vst.msk [vmem:[%s529 + $0x68] sm:$0xff] %vm1649, %v2791
      %2824 = vst.msk [vmem:[%s529 + $0x70] sm:$0xff] %vm1649, %v2792
      %2825 = vst.msk [vmem:[%s529 + $0x78] sm:$0xff] %vm1649, %v2793
      %2826 = vst.msk [vmem:[%s529 + $0x80] sm:$0xff] %vm1649, %v2794
      %2827 = vst.msk [vmem:[%s529 + $0x88] sm:$0xff] %vm1649, %v2795
      %2828 = vst.msk [vmem:[%s529 + $0x90] sm:$0xff] %vm1649, %v2796
      %2829 = vst.msk [vmem:[%s529 + $0x98] sm:$0xff] %vm1649, %v2797
      %2830 = vst.msk [vmem:[%s529 + $0xa0] sm:$0xff] %vm1649, %v2798
      %2831 = vst.msk [vmem:[%s529 + $0xa8] sm:$0xff] %vm1649, %v2799
      %2832 = vst.msk [vmem:[%s529 + $0xb0] sm:$0xff] %vm1649, %v2800
      %2833 = vst.msk [vmem:[%s529 + $0xb8] sm:$0xff] %vm1649, %v2801
      %2834 = vst.msk [vmem:[%s529 + $0xc0] sm:$0xff] %vm1649, %v2802
      %2835 = vst.msk [vmem:[%s529 + $0xc8] sm:$0xff] %vm1649, %v2803
      %2836 = vst.msk [vmem:[%s529 + $0xd0] sm:$0xff] %vm1649, %v2804
      %2837 = vst.msk [vmem:[%s529 + $0xd8] sm:$0xff] %vm1649, %v2805
      %2838 = vst.msk [vmem:[%s529 + $0xe0] sm:$0xff] %vm1649, %v2806
      %2839 = vst.msk [vmem:[%s529 + $0xe8] sm:$0xff] %vm1649, %v2807
      %2840 = vst.msk [vmem:[%s529 + $0xf0] sm:$0xff] %vm1649, %v2808
      %2841 = vst.msk [vmem:[%s529 + $0xf8] sm:$0xff] %vm1649, %v2809
      %v2842 = vpack.c.bf16 %v2779, %v2778
      %v2843 = vpack.c.bf16 %v2781, %v2780
      %v2844 = vpack.c.bf16 %v2783, %v2782
      %v2845 = vpack.c.bf16 %v2785, %v2784
      %v2846 = vpack.c.bf16 %v2787, %v2786
      %v2847 = vpack.c.bf16 %v2789, %v2788
      %v2848 = vpack.c.bf16 %v2791, %v2790
      %v2849 = vpack.c.bf16 %v2793, %v2792
      %v2850 = vpack.c.bf16 %v2795, %v2794
      %v2851 = vpack.c.bf16 %v2797, %v2796
      %v2852 = vpack.c.bf16 %v2799, %v2798
      %v2853 = vpack.c.bf16 %v2801, %v2800
      %v2854 = vpack.c.bf16 %v2803, %v2802
      %v2855 = vpack.c.bf16 %v2805, %v2804
      %v2856 = vpack.c.bf16 %v2807, %v2806
      %v2857 = vpack.c.bf16 %v2809, %v2808
      %v2859 = vperm.slane %v1996, 0
      %v2864 = vunpack.c.l.b16 %v1993
      %v2865 = vunpack.c.l.b16 %v1994
      %v2866 = vunpack.c.l.b16 %v1995
      %v2867 = vpack.c.b16 %v2865, %v2864
      %v2868 = vpack.c.b16 %v2866, %v2866
      %v2871 = vsel %vm1649, %v2842, 0
      %v2874 = vsel %vm1649, %v2843, 0
      %v2877 = vsel %vm1649, %v2844, 0
      %v2880 = vsel %vm1649, %v2845, 0
      %v2883 = vsel %vm1649, %v2846, 0
      %v2886 = vsel %vm1649, %v2847, 0
      %v2889 = vsel %vm1649, %v2848, 0
      %v2892 = vsel %vm1649, %v2849, 0
      %v2895 = vsel %vm1649, %v2850, 0
      %v2898 = vsel %vm1649, %v2851, 0
      %v2901 = vsel %vm1649, %v2852, 0
      %v2904 = vsel %vm1649, %v2853, 0
      %v2907 = vsel %vm1649, %v2854, 0
      %v2910 = vsel %vm1649, %v2855, 0
      %v2913 = vsel %vm1649, %v2856, 0
      %v2916 = vsel %vm1649, %v2857, 0
      %v2919 = vsel %vm1698, %v2868, 0
      %2921 = vmatpush.bf16.msra.mxu0 0
      %2922 = vmatpush.bf16.msra.mxu0 0
      %2923 = vmatpush.bf16.msra.mxu0 0
      %2924 = vmatpush.bf16.msra.mxu0 0
      %2925 = vmatpush.bf16.msra.mxu0 0
      %2926 = vmatpush.bf16.msra.mxu0 0
      %2927 = vmatpush.bf16.msra.mxu0 %v2919
      %2928 = vmatpush.bf16.msra.mxu0 %v2867
      %2929 = vmatmul.bf16.gmra.mxu0 %v2871
      %v2930 = vpop.f32.mrf.mxu0
      %v2931 = vadd.f32 %v2859, %v2930
      %v2932 = vpop.f32.mrf.mxu0
      %v2933 = vadd.f32 %v2859, %v2932
      %2934 = vmatmul.bf16.gmra.mxu0 %v2874
      %v2935 = vpop.f32.mrf.mxu0
      %v2936 = vadd.f32 %v2859, %v2935
      %v2937 = vpop.f32.mrf.mxu0
      %v2938 = vadd.f32 %v2859, %v2937
      %2939 = vmatmul.bf16.gmra.mxu0 %v2877
      %v2940 = vpop.f32.mrf.mxu0
      %v2941 = vadd.f32 %v2859, %v2940
      %v2942 = vpop.f32.mrf.mxu0
      %v2943 = vadd.f32 %v2859, %v2942
      %2944 = vmatmul.bf16.gmra.mxu0 %v2880
      %v2945 = vpop.f32.mrf.mxu0
      %v2946 = vadd.f32 %v2859, %v2945
      %v2947 = vpop.f32.mrf.mxu0
      %v2948 = vadd.f32 %v2859, %v2947
      %2949 = vmatmul.bf16.gmra.mxu0 %v2883
      %v2950 = vpop.f32.mrf.mxu0
      %v2951 = vadd.f32 %v2859, %v2950
      %v2952 = vpop.f32.mrf.mxu0
      %v2953 = vadd.f32 %v2859, %v2952
      %2954 = vmatmul.bf16.gmra.mxu0 %v2886
      %v2955 = vpop.f32.mrf.mxu0
      %v2956 = vadd.f32 %v2859, %v2955
      %v2957 = vpop.f32.mrf.mxu0
      %v2958 = vadd.f32 %v2859, %v2957
      %2959 = vmatmul.bf16.gmra.mxu0 %v2889
      %v2960 = vpop.f32.mrf.mxu0
      %v2961 = vadd.f32 %v2859, %v2960
      %v2962 = vpop.f32.mrf.mxu0
      %v2963 = vadd.f32 %v2859, %v2962
      %2964 = vmatmul.bf16.gmra.mxu0 %v2892
      %v2965 = vpop.f32.mrf.mxu0
      %v2966 = vadd.f32 %v2859, %v2965
      %v2967 = vpop.f32.mrf.mxu0
      %v2968 = vadd.f32 %v2859, %v2967
      %2969 = vmatmul.bf16.gmra.mxu0 %v2895
      %v2970 = vpop.f32.mrf.mxu0
      %v2971 = vadd.f32 %v2859, %v2970
      %v2972 = vpop.f32.mrf.mxu0
      %v2973 = vadd.f32 %v2859, %v2972
      %2974 = vmatmul.bf16.gmra.mxu0 %v2898
      %v2975 = vpop.f32.mrf.mxu0
      %v2976 = vadd.f32 %v2859, %v2975
      %v2977 = vpop.f32.mrf.mxu0
      %v2978 = vadd.f32 %v2859, %v2977
      %2979 = vmatmul.bf16.gmra.mxu0 %v2901
      %v2980 = vpop.f32.mrf.mxu0
      %v2981 = vadd.f32 %v2859, %v2980
      %v2982 = vpop.f32.mrf.mxu0
      %v2983 = vadd.f32 %v2859, %v2982
      %2984 = vmatmul.bf16.gmra.mxu0 %v2904
      %v2985 = vpop.f32.mrf.mxu0
      %v2986 = vadd.f32 %v2859, %v2985
      %v2987 = vpop.f32.mrf.mxu0
      %v2988 = vadd.f32 %v2859, %v2987
      %2989 = vmatmul.bf16.gmra.mxu0 %v2907
      %v2990 = vpop.f32.mrf.mxu0
      %v2991 = vadd.f32 %v2859, %v2990
      %v2992 = vpop.f32.mrf.mxu0
      %v2993 = vadd.f32 %v2859, %v2992
      %2994 = vmatmul.bf16.gmra.mxu0 %v2910
      %v2995 = vpop.f32.mrf.mxu0
      %v2996 = vadd.f32 %v2859, %v2995
      %v2997 = vpop.f32.mrf.mxu0
      %v2998 = vadd.f32 %v2859, %v2997
      %2999 = vmatmul.bf16.gmra.mxu0 %v2913
      %v3000 = vpop.f32.mrf.mxu0
      %v3001 = vadd.f32 %v2859, %v3000
      %v3002 = vpop.f32.mrf.mxu0
      %v3003 = vadd.f32 %v2859, %v3002
      %3004 = vmatmul.bf16.gmra.mxu0 %v2916
      %v3005 = vpop.f32.mrf.mxu0
      %v3006 = vadd.f32 %v2859, %v3005
      %v3007 = vpop.f32.mrf.mxu0
      %v3008 = vadd.f32 %v2859, %v3007
      %3009 = vdwg.mxu0
      %v3010 = vmax.f32 %v2931, 0.0
      %v3011 = vmax.f32 %v2933, 0.0
      %v3012 = vmax.f32 %v2936, 0.0
      %v3013 = vmax.f32 %v2938, 0.0
      %v3014 = vmax.f32 %v2941, 0.0
      %v3015 = vmax.f32 %v2943, 0.0
      %v3016 = vmax.f32 %v2946, 0.0
      %v3017 = vmax.f32 %v2948, 0.0
      %v3018 = vmax.f32 %v2951, 0.0
      %v3019 = vmax.f32 %v2953, 0.0
      %v3020 = vmax.f32 %v2956, 0.0
      %v3021 = vmax.f32 %v2958, 0.0
      %v3022 = vmax.f32 %v2961, 0.0
      %v3023 = vmax.f32 %v2963, 0.0
      %v3024 = vmax.f32 %v2966, 0.0
      %v3025 = vmax.f32 %v2968, 0.0
      %v3026 = vmax.f32 %v2971, 0.0
      %v3027 = vmax.f32 %v2973, 0.0
      %v3028 = vmax.f32 %v2976, 0.0
      %v3029 = vmax.f32 %v2978, 0.0
      %v3030 = vmax.f32 %v2981, 0.0
      %v3031 = vmax.f32 %v2983, 0.0
      %v3032 = vmax.f32 %v2986, 0.0
      %v3033 = vmax.f32 %v2988, 0.0
      %v3034 = vmax.f32 %v2991, 0.0
      %v3035 = vmax.f32 %v2993, 0.0
      %v3036 = vmax.f32 %v2996, 0.0
      %v3037 = vmax.f32 %v2998, 0.0
      %v3038 = vmax.f32 %v3001, 0.0
      %v3039 = vmax.f32 %v3003, 0.0
      %v3040 = vmax.f32 %v3006, 0.0
      %v3041 = vmax.f32 %v3008, 0.0
      %v3042 = vpack.c.bf16 %v3010, %v3010
      %v3043 = vpack.c.bf16 %v3011, %v3011
      %v3044 = vpack.c.bf16 %v3012, %v3012
      %v3045 = vpack.c.bf16 %v3013, %v3013
      %v3046 = vpack.c.bf16 %v3014, %v3014
      %v3047 = vpack.c.bf16 %v3015, %v3015
      %v3048 = vpack.c.bf16 %v3016, %v3016
      %v3049 = vpack.c.bf16 %v3017, %v3017
      %v3050 = vpack.c.bf16 %v3018, %v3018
      %v3051 = vpack.c.bf16 %v3019, %v3019
      %v3052 = vpack.c.bf16 %v3020, %v3020
      %v3053 = vpack.c.bf16 %v3021, %v3021
      %v3054 = vpack.c.bf16 %v3022, %v3022
      %v3055 = vpack.c.bf16 %v3023, %v3023
      %v3056 = vpack.c.bf16 %v3024, %v3024
      %v3057 = vpack.c.bf16 %v3025, %v3025
      %v3058 = vpack.c.bf16 %v3026, %v3026
      %v3059 = vpack.c.bf16 %v3027, %v3027
      %v3060 = vpack.c.bf16 %v3028, %v3028
      %v3061 = vpack.c.bf16 %v3029, %v3029
      %v3062 = vpack.c.bf16 %v3030, %v3030
      %v3063 = vpack.c.bf16 %v3031, %v3031
      %v3064 = vpack.c.bf16 %v3032, %v3032
      %v3065 = vpack.c.bf16 %v3033, %v3033
      %v3066 = vpack.c.bf16 %v3034, %v3034
      %v3067 = vpack.c.bf16 %v3035, %v3035
      %v3068 = vpack.c.bf16 %v3036, %v3036
      %v3069 = vpack.c.bf16 %v3037, %v3037
      %v3070 = vpack.c.bf16 %v3038, %v3038
      %v3071 = vpack.c.bf16 %v3039, %v3039
      %v3072 = vpack.c.bf16 %v3040, %v3040
      %v3073 = vpack.c.bf16 %v3041, %v3041
      %vm3074 = vcmask 93184
      %3075 = vst.msk [vmem:[%s535] sm:$0xf] %vm3074, %v3042
      %3076 = vst.msk [vmem:[%s535 + $0x4] sm:$0xf] %vm3074, %v3043
      %3077 = vst.msk [vmem:[%s535 + $0x8] sm:$0xf] %vm3074, %v3044
      %3078 = vst.msk [vmem:[%s535 + $0xc] sm:$0xf] %vm3074, %v3045
      %3079 = vst.msk [vmem:[%s535 + $0x10] sm:$0xf] %vm3074, %v3046
      %3080 = vst.msk [vmem:[%s535 + $0x14] sm:$0xf] %vm3074, %v3047
      %3081 = vst.msk [vmem:[%s535 + $0x18] sm:$0xf] %vm3074, %v3048
      %3082 = vst.msk [vmem:[%s535 + $0x1c] sm:$0xf] %vm3074, %v3049
      %3083 = vst.msk [vmem:[%s535 + $0x20] sm:$0xf] %vm3074, %v3050
      %3084 = vst.msk [vmem:[%s535 + $0x24] sm:$0xf] %vm3074, %v3051
      %3085 = vst.msk [vmem:[%s535 + $0x28] sm:$0xf] %vm3074, %v3052
      %3086 = vst.msk [vmem:[%s535 + $0x2c] sm:$0xf] %vm3074, %v3053
      %3087 = vst.msk [vmem:[%s535 + $0x30] sm:$0xf] %vm3074, %v3054
      %3088 = vst.msk [vmem:[%s535 + $0x34] sm:$0xf] %vm3074, %v3055
      %3089 = vst.msk [vmem:[%s535 + $0x38] sm:$0xf] %vm3074, %v3056
      %3090 = vst.msk [vmem:[%s535 + $0x3c] sm:$0xf] %vm3074, %v3057
      %3091 = vst.msk [vmem:[%s535 + $0x40] sm:$0xf] %vm3074, %v3058
      %3092 = vst.msk [vmem:[%s535 + $0x44] sm:$0xf] %vm3074, %v3059
      %3093 = vst.msk [vmem:[%s535 + $0x48] sm:$0xf] %vm3074, %v3060
      %3094 = vst.msk [vmem:[%s535 + $0x4c] sm:$0xf] %vm3074, %v3061
      %3095 = vst.msk [vmem:[%s535 + $0x50] sm:$0xf] %vm3074, %v3062
      %3096 = vst.msk [vmem:[%s535 + $0x54] sm:$0xf] %vm3074, %v3063
      %3097 = vst.msk [vmem:[%s535 + $0x58] sm:$0xf] %vm3074, %v3064
      %3098 = vst.msk [vmem:[%s535 + $0x5c] sm:$0xf] %vm3074, %v3065
      %3099 = vst.msk [vmem:[%s535 + $0x60] sm:$0xf] %vm3074, %v3066
      %3100 = vst.msk [vmem:[%s535 + $0x64] sm:$0xf] %vm3074, %v3067
      %3101 = vst.msk [vmem:[%s535 + $0x68] sm:$0xf] %vm3074, %v3068
      %3102 = vst.msk [vmem:[%s535 + $0x6c] sm:$0xf] %vm3074, %v3069
      %3103 = vst.msk [vmem:[%s535 + $0x70] sm:$0xf] %vm3074, %v3070
      %3104 = vst.msk [vmem:[%s535 + $0x74] sm:$0xf] %vm3074, %v3071
      %3105 = vst.msk [vmem:[%s535 + $0x78] sm:$0xf] %vm3074, %v3072
      %3106 = vst.msk [vmem:[%s535 + $0x7c] sm:$0xf] %vm3074, %v3073
      %s3107 = smul.u32 32, %s27
      %p3108 = scmp.lt.s32.totalorder %s3107, 63
      %s3109 = scalar_select %p3108, %s3107, 63
      %s3110 = smul.addr %s3109, 8
      %s3111 = scalar_lea.vmem %s14, %s3110
      %s3112 = smul.u32 32, %s27
      %p3113 = scmp.lt.s32.totalorder %s3112, 63
      %s3114 = scalar_select %p3113, %s3112, 63
      %s3115 = smul.addr %s3114, 4
      %s3116 = scalar_lea.vmem %s15, %s3115
      // Predicated region
      $region77: #{_lambda_.4} parent=75 // pred_check
        %p3117 = pneg %p349
      $region78: #{_lambda_.4} parent=75 // pred_check_branch
        %3119 = sbr.rel (%p3117) target = $region80
      $region79: #{_lambda_.4} parent=75 // pred_region
        %s3120 = smul.u32 32, %s27
      $region80: #{_lambda_.4} parent=75 // pred_fallthru
        _
      // Predicated region
      $region81: #{_lambda_.4} parent=75 // pred_check
        %p3121 = pneg %p375
      $region82: #{_lambda_.4} parent=75 // pred_check_branch
        %3123 = sbr.rel (%p3121) target = $region84
      $region83: #{_lambda_.4} parent=75 // pred_region
        %s3124 = smul.u32 32, %s27
      $region84: #{_lambda_.4} parent=75 // pred_fallthru
        _
    $region76: #{_lambda_.4} parent=5 // pred_fallthru
      _
    %p3125 = scmp.le.s32.totalorder 2, %s22
    // Predicated region
    $region85: #{_lambda_.4} parent=5 // pred_check
      %p3126 = pneg %p3125
    $region86: #{_lambda_.4} parent=5 // pred_check_branch
      %3128 = sbr.rel (%p3126) target = $region88
    $region87: #{_lambda_.4} parent=5 // pred_region
      %s3129 = ssub.s32 %s22, 2
      // Predicated region
      $region89: #{_lambda_.4} parent=87 // pred_check
        %p3130 = pneg %p355
      $region90: #{_lambda_.4} parent=87 // pred_check_branch
        %3132 = sbr.rel (%p3130) target = $region92
      $region91: #{_lambda_.4} parent=87 // pred_region
        %s3133 = smul.u32 32, %s28
        %p3134 = scmp.lt.s32.totalorder %s3133, 63
        %s3135 = scalar_select %p3134, %s3133, 63
        %s3136 = smul.addr %s3135, 8
        %s3137 = scalar_lea.vmem %s14, %s3136
      $region92: #{_lambda_.4} parent=87 // pred_fallthru
        _
      // Predicated region
      $region93: #{_lambda_.4} parent=87 // pred_check
        %p3138 = pneg %p381
      $region94: #{_lambda_.4} parent=87 // pred_check_branch
        %3140 = sbr.rel (%p3138) target = $region96
      $region95: #{_lambda_.4} parent=87 // pred_region
        %s3141 = smul.u32 32, %s28
        %p3142 = scmp.lt.s32.totalorder %s3141, 63
        %s3143 = scalar_select %p3142, %s3141, 63
        %s3144 = smul.addr %s3143, 4
        %s3145 = scalar_lea.vmem %s15, %s3144
      $region96: #{_lambda_.4} parent=87 // pred_fallthru
        _
    $region88: #{_lambda_.4} parent=5 // pred_fallthru
      _
  $region6: #{_lambda_.4} parent=0 // loop_footer
    %s26 = sadd.s32 1, %s22
  $region7: #{_lambda_.4} parent=0 // loop_footer_branch
    %21 = sbr.rel target = $region3
  $region8: #{_lambda_.4} parent=0 // loop_exit
    _

</llo_original>
